<compile_context>
chip_gen: v7x
topology: tpu7x:2x2x1
jax: 0.10.0
libtpu: 0.0.40
codegen_flags: <defaults>
</compile_context>

<pallas_src>
import functools

import jax
import jax.numpy as jnp
from jax.experimental import pallas as pl
from jax.experimental.pallas import tpu as pltpu


def _ceil_to(x, m):
    return ((x + m - 1) // m) * m


def _is_pow2(x):
    return x > 0 and (x & (x - 1)) == 0


# ---------------------------------------------------------------------------
# Parameter initialization (deterministic, synthetic)
# ---------------------------------------------------------------------------
def _init_conv(key, ci, co, k):
    wkey, bkey = jax.random.split(key)
    w = jax.random.normal(wkey, (co, ci, k), jnp.float32) / jnp.sqrt(float(ci * k))
    b = jax.random.normal(bkey, (co,), jnp.float32) * 0.01
    return w, b


def _init_conv_bn(key, ci, co, k):
    w, b = _init_conv(key, ci, co, k)
    return {"w": w, "b": b,
            "g": jnp.ones((co,), jnp.float32),
            "beta": jnp.zeros((co,), jnp.float32)}


def init_utime_params(key, *, in_channels, n_classes, init_filters, depth,
                      kernel_size, up_kernel_sizes):
    counter = [0]

    def nk():
        counter[0] += 1
        return jax.random.fold_in(key, counter[0])

    params = {}
    params["input"] = {
        "c1": _init_conv_bn(nk(), in_channels, init_filters, kernel_size),
        "c2": _init_conv_bn(nk(), init_filters, init_filters, kernel_size),
    }
    filters = init_filters
    enc = []
    for _ in range(depth):
        nxt = filters * 2
        enc.append({"c1": _init_conv_bn(nk(), filters, nxt, kernel_size),
                    "c2": _init_conv_bn(nk(), nxt, nxt, kernel_size)})
        filters = nxt
    params["enc"] = enc
    params["bottom"] = {
        "c1": _init_conv_bn(nk(), filters, filters, kernel_size),
        "c2": _init_conv_bn(nk(), filters, filters, kernel_size),
    }
    dec = []
    for i in range(depth):
        idx = depth - i - 1
        skip_f = init_filters * (2 ** idx)
        in_f = filters
        out_f = filters // 2
        dec.append({
            "up": _init_conv_bn(nk(), in_f, out_f, up_kernel_sizes[i]),
            "c1": _init_conv_bn(nk(), out_f + skip_f, out_f, kernel_size),
            "c2": _init_conv_bn(nk(), out_f, out_f, kernel_size),
        })
        filters = out_f
    params["dec"] = dec
    w, b = _init_conv(nk(), filters, n_classes, 1)
    params["out"] = {"w": w, "b": b}
    return params


# ---------------------------------------------------------------------------
# Static execution "program" + packed parameter arrays for the fused kernel
# ---------------------------------------------------------------------------
def _collect(params, *, depth, dilation, pool_sizes, L0):
    convs = []     # per conv: dict(w, p2, dilation, use_bn, relu, L)
    program = []   # ("conv", i) | ("push_skip",) | ("pool", L_in, p)
                   # | ("upsample", L_in, L_out) | ("concat_skip", slot)

    def add_conv(cp, dil, use_bn, relu, L):
        if use_bn:
            # Training-mode BN subtracts the batch mean, which cancels a
            # constant per-channel bias exactly -> conv bias dropped.
            p2 = jnp.stack([cp["g"], cp["beta"]], axis=1)
        else:
            p2 = jnp.stack([cp["b"], jnp.zeros_like(cp["b"])], axis=1)
        convs.append(dict(w=cp["w"], p2=p2, dilation=dil,
                          use_bn=use_bn, relu=relu, L=L))
        program.append(("conv", len(convs) - 1))

    L = L0
    add_conv(params["input"]["c1"], dilation, True, True, L)
    add_conv(params["input"]["c2"], dilation, True, True, L)
    program.append(("push_skip",))
    skip_Ls = [L]
    for i in range(depth):
        add_conv(params["enc"][i]["c1"], dilation, True, True, L)
        add_conv(params["enc"][i]["c2"], dilation, True, True, L)
        program.append(("push_skip",))
        skip_Ls.append(L)
        program.append(("pool", L, pool_sizes[i]))
        L = L // pool_sizes[i]
    add_conv(params["bottom"]["c1"], dilation, True, True, L)
    add_conv(params["bottom"]["c2"], dilation, True, True, L)
    n_skips = depth + 1
    for i in range(depth):
        slot = n_skips - i - 2                       # == PyTorch skip indexing
        L_skip = skip_Ls[slot]
        program.append(("upsample", L, L_skip))
        L = L_skip
        dp = params["dec"][i]
        add_conv(dp["up"], 1, True, True, L)
        program.append(("concat_skip", slot))
        add_conv(dp["c1"], 1, True, True, L)
        add_conv(dp["c2"], 1, True, True, L)
    add_conv(params["out"], 1, False, False, L)       # 1x1 head: bias, no BN
    return convs, program, L


def _pack(convs):
    # Common padded contraction width (>=128, multiple of 128 = MXU granule on
    # v5e; also fine on v6e/v7x).
    kci_max = max(_ceil_to(c["w"].shape[1], 8) * c["w"].shape[2] for c in convs)
    KCI = _ceil_to(max(kci_max, 128), 128)
    w_blocks, p_blocks, metas = [], [], []
    off = 0
    for c in convs:
        w = c["w"].astype(jnp.float32)
        Co, Ci, K = w.shape
        Ci_pad = _ceil_to(Ci, 8)                      # sublane-aligned tap block
        Co_pad = _ceil_to(Co, 8)                      # 8-aligned output rows
        w_kc = jnp.transpose(w, (0, 2, 1))            # (Co, K, Ci) k-major cols
        w_kc = jnp.pad(w_kc, ((0, Co_pad - Co), (0, 0), (0, Ci_pad - Ci)))
        w_flat = w_kc.reshape(Co_pad, K * Ci_pad)
        w_flat = jnp.pad(w_flat, ((0, 0), (0, KCI - K * Ci_pad)))
        p2 = jnp.pad(c["p2"].astype(jnp.float32), ((0, Co_pad - Co), (0, 0)))
        w_blocks.append(w_flat)
        p_blocks.append(p2)
        metas.append(dict(off=off, Co=Co, Co_pad=Co_pad, Ci=Ci, Ci_pad=Ci_pad,
                          K=K, dilation=c["dilation"], use_bn=c["use_bn"],
                          relu=c["relu"], L=c["L"]))
        off += Co_pad
    return (jnp.concatenate(w_blocks, axis=0),
            jnp.concatenate(p_blocks, axis=0), metas, KCI)


# ---------------------------------------------------------------------------
# The single fused kernel
# ---------------------------------------------------------------------------
def _make_utime_kernel(metas, program, *, B, KCI, eps):
    def kernel(x_ref, w_ref, p_ref, o_ref):
        memo = {}

        def idiv(x, d):
            if _is_pow2(d):
                return jnp.right_shift(x, int(d).bit_length() - 1)
            return x // d   # TODO(synk): only hit for non-power-of-two configs

        def imod(x, d):
            if _is_pow2(d):
                return jnp.bitwise_and(x, d - 1)
            return x % d

        def one_hot(cond):
            return jnp.where(cond, jnp.float32(1.0), jnp.float32(0.0))

        def band_matrix(L, s):
            """(B*L, B*L) 0/1 matrix: (h @ T)[c, j] = h[c, j+s] if j+s lies in
            the same batch window, else 0 ('same' conv zero padding)."""
            key = ("band", L, s)
            if key not in memo:
                n = B * L
                r = jax.lax.broadcasted_iota(jnp.int32, (n, n), 0)
                c = jax.lax.broadcasted_iota(jnp.int32, (n, n), 1)
                memo[key] = one_hot((r == c + s) & (idiv(r, L) == idiv(c, L)))
            return memo[key]

        def pool_matrices(L_in, p):
            """p selection matrices (B*L_in, B*Lo): the k-th gathers source
            position o*p + k for output position o (MaxPool window tap k)."""
            key = ("pool", L_in, p)
            if key not in memo:
                Lo = L_in // p
                n_in, n_out = B * L_in, B * Lo
                r = jax.lax.broadcasted_iota(jnp.int32, (n_in, n_out), 0)
                c = jax.lax.broadcasted_iota(jnp.int32, (n_in, n_out), 1)
                base = idiv(c, Lo) * L_in + imod(c, Lo) * p
                memo[key] = [one_hot(r == base + k) for k in range(p)]
            return memo[key]

        def up_matrix(L_in, L_out):
            """(B*L_in, B*L_out) nearest-neighbor gather matrix
            (src = floor(dst * L_in / L_out), per batch window)."""
            key = ("up", L_in, L_out)
            if key not in memo:
                n_in, n_out = B * L_in, B * L_out
                r = jax.lax.broadcasted_iota(jnp.int32, (n_in, n_out), 0)
                c = jax.lax.broadcasted_iota(jnp.int32, (n_in, n_out), 1)
                src = idiv(c, L_out) * L_in + idiv(imod(c, L_out) * L_in, L_out)
                memo[key] = one_hot(r == src)
            return memo[key]

        def conv_stage(h, m):
            L = m["L"]
            BL = B * L
            Ci, Ci_pad, Co, Co_pad = m["Ci"], m["Ci_pad"], m["Co"], m["Co_pad"]
            K, d = m["K"], m["dilation"]
            assert h.shape == (Ci, BL), (h.shape, m)
            if Ci_pad > Ci:                       # sublane-aligned tap blocks
                h = jnp.concatenate(
                    [h, jnp.zeros((Ci_pad - Ci, BL), jnp.float32)], axis=0)
            left = (d * (K - 1)) // 2             # torch padding='same'
            cols = []
            for k in range(K):
                s = k * d - left
                if abs(s) >= L:                   # tap entirely in the padding
                    cols.append(jnp.zeros((Ci_pad, BL), jnp.float32))
                elif s == 0:
                    cols.append(h)
                else:
                    cols.append(jnp.dot(h, band_matrix(L, s),
                                        preferred_element_type=jnp.float32))
            if K * Ci_pad < KCI:                  # pad contraction dim to 128k
                cols.append(jnp.zeros((KCI - K * Ci_pad, BL), jnp.float32))
            xcol = cols[0] if len(cols) == 1 else jnp.concatenate(cols, axis=0)

            wv = w_ref[m["off"]:m["off"] + Co_pad, :]        # (Co_pad, KCI)
            acc = jnp.dot(wv, xcol, preferred_element_type=jnp.float32)
            acc = acc[:Co, :]                                 # (Co, BL) f32
            pv = p_ref[m["off"]:m["off"] + Co_pad, :]
            if m["use_bn"]:
                # One-pass training-mode BN (batch mean / biased variance);
                # the two lane reductions are independent (overlap on XLUs).
                inv_n = jnp.float32(1.0 / BL)
                s1 = jnp.sum(acc, axis=1, keepdims=True)
                s2 = jnp.sum(acc * acc, axis=1, keepdims=True)
                mean = s1 * inv_n
                var = jnp.maximum(s2 * inv_n - mean * mean, 0.0)
                scale = jax.lax.rsqrt(var + jnp.float32(eps)) * pv[:Co, 0:1]
                acc = (acc - mean) * scale + pv[:Co, 1:2]
            else:
                acc = acc + pv[:Co, 0:1]                      # bias (no BN)
            if m["relu"]:
                acc = jnp.maximum(acc, 0.0)
            return acc

        h = x_ref[...].astype(jnp.float32)
        skips = []
        for op in program:
            if op[0] == "conv":
                h = conv_stage(h, metas[op[1]])
            elif op[0] == "push_skip":
                skips.append(h)
            elif op[0] == "pool":
                _, L_in, p = op
                taps = [jnp.dot(h, mk, preferred_element_type=jnp.float32)
                        for mk in pool_matrices(L_in, p)]
                h = functools.reduce(jnp.maximum, taps)
            elif op[0] == "upsample":
                _, L_in, L_out = op
                if L_out != L_in:
                    h = jnp.dot(h, up_matrix(L_in, L_out),
                                preferred_element_type=jnp.float32)
            elif op[0] == "concat_skip":
                h = jnp.concatenate([h, skips[op[1]]], axis=0)
            else:
                raise ValueError(op)
        assert h.shape == o_ref.shape, (h.shape, o_ref.shape)
        o_ref[...] = h.astype(o_ref.dtype)

    return kernel


# ---------------------------------------------------------------------------
# Builder: packs parameters ONCE (eagerly) and returns forward(x)
# ---------------------------------------------------------------------------
def build_utime_forward(params, *, depth, dilation, pool_sizes, B, L,
                        eps=1e-5, vmem_limit_bytes=32 * 1024 * 1024):
    convs, program, L_final = _collect(params, depth=depth, dilation=dilation,
                                       pool_sizes=pool_sizes, L0=L)
    W_all, P_all, metas, KCI = _pack(convs)
    n_classes = params["out"]["w"].shape[0]
    Cin = params["input"]["c1"]["w"].shape[1]
    R = W_all.shape[0]
    BL_in, BL_fin = B * L, B * L_final

    kernel = _make_utime_kernel(metas, program, B=B, KCI=KCI, eps=eps)
    call = pl.pallas_call(
        kernel,
        out_shape=jax.ShapeDtypeStruct((n_classes, BL_fin), jnp.float32),
        grid=(1,),
        in_specs=[pl.BlockSpec((Cin, BL_in), lambda i: (0, 0)),
                  pl.BlockSpec((R, KCI), lambda i: (0, 0)),
                  pl.BlockSpec((R, 2), lambda i: (0, 0))],
        out_specs=pl.BlockSpec((n_classes, BL_fin), lambda i: (0, 0)),
        compiler_params=pltpu.CompilerParams(
            dimension_semantics=("arbitrary",),
            vmem_limit_bytes=vmem_limit_bytes),
    )

    def forward(x):
        assert x.shape == (B, Cin, L), x.shape
        # Channel-major (C, B*L): channels on sublanes, batch*length on lanes
        # (lane-dense 128 at full resolution for the demo shapes).
        h = jnp.transpose(x, (1, 0, 2)).reshape(Cin, BL_in).astype(jnp.float32)
        out = call(h, W_all, P_all)
        return jnp.transpose(out.reshape(n_classes, B, L_final), (1, 0, 2))

    return forward


# ---------------------------------------------------------------------------
# Demo
# ---------------------------------------------------------------------------
if __name__ == "__main__":
    # Small UTime config (valid constructor arguments of the reference module).
    in_channels = 2
    n_classes = 3
    init_filters = 4
    depth = 2
    kernel_size = 5
    dilation = 9
    pool_sizes = [4, 2]
    up_kernel_sizes = [2, 4]

    B, L = 2, 64   # L divisible by prod(pool_sizes)=8; B*L = 128 (lane-dense)

    key = jax.random.PRNGKey(0)
    params = init_utime_params(
        key, in_channels=in_channels, n_classes=n_classes,
        init_filters=init_filters, depth=depth, kernel_size=kernel_size,
        up_kernel_sizes=up_kernel_sizes)

    x = jax.random.normal(jax.random.fold_in(key, 12345),
                          (B, in_channels, L), dtype=jnp.float32)

    fwd = jax.jit(build_utime_forward(
        params, depth=depth, dilation=dilation, pool_sizes=pool_sizes,
        B=B, L=L))

    out = jax.block_until_ready(fwd(x))
    assert out.shape == (B, n_classes, L), out.shape
    assert bool(jnp.all(jnp.isfinite(out)))
    print("KERNEL_OK")
</pallas_src>

<mosaic_0001>
module attributes {stable_mosaic.version = 11 : i64} {
  func.func @kernel(%arg0: i32, %arg1: memref<2x128xf32, #tpu.memory_space<vmem>>, %arg2: memref<152x128xf32, #tpu.memory_space<vmem>>, %arg3: memref<152x2xf32, #tpu.memory_space<vmem>>, %arg4: memref<3x128xf32, #tpu.memory_space<vmem>>) attributes {dimension_semantics = [#tpu.dimension_semantics<arbitrary>], iteration_bounds = array<i64: 1>, scalar_prefetch = 0 : i64, scratch_operands = 0 : i64, tpu.core_type = #tpu.core_type<tc>, window_params = [{pipeline_mode = #tpu.pipeline_mode<synchronous>, transform_indices = @transform_0, window_bounds = array<i64: 2, 128>}, {pipeline_mode = #tpu.pipeline_mode<synchronous>, transform_indices = @transform_1, window_bounds = array<i64: 152, 128>}, {pipeline_mode = #tpu.pipeline_mode<synchronous>, transform_indices = @transform_2, window_bounds = array<i64: 152, 2>}, {pipeline_mode = #tpu.pipeline_mode<synchronous>, transform_indices = @transform_3, window_bounds = array<i64: 3, 128>}]} {
    %c0 = arith.constant 0 : index
    %c0_0 = arith.constant 0 : index
    %0 = vector.load %arg1[%c0, %c0_0] : memref<2x128xf32, #tpu.memory_space<vmem>>, vector<2x128xf32>
    %cst = arith.constant 0.000000e+00 : f32
    %1 = vector.broadcast %cst : f32 to vector<6x128xf32>
    %2 = tpu.concatenate %0, %1 in 0 : vector<2x128xf32>, vector<6x128xf32> -> vector<8x128xf32>
    %3 = tpu.iota {dimensions = array<i32: 0>} : vector<128x128xi32>
    %4 = tpu.iota {dimensions = array<i32: 1>} : vector<128x128xi32>
    %c-18_i32 = arith.constant -18 : i32
    %5 = vector.broadcast %c-18_i32 : i32 to vector<128x128xi32>
    %6 = arith.addi %4, %5 : vector<128x128xi32>
    %7 = arith.cmpi eq, %3, %6 : vector<128x128xi32>
    %c6_i32 = arith.constant 6 : i32
    %8 = vector.broadcast %c6_i32 : i32 to vector<128x128xi32>
    %9 = arith.shrsi %3, %8 : vector<128x128xi32>
    %c6_i32_1 = arith.constant 6 : i32
    %10 = vector.broadcast %c6_i32_1 : i32 to vector<128x128xi32>
    %11 = arith.shrsi %4, %10 : vector<128x128xi32>
    %12 = arith.cmpi eq, %9, %11 : vector<128x128xi32>
    %13 = arith.andi %7, %12 : vector<128x128xi1>
    %cst_2 = arith.constant 1.000000e+00 : f32
    %cst_3 = arith.constant 0.000000e+00 : f32
    %14 = vector.broadcast %cst_2 : f32 to vector<128x128xf32>
    %15 = vector.broadcast %cst_3 : f32 to vector<128x128xf32>
    %16 = arith.select %13, %14, %15 : vector<128x128xi1>, vector<128x128xf32>
    %cst_4 = arith.constant dense<0.000000e+00> : vector<8x128xf32>
    %17 = tpu.matmul %2, %16, %cst_4 {dimension_numbers = #tpu.dot_dimension_numbers<[1], [0], [0], [1], [0, 0, 1, 1], [], []>} : vector<8x128xf32>, vector<128x128xf32>, vector<8x128xf32> -> vector<8x128xf32>
    %18 = tpu.iota {dimensions = array<i32: 0>} : vector<128x128xi32>
    %19 = tpu.iota {dimensions = array<i32: 1>} : vector<128x128xi32>
    %c-9_i32 = arith.constant -9 : i32
    %20 = vector.broadcast %c-9_i32 : i32 to vector<128x128xi32>
    %21 = arith.addi %19, %20 : vector<128x128xi32>
    %22 = arith.cmpi eq, %18, %21 : vector<128x128xi32>
    %c6_i32_5 = arith.constant 6 : i32
    %23 = vector.broadcast %c6_i32_5 : i32 to vector<128x128xi32>
    %24 = arith.shrsi %18, %23 : vector<128x128xi32>
    %c6_i32_6 = arith.constant 6 : i32
    %25 = vector.broadcast %c6_i32_6 : i32 to vector<128x128xi32>
    %26 = arith.shrsi %19, %25 : vector<128x128xi32>
    %27 = arith.cmpi eq, %24, %26 : vector<128x128xi32>
    %28 = arith.andi %22, %27 : vector<128x128xi1>
    %cst_7 = arith.constant 1.000000e+00 : f32
    %cst_8 = arith.constant 0.000000e+00 : f32
    %29 = vector.broadcast %cst_7 : f32 to vector<128x128xf32>
    %30 = vector.broadcast %cst_8 : f32 to vector<128x128xf32>
    %31 = arith.select %28, %29, %30 : vector<128x128xi1>, vector<128x128xf32>
    %cst_9 = arith.constant dense<0.000000e+00> : vector<8x128xf32>
    %32 = tpu.matmul %2, %31, %cst_9 {dimension_numbers = #tpu.dot_dimension_numbers<[1], [0], [0], [1], [0, 0, 1, 1], [], []>} : vector<8x128xf32>, vector<128x128xf32>, vector<8x128xf32> -> vector<8x128xf32>
    %33 = tpu.iota {dimensions = array<i32: 0>} : vector<128x128xi32>
    %34 = tpu.iota {dimensions = array<i32: 1>} : vector<128x128xi32>
    %c9_i32 = arith.constant 9 : i32
    %35 = vector.broadcast %c9_i32 : i32 to vector<128x128xi32>
    %36 = arith.addi %34, %35 : vector<128x128xi32>
    %37 = arith.cmpi eq, %33, %36 : vector<128x128xi32>
    %c6_i32_10 = arith.constant 6 : i32
    %38 = vector.broadcast %c6_i32_10 : i32 to vector<128x128xi32>
    %39 = arith.shrsi %33, %38 : vector<128x128xi32>
    %c6_i32_11 = arith.constant 6 : i32
    %40 = vector.broadcast %c6_i32_11 : i32 to vector<128x128xi32>
    %41 = arith.shrsi %34, %40 : vector<128x128xi32>
    %42 = arith.cmpi eq, %39, %41 : vector<128x128xi32>
    %43 = arith.andi %37, %42 : vector<128x128xi1>
    %cst_12 = arith.constant 1.000000e+00 : f32
    %cst_13 = arith.constant 0.000000e+00 : f32
    %44 = vector.broadcast %cst_12 : f32 to vector<128x128xf32>
    %45 = vector.broadcast %cst_13 : f32 to vector<128x128xf32>
    %46 = arith.select %43, %44, %45 : vector<128x128xi1>, vector<128x128xf32>
    %cst_14 = arith.constant dense<0.000000e+00> : vector<8x128xf32>
    %47 = tpu.matmul %2, %46, %cst_14 {dimension_numbers = #tpu.dot_dimension_numbers<[1], [0], [0], [1], [0, 0, 1, 1], [], []>} : vector<8x128xf32>, vector<128x128xf32>, vector<8x128xf32> -> vector<8x128xf32>
    %48 = tpu.iota {dimensions = array<i32: 0>} : vector<128x128xi32>
    %49 = tpu.iota {dimensions = array<i32: 1>} : vector<128x128xi32>
    %c18_i32 = arith.constant 18 : i32
    %50 = vector.broadcast %c18_i32 : i32 to vector<128x128xi32>
    %51 = arith.addi %49, %50 : vector<128x128xi32>
    %52 = arith.cmpi eq, %48, %51 : vector<128x128xi32>
    %c6_i32_15 = arith.constant 6 : i32
    %53 = vector.broadcast %c6_i32_15 : i32 to vector<128x128xi32>
    %54 = arith.shrsi %48, %53 : vector<128x128xi32>
    %c6_i32_16 = arith.constant 6 : i32
    %55 = vector.broadcast %c6_i32_16 : i32 to vector<128x128xi32>
    %56 = arith.shrsi %49, %55 : vector<128x128xi32>
    %57 = arith.cmpi eq, %54, %56 : vector<128x128xi32>
    %58 = arith.andi %52, %57 : vector<128x128xi1>
    %cst_17 = arith.constant 1.000000e+00 : f32
    %cst_18 = arith.constant 0.000000e+00 : f32
    %59 = vector.broadcast %cst_17 : f32 to vector<128x128xf32>
    %60 = vector.broadcast %cst_18 : f32 to vector<128x128xf32>
    %61 = arith.select %58, %59, %60 : vector<128x128xi1>, vector<128x128xf32>
    %cst_19 = arith.constant dense<0.000000e+00> : vector<8x128xf32>
    %62 = tpu.matmul %2, %61, %cst_19 {dimension_numbers = #tpu.dot_dimension_numbers<[1], [0], [0], [1], [0, 0, 1, 1], [], []>} : vector<8x128xf32>, vector<128x128xf32>, vector<8x128xf32> -> vector<8x128xf32>
    %cst_20 = arith.constant 0.000000e+00 : f32
    %63 = vector.broadcast %cst_20 : f32 to vector<88x128xf32>
    %64 = tpu.concatenate %17, %32, %2, %47, %62, %63 in 0 : vector<8x128xf32>, vector<8x128xf32>, vector<8x128xf32>, vector<8x128xf32>, vector<8x128xf32>, vector<88x128xf32> -> vector<128x128xf32>
    %c0_21 = arith.constant 0 : index
    %c0_22 = arith.constant 0 : index
    %65 = vector.load %arg2[%c0_21, %c0_22] : memref<152x128xf32, #tpu.memory_space<vmem>>, vector<8x128xf32>
    %cst_23 = arith.constant dense<0.000000e+00> : vector<8x128xf32>
    %66 = tpu.matmul %65, %64, %cst_23 {dimension_numbers = #tpu.dot_dimension_numbers<[1], [0], [0], [1], [0, 0, 1, 1], [], []>} : vector<8x128xf32>, vector<128x128xf32>, vector<8x128xf32> -> vector<8x128xf32>
    %67 = vector.extract_strided_slice %66 {offsets = [0, 0], sizes = [4, 128], strides = [1, 1]} : vector<8x128xf32> to vector<4x128xf32>
    %c0_24 = arith.constant 0 : index
    %c0_25 = arith.constant 0 : index
    %68 = vector.load %arg3[%c0_24, %c0_25] : memref<152x2xf32, #tpu.memory_space<vmem>>, vector<8x2xf32>
    %cst_26 = arith.constant dense<0.000000e+00> : vector<4xf32>
    %69 = vector.multi_reduction <add>, %67, %cst_26 [1] : vector<4x128xf32> to vector<4xf32>
    %70 = vector.shape_cast %69 : vector<4xf32> to vector<4x1xf32>
    %71 = arith.mulf %67, %67 : vector<4x128xf32>
    %cst_27 = arith.constant dense<0.000000e+00> : vector<4xf32>
    %72 = vector.multi_reduction <add>, %71, %cst_27 [1] : vector<4x128xf32> to vector<4xf32>
    %73 = vector.shape_cast %72 : vector<4xf32> to vector<4x1xf32>
    %cst_28 = arith.constant 7.812500e-03 : f32
    %74 = vector.broadcast %cst_28 : f32 to vector<4x1xf32>
    %75 = arith.mulf %70, %74 : vector<4x1xf32>
    %cst_29 = arith.constant 7.812500e-03 : f32
    %76 = vector.broadcast %cst_29 : f32 to vector<4x1xf32>
    %77 = arith.mulf %73, %76 : vector<4x1xf32>
    %78 = arith.mulf %75, %75 : vector<4x1xf32>
    %79 = arith.subf %77, %78 : vector<4x1xf32>
    %cst_30 = arith.constant 0.000000e+00 : f32
    %80 = vector.broadcast %cst_30 : f32 to vector<4x1xf32>
    %81 = arith.maximumf %79, %80 : vector<4x1xf32>
    %cst_31 = arith.constant 9.99999974E-6 : f32
    %82 = vector.broadcast %cst_31 : f32 to vector<4x1xf32>
    %83 = arith.addf %81, %82 : vector<4x1xf32>
    %84 = math.rsqrt %83 : vector<4x1xf32>
    %85 = vector.extract_strided_slice %68 {offsets = [0, 0], sizes = [4, 1], strides = [1, 1]} : vector<8x2xf32> to vector<4x1xf32>
    %86 = arith.mulf %84, %85 : vector<4x1xf32>
    %87 = vector.broadcast %75 : vector<4x1xf32> to vector<4x128xf32>
    %88 = arith.subf %67, %87 : vector<4x128xf32>
    %89 = vector.broadcast %86 : vector<4x1xf32> to vector<4x128xf32>
    %90 = arith.mulf %88, %89 : vector<4x128xf32>
    %91 = vector.extract_strided_slice %68 {offsets = [0, 1], sizes = [4, 1], strides = [1, 1]} : vector<8x2xf32> to vector<4x1xf32>
    %92 = vector.broadcast %91 : vector<4x1xf32> to vector<4x128xf32>
    %93 = arith.addf %90, %92 : vector<4x128xf32>
    %cst_32 = arith.constant 0.000000e+00 : f32
    %94 = vector.broadcast %cst_32 : f32 to vector<4x128xf32>
    %95 = arith.maximumf %93, %94 : vector<4x128xf32>
    %cst_33 = arith.constant 0.000000e+00 : f32
    %96 = vector.broadcast %cst_33 : f32 to vector<4x128xf32>
    %97 = tpu.concatenate %95, %96 in 0 : vector<4x128xf32>, vector<4x128xf32> -> vector<8x128xf32>
    %cst_34 = arith.constant dense<0.000000e+00> : vector<8x128xf32>
    %98 = tpu.matmul %97, %16, %cst_34 {dimension_numbers = #tpu.dot_dimension_numbers<[1], [0], [0], [1], [0, 0, 1, 1], [], []>} : vector<8x128xf32>, vector<128x128xf32>, vector<8x128xf32> -> vector<8x128xf32>
    %cst_35 = arith.constant dense<0.000000e+00> : vector<8x128xf32>
    %99 = tpu.matmul %97, %31, %cst_35 {dimension_numbers = #tpu.dot_dimension_numbers<[1], [0], [0], [1], [0, 0, 1, 1], [], []>} : vector<8x128xf32>, vector<128x128xf32>, vector<8x128xf32> -> vector<8x128xf32>
    %cst_36 = arith.constant dense<0.000000e+00> : vector<8x128xf32>
    %100 = tpu.matmul %97, %46, %cst_36 {dimension_numbers = #tpu.dot_dimension_numbers<[1], [0], [0], [1], [0, 0, 1, 1], [], []>} : vector<8x128xf32>, vector<128x128xf32>, vector<8x128xf32> -> vector<8x128xf32>
    %cst_37 = arith.constant dense<0.000000e+00> : vector<8x128xf32>
    %101 = tpu.matmul %97, %61, %cst_37 {dimension_numbers = #tpu.dot_dimension_numbers<[1], [0], [0], [1], [0, 0, 1, 1], [], []>} : vector<8x128xf32>, vector<128x128xf32>, vector<8x128xf32> -> vector<8x128xf32>
    %cst_38 = arith.constant 0.000000e+00 : f32
    %102 = vector.broadcast %cst_38 : f32 to vector<88x128xf32>
    %103 = tpu.concatenate %98, %99, %97, %100, %101, %102 in 0 : vector<8x128xf32>, vector<8x128xf32>, vector<8x128xf32>, vector<8x128xf32>, vector<8x128xf32>, vector<88x128xf32> -> vector<128x128xf32>
    %c8 = arith.constant 8 : index
    %c0_39 = arith.constant 0 : index
    %104 = vector.load %arg2[%c8, %c0_39] : memref<152x128xf32, #tpu.memory_space<vmem>>, vector<8x128xf32>
    %cst_40 = arith.constant dense<0.000000e+00> : vector<8x128xf32>
    %105 = tpu.matmul %104, %103, %cst_40 {dimension_numbers = #tpu.dot_dimension_numbers<[1], [0], [0], [1], [0, 0, 1, 1], [], []>} : vector<8x128xf32>, vector<128x128xf32>, vector<8x128xf32> -> vector<8x128xf32>
    %106 = vector.extract_strided_slice %105 {offsets = [0, 0], sizes = [4, 128], strides = [1, 1]} : vector<8x128xf32> to vector<4x128xf32>
    %c8_41 = arith.constant 8 : index
    %c0_42 = arith.constant 0 : index
    %107 = vector.load %arg3[%c8_41, %c0_42] : memref<152x2xf32, #tpu.memory_space<vmem>>, vector<8x2xf32>
    %cst_43 = arith.constant dense<0.000000e+00> : vector<4xf32>
    %108 = vector.multi_reduction <add>, %106, %cst_43 [1] : vector<4x128xf32> to vector<4xf32>
    %109 = vector.shape_cast %108 : vector<4xf32> to vector<4x1xf32>
    %110 = arith.mulf %106, %106 : vector<4x128xf32>
    %cst_44 = arith.constant dense<0.000000e+00> : vector<4xf32>
    %111 = vector.multi_reduction <add>, %110, %cst_44 [1] : vector<4x128xf32> to vector<4xf32>
    %112 = vector.shape_cast %111 : vector<4xf32> to vector<4x1xf32>
    %cst_45 = arith.constant 7.812500e-03 : f32
    %113 = vector.broadcast %cst_45 : f32 to vector<4x1xf32>
    %114 = arith.mulf %109, %113 : vector<4x1xf32>
    %cst_46 = arith.constant 7.812500e-03 : f32
    %115 = vector.broadcast %cst_46 : f32 to vector<4x1xf32>
    %116 = arith.mulf %112, %115 : vector<4x1xf32>
    %117 = arith.mulf %114, %114 : vector<4x1xf32>
    %118 = arith.subf %116, %117 : vector<4x1xf32>
    %cst_47 = arith.constant 0.000000e+00 : f32
    %119 = vector.broadcast %cst_47 : f32 to vector<4x1xf32>
    %120 = arith.maximumf %118, %119 : vector<4x1xf32>
    %cst_48 = arith.constant 9.99999974E-6 : f32
    %121 = vector.broadcast %cst_48 : f32 to vector<4x1xf32>
    %122 = arith.addf %120, %121 : vector<4x1xf32>
    %123 = math.rsqrt %122 : vector<4x1xf32>
    %124 = vector.extract_strided_slice %107 {offsets = [0, 0], sizes = [4, 1], strides = [1, 1]} : vector<8x2xf32> to vector<4x1xf32>
    %125 = arith.mulf %123, %124 : vector<4x1xf32>
    %126 = vector.broadcast %114 : vector<4x1xf32> to vector<4x128xf32>
    %127 = arith.subf %106, %126 : vector<4x128xf32>
    %128 = vector.broadcast %125 : vector<4x1xf32> to vector<4x128xf32>
    %129 = arith.mulf %127, %128 : vector<4x128xf32>
    %130 = vector.extract_strided_slice %107 {offsets = [0, 1], sizes = [4, 1], strides = [1, 1]} : vector<8x2xf32> to vector<4x1xf32>
    %131 = vector.broadcast %130 : vector<4x1xf32> to vector<4x128xf32>
    %132 = arith.addf %129, %131 : vector<4x128xf32>
    %cst_49 = arith.constant 0.000000e+00 : f32
    %133 = vector.broadcast %cst_49 : f32 to vector<4x128xf32>
    %134 = arith.maximumf %132, %133 : vector<4x128xf32>
    %cst_50 = arith.constant 0.000000e+00 : f32
    %135 = vector.broadcast %cst_50 : f32 to vector<4x128xf32>
    %136 = tpu.concatenate %134, %135 in 0 : vector<4x128xf32>, vector<4x128xf32> -> vector<8x128xf32>
    %cst_51 = arith.constant dense<0.000000e+00> : vector<8x128xf32>
    %137 = tpu.matmul %136, %16, %cst_51 {dimension_numbers = #tpu.dot_dimension_numbers<[1], [0], [0], [1], [0, 0, 1, 1], [], []>} : vector<8x128xf32>, vector<128x128xf32>, vector<8x128xf32> -> vector<8x128xf32>
    %cst_52 = arith.constant dense<0.000000e+00> : vector<8x128xf32>
    %138 = tpu.matmul %136, %31, %cst_52 {dimension_numbers = #tpu.dot_dimension_numbers<[1], [0], [0], [1], [0, 0, 1, 1], [], []>} : vector<8x128xf32>, vector<128x128xf32>, vector<8x128xf32> -> vector<8x128xf32>
    %cst_53 = arith.constant dense<0.000000e+00> : vector<8x128xf32>
    %139 = tpu.matmul %136, %46, %cst_53 {dimension_numbers = #tpu.dot_dimension_numbers<[1], [0], [0], [1], [0, 0, 1, 1], [], []>} : vector<8x128xf32>, vector<128x128xf32>, vector<8x128xf32> -> vector<8x128xf32>
    %cst_54 = arith.constant dense<0.000000e+00> : vector<8x128xf32>
    %140 = tpu.matmul %136, %61, %cst_54 {dimension_numbers = #tpu.dot_dimension_numbers<[1], [0], [0], [1], [0, 0, 1, 1], [], []>} : vector<8x128xf32>, vector<128x128xf32>, vector<8x128xf32> -> vector<8x128xf32>
    %cst_55 = arith.constant 0.000000e+00 : f32
    %141 = vector.broadcast %cst_55 : f32 to vector<88x128xf32>
    %142 = tpu.concatenate %137, %138, %136, %139, %140, %141 in 0 : vector<8x128xf32>, vector<8x128xf32>, vector<8x128xf32>, vector<8x128xf32>, vector<8x128xf32>, vector<88x128xf32> -> vector<128x128xf32>
    %c16 = arith.constant 16 : index
    %c0_56 = arith.constant 0 : index
    %143 = vector.load %arg2[%c16, %c0_56] : memref<152x128xf32, #tpu.memory_space<vmem>>, vector<8x128xf32>
    %cst_57 = arith.constant dense<0.000000e+00> : vector<8x128xf32>
    %144 = tpu.matmul %143, %142, %cst_57 {dimension_numbers = #tpu.dot_dimension_numbers<[1], [0], [0], [1], [0, 0, 1, 1], [], []>} : vector<8x128xf32>, vector<128x128xf32>, vector<8x128xf32> -> vector<8x128xf32>
    %c16_58 = arith.constant 16 : index
    %c0_59 = arith.constant 0 : index
    %145 = vector.load %arg3[%c16_58, %c0_59] : memref<152x2xf32, #tpu.memory_space<vmem>>, vector<8x2xf32>
    %cst_60 = arith.constant dense<0.000000e+00> : vector<8xf32>
    %146 = vector.multi_reduction <add>, %144, %cst_60 [1] : vector<8x128xf32> to vector<8xf32>
    %147 = vector.shape_cast %146 : vector<8xf32> to vector<8x1xf32>
    %148 = arith.mulf %144, %144 : vector<8x128xf32>
    %cst_61 = arith.constant dense<0.000000e+00> : vector<8xf32>
    %149 = vector.multi_reduction <add>, %148, %cst_61 [1] : vector<8x128xf32> to vector<8xf32>
    %150 = vector.shape_cast %149 : vector<8xf32> to vector<8x1xf32>
    %cst_62 = arith.constant 7.812500e-03 : f32
    %151 = vector.broadcast %cst_62 : f32 to vector<8x1xf32>
    %152 = arith.mulf %147, %151 : vector<8x1xf32>
    %cst_63 = arith.constant 7.812500e-03 : f32
    %153 = vector.broadcast %cst_63 : f32 to vector<8x1xf32>
    %154 = arith.mulf %150, %153 : vector<8x1xf32>
    %155 = arith.mulf %152, %152 : vector<8x1xf32>
    %156 = arith.subf %154, %155 : vector<8x1xf32>
    %cst_64 = arith.constant 0.000000e+00 : f32
    %157 = vector.broadcast %cst_64 : f32 to vector<8x1xf32>
    %158 = arith.maximumf %156, %157 : vector<8x1xf32>
    %cst_65 = arith.constant 9.99999974E-6 : f32
    %159 = vector.broadcast %cst_65 : f32 to vector<8x1xf32>
    %160 = arith.addf %158, %159 : vector<8x1xf32>
    %161 = math.rsqrt %160 : vector<8x1xf32>
    %162 = vector.extract_strided_slice %145 {offsets = [0, 0], sizes = [8, 1], strides = [1, 1]} : vector<8x2xf32> to vector<8x1xf32>
    %163 = arith.mulf %161, %162 : vector<8x1xf32>
    %164 = vector.broadcast %152 : vector<8x1xf32> to vector<8x128xf32>
    %165 = arith.subf %144, %164 : vector<8x128xf32>
    %166 = vector.broadcast %163 : vector<8x1xf32> to vector<8x128xf32>
    %167 = arith.mulf %165, %166 : vector<8x128xf32>
    %168 = vector.extract_strided_slice %145 {offsets = [0, 1], sizes = [8, 1], strides = [1, 1]} : vector<8x2xf32> to vector<8x1xf32>
    %169 = vector.broadcast %168 : vector<8x1xf32> to vector<8x128xf32>
    %170 = arith.addf %167, %169 : vector<8x128xf32>
    %cst_66 = arith.constant 0.000000e+00 : f32
    %171 = vector.broadcast %cst_66 : f32 to vector<8x128xf32>
    %172 = arith.maximumf %170, %171 : vector<8x128xf32>
    %cst_67 = arith.constant dense<0.000000e+00> : vector<8x128xf32>
    %173 = tpu.matmul %172, %16, %cst_67 {dimension_numbers = #tpu.dot_dimension_numbers<[1], [0], [0], [1], [0, 0, 1, 1], [], []>} : vector<8x128xf32>, vector<128x128xf32>, vector<8x128xf32> -> vector<8x128xf32>
    %cst_68 = arith.constant dense<0.000000e+00> : vector<8x128xf32>
    %174 = tpu.matmul %172, %31, %cst_68 {dimension_numbers = #tpu.dot_dimension_numbers<[1], [0], [0], [1], [0, 0, 1, 1], [], []>} : vector<8x128xf32>, vector<128x128xf32>, vector<8x128xf32> -> vector<8x128xf32>
    %cst_69 = arith.constant dense<0.000000e+00> : vector<8x128xf32>
    %175 = tpu.matmul %172, %46, %cst_69 {dimension_numbers = #tpu.dot_dimension_numbers<[1], [0], [0], [1], [0, 0, 1, 1], [], []>} : vector<8x128xf32>, vector<128x128xf32>, vector<8x128xf32> -> vector<8x128xf32>
    %cst_70 = arith.constant dense<0.000000e+00> : vector<8x128xf32>
    %176 = tpu.matmul %172, %61, %cst_70 {dimension_numbers = #tpu.dot_dimension_numbers<[1], [0], [0], [1], [0, 0, 1, 1], [], []>} : vector<8x128xf32>, vector<128x128xf32>, vector<8x128xf32> -> vector<8x128xf32>
    %cst_71 = arith.constant 0.000000e+00 : f32
    %177 = vector.broadcast %cst_71 : f32 to vector<88x128xf32>
    %178 = tpu.concatenate %173, %174, %172, %175, %176, %177 in 0 : vector<8x128xf32>, vector<8x128xf32>, vector<8x128xf32>, vector<8x128xf32>, vector<8x128xf32>, vector<88x128xf32> -> vector<128x128xf32>
    %c24 = arith.constant 24 : index
    %c0_72 = arith.constant 0 : index
    %179 = vector.load %arg2[%c24, %c0_72] : memref<152x128xf32, #tpu.memory_space<vmem>>, vector<8x128xf32>
    %cst_73 = arith.constant dense<0.000000e+00> : vector<8x128xf32>
    %180 = tpu.matmul %179, %178, %cst_73 {dimension_numbers = #tpu.dot_dimension_numbers<[1], [0], [0], [1], [0, 0, 1, 1], [], []>} : vector<8x128xf32>, vector<128x128xf32>, vector<8x128xf32> -> vector<8x128xf32>
    %c24_74 = arith.constant 24 : index
    %c0_75 = arith.constant 0 : index
    %181 = vector.load %arg3[%c24_74, %c0_75] : memref<152x2xf32, #tpu.memory_space<vmem>>, vector<8x2xf32>
    %cst_76 = arith.constant dense<0.000000e+00> : vector<8xf32>
    %182 = vector.multi_reduction <add>, %180, %cst_76 [1] : vector<8x128xf32> to vector<8xf32>
    %183 = vector.shape_cast %182 : vector<8xf32> to vector<8x1xf32>
    %184 = arith.mulf %180, %180 : vector<8x128xf32>
    %cst_77 = arith.constant dense<0.000000e+00> : vector<8xf32>
    %185 = vector.multi_reduction <add>, %184, %cst_77 [1] : vector<8x128xf32> to vector<8xf32>
    %186 = vector.shape_cast %185 : vector<8xf32> to vector<8x1xf32>
    %cst_78 = arith.constant 7.812500e-03 : f32
    %187 = vector.broadcast %cst_78 : f32 to vector<8x1xf32>
    %188 = arith.mulf %183, %187 : vector<8x1xf32>
    %cst_79 = arith.constant 7.812500e-03 : f32
    %189 = vector.broadcast %cst_79 : f32 to vector<8x1xf32>
    %190 = arith.mulf %186, %189 : vector<8x1xf32>
    %191 = arith.mulf %188, %188 : vector<8x1xf32>
    %192 = arith.subf %190, %191 : vector<8x1xf32>
    %cst_80 = arith.constant 0.000000e+00 : f32
    %193 = vector.broadcast %cst_80 : f32 to vector<8x1xf32>
    %194 = arith.maximumf %192, %193 : vector<8x1xf32>
    %cst_81 = arith.constant 9.99999974E-6 : f32
    %195 = vector.broadcast %cst_81 : f32 to vector<8x1xf32>
    %196 = arith.addf %194, %195 : vector<8x1xf32>
    %197 = math.rsqrt %196 : vector<8x1xf32>
    %198 = vector.extract_strided_slice %181 {offsets = [0, 0], sizes = [8, 1], strides = [1, 1]} : vector<8x2xf32> to vector<8x1xf32>
    %199 = arith.mulf %197, %198 : vector<8x1xf32>
    %200 = vector.broadcast %188 : vector<8x1xf32> to vector<8x128xf32>
    %201 = arith.subf %180, %200 : vector<8x128xf32>
    %202 = vector.broadcast %199 : vector<8x1xf32> to vector<8x128xf32>
    %203 = arith.mulf %201, %202 : vector<8x128xf32>
    %204 = vector.extract_strided_slice %181 {offsets = [0, 1], sizes = [8, 1], strides = [1, 1]} : vector<8x2xf32> to vector<8x1xf32>
    %205 = vector.broadcast %204 : vector<8x1xf32> to vector<8x128xf32>
    %206 = arith.addf %203, %205 : vector<8x128xf32>
    %cst_82 = arith.constant 0.000000e+00 : f32
    %207 = vector.broadcast %cst_82 : f32 to vector<8x128xf32>
    %208 = arith.maximumf %206, %207 : vector<8x128xf32>
    %209 = tpu.iota {dimensions = array<i32: 0>} : vector<128x32xi32>
    %210 = tpu.iota {dimensions = array<i32: 1>} : vector<128x32xi32>
    %c4_i32 = arith.constant 4 : i32
    %211 = vector.broadcast %c4_i32 : i32 to vector<128x32xi32>
    %212 = arith.shrsi %210, %211 : vector<128x32xi32>
    %c64_i32 = arith.constant 64 : i32
    %213 = vector.broadcast %c64_i32 : i32 to vector<128x32xi32>
    %214 = arith.muli %212, %213 : vector<128x32xi32>
    %c15_i32 = arith.constant 15 : i32
    %215 = vector.broadcast %c15_i32 : i32 to vector<128x32xi32>
    %216 = arith.andi %210, %215 : vector<128x32xi32>
    %c4_i32_83 = arith.constant 4 : i32
    %217 = vector.broadcast %c4_i32_83 : i32 to vector<128x32xi32>
    %218 = arith.muli %216, %217 : vector<128x32xi32>
    %219 = arith.addi %214, %218 : vector<128x32xi32>
    %c0_i32 = arith.constant 0 : i32
    %220 = vector.broadcast %c0_i32 : i32 to vector<128x32xi32>
    %221 = arith.addi %219, %220 : vector<128x32xi32>
    %222 = arith.cmpi eq, %209, %221 : vector<128x32xi32>
    %cst_84 = arith.constant 1.000000e+00 : f32
    %cst_85 = arith.constant 0.000000e+00 : f32
    %223 = vector.broadcast %cst_84 : f32 to vector<128x32xf32>
    %224 = vector.broadcast %cst_85 : f32 to vector<128x32xf32>
    %225 = arith.select %222, %223, %224 : vector<128x32xi1>, vector<128x32xf32>
    %c1_i32 = arith.constant 1 : i32
    %226 = vector.broadcast %c1_i32 : i32 to vector<128x32xi32>
    %227 = arith.addi %219, %226 : vector<128x32xi32>
    %228 = arith.cmpi eq, %209, %227 : vector<128x32xi32>
    %cst_86 = arith.constant 1.000000e+00 : f32
    %cst_87 = arith.constant 0.000000e+00 : f32
    %229 = vector.broadcast %cst_86 : f32 to vector<128x32xf32>
    %230 = vector.broadcast %cst_87 : f32 to vector<128x32xf32>
    %231 = arith.select %228, %229, %230 : vector<128x32xi1>, vector<128x32xf32>
    %c2_i32 = arith.constant 2 : i32
    %232 = vector.broadcast %c2_i32 : i32 to vector<128x32xi32>
    %233 = arith.addi %219, %232 : vector<128x32xi32>
    %234 = arith.cmpi eq, %209, %233 : vector<128x32xi32>
    %cst_88 = arith.constant 1.000000e+00 : f32
    %cst_89 = arith.constant 0.000000e+00 : f32
    %235 = vector.broadcast %cst_88 : f32 to vector<128x32xf32>
    %236 = vector.broadcast %cst_89 : f32 to vector<128x32xf32>
    %237 = arith.select %234, %235, %236 : vector<128x32xi1>, vector<128x32xf32>
    %c3_i32 = arith.constant 3 : i32
    %238 = vector.broadcast %c3_i32 : i32 to vector<128x32xi32>
    %239 = arith.addi %219, %238 : vector<128x32xi32>
    %240 = arith.cmpi eq, %209, %239 : vector<128x32xi32>
    %cst_90 = arith.constant 1.000000e+00 : f32
    %cst_91 = arith.constant 0.000000e+00 : f32
    %241 = vector.broadcast %cst_90 : f32 to vector<128x32xf32>
    %242 = vector.broadcast %cst_91 : f32 to vector<128x32xf32>
    %243 = arith.select %240, %241, %242 : vector<128x32xi1>, vector<128x32xf32>
    %cst_92 = arith.constant dense<0.000000e+00> : vector<8x32xf32>
    %244 = tpu.matmul %208, %225, %cst_92 {dimension_numbers = #tpu.dot_dimension_numbers<[1], [0], [0], [1], [0, 0, 1, 1], [], []>} : vector<8x128xf32>, vector<128x32xf32>, vector<8x32xf32> -> vector<8x32xf32>
    %cst_93 = arith.constant dense<0.000000e+00> : vector<8x32xf32>
    %245 = tpu.matmul %208, %231, %cst_93 {dimension_numbers = #tpu.dot_dimension_numbers<[1], [0], [0], [1], [0, 0, 1, 1], [], []>} : vector<8x128xf32>, vector<128x32xf32>, vector<8x32xf32> -> vector<8x32xf32>
    %cst_94 = arith.constant dense<0.000000e+00> : vector<8x32xf32>
    %246 = tpu.matmul %208, %237, %cst_94 {dimension_numbers = #tpu.dot_dimension_numbers<[1], [0], [0], [1], [0, 0, 1, 1], [], []>} : vector<8x128xf32>, vector<128x32xf32>, vector<8x32xf32> -> vector<8x32xf32>
    %cst_95 = arith.constant dense<0.000000e+00> : vector<8x32xf32>
    %247 = tpu.matmul %208, %243, %cst_95 {dimension_numbers = #tpu.dot_dimension_numbers<[1], [0], [0], [1], [0, 0, 1, 1], [], []>} : vector<8x128xf32>, vector<128x32xf32>, vector<8x32xf32> -> vector<8x32xf32>
    %248 = arith.maximumf %244, %245 : vector<8x32xf32>
    %249 = arith.maximumf %248, %246 : vector<8x32xf32>
    %250 = arith.maximumf %249, %247 : vector<8x32xf32>
    %cst_96 = arith.constant 0.000000e+00 : f32
    %251 = vector.broadcast %cst_96 : f32 to vector<8x32xf32>
    %252 = tpu.iota {dimensions = array<i32: 0>} : vector<32x32xi32>
    %253 = tpu.iota {dimensions = array<i32: 1>} : vector<32x32xi32>
    %c-9_i32_97 = arith.constant -9 : i32
    %254 = vector.broadcast %c-9_i32_97 : i32 to vector<32x32xi32>
    %255 = arith.addi %253, %254 : vector<32x32xi32>
    %256 = arith.cmpi eq, %252, %255 : vector<32x32xi32>
    %c4_i32_98 = arith.constant 4 : i32
    %257 = vector.broadcast %c4_i32_98 : i32 to vector<32x32xi32>
    %258 = arith.shrsi %252, %257 : vector<32x32xi32>
    %c4_i32_99 = arith.constant 4 : i32
    %259 = vector.broadcast %c4_i32_99 : i32 to vector<32x32xi32>
    %260 = arith.shrsi %253, %259 : vector<32x32xi32>
    %261 = arith.cmpi eq, %258, %260 : vector<32x32xi32>
    %262 = arith.andi %256, %261 : vector<32x32xi1>
    %cst_100 = arith.constant 1.000000e+00 : f32
    %cst_101 = arith.constant 0.000000e+00 : f32
    %263 = vector.broadcast %cst_100 : f32 to vector<32x32xf32>
    %264 = vector.broadcast %cst_101 : f32 to vector<32x32xf32>
    %265 = arith.select %262, %263, %264 : vector<32x32xi1>, vector<32x32xf32>
    %cst_102 = arith.constant dense<0.000000e+00> : vector<8x32xf32>
    %266 = tpu.matmul %250, %265, %cst_102 {dimension_numbers = #tpu.dot_dimension_numbers<[1], [0], [0], [1], [0, 0, 1, 1], [], []>} : vector<8x32xf32>, vector<32x32xf32>, vector<8x32xf32> -> vector<8x32xf32>
    %267 = tpu.iota {dimensions = array<i32: 0>} : vector<32x32xi32>
    %268 = tpu.iota {dimensions = array<i32: 1>} : vector<32x32xi32>
    %c9_i32_103 = arith.constant 9 : i32
    %269 = vector.broadcast %c9_i32_103 : i32 to vector<32x32xi32>
    %270 = arith.addi %268, %269 : vector<32x32xi32>
    %271 = arith.cmpi eq, %267, %270 : vector<32x32xi32>
    %c4_i32_104 = arith.constant 4 : i32
    %272 = vector.broadcast %c4_i32_104 : i32 to vector<32x32xi32>
    %273 = arith.shrsi %267, %272 : vector<32x32xi32>
    %c4_i32_105 = arith.constant 4 : i32
    %274 = vector.broadcast %c4_i32_105 : i32 to vector<32x32xi32>
    %275 = arith.shrsi %268, %274 : vector<32x32xi32>
    %276 = arith.cmpi eq, %273, %275 : vector<32x32xi32>
    %277 = arith.andi %271, %276 : vector<32x32xi1>
    %cst_106 = arith.constant 1.000000e+00 : f32
    %cst_107 = arith.constant 0.000000e+00 : f32
    %278 = vector.broadcast %cst_106 : f32 to vector<32x32xf32>
    %279 = vector.broadcast %cst_107 : f32 to vector<32x32xf32>
    %280 = arith.select %277, %278, %279 : vector<32x32xi1>, vector<32x32xf32>
    %cst_108 = arith.constant dense<0.000000e+00> : vector<8x32xf32>
    %281 = tpu.matmul %250, %280, %cst_108 {dimension_numbers = #tpu.dot_dimension_numbers<[1], [0], [0], [1], [0, 0, 1, 1], [], []>} : vector<8x32xf32>, vector<32x32xf32>, vector<8x32xf32> -> vector<8x32xf32>
    %cst_109 = arith.constant 0.000000e+00 : f32
    %282 = vector.broadcast %cst_109 : f32 to vector<8x32xf32>
    %cst_110 = arith.constant 0.000000e+00 : f32
    %283 = vector.broadcast %cst_110 : f32 to vector<88x32xf32>
    %284 = tpu.concatenate %251, %266, %250, %281, %282, %283 in 0 : vector<8x32xf32>, vector<8x32xf32>, vector<8x32xf32>, vector<8x32xf32>, vector<8x32xf32>, vector<88x32xf32> -> vector<128x32xf32>
    %c32 = arith.constant 32 : index
    %c0_111 = arith.constant 0 : index
    %285 = vector.load %arg2[%c32, %c0_111] : memref<152x128xf32, #tpu.memory_space<vmem>>, vector<16x128xf32>
    %cst_112 = arith.constant dense<0.000000e+00> : vector<16x32xf32>
    %286 = tpu.matmul %285, %284, %cst_112 {dimension_numbers = #tpu.dot_dimension_numbers<[1], [0], [0], [1], [0, 0, 1, 1], [], []>} : vector<16x128xf32>, vector<128x32xf32>, vector<16x32xf32> -> vector<16x32xf32>
    %c32_113 = arith.constant 32 : index
    %c0_114 = arith.constant 0 : index
    %287 = vector.load %arg3[%c32_113, %c0_114] : memref<152x2xf32, #tpu.memory_space<vmem>>, vector<16x2xf32>
    %cst_115 = arith.constant dense<0.000000e+00> : vector<16xf32>
    %288 = vector.multi_reduction <add>, %286, %cst_115 [1] : vector<16x32xf32> to vector<16xf32>
    %289 = vector.shape_cast %288 : vector<16xf32> to vector<16x1xf32>
    %290 = arith.mulf %286, %286 : vector<16x32xf32>
    %cst_116 = arith.constant dense<0.000000e+00> : vector<16xf32>
    %291 = vector.multi_reduction <add>, %290, %cst_116 [1] : vector<16x32xf32> to vector<16xf32>
    %292 = vector.shape_cast %291 : vector<16xf32> to vector<16x1xf32>
    %cst_117 = arith.constant 3.125000e-02 : f32
    %293 = vector.broadcast %cst_117 : f32 to vector<16x1xf32>
    %294 = arith.mulf %289, %293 : vector<16x1xf32>
    %cst_118 = arith.constant 3.125000e-02 : f32
    %295 = vector.broadcast %cst_118 : f32 to vector<16x1xf32>
    %296 = arith.mulf %292, %295 : vector<16x1xf32>
    %297 = arith.mulf %294, %294 : vector<16x1xf32>
    %298 = arith.subf %296, %297 : vector<16x1xf32>
    %cst_119 = arith.constant 0.000000e+00 : f32
    %299 = vector.broadcast %cst_119 : f32 to vector<16x1xf32>
    %300 = arith.maximumf %298, %299 : vector<16x1xf32>
    %cst_120 = arith.constant 9.99999974E-6 : f32
    %301 = vector.broadcast %cst_120 : f32 to vector<16x1xf32>
    %302 = arith.addf %300, %301 : vector<16x1xf32>
    %303 = math.rsqrt %302 : vector<16x1xf32>
    %304 = vector.extract_strided_slice %287 {offsets = [0, 0], sizes = [16, 1], strides = [1, 1]} : vector<16x2xf32> to vector<16x1xf32>
    %305 = arith.mulf %303, %304 : vector<16x1xf32>
    %306 = vector.broadcast %294 : vector<16x1xf32> to vector<16x32xf32>
    %307 = arith.subf %286, %306 : vector<16x32xf32>
    %308 = vector.broadcast %305 : vector<16x1xf32> to vector<16x32xf32>
    %309 = arith.mulf %307, %308 : vector<16x32xf32>
    %310 = vector.extract_strided_slice %287 {offsets = [0, 1], sizes = [16, 1], strides = [1, 1]} : vector<16x2xf32> to vector<16x1xf32>
    %311 = vector.broadcast %310 : vector<16x1xf32> to vector<16x32xf32>
    %312 = arith.addf %309, %311 : vector<16x32xf32>
    %cst_121 = arith.constant 0.000000e+00 : f32
    %313 = vector.broadcast %cst_121 : f32 to vector<16x32xf32>
    %314 = arith.maximumf %312, %313 : vector<16x32xf32>
    %cst_122 = arith.constant 0.000000e+00 : f32
    %315 = vector.broadcast %cst_122 : f32 to vector<16x32xf32>
    %cst_123 = arith.constant dense<0.000000e+00> : vector<16x32xf32>
    %316 = tpu.matmul %314, %265, %cst_123 {dimension_numbers = #tpu.dot_dimension_numbers<[1], [0], [0], [1], [0, 0, 1, 1], [], []>} : vector<16x32xf32>, vector<32x32xf32>, vector<16x32xf32> -> vector<16x32xf32>
    %cst_124 = arith.constant dense<0.000000e+00> : vector<16x32xf32>
    %317 = tpu.matmul %314, %280, %cst_124 {dimension_numbers = #tpu.dot_dimension_numbers<[1], [0], [0], [1], [0, 0, 1, 1], [], []>} : vector<16x32xf32>, vector<32x32xf32>, vector<16x32xf32> -> vector<16x32xf32>
    %cst_125 = arith.constant 0.000000e+00 : f32
    %318 = vector.broadcast %cst_125 : f32 to vector<16x32xf32>
    %cst_126 = arith.constant 0.000000e+00 : f32
    %319 = vector.broadcast %cst_126 : f32 to vector<48x32xf32>
    %320 = tpu.concatenate %315, %316, %314, %317, %318, %319 in 0 : vector<16x32xf32>, vector<16x32xf32>, vector<16x32xf32>, vector<16x32xf32>, vector<16x32xf32>, vector<48x32xf32> -> vector<128x32xf32>
    %c48 = arith.constant 48 : index
    %c0_127 = arith.constant 0 : index
    %321 = vector.load %arg2[%c48, %c0_127] : memref<152x128xf32, #tpu.memory_space<vmem>>, vector<16x128xf32>
    %cst_128 = arith.constant dense<0.000000e+00> : vector<16x32xf32>
    %322 = tpu.matmul %321, %320, %cst_128 {dimension_numbers = #tpu.dot_dimension_numbers<[1], [0], [0], [1], [0, 0, 1, 1], [], []>} : vector<16x128xf32>, vector<128x32xf32>, vector<16x32xf32> -> vector<16x32xf32>
    %c48_129 = arith.constant 48 : index
    %c0_130 = arith.constant 0 : index
    %323 = vector.load %arg3[%c48_129, %c0_130] : memref<152x2xf32, #tpu.memory_space<vmem>>, vector<16x2xf32>
    %cst_131 = arith.constant dense<0.000000e+00> : vector<16xf32>
    %324 = vector.multi_reduction <add>, %322, %cst_131 [1] : vector<16x32xf32> to vector<16xf32>
    %325 = vector.shape_cast %324 : vector<16xf32> to vector<16x1xf32>
    %326 = arith.mulf %322, %322 : vector<16x32xf32>
    %cst_132 = arith.constant dense<0.000000e+00> : vector<16xf32>
    %327 = vector.multi_reduction <add>, %326, %cst_132 [1] : vector<16x32xf32> to vector<16xf32>
    %328 = vector.shape_cast %327 : vector<16xf32> to vector<16x1xf32>
    %cst_133 = arith.constant 3.125000e-02 : f32
    %329 = vector.broadcast %cst_133 : f32 to vector<16x1xf32>
    %330 = arith.mulf %325, %329 : vector<16x1xf32>
    %cst_134 = arith.constant 3.125000e-02 : f32
    %331 = vector.broadcast %cst_134 : f32 to vector<16x1xf32>
    %332 = arith.mulf %328, %331 : vector<16x1xf32>
    %333 = arith.mulf %330, %330 : vector<16x1xf32>
    %334 = arith.subf %332, %333 : vector<16x1xf32>
    %cst_135 = arith.constant 0.000000e+00 : f32
    %335 = vector.broadcast %cst_135 : f32 to vector<16x1xf32>
    %336 = arith.maximumf %334, %335 : vector<16x1xf32>
    %cst_136 = arith.constant 9.99999974E-6 : f32
    %337 = vector.broadcast %cst_136 : f32 to vector<16x1xf32>
    %338 = arith.addf %336, %337 : vector<16x1xf32>
    %339 = math.rsqrt %338 : vector<16x1xf32>
    %340 = vector.extract_strided_slice %323 {offsets = [0, 0], sizes = [16, 1], strides = [1, 1]} : vector<16x2xf32> to vector<16x1xf32>
    %341 = arith.mulf %339, %340 : vector<16x1xf32>
    %342 = vector.broadcast %330 : vector<16x1xf32> to vector<16x32xf32>
    %343 = arith.subf %322, %342 : vector<16x32xf32>
    %344 = vector.broadcast %341 : vector<16x1xf32> to vector<16x32xf32>
    %345 = arith.mulf %343, %344 : vector<16x32xf32>
    %346 = vector.extract_strided_slice %323 {offsets = [0, 1], sizes = [16, 1], strides = [1, 1]} : vector<16x2xf32> to vector<16x1xf32>
    %347 = vector.broadcast %346 : vector<16x1xf32> to vector<16x32xf32>
    %348 = arith.addf %345, %347 : vector<16x32xf32>
    %cst_137 = arith.constant 0.000000e+00 : f32
    %349 = vector.broadcast %cst_137 : f32 to vector<16x32xf32>
    %350 = arith.maximumf %348, %349 : vector<16x32xf32>
    %351 = tpu.iota {dimensions = array<i32: 0>} : vector<32x16xi32>
    %352 = tpu.iota {dimensions = array<i32: 1>} : vector<32x16xi32>
    %c3_i32_138 = arith.constant 3 : i32
    %353 = vector.broadcast %c3_i32_138 : i32 to vector<32x16xi32>
    %354 = arith.shrsi %352, %353 : vector<32x16xi32>
    %c16_i32 = arith.constant 16 : i32
    %355 = vector.broadcast %c16_i32 : i32 to vector<32x16xi32>
    %356 = arith.muli %354, %355 : vector<32x16xi32>
    %c7_i32 = arith.constant 7 : i32
    %357 = vector.broadcast %c7_i32 : i32 to vector<32x16xi32>
    %358 = arith.andi %352, %357 : vector<32x16xi32>
    %c2_i32_139 = arith.constant 2 : i32
    %359 = vector.broadcast %c2_i32_139 : i32 to vector<32x16xi32>
    %360 = arith.muli %358, %359 : vector<32x16xi32>
    %361 = arith.addi %356, %360 : vector<32x16xi32>
    %c0_i32_140 = arith.constant 0 : i32
    %362 = vector.broadcast %c0_i32_140 : i32 to vector<32x16xi32>
    %363 = arith.addi %361, %362 : vector<32x16xi32>
    %364 = arith.cmpi eq, %351, %363 : vector<32x16xi32>
    %cst_141 = arith.constant 1.000000e+00 : f32
    %cst_142 = arith.constant 0.000000e+00 : f32
    %365 = vector.broadcast %cst_141 : f32 to vector<32x16xf32>
    %366 = vector.broadcast %cst_142 : f32 to vector<32x16xf32>
    %367 = arith.select %364, %365, %366 : vector<32x16xi1>, vector<32x16xf32>
    %c1_i32_143 = arith.constant 1 : i32
    %368 = vector.broadcast %c1_i32_143 : i32 to vector<32x16xi32>
    %369 = arith.addi %361, %368 : vector<32x16xi32>
    %370 = arith.cmpi eq, %351, %369 : vector<32x16xi32>
    %cst_144 = arith.constant 1.000000e+00 : f32
    %cst_145 = arith.constant 0.000000e+00 : f32
    %371 = vector.broadcast %cst_144 : f32 to vector<32x16xf32>
    %372 = vector.broadcast %cst_145 : f32 to vector<32x16xf32>
    %373 = arith.select %370, %371, %372 : vector<32x16xi1>, vector<32x16xf32>
    %cst_146 = arith.constant dense<0.000000e+00> : vector<16x16xf32>
    %374 = tpu.matmul %350, %367, %cst_146 {dimension_numbers = #tpu.dot_dimension_numbers<[1], [0], [0], [1], [0, 0, 1, 1], [], []>} : vector<16x32xf32>, vector<32x16xf32>, vector<16x16xf32> -> vector<16x16xf32>
    %cst_147 = arith.constant dense<0.000000e+00> : vector<16x16xf32>
    %375 = tpu.matmul %350, %373, %cst_147 {dimension_numbers = #tpu.dot_dimension_numbers<[1], [0], [0], [1], [0, 0, 1, 1], [], []>} : vector<16x32xf32>, vector<32x16xf32>, vector<16x16xf32> -> vector<16x16xf32>
    %376 = arith.maximumf %374, %375 : vector<16x16xf32>
    %cst_148 = arith.constant 0.000000e+00 : f32
    %377 = vector.broadcast %cst_148 : f32 to vector<16x16xf32>
    %cst_149 = arith.constant 0.000000e+00 : f32
    %378 = vector.broadcast %cst_149 : f32 to vector<16x16xf32>
    %cst_150 = arith.constant 0.000000e+00 : f32
    %379 = vector.broadcast %cst_150 : f32 to vector<16x16xf32>
    %cst_151 = arith.constant 0.000000e+00 : f32
    %380 = vector.broadcast %cst_151 : f32 to vector<16x16xf32>
    %cst_152 = arith.constant 0.000000e+00 : f32
    %381 = vector.broadcast %cst_152 : f32 to vector<48x16xf32>
    %382 = tpu.concatenate %377, %378, %376, %379, %380, %381 in 0 : vector<16x16xf32>, vector<16x16xf32>, vector<16x16xf32>, vector<16x16xf32>, vector<16x16xf32>, vector<48x16xf32> -> vector<128x16xf32>
    %c64 = arith.constant 64 : index
    %c0_153 = arith.constant 0 : index
    %383 = vector.load %arg2[%c64, %c0_153] : memref<152x128xf32, #tpu.memory_space<vmem>>, vector<16x128xf32>
    %cst_154 = arith.constant dense<0.000000e+00> : vector<16x16xf32>
    %384 = tpu.matmul %383, %382, %cst_154 {dimension_numbers = #tpu.dot_dimension_numbers<[1], [0], [0], [1], [0, 0, 1, 1], [], []>} : vector<16x128xf32>, vector<128x16xf32>, vector<16x16xf32> -> vector<16x16xf32>
    %c64_155 = arith.constant 64 : index
    %c0_156 = arith.constant 0 : index
    %385 = vector.load %arg3[%c64_155, %c0_156] : memref<152x2xf32, #tpu.memory_space<vmem>>, vector<16x2xf32>
    %cst_157 = arith.constant dense<0.000000e+00> : vector<16xf32>
    %386 = vector.multi_reduction <add>, %384, %cst_157 [1] : vector<16x16xf32> to vector<16xf32>
    %387 = vector.shape_cast %386 : vector<16xf32> to vector<16x1xf32>
    %388 = arith.mulf %384, %384 : vector<16x16xf32>
    %cst_158 = arith.constant dense<0.000000e+00> : vector<16xf32>
    %389 = vector.multi_reduction <add>, %388, %cst_158 [1] : vector<16x16xf32> to vector<16xf32>
    %390 = vector.shape_cast %389 : vector<16xf32> to vector<16x1xf32>
    %cst_159 = arith.constant 6.250000e-02 : f32
    %391 = vector.broadcast %cst_159 : f32 to vector<16x1xf32>
    %392 = arith.mulf %387, %391 : vector<16x1xf32>
    %cst_160 = arith.constant 6.250000e-02 : f32
    %393 = vector.broadcast %cst_160 : f32 to vector<16x1xf32>
    %394 = arith.mulf %390, %393 : vector<16x1xf32>
    %395 = arith.mulf %392, %392 : vector<16x1xf32>
    %396 = arith.subf %394, %395 : vector<16x1xf32>
    %cst_161 = arith.constant 0.000000e+00 : f32
    %397 = vector.broadcast %cst_161 : f32 to vector<16x1xf32>
    %398 = arith.maximumf %396, %397 : vector<16x1xf32>
    %cst_162 = arith.constant 9.99999974E-6 : f32
    %399 = vector.broadcast %cst_162 : f32 to vector<16x1xf32>
    %400 = arith.addf %398, %399 : vector<16x1xf32>
    %401 = math.rsqrt %400 : vector<16x1xf32>
    %402 = vector.extract_strided_slice %385 {offsets = [0, 0], sizes = [16, 1], strides = [1, 1]} : vector<16x2xf32> to vector<16x1xf32>
    %403 = arith.mulf %401, %402 : vector<16x1xf32>
    %404 = vector.broadcast %392 : vector<16x1xf32> to vector<16x16xf32>
    %405 = arith.subf %384, %404 : vector<16x16xf32>
    %406 = vector.broadcast %403 : vector<16x1xf32> to vector<16x16xf32>
    %407 = arith.mulf %405, %406 : vector<16x16xf32>
    %408 = vector.extract_strided_slice %385 {offsets = [0, 1], sizes = [16, 1], strides = [1, 1]} : vector<16x2xf32> to vector<16x1xf32>
    %409 = vector.broadcast %408 : vector<16x1xf32> to vector<16x16xf32>
    %410 = arith.addf %407, %409 : vector<16x16xf32>
    %cst_163 = arith.constant 0.000000e+00 : f32
    %411 = vector.broadcast %cst_163 : f32 to vector<16x16xf32>
    %412 = arith.maximumf %410, %411 : vector<16x16xf32>
    %cst_164 = arith.constant 0.000000e+00 : f32
    %413 = vector.broadcast %cst_164 : f32 to vector<16x16xf32>
    %cst_165 = arith.constant 0.000000e+00 : f32
    %414 = vector.broadcast %cst_165 : f32 to vector<16x16xf32>
    %cst_166 = arith.constant 0.000000e+00 : f32
    %415 = vector.broadcast %cst_166 : f32 to vector<16x16xf32>
    %cst_167 = arith.constant 0.000000e+00 : f32
    %416 = vector.broadcast %cst_167 : f32 to vector<16x16xf32>
    %cst_168 = arith.constant 0.000000e+00 : f32
    %417 = vector.broadcast %cst_168 : f32 to vector<48x16xf32>
    %418 = tpu.concatenate %413, %414, %412, %415, %416, %417 in 0 : vector<16x16xf32>, vector<16x16xf32>, vector<16x16xf32>, vector<16x16xf32>, vector<16x16xf32>, vector<48x16xf32> -> vector<128x16xf32>
    %c80 = arith.constant 80 : index
    %c0_169 = arith.constant 0 : index
    %419 = vector.load %arg2[%c80, %c0_169] : memref<152x128xf32, #tpu.memory_space<vmem>>, vector<16x128xf32>
    %cst_170 = arith.constant dense<0.000000e+00> : vector<16x16xf32>
    %420 = tpu.matmul %419, %418, %cst_170 {dimension_numbers = #tpu.dot_dimension_numbers<[1], [0], [0], [1], [0, 0, 1, 1], [], []>} : vector<16x128xf32>, vector<128x16xf32>, vector<16x16xf32> -> vector<16x16xf32>
    %c80_171 = arith.constant 80 : index
    %c0_172 = arith.constant 0 : index
    %421 = vector.load %arg3[%c80_171, %c0_172] : memref<152x2xf32, #tpu.memory_space<vmem>>, vector<16x2xf32>
    %cst_173 = arith.constant dense<0.000000e+00> : vector<16xf32>
    %422 = vector.multi_reduction <add>, %420, %cst_173 [1] : vector<16x16xf32> to vector<16xf32>
    %423 = vector.shape_cast %422 : vector<16xf32> to vector<16x1xf32>
    %424 = arith.mulf %420, %420 : vector<16x16xf32>
    %cst_174 = arith.constant dense<0.000000e+00> : vector<16xf32>
    %425 = vector.multi_reduction <add>, %424, %cst_174 [1] : vector<16x16xf32> to vector<16xf32>
    %426 = vector.shape_cast %425 : vector<16xf32> to vector<16x1xf32>
    %cst_175 = arith.constant 6.250000e-02 : f32
    %427 = vector.broadcast %cst_175 : f32 to vector<16x1xf32>
    %428 = arith.mulf %423, %427 : vector<16x1xf32>
    %cst_176 = arith.constant 6.250000e-02 : f32
    %429 = vector.broadcast %cst_176 : f32 to vector<16x1xf32>
    %430 = arith.mulf %426, %429 : vector<16x1xf32>
    %431 = arith.mulf %428, %428 : vector<16x1xf32>
    %432 = arith.subf %430, %431 : vector<16x1xf32>
    %cst_177 = arith.constant 0.000000e+00 : f32
    %433 = vector.broadcast %cst_177 : f32 to vector<16x1xf32>
    %434 = arith.maximumf %432, %433 : vector<16x1xf32>
    %cst_178 = arith.constant 9.99999974E-6 : f32
    %435 = vector.broadcast %cst_178 : f32 to vector<16x1xf32>
    %436 = arith.addf %434, %435 : vector<16x1xf32>
    %437 = math.rsqrt %436 : vector<16x1xf32>
    %438 = vector.extract_strided_slice %421 {offsets = [0, 0], sizes = [16, 1], strides = [1, 1]} : vector<16x2xf32> to vector<16x1xf32>
    %439 = arith.mulf %437, %438 : vector<16x1xf32>
    %440 = vector.broadcast %428 : vector<16x1xf32> to vector<16x16xf32>
    %441 = arith.subf %420, %440 : vector<16x16xf32>
    %442 = vector.broadcast %439 : vector<16x1xf32> to vector<16x16xf32>
    %443 = arith.mulf %441, %442 : vector<16x16xf32>
    %444 = vector.extract_strided_slice %421 {offsets = [0, 1], sizes = [16, 1], strides = [1, 1]} : vector<16x2xf32> to vector<16x1xf32>
    %445 = vector.broadcast %444 : vector<16x1xf32> to vector<16x16xf32>
    %446 = arith.addf %443, %445 : vector<16x16xf32>
    %cst_179 = arith.constant 0.000000e+00 : f32
    %447 = vector.broadcast %cst_179 : f32 to vector<16x16xf32>
    %448 = arith.maximumf %446, %447 : vector<16x16xf32>
    %449 = tpu.iota {dimensions = array<i32: 0>} : vector<16x128xi32>
    %450 = tpu.iota {dimensions = array<i32: 1>} : vector<16x128xi32>
    %c6_i32_180 = arith.constant 6 : i32
    %451 = vector.broadcast %c6_i32_180 : i32 to vector<16x128xi32>
    %452 = arith.shrsi %450, %451 : vector<16x128xi32>
    %c8_i32 = arith.constant 8 : i32
    %453 = vector.broadcast %c8_i32 : i32 to vector<16x128xi32>
    %454 = arith.muli %452, %453 : vector<16x128xi32>
    %c63_i32 = arith.constant 63 : i32
    %455 = vector.broadcast %c63_i32 : i32 to vector<16x128xi32>
    %456 = arith.andi %450, %455 : vector<16x128xi32>
    %c8_i32_181 = arith.constant 8 : i32
    %457 = vector.broadcast %c8_i32_181 : i32 to vector<16x128xi32>
    %458 = arith.muli %456, %457 : vector<16x128xi32>
    %c6_i32_182 = arith.constant 6 : i32
    %459 = vector.broadcast %c6_i32_182 : i32 to vector<16x128xi32>
    %460 = arith.shrsi %458, %459 : vector<16x128xi32>
    %461 = arith.addi %454, %460 : vector<16x128xi32>
    %462 = arith.cmpi eq, %449, %461 : vector<16x128xi32>
    %cst_183 = arith.constant 1.000000e+00 : f32
    %cst_184 = arith.constant 0.000000e+00 : f32
    %463 = vector.broadcast %cst_183 : f32 to vector<16x128xf32>
    %464 = vector.broadcast %cst_184 : f32 to vector<16x128xf32>
    %465 = arith.select %462, %463, %464 : vector<16x128xi1>, vector<16x128xf32>
    %cst_185 = arith.constant dense<0.000000e+00> : vector<16x128xf32>
    %466 = tpu.matmul %448, %465, %cst_185 {dimension_numbers = #tpu.dot_dimension_numbers<[1], [0], [0], [1], [0, 0, 1, 1], [], []>} : vector<16x16xf32>, vector<16x128xf32>, vector<16x128xf32> -> vector<16x128xf32>
    %467 = tpu.iota {dimensions = array<i32: 0>} : vector<128x128xi32>
    %468 = tpu.iota {dimensions = array<i32: 1>} : vector<128x128xi32>
    %c1_i32_186 = arith.constant 1 : i32
    %469 = vector.broadcast %c1_i32_186 : i32 to vector<128x128xi32>
    %470 = arith.addi %468, %469 : vector<128x128xi32>
    %471 = arith.cmpi eq, %467, %470 : vector<128x128xi32>
    %c6_i32_187 = arith.constant 6 : i32
    %472 = vector.broadcast %c6_i32_187 : i32 to vector<128x128xi32>
    %473 = arith.shrsi %467, %472 : vector<128x128xi32>
    %c6_i32_188 = arith.constant 6 : i32
    %474 = vector.broadcast %c6_i32_188 : i32 to vector<128x128xi32>
    %475 = arith.shrsi %468, %474 : vector<128x128xi32>
    %476 = arith.cmpi eq, %473, %475 : vector<128x128xi32>
    %477 = arith.andi %471, %476 : vector<128x128xi1>
    %cst_189 = arith.constant 1.000000e+00 : f32
    %cst_190 = arith.constant 0.000000e+00 : f32
    %478 = vector.broadcast %cst_189 : f32 to vector<128x128xf32>
    %479 = vector.broadcast %cst_190 : f32 to vector<128x128xf32>
    %480 = arith.select %477, %478, %479 : vector<128x128xi1>, vector<128x128xf32>
    %cst_191 = arith.constant dense<0.000000e+00> : vector<16x128xf32>
    %481 = tpu.matmul %466, %480, %cst_191 {dimension_numbers = #tpu.dot_dimension_numbers<[1], [0], [0], [1], [0, 0, 1, 1], [], []>} : vector<16x128xf32>, vector<128x128xf32>, vector<16x128xf32> -> vector<16x128xf32>
    %cst_192 = arith.constant 0.000000e+00 : f32
    %482 = vector.broadcast %cst_192 : f32 to vector<96x128xf32>
    %483 = tpu.concatenate %466, %481, %482 in 0 : vector<16x128xf32>, vector<16x128xf32>, vector<96x128xf32> -> vector<128x128xf32>
    %c96 = arith.constant 96 : index
    %c0_193 = arith.constant 0 : index
    %484 = vector.load %arg2[%c96, %c0_193] : memref<152x128xf32, #tpu.memory_space<vmem>>, vector<8x128xf32>
    %cst_194 = arith.constant dense<0.000000e+00> : vector<8x128xf32>
    %485 = tpu.matmul %484, %483, %cst_194 {dimension_numbers = #tpu.dot_dimension_numbers<[1], [0], [0], [1], [0, 0, 1, 1], [], []>} : vector<8x128xf32>, vector<128x128xf32>, vector<8x128xf32> -> vector<8x128xf32>
    %c96_195 = arith.constant 96 : index
    %c0_196 = arith.constant 0 : index
    %486 = vector.load %arg3[%c96_195, %c0_196] : memref<152x2xf32, #tpu.memory_space<vmem>>, vector<8x2xf32>
    %cst_197 = arith.constant dense<0.000000e+00> : vector<8xf32>
    %487 = vector.multi_reduction <add>, %485, %cst_197 [1] : vector<8x128xf32> to vector<8xf32>
    %488 = vector.shape_cast %487 : vector<8xf32> to vector<8x1xf32>
    %489 = arith.mulf %485, %485 : vector<8x128xf32>
    %cst_198 = arith.constant dense<0.000000e+00> : vector<8xf32>
    %490 = vector.multi_reduction <add>, %489, %cst_198 [1] : vector<8x128xf32> to vector<8xf32>
    %491 = vector.shape_cast %490 : vector<8xf32> to vector<8x1xf32>
    %cst_199 = arith.constant 7.812500e-03 : f32
    %492 = vector.broadcast %cst_199 : f32 to vector<8x1xf32>
    %493 = arith.mulf %488, %492 : vector<8x1xf32>
    %cst_200 = arith.constant 7.812500e-03 : f32
    %494 = vector.broadcast %cst_200 : f32 to vector<8x1xf32>
    %495 = arith.mulf %491, %494 : vector<8x1xf32>
    %496 = arith.mulf %493, %493 : vector<8x1xf32>
    %497 = arith.subf %495, %496 : vector<8x1xf32>
    %cst_201 = arith.constant 0.000000e+00 : f32
    %498 = vector.broadcast %cst_201 : f32 to vector<8x1xf32>
    %499 = arith.maximumf %497, %498 : vector<8x1xf32>
    %cst_202 = arith.constant 9.99999974E-6 : f32
    %500 = vector.broadcast %cst_202 : f32 to vector<8x1xf32>
    %501 = arith.addf %499, %500 : vector<8x1xf32>
    %502 = math.rsqrt %501 : vector<8x1xf32>
    %503 = vector.extract_strided_slice %486 {offsets = [0, 0], sizes = [8, 1], strides = [1, 1]} : vector<8x2xf32> to vector<8x1xf32>
    %504 = arith.mulf %502, %503 : vector<8x1xf32>
    %505 = vector.broadcast %493 : vector<8x1xf32> to vector<8x128xf32>
    %506 = arith.subf %485, %505 : vector<8x128xf32>
    %507 = vector.broadcast %504 : vector<8x1xf32> to vector<8x128xf32>
    %508 = arith.mulf %506, %507 : vector<8x128xf32>
    %509 = vector.extract_strided_slice %486 {offsets = [0, 1], sizes = [8, 1], strides = [1, 1]} : vector<8x2xf32> to vector<8x1xf32>
    %510 = vector.broadcast %509 : vector<8x1xf32> to vector<8x128xf32>
    %511 = arith.addf %508, %510 : vector<8x128xf32>
    %cst_203 = arith.constant 0.000000e+00 : f32
    %512 = vector.broadcast %cst_203 : f32 to vector<8x128xf32>
    %513 = arith.maximumf %511, %512 : vector<8x128xf32>
    %514 = tpu.concatenate %513, %208 in 0 : vector<8x128xf32>, vector<8x128xf32> -> vector<16x128xf32>
    %515 = tpu.iota {dimensions = array<i32: 0>} : vector<128x128xi32>
    %516 = tpu.iota {dimensions = array<i32: 1>} : vector<128x128xi32>
    %c-2_i32 = arith.constant -2 : i32
    %517 = vector.broadcast %c-2_i32 : i32 to vector<128x128xi32>
    %518 = arith.addi %516, %517 : vector<128x128xi32>
    %519 = arith.cmpi eq, %515, %518 : vector<128x128xi32>
    %c6_i32_204 = arith.constant 6 : i32
    %520 = vector.broadcast %c6_i32_204 : i32 to vector<128x128xi32>
    %521 = arith.shrsi %515, %520 : vector<128x128xi32>
    %c6_i32_205 = arith.constant 6 : i32
    %522 = vector.broadcast %c6_i32_205 : i32 to vector<128x128xi32>
    %523 = arith.shrsi %516, %522 : vector<128x128xi32>
    %524 = arith.cmpi eq, %521, %523 : vector<128x128xi32>
    %525 = arith.andi %519, %524 : vector<128x128xi1>
    %cst_206 = arith.constant 1.000000e+00 : f32
    %cst_207 = arith.constant 0.000000e+00 : f32
    %526 = vector.broadcast %cst_206 : f32 to vector<128x128xf32>
    %527 = vector.broadcast %cst_207 : f32 to vector<128x128xf32>
    %528 = arith.select %525, %526, %527 : vector<128x128xi1>, vector<128x128xf32>
    %cst_208 = arith.constant dense<0.000000e+00> : vector<16x128xf32>
    %529 = tpu.matmul %514, %528, %cst_208 {dimension_numbers = #tpu.dot_dimension_numbers<[1], [0], [0], [1], [0, 0, 1, 1], [], []>} : vector<16x128xf32>, vector<128x128xf32>, vector<16x128xf32> -> vector<16x128xf32>
    %530 = tpu.iota {dimensions = array<i32: 0>} : vector<128x128xi32>
    %531 = tpu.iota {dimensions = array<i32: 1>} : vector<128x128xi32>
    %c-1_i32 = arith.constant -1 : i32
    %532 = vector.broadcast %c-1_i32 : i32 to vector<128x128xi32>
    %533 = arith.addi %531, %532 : vector<128x128xi32>
    %534 = arith.cmpi eq, %530, %533 : vector<128x128xi32>
    %c6_i32_209 = arith.constant 6 : i32
    %535 = vector.broadcast %c6_i32_209 : i32 to vector<128x128xi32>
    %536 = arith.shrsi %530, %535 : vector<128x128xi32>
    %c6_i32_210 = arith.constant 6 : i32
    %537 = vector.broadcast %c6_i32_210 : i32 to vector<128x128xi32>
    %538 = arith.shrsi %531, %537 : vector<128x128xi32>
    %539 = arith.cmpi eq, %536, %538 : vector<128x128xi32>
    %540 = arith.andi %534, %539 : vector<128x128xi1>
    %cst_211 = arith.constant 1.000000e+00 : f32
    %cst_212 = arith.constant 0.000000e+00 : f32
    %541 = vector.broadcast %cst_211 : f32 to vector<128x128xf32>
    %542 = vector.broadcast %cst_212 : f32 to vector<128x128xf32>
    %543 = arith.select %540, %541, %542 : vector<128x128xi1>, vector<128x128xf32>
    %cst_213 = arith.constant dense<0.000000e+00> : vector<16x128xf32>
    %544 = tpu.matmul %514, %543, %cst_213 {dimension_numbers = #tpu.dot_dimension_numbers<[1], [0], [0], [1], [0, 0, 1, 1], [], []>} : vector<16x128xf32>, vector<128x128xf32>, vector<16x128xf32> -> vector<16x128xf32>
    %cst_214 = arith.constant dense<0.000000e+00> : vector<16x128xf32>
    %545 = tpu.matmul %514, %480, %cst_214 {dimension_numbers = #tpu.dot_dimension_numbers<[1], [0], [0], [1], [0, 0, 1, 1], [], []>} : vector<16x128xf32>, vector<128x128xf32>, vector<16x128xf32> -> vector<16x128xf32>
    %546 = tpu.iota {dimensions = array<i32: 0>} : vector<128x128xi32>
    %547 = tpu.iota {dimensions = array<i32: 1>} : vector<128x128xi32>
    %c2_i32_215 = arith.constant 2 : i32
    %548 = vector.broadcast %c2_i32_215 : i32 to vector<128x128xi32>
    %549 = arith.addi %547, %548 : vector<128x128xi32>
    %550 = arith.cmpi eq, %546, %549 : vector<128x128xi32>
    %c6_i32_216 = arith.constant 6 : i32
    %551 = vector.broadcast %c6_i32_216 : i32 to vector<128x128xi32>
    %552 = arith.shrsi %546, %551 : vector<128x128xi32>
    %c6_i32_217 = arith.constant 6 : i32
    %553 = vector.broadcast %c6_i32_217 : i32 to vector<128x128xi32>
    %554 = arith.shrsi %547, %553 : vector<128x128xi32>
    %555 = arith.cmpi eq, %552, %554 : vector<128x128xi32>
    %556 = arith.andi %550, %555 : vector<128x128xi1>
    %cst_218 = arith.constant 1.000000e+00 : f32
    %cst_219 = arith.constant 0.000000e+00 : f32
    %557 = vector.broadcast %cst_218 : f32 to vector<128x128xf32>
    %558 = vector.broadcast %cst_219 : f32 to vector<128x128xf32>
    %559 = arith.select %556, %557, %558 : vector<128x128xi1>, vector<128x128xf32>
    %cst_220 = arith.constant dense<0.000000e+00> : vector<16x128xf32>
    %560 = tpu.matmul %514, %559, %cst_220 {dimension_numbers = #tpu.dot_dimension_numbers<[1], [0], [0], [1], [0, 0, 1, 1], [], []>} : vector<16x128xf32>, vector<128x128xf32>, vector<16x128xf32> -> vector<16x128xf32>
    %cst_221 = arith.constant 0.000000e+00 : f32
    %561 = vector.broadcast %cst_221 : f32 to vector<48x128xf32>
    %562 = tpu.concatenate %529, %544, %514, %545, %560, %561 in 0 : vector<16x128xf32>, vector<16x128xf32>, vector<16x128xf32>, vector<16x128xf32>, vector<16x128xf32>, vector<48x128xf32> -> vector<128x128xf32>
    %c104 = arith.constant 104 : index
    %c0_222 = arith.constant 0 : index
    %563 = vector.load %arg2[%c104, %c0_222] : memref<152x128xf32, #tpu.memory_space<vmem>>, vector<8x128xf32>
    %cst_223 = arith.constant dense<0.000000e+00> : vector<8x128xf32>
    %564 = tpu.matmul %563, %562, %cst_223 {dimension_numbers = #tpu.dot_dimension_numbers<[1], [0], [0], [1], [0, 0, 1, 1], [], []>} : vector<8x128xf32>, vector<128x128xf32>, vector<8x128xf32> -> vector<8x128xf32>
    %c104_224 = arith.constant 104 : index
    %c0_225 = arith.constant 0 : index
    %565 = vector.load %arg3[%c104_224, %c0_225] : memref<152x2xf32, #tpu.memory_space<vmem>>, vector<8x2xf32>
    %cst_226 = arith.constant dense<0.000000e+00> : vector<8xf32>
    %566 = vector.multi_reduction <add>, %564, %cst_226 [1] : vector<8x128xf32> to vector<8xf32>
    %567 = vector.shape_cast %566 : vector<8xf32> to vector<8x1xf32>
    %568 = arith.mulf %564, %564 : vector<8x128xf32>
    %cst_227 = arith.constant dense<0.000000e+00> : vector<8xf32>
    %569 = vector.multi_reduction <add>, %568, %cst_227 [1] : vector<8x128xf32> to vector<8xf32>
    %570 = vector.shape_cast %569 : vector<8xf32> to vector<8x1xf32>
    %cst_228 = arith.constant 7.812500e-03 : f32
    %571 = vector.broadcast %cst_228 : f32 to vector<8x1xf32>
    %572 = arith.mulf %567, %571 : vector<8x1xf32>
    %cst_229 = arith.constant 7.812500e-03 : f32
    %573 = vector.broadcast %cst_229 : f32 to vector<8x1xf32>
    %574 = arith.mulf %570, %573 : vector<8x1xf32>
    %575 = arith.mulf %572, %572 : vector<8x1xf32>
    %576 = arith.subf %574, %575 : vector<8x1xf32>
    %cst_230 = arith.constant 0.000000e+00 : f32
    %577 = vector.broadcast %cst_230 : f32 to vector<8x1xf32>
    %578 = arith.maximumf %576, %577 : vector<8x1xf32>
    %cst_231 = arith.constant 9.99999974E-6 : f32
    %579 = vector.broadcast %cst_231 : f32 to vector<8x1xf32>
    %580 = arith.addf %578, %579 : vector<8x1xf32>
    %581 = math.rsqrt %580 : vector<8x1xf32>
    %582 = vector.extract_strided_slice %565 {offsets = [0, 0], sizes = [8, 1], strides = [1, 1]} : vector<8x2xf32> to vector<8x1xf32>
    %583 = arith.mulf %581, %582 : vector<8x1xf32>
    %584 = vector.broadcast %572 : vector<8x1xf32> to vector<8x128xf32>
    %585 = arith.subf %564, %584 : vector<8x128xf32>
    %586 = vector.broadcast %583 : vector<8x1xf32> to vector<8x128xf32>
    %587 = arith.mulf %585, %586 : vector<8x128xf32>
    %588 = vector.extract_strided_slice %565 {offsets = [0, 1], sizes = [8, 1], strides = [1, 1]} : vector<8x2xf32> to vector<8x1xf32>
    %589 = vector.broadcast %588 : vector<8x1xf32> to vector<8x128xf32>
    %590 = arith.addf %587, %589 : vector<8x128xf32>
    %cst_232 = arith.constant 0.000000e+00 : f32
    %591 = vector.broadcast %cst_232 : f32 to vector<8x128xf32>
    %592 = arith.maximumf %590, %591 : vector<8x128xf32>
    %cst_233 = arith.constant dense<0.000000e+00> : vector<8x128xf32>
    %593 = tpu.matmul %592, %528, %cst_233 {dimension_numbers = #tpu.dot_dimension_numbers<[1], [0], [0], [1], [0, 0, 1, 1], [], []>} : vector<8x128xf32>, vector<128x128xf32>, vector<8x128xf32> -> vector<8x128xf32>
    %cst_234 = arith.constant dense<0.000000e+00> : vector<8x128xf32>
    %594 = tpu.matmul %592, %543, %cst_234 {dimension_numbers = #tpu.dot_dimension_numbers<[1], [0], [0], [1], [0, 0, 1, 1], [], []>} : vector<8x128xf32>, vector<128x128xf32>, vector<8x128xf32> -> vector<8x128xf32>
    %cst_235 = arith.constant dense<0.000000e+00> : vector<8x128xf32>
    %595 = tpu.matmul %592, %480, %cst_235 {dimension_numbers = #tpu.dot_dimension_numbers<[1], [0], [0], [1], [0, 0, 1, 1], [], []>} : vector<8x128xf32>, vector<128x128xf32>, vector<8x128xf32> -> vector<8x128xf32>
    %cst_236 = arith.constant dense<0.000000e+00> : vector<8x128xf32>
    %596 = tpu.matmul %592, %559, %cst_236 {dimension_numbers = #tpu.dot_dimension_numbers<[1], [0], [0], [1], [0, 0, 1, 1], [], []>} : vector<8x128xf32>, vector<128x128xf32>, vector<8x128xf32> -> vector<8x128xf32>
    %cst_237 = arith.constant 0.000000e+00 : f32
    %597 = vector.broadcast %cst_237 : f32 to vector<88x128xf32>
    %598 = tpu.concatenate %593, %594, %592, %595, %596, %597 in 0 : vector<8x128xf32>, vector<8x128xf32>, vector<8x128xf32>, vector<8x128xf32>, vector<8x128xf32>, vector<88x128xf32> -> vector<128x128xf32>
    %c112 = arith.constant 112 : index
    %c0_238 = arith.constant 0 : index
    %599 = vector.load %arg2[%c112, %c0_238] : memref<152x128xf32, #tpu.memory_space<vmem>>, vector<8x128xf32>
    %cst_239 = arith.constant dense<0.000000e+00> : vector<8x128xf32>
    %600 = tpu.matmul %599, %598, %cst_239 {dimension_numbers = #tpu.dot_dimension_numbers<[1], [0], [0], [1], [0, 0, 1, 1], [], []>} : vector<8x128xf32>, vector<128x128xf32>, vector<8x128xf32> -> vector<8x128xf32>
    %c112_240 = arith.constant 112 : index
    %c0_241 = arith.constant 0 : index
    %601 = vector.load %arg3[%c112_240, %c0_241] : memref<152x2xf32, #tpu.memory_space<vmem>>, vector<8x2xf32>
    %cst_242 = arith.constant dense<0.000000e+00> : vector<8xf32>
    %602 = vector.multi_reduction <add>, %600, %cst_242 [1] : vector<8x128xf32> to vector<8xf32>
    %603 = vector.shape_cast %602 : vector<8xf32> to vector<8x1xf32>
    %604 = arith.mulf %600, %600 : vector<8x128xf32>
    %cst_243 = arith.constant dense<0.000000e+00> : vector<8xf32>
    %605 = vector.multi_reduction <add>, %604, %cst_243 [1] : vector<8x128xf32> to vector<8xf32>
    %606 = vector.shape_cast %605 : vector<8xf32> to vector<8x1xf32>
    %cst_244 = arith.constant 7.812500e-03 : f32
    %607 = vector.broadcast %cst_244 : f32 to vector<8x1xf32>
    %608 = arith.mulf %603, %607 : vector<8x1xf32>
    %cst_245 = arith.constant 7.812500e-03 : f32
    %609 = vector.broadcast %cst_245 : f32 to vector<8x1xf32>
    %610 = arith.mulf %606, %609 : vector<8x1xf32>
    %611 = arith.mulf %608, %608 : vector<8x1xf32>
    %612 = arith.subf %610, %611 : vector<8x1xf32>
    %cst_246 = arith.constant 0.000000e+00 : f32
    %613 = vector.broadcast %cst_246 : f32 to vector<8x1xf32>
    %614 = arith.maximumf %612, %613 : vector<8x1xf32>
    %cst_247 = arith.constant 9.99999974E-6 : f32
    %615 = vector.broadcast %cst_247 : f32 to vector<8x1xf32>
    %616 = arith.addf %614, %615 : vector<8x1xf32>
    %617 = math.rsqrt %616 : vector<8x1xf32>
    %618 = vector.extract_strided_slice %601 {offsets = [0, 0], sizes = [8, 1], strides = [1, 1]} : vector<8x2xf32> to vector<8x1xf32>
    %619 = arith.mulf %617, %618 : vector<8x1xf32>
    %620 = vector.broadcast %608 : vector<8x1xf32> to vector<8x128xf32>
    %621 = arith.subf %600, %620 : vector<8x128xf32>
    %622 = vector.broadcast %619 : vector<8x1xf32> to vector<8x128xf32>
    %623 = arith.mulf %621, %622 : vector<8x128xf32>
    %624 = vector.extract_strided_slice %601 {offsets = [0, 1], sizes = [8, 1], strides = [1, 1]} : vector<8x2xf32> to vector<8x1xf32>
    %625 = vector.broadcast %624 : vector<8x1xf32> to vector<8x128xf32>
    %626 = arith.addf %623, %625 : vector<8x128xf32>
    %cst_248 = arith.constant 0.000000e+00 : f32
    %627 = vector.broadcast %cst_248 : f32 to vector<8x128xf32>
    %628 = arith.maximumf %626, %627 : vector<8x128xf32>
    %cst_249 = arith.constant dense<0.000000e+00> : vector<8x128xf32>
    %629 = tpu.matmul %628, %543, %cst_249 {dimension_numbers = #tpu.dot_dimension_numbers<[1], [0], [0], [1], [0, 0, 1, 1], [], []>} : vector<8x128xf32>, vector<128x128xf32>, vector<8x128xf32> -> vector<8x128xf32>
    %cst_250 = arith.constant dense<0.000000e+00> : vector<8x128xf32>
    %630 = tpu.matmul %628, %480, %cst_250 {dimension_numbers = #tpu.dot_dimension_numbers<[1], [0], [0], [1], [0, 0, 1, 1], [], []>} : vector<8x128xf32>, vector<128x128xf32>, vector<8x128xf32> -> vector<8x128xf32>
    %cst_251 = arith.constant dense<0.000000e+00> : vector<8x128xf32>
    %631 = tpu.matmul %628, %559, %cst_251 {dimension_numbers = #tpu.dot_dimension_numbers<[1], [0], [0], [1], [0, 0, 1, 1], [], []>} : vector<8x128xf32>, vector<128x128xf32>, vector<8x128xf32> -> vector<8x128xf32>
    %cst_252 = arith.constant 0.000000e+00 : f32
    %632 = vector.broadcast %cst_252 : f32 to vector<96x128xf32>
    %633 = tpu.concatenate %629, %628, %630, %631, %632 in 0 : vector<8x128xf32>, vector<8x128xf32>, vector<8x128xf32>, vector<8x128xf32>, vector<96x128xf32> -> vector<128x128xf32>
    %c120 = arith.constant 120 : index
    %c0_253 = arith.constant 0 : index
    %634 = vector.load %arg2[%c120, %c0_253] : memref<152x128xf32, #tpu.memory_space<vmem>>, vector<8x128xf32>
    %cst_254 = arith.constant dense<0.000000e+00> : vector<8x128xf32>
    %635 = tpu.matmul %634, %633, %cst_254 {dimension_numbers = #tpu.dot_dimension_numbers<[1], [0], [0], [1], [0, 0, 1, 1], [], []>} : vector<8x128xf32>, vector<128x128xf32>, vector<8x128xf32> -> vector<8x128xf32>
    %636 = vector.extract_strided_slice %635 {offsets = [0, 0], sizes = [4, 128], strides = [1, 1]} : vector<8x128xf32> to vector<4x128xf32>
    %c120_255 = arith.constant 120 : index
    %c0_256 = arith.constant 0 : index
    %637 = vector.load %arg3[%c120_255, %c0_256] : memref<152x2xf32, #tpu.memory_space<vmem>>, vector<8x2xf32>
    %cst_257 = arith.constant dense<0.000000e+00> : vector<4xf32>
    %638 = vector.multi_reduction <add>, %636, %cst_257 [1] : vector<4x128xf32> to vector<4xf32>
    %639 = vector.shape_cast %638 : vector<4xf32> to vector<4x1xf32>
    %640 = arith.mulf %636, %636 : vector<4x128xf32>
    %cst_258 = arith.constant dense<0.000000e+00> : vector<4xf32>
    %641 = vector.multi_reduction <add>, %640, %cst_258 [1] : vector<4x128xf32> to vector<4xf32>
    %642 = vector.shape_cast %641 : vector<4xf32> to vector<4x1xf32>
    %cst_259 = arith.constant 7.812500e-03 : f32
    %643 = vector.broadcast %cst_259 : f32 to vector<4x1xf32>
    %644 = arith.mulf %639, %643 : vector<4x1xf32>
    %cst_260 = arith.constant 7.812500e-03 : f32
    %645 = vector.broadcast %cst_260 : f32 to vector<4x1xf32>
    %646 = arith.mulf %642, %645 : vector<4x1xf32>
    %647 = arith.mulf %644, %644 : vector<4x1xf32>
    %648 = arith.subf %646, %647 : vector<4x1xf32>
    %cst_261 = arith.constant 0.000000e+00 : f32
    %649 = vector.broadcast %cst_261 : f32 to vector<4x1xf32>
    %650 = arith.maximumf %648, %649 : vector<4x1xf32>
    %cst_262 = arith.constant 9.99999974E-6 : f32
    %651 = vector.broadcast %cst_262 : f32 to vector<4x1xf32>
    %652 = arith.addf %650, %651 : vector<4x1xf32>
    %653 = math.rsqrt %652 : vector<4x1xf32>
    %654 = vector.extract_strided_slice %637 {offsets = [0, 0], sizes = [4, 1], strides = [1, 1]} : vector<8x2xf32> to vector<4x1xf32>
    %655 = arith.mulf %653, %654 : vector<4x1xf32>
    %656 = vector.broadcast %644 : vector<4x1xf32> to vector<4x128xf32>
    %657 = arith.subf %636, %656 : vector<4x128xf32>
    %658 = vector.broadcast %655 : vector<4x1xf32> to vector<4x128xf32>
    %659 = arith.mulf %657, %658 : vector<4x128xf32>
    %660 = vector.extract_strided_slice %637 {offsets = [0, 1], sizes = [4, 1], strides = [1, 1]} : vector<8x2xf32> to vector<4x1xf32>
    %661 = vector.broadcast %660 : vector<4x1xf32> to vector<4x128xf32>
    %662 = arith.addf %659, %661 : vector<4x128xf32>
    %cst_263 = arith.constant 0.000000e+00 : f32
    %663 = vector.broadcast %cst_263 : f32 to vector<4x128xf32>
    %664 = arith.maximumf %662, %663 : vector<4x128xf32>
    %665 = tpu.concatenate %664, %134 in 0 : vector<4x128xf32>, vector<4x128xf32> -> vector<8x128xf32>
    %cst_264 = arith.constant dense<0.000000e+00> : vector<8x128xf32>
    %666 = tpu.matmul %665, %528, %cst_264 {dimension_numbers = #tpu.dot_dimension_numbers<[1], [0], [0], [1], [0, 0, 1, 1], [], []>} : vector<8x128xf32>, vector<128x128xf32>, vector<8x128xf32> -> vector<8x128xf32>
    %cst_265 = arith.constant dense<0.000000e+00> : vector<8x128xf32>
    %667 = tpu.matmul %665, %543, %cst_265 {dimension_numbers = #tpu.dot_dimension_numbers<[1], [0], [0], [1], [0, 0, 1, 1], [], []>} : vector<8x128xf32>, vector<128x128xf32>, vector<8x128xf32> -> vector<8x128xf32>
    %cst_266 = arith.constant dense<0.000000e+00> : vector<8x128xf32>
    %668 = tpu.matmul %665, %480, %cst_266 {dimension_numbers = #tpu.dot_dimension_numbers<[1], [0], [0], [1], [0, 0, 1, 1], [], []>} : vector<8x128xf32>, vector<128x128xf32>, vector<8x128xf32> -> vector<8x128xf32>
    %cst_267 = arith.constant dense<0.000000e+00> : vector<8x128xf32>
    %669 = tpu.matmul %665, %559, %cst_267 {dimension_numbers = #tpu.dot_dimension_numbers<[1], [0], [0], [1], [0, 0, 1, 1], [], []>} : vector<8x128xf32>, vector<128x128xf32>, vector<8x128xf32> -> vector<8x128xf32>
    %cst_268 = arith.constant 0.000000e+00 : f32
    %670 = vector.broadcast %cst_268 : f32 to vector<88x128xf32>
    %671 = tpu.concatenate %666, %667, %665, %668, %669, %670 in 0 : vector<8x128xf32>, vector<8x128xf32>, vector<8x128xf32>, vector<8x128xf32>, vector<8x128xf32>, vector<88x128xf32> -> vector<128x128xf32>
    %c128 = arith.constant 128 : index
    %c0_269 = arith.constant 0 : index
    %672 = vector.load %arg2[%c128, %c0_269] : memref<152x128xf32, #tpu.memory_space<vmem>>, vector<8x128xf32>
    %cst_270 = arith.constant dense<0.000000e+00> : vector<8x128xf32>
    %673 = tpu.matmul %672, %671, %cst_270 {dimension_numbers = #tpu.dot_dimension_numbers<[1], [0], [0], [1], [0, 0, 1, 1], [], []>} : vector<8x128xf32>, vector<128x128xf32>, vector<8x128xf32> -> vector<8x128xf32>
    %674 = vector.extract_strided_slice %673 {offsets = [0, 0], sizes = [4, 128], strides = [1, 1]} : vector<8x128xf32> to vector<4x128xf32>
    %c128_271 = arith.constant 128 : index
    %c0_272 = arith.constant 0 : index
    %675 = vector.load %arg3[%c128_271, %c0_272] : memref<152x2xf32, #tpu.memory_space<vmem>>, vector<8x2xf32>
    %cst_273 = arith.constant dense<0.000000e+00> : vector<4xf32>
    %676 = vector.multi_reduction <add>, %674, %cst_273 [1] : vector<4x128xf32> to vector<4xf32>
    %677 = vector.shape_cast %676 : vector<4xf32> to vector<4x1xf32>
    %678 = arith.mulf %674, %674 : vector<4x128xf32>
    %cst_274 = arith.constant dense<0.000000e+00> : vector<4xf32>
    %679 = vector.multi_reduction <add>, %678, %cst_274 [1] : vector<4x128xf32> to vector<4xf32>
    %680 = vector.shape_cast %679 : vector<4xf32> to vector<4x1xf32>
    %cst_275 = arith.constant 7.812500e-03 : f32
    %681 = vector.broadcast %cst_275 : f32 to vector<4x1xf32>
    %682 = arith.mulf %677, %681 : vector<4x1xf32>
    %cst_276 = arith.constant 7.812500e-03 : f32
    %683 = vector.broadcast %cst_276 : f32 to vector<4x1xf32>
    %684 = arith.mulf %680, %683 : vector<4x1xf32>
    %685 = arith.mulf %682, %682 : vector<4x1xf32>
    %686 = arith.subf %684, %685 : vector<4x1xf32>
    %cst_277 = arith.constant 0.000000e+00 : f32
    %687 = vector.broadcast %cst_277 : f32 to vector<4x1xf32>
    %688 = arith.maximumf %686, %687 : vector<4x1xf32>
    %cst_278 = arith.constant 9.99999974E-6 : f32
    %689 = vector.broadcast %cst_278 : f32 to vector<4x1xf32>
    %690 = arith.addf %688, %689 : vector<4x1xf32>
    %691 = math.rsqrt %690 : vector<4x1xf32>
    %692 = vector.extract_strided_slice %675 {offsets = [0, 0], sizes = [4, 1], strides = [1, 1]} : vector<8x2xf32> to vector<4x1xf32>
    %693 = arith.mulf %691, %692 : vector<4x1xf32>
    %694 = vector.broadcast %682 : vector<4x1xf32> to vector<4x128xf32>
    %695 = arith.subf %674, %694 : vector<4x128xf32>
    %696 = vector.broadcast %693 : vector<4x1xf32> to vector<4x128xf32>
    %697 = arith.mulf %695, %696 : vector<4x128xf32>
    %698 = vector.extract_strided_slice %675 {offsets = [0, 1], sizes = [4, 1], strides = [1, 1]} : vector<8x2xf32> to vector<4x1xf32>
    %699 = vector.broadcast %698 : vector<4x1xf32> to vector<4x128xf32>
    %700 = arith.addf %697, %699 : vector<4x128xf32>
    %cst_279 = arith.constant 0.000000e+00 : f32
    %701 = vector.broadcast %cst_279 : f32 to vector<4x128xf32>
    %702 = arith.maximumf %700, %701 : vector<4x128xf32>
    %cst_280 = arith.constant 0.000000e+00 : f32
    %703 = vector.broadcast %cst_280 : f32 to vector<4x128xf32>
    %704 = tpu.concatenate %702, %703 in 0 : vector<4x128xf32>, vector<4x128xf32> -> vector<8x128xf32>
    %cst_281 = arith.constant dense<0.000000e+00> : vector<8x128xf32>
    %705 = tpu.matmul %704, %528, %cst_281 {dimension_numbers = #tpu.dot_dimension_numbers<[1], [0], [0], [1], [0, 0, 1, 1], [], []>} : vector<8x128xf32>, vector<128x128xf32>, vector<8x128xf32> -> vector<8x128xf32>
    %cst_282 = arith.constant dense<0.000000e+00> : vector<8x128xf32>
    %706 = tpu.matmul %704, %543, %cst_282 {dimension_numbers = #tpu.dot_dimension_numbers<[1], [0], [0], [1], [0, 0, 1, 1], [], []>} : vector<8x128xf32>, vector<128x128xf32>, vector<8x128xf32> -> vector<8x128xf32>
    %cst_283 = arith.constant dense<0.000000e+00> : vector<8x128xf32>
    %707 = tpu.matmul %704, %480, %cst_283 {dimension_numbers = #tpu.dot_dimension_numbers<[1], [0], [0], [1], [0, 0, 1, 1], [], []>} : vector<8x128xf32>, vector<128x128xf32>, vector<8x128xf32> -> vector<8x128xf32>
    %cst_284 = arith.constant dense<0.000000e+00> : vector<8x128xf32>
    %708 = tpu.matmul %704, %559, %cst_284 {dimension_numbers = #tpu.dot_dimension_numbers<[1], [0], [0], [1], [0, 0, 1, 1], [], []>} : vector<8x128xf32>, vector<128x128xf32>, vector<8x128xf32> -> vector<8x128xf32>
    %cst_285 = arith.constant 0.000000e+00 : f32
    %709 = vector.broadcast %cst_285 : f32 to vector<88x128xf32>
    %710 = tpu.concatenate %705, %706, %704, %707, %708, %709 in 0 : vector<8x128xf32>, vector<8x128xf32>, vector<8x128xf32>, vector<8x128xf32>, vector<8x128xf32>, vector<88x128xf32> -> vector<128x128xf32>
    %c136 = arith.constant 136 : index
    %c0_286 = arith.constant 0 : index
    %711 = vector.load %arg2[%c136, %c0_286] : memref<152x128xf32, #tpu.memory_space<vmem>>, vector<8x128xf32>
    %cst_287 = arith.constant dense<0.000000e+00> : vector<8x128xf32>
    %712 = tpu.matmul %711, %710, %cst_287 {dimension_numbers = #tpu.dot_dimension_numbers<[1], [0], [0], [1], [0, 0, 1, 1], [], []>} : vector<8x128xf32>, vector<128x128xf32>, vector<8x128xf32> -> vector<8x128xf32>
    %713 = vector.extract_strided_slice %712 {offsets = [0, 0], sizes = [4, 128], strides = [1, 1]} : vector<8x128xf32> to vector<4x128xf32>
    %c136_288 = arith.constant 136 : index
    %c0_289 = arith.constant 0 : index
    %714 = vector.load %arg3[%c136_288, %c0_289] : memref<152x2xf32, #tpu.memory_space<vmem>>, vector<8x2xf32>
    %cst_290 = arith.constant dense<0.000000e+00> : vector<4xf32>
    %715 = vector.multi_reduction <add>, %713, %cst_290 [1] : vector<4x128xf32> to vector<4xf32>
    %716 = vector.shape_cast %715 : vector<4xf32> to vector<4x1xf32>
    %717 = arith.mulf %713, %713 : vector<4x128xf32>
    %cst_291 = arith.constant dense<0.000000e+00> : vector<4xf32>
    %718 = vector.multi_reduction <add>, %717, %cst_291 [1] : vector<4x128xf32> to vector<4xf32>
    %719 = vector.shape_cast %718 : vector<4xf32> to vector<4x1xf32>
    %cst_292 = arith.constant 7.812500e-03 : f32
    %720 = vector.broadcast %cst_292 : f32 to vector<4x1xf32>
    %721 = arith.mulf %716, %720 : vector<4x1xf32>
    %cst_293 = arith.constant 7.812500e-03 : f32
    %722 = vector.broadcast %cst_293 : f32 to vector<4x1xf32>
    %723 = arith.mulf %719, %722 : vector<4x1xf32>
    %724 = arith.mulf %721, %721 : vector<4x1xf32>
    %725 = arith.subf %723, %724 : vector<4x1xf32>
    %cst_294 = arith.constant 0.000000e+00 : f32
    %726 = vector.broadcast %cst_294 : f32 to vector<4x1xf32>
    %727 = arith.maximumf %725, %726 : vector<4x1xf32>
    %cst_295 = arith.constant 9.99999974E-6 : f32
    %728 = vector.broadcast %cst_295 : f32 to vector<4x1xf32>
    %729 = arith.addf %727, %728 : vector<4x1xf32>
    %730 = math.rsqrt %729 : vector<4x1xf32>
    %731 = vector.extract_strided_slice %714 {offsets = [0, 0], sizes = [4, 1], strides = [1, 1]} : vector<8x2xf32> to vector<4x1xf32>
    %732 = arith.mulf %730, %731 : vector<4x1xf32>
    %733 = vector.broadcast %721 : vector<4x1xf32> to vector<4x128xf32>
    %734 = arith.subf %713, %733 : vector<4x128xf32>
    %735 = vector.broadcast %732 : vector<4x1xf32> to vector<4x128xf32>
    %736 = arith.mulf %734, %735 : vector<4x128xf32>
    %737 = vector.extract_strided_slice %714 {offsets = [0, 1], sizes = [4, 1], strides = [1, 1]} : vector<8x2xf32> to vector<4x1xf32>
    %738 = vector.broadcast %737 : vector<4x1xf32> to vector<4x128xf32>
    %739 = arith.addf %736, %738 : vector<4x128xf32>
    %cst_296 = arith.constant 0.000000e+00 : f32
    %740 = vector.broadcast %cst_296 : f32 to vector<4x128xf32>
    %741 = arith.maximumf %739, %740 : vector<4x128xf32>
    %cst_297 = arith.constant 0.000000e+00 : f32
    %742 = vector.broadcast %cst_297 : f32 to vector<4x128xf32>
    %743 = tpu.concatenate %741, %742 in 0 : vector<4x128xf32>, vector<4x128xf32> -> vector<8x128xf32>
    %cst_298 = arith.constant 0.000000e+00 : f32
    %744 = vector.broadcast %cst_298 : f32 to vector<120x128xf32>
    %745 = tpu.concatenate %743, %744 in 0 : vector<8x128xf32>, vector<120x128xf32> -> vector<128x128xf32>
    %c144 = arith.constant 144 : index
    %c0_299 = arith.constant 0 : index
    %746 = vector.load %arg2[%c144, %c0_299] : memref<152x128xf32, #tpu.memory_space<vmem>>, vector<8x128xf32>
    %cst_300 = arith.constant dense<0.000000e+00> : vector<8x128xf32>
    %747 = tpu.matmul %746, %745, %cst_300 {dimension_numbers = #tpu.dot_dimension_numbers<[1], [0], [0], [1], [0, 0, 1, 1], [], []>} : vector<8x128xf32>, vector<128x128xf32>, vector<8x128xf32> -> vector<8x128xf32>
    %748 = vector.extract_strided_slice %747 {offsets = [0, 0], sizes = [3, 128], strides = [1, 1]} : vector<8x128xf32> to vector<3x128xf32>
    %c144_301 = arith.constant 144 : index
    %c0_302 = arith.constant 0 : index
    %749 = vector.load %arg3[%c144_301, %c0_302] : memref<152x2xf32, #tpu.memory_space<vmem>>, vector<8x2xf32>
    %750 = vector.extract_strided_slice %749 {offsets = [0, 0], sizes = [3, 1], strides = [1, 1]} : vector<8x2xf32> to vector<3x1xf32>
    %751 = vector.broadcast %750 : vector<3x1xf32> to vector<3x128xf32>
    %752 = arith.addf %748, %751 : vector<3x128xf32>
    %c0_303 = arith.constant 0 : index
    %c0_304 = arith.constant 0 : index
    %753 = vector.load %arg4[%c0_303, %c0_304] : memref<3x128xf32, #tpu.memory_space<vmem>>, vector<3x128xf32>
    tpu.vector_store %arg4[%c0_303, %c0_304], %752 {strides = array<i32>} : memref<3x128xf32, #tpu.memory_space<vmem>>, vector<3x128xf32>,
    return
  }
  func.func @transform_0(%arg0: i32) -> (i32, i32) {
    %c0_i32 = arith.constant 0 : i32
    %c0_i32_0 = arith.constant 0 : i32
    %c0_i32_1 = arith.constant 0 : i32
    return %c0_i32, %c0_i32_0 : i32, i32
  }
  func.func @transform_1(%arg0: i32) -> (i32, i32) {
    %c0_i32 = arith.constant 0 : i32
    %c0_i32_0 = arith.constant 0 : i32
    %c0_i32_1 = arith.constant 0 : i32
    return %c0_i32, %c0_i32_0 : i32, i32
  }
  func.func @transform_2(%arg0: i32) -> (i32, i32) {
    %c0_i32 = arith.constant 0 : i32
    %c0_i32_0 = arith.constant 0 : i32
    %c0_i32_1 = arith.constant 0 : i32
    return %c0_i32, %c0_i32_0 : i32, i32
  }
  func.func @transform_3(%arg0: i32) -> (i32, i32) {
    %c0_i32 = arith.constant 0 : i32
    %c0_i32_0 = arith.constant 0 : i32
    %c0_i32_1 = arith.constant 0 : i32
    return %c0_i32, %c0_i32_0 : i32, i32
  }
}

</mosaic_0001>

<llo_original>
// kernel: forward.1
$region0: #{forward.1}
  #allocation0 [shape = 'u32[]', space=smem, size = 0x4, offset = 0x4, fixed_abs, tag = 'smem constant byte address 0x4 - core index']
  #allocation1 [shape = 'u32[144,128]{1,0:T(1,128)}', space=vmem, size = 0x12000, scoped, tag = 'internal scratch']
  %s0 = inlined_call_operand.vmem [shape: f32[2,128], index: 0, kind: input, shape index: {}]
  %s1 = inlined_call_operand.hbm [shape: f32[152,128], index: 1, kind: input, shape index: {}]
  %s2 = inlined_call_operand.hbm [shape: f32[152,2], index: 2, kind: input, shape index: {}]
  %s3 = inlined_call_operand.vmem [shape: f32[3,128], index: 3, kind: output, shape index: {}]
  %s4 = sld [smem:[#allocation0]]
  $region30: #{forward.1} parent=0
    _
  %s6 = ssub.s32 1, %s4
  %s7 = scalar_select 0, %s6, %s4
  $region1: #{forward.1} parent=0
    #allocation2 [shape = 'u8[77824]{0}', space=vmem, size = 0x13000, scoped, tag = 'input window, operand 1, single buffered']
    #allocation3 [shape = 's32[1]{0}', space=sflag, size = 0x4, scoped, tag = 'scoped memory for forward.1']
    #allocation4 [shape = 'u8[77824]{0}', space=vmem, size = 0x13000, scoped, tag = 'input window, operand 2, single buffered']
    #allocation5 [shape = 's32[1]{0}', space=sflag, size = 0x4, scoped, tag = 'scoped memory for forward.1']
    %8 = vsyncpa [#allocation3], 0
    %9 = vsyncpa [#allocation5], 0
    // Predicated region
    $region2: #{forward.1} parent=1 // pred_check
      _
    $region3: #{forward.1} parent=1 // pred_check_branch
      %11 = sbr.rel (0) target = $region5
    $region4: #{forward.1} parent=1 // pred_region
      _
    $region5: #{forward.1} parent=1 // pred_fallthru
      _
    // Predicated region
    $region6: #{forward.1} parent=1 // pred_check
      _
    $region7: #{forward.1} parent=1 // pred_check_branch
      %13 = sbr.rel (0) target = $region9
    $region8: #{forward.1} parent=1 // pred_region
      %s15 = ssub.s32 2432, 2432
      %16 = vsyncadd [#allocation3], %s15
      %s17 = sshll.u32 [#allocation2], 4
      %s18 = int_to_ptr.vmem [resolvable:$true] %s17
      %23 = dma.hbm_to_vmem [thread:$0]  %s1, 2432, %s18, [#allocation3], 128, 128, 8
    $region9: #{forward.1} parent=1 // pred_fallthru
      _
    // Predicated region
    $region10: #{forward.1} parent=1 // pred_check
      _
    $region11: #{forward.1} parent=1 // pred_check_branch
      %25 = sbr.rel (0) target = $region13
    $region12: #{forward.1} parent=1 // pred_region
      %s27 = ssub.s32 2432, 2432
      %28 = vsyncadd [#allocation5], %s27
      %s29 = sshll.u32 [#allocation4], 4
      %s30 = int_to_ptr.vmem [resolvable:$true] %s29
      %35 = dma.hbm_to_vmem [thread:$0]  %s2, 2432, %s30, [#allocation5], 128, 128, 8
    $region13: #{forward.1} parent=1 // pred_fallthru
      _
    // Predicated region
    $region14: #{forward.1} parent=1 // pred_check
      _
    $region15: #{forward.1} parent=1 // pred_check_branch
      %37 = sbr.rel (0) target = $region17
    $region16: #{forward.1} parent=1 // pred_region
      %38 = dma.done [#allocation3], 2432
    $region17: #{forward.1} parent=1 // pred_fallthru
      _
    // Predicated region
    $region18: #{forward.1} parent=1 // pred_check
      _
    $region19: #{forward.1} parent=1 // pred_check_branch
      %40 = sbr.rel (0) target = $region21
    $region20: #{forward.1} parent=1 // pred_region
      %41 = dma.done [#allocation5], 2432
    $region21: #{forward.1} parent=1 // pred_fallthru
      _
    %v42 = vld [vmem:[%s0] sm:$0x3]
    %vm43 = vcmask 1041408
    %v44 = vsel %vm43, %v42, 0.0
    %v45 = vlaneseq
    %v46 = vshrl.u32 %v45, 7
    %v47 = vadd.s32 %v46, 8
    %v48 = vadd.s32 %v46, 16
    %v49 = vadd.s32 %v46, 24
    %v50 = vadd.s32 %v46, 32
    %v51 = vadd.s32 %v46, 40
    %v52 = vadd.s32 %v46, 48
    %v53 = vadd.s32 %v46, 56
    %v54 = vadd.s32 %v46, 64
    %v55 = vadd.s32 %v46, 72
    %v56 = vadd.s32 %v46, 80
    %v57 = vadd.s32 %v46, 88
    %v58 = vadd.s32 %v46, 96
    %v59 = vadd.s32 %v46, 104
    %v60 = vadd.s32 %v46, 112
    %v61 = vadd.s32 %v46, 120
    %v62 = vlaneseq
    %v63 = vand.u32 %v62, 127
    %v64 = vadd.s32 %v63, 4294967278
    %vm65 = vcmp.eq.s32.totalorder %v46, %v64
    %vm66 = vcmp.eq.s32.totalorder %v47, %v64
    %vm67 = vcmp.eq.s32.totalorder %v48, %v64
    %vm68 = vcmp.eq.s32.totalorder %v49, %v64
    %vm69 = vcmp.eq.s32.totalorder %v50, %v64
    %vm70 = vcmp.eq.s32.totalorder %v51, %v64
    %vm71 = vcmp.eq.s32.totalorder %v52, %v64
    %vm72 = vcmp.eq.s32.totalorder %v53, %v64
    %vm73 = vcmp.eq.s32.totalorder %v54, %v64
    %vm74 = vcmp.eq.s32.totalorder %v55, %v64
    %vm75 = vcmp.eq.s32.totalorder %v56, %v64
    %vm76 = vcmp.eq.s32.totalorder %v57, %v64
    %vm77 = vcmp.eq.s32.totalorder %v58, %v64
    %vm78 = vcmp.eq.s32.totalorder %v59, %v64
    %vm79 = vcmp.eq.s32.totalorder %v60, %v64
    %vm80 = vcmp.eq.s32.totalorder %v61, %v64
    %v81 = vshra.s32 %v46, 6
    %v82 = vshra.s32 %v47, 6
    %v83 = vshra.s32 %v48, 6
    %v84 = vshra.s32 %v49, 6
    %v85 = vshra.s32 %v50, 6
    %v86 = vshra.s32 %v51, 6
    %v87 = vshra.s32 %v52, 6
    %v88 = vshra.s32 %v53, 6
    %v89 = vshra.s32 %v54, 6
    %v90 = vshra.s32 %v55, 6
    %v91 = vshra.s32 %v56, 6
    %v92 = vshra.s32 %v57, 6
    %v93 = vshra.s32 %v58, 6
    %v94 = vshra.s32 %v59, 6
    %v95 = vshra.s32 %v60, 6
    %v96 = vshra.s32 %v61, 6
    %v97 = vshra.s32 %v63, 6
    %vm98 = vcmp.eq.s32.totalorder %v81, %v97
    %vm99 = vcmp.eq.s32.totalorder %v82, %v97
    %vm100 = vcmp.eq.s32.totalorder %v83, %v97
    %vm101 = vcmp.eq.s32.totalorder %v84, %v97
    %vm102 = vcmp.eq.s32.totalorder %v85, %v97
    %vm103 = vcmp.eq.s32.totalorder %v86, %v97
    %vm104 = vcmp.eq.s32.totalorder %v87, %v97
    %vm105 = vcmp.eq.s32.totalorder %v88, %v97
    %vm106 = vcmp.eq.s32.totalorder %v89, %v97
    %vm107 = vcmp.eq.s32.totalorder %v90, %v97
    %vm108 = vcmp.eq.s32.totalorder %v91, %v97
    %vm109 = vcmp.eq.s32.totalorder %v92, %v97
    %vm110 = vcmp.eq.s32.totalorder %v93, %v97
    %vm111 = vcmp.eq.s32.totalorder %v94, %v97
    %vm112 = vcmp.eq.s32.totalorder %v95, %v97
    %vm113 = vcmp.eq.s32.totalorder %v96, %v97
    %vm114 = vmand %vm65, %vm98
    %vm115 = vmand %vm66, %vm99
    %vm116 = vmand %vm67, %vm100
    %vm117 = vmand %vm68, %vm101
    %vm118 = vmand %vm69, %vm102
    %vm119 = vmand %vm70, %vm103
    %vm120 = vmand %vm71, %vm104
    %vm121 = vmand %vm72, %vm105
    %vm122 = vmand %vm73, %vm106
    %vm123 = vmand %vm74, %vm107
    %vm124 = vmand %vm75, %vm108
    %vm125 = vmand %vm76, %vm109
    %vm126 = vmand %vm77, %vm110
    %vm127 = vmand %vm78, %vm111
    %vm128 = vmand %vm79, %vm112
    %vm129 = vmand %vm80, %vm113
    %v130 = vsel %vm114, 1.0, 0.0
    %v131 = vsel %vm115, 1.0, 0.0
    %v132 = vsel %vm116, 1.0, 0.0
    %v133 = vsel %vm117, 1.0, 0.0
    %v134 = vsel %vm118, 1.0, 0.0
    %v135 = vsel %vm119, 1.0, 0.0
    %v136 = vsel %vm120, 1.0, 0.0
    %v137 = vsel %vm121, 1.0, 0.0
    %v138 = vsel %vm122, 1.0, 0.0
    %v139 = vsel %vm123, 1.0, 0.0
    %v140 = vsel %vm124, 1.0, 0.0
    %v141 = vsel %vm125, 1.0, 0.0
    %v142 = vsel %vm126, 1.0, 0.0
    %v143 = vsel %vm127, 1.0, 0.0
    %v144 = vsel %vm128, 1.0, 0.0
    %v145 = vsel %vm129, 1.0, 0.0
    %146 = vmatprep.subr.mxu0 0.0
    %147 = vmatpush1.msra.mxu0 %v130
    %148 = vmatprep.subr.mxu0 0.0
    %149 = vmatpush1.msra.mxu0 %v131
    %150 = vmatprep.subr.mxu0 0.0
    %151 = vmatpush1.msra.mxu0 %v132
    %152 = vmatprep.subr.mxu0 0.0
    %153 = vmatpush1.msra.mxu0 %v133
    %154 = vmatprep.subr.mxu0 0.0
    %155 = vmatpush1.msra.mxu0 %v134
    %156 = vmatprep.subr.mxu0 0.0
    %157 = vmatpush1.msra.mxu0 %v135
    %158 = vmatprep.subr.mxu0 0.0
    %159 = vmatpush1.msra.mxu0 %v136
    %160 = vmatprep.subr.mxu0 0.0
    %161 = vmatpush1.msra.mxu0 %v137
    %162 = vmatprep.subr.mxu0 0.0
    %163 = vmatpush1.msra.mxu0 %v138
    %164 = vmatprep.subr.mxu0 0.0
    %165 = vmatpush1.msra.mxu0 %v139
    %166 = vmatprep.subr.mxu0 0.0
    %167 = vmatpush1.msra.mxu0 %v140
    %168 = vmatprep.subr.mxu0 0.0
    %169 = vmatpush1.msra.mxu0 %v141
    %170 = vmatprep.subr.mxu0 0.0
    %171 = vmatpush1.msra.mxu0 %v142
    %172 = vmatprep.subr.mxu0 0.0
    %173 = vmatpush1.msra.mxu0 %v143
    %174 = vmatprep.subr.mxu0 0.0
    %175 = vmatpush1.msra.mxu0 %v144
    %176 = vmatprep.subr.mxu0 0.0
    %177 = vmatpush1.msra.mxu0 %v145
    %178 = vmatprep.subr.mxu0 0.0
    %179 = vmatpush1.msra.mxu0 0.0
    %180 = vmatprep.subr.mxu0 0.0
    %181 = vmatpush1.msra.mxu0 0.0
    %182 = vmatprep.subr.mxu0 0.0
    %183 = vmatpush1.msra.mxu0 0.0
    %184 = vmatprep.subr.mxu0 0.0
    %185 = vmatpush1.msra.mxu0 0.0
    %186 = vmatprep.subr.mxu0 0.0
    %187 = vmatpush1.msra.mxu0 0.0
    %188 = vmatprep.subr.mxu0 0.0
    %189 = vmatpush1.msra.mxu0 0.0
    %190 = vmatprep.subr.mxu0 0.0
    %191 = vmatpush1.msra.mxu0 0.0
    %192 = vmatprep.subr.mxu0 0.0
    %193 = vmatpush1.msra.mxu0 0.0
    %194 = vmatprep.subr.mxu0 0.0
    %195 = vmatpush1.msra.mxu0 0.0
    %196 = vmatprep.subr.mxu0 0.0
    %197 = vmatpush1.msra.mxu0 0.0
    %198 = vmatprep.subr.mxu0 0.0
    %199 = vmatpush1.msra.mxu0 0.0
    %200 = vmatprep.subr.mxu0 0.0
    %201 = vmatpush1.msra.mxu0 0.0
    %202 = vmatprep.subr.mxu0 0.0
    %203 = vmatpush1.msra.mxu0 0.0
    %204 = vmatprep.subr.mxu0 0.0
    %205 = vmatpush1.msra.mxu0 0.0
    %206 = vmatprep.subr.mxu0 0.0
    %207 = vmatpush1.msra.mxu0 0.0
    %208 = vmatprep.subr.mxu0 0.0
    %209 = vmatpush1.msra.mxu0 0.0
    %210 = vmatprep.mubr.f32.mxu0 0.0
    %211 = vmatmul.mubr.f32.gmra.mrb[0].mxu0 %v44
    %v212 = vpop.f32.mrb[0].mxu0
    %v213 = vadd.f32 0.0, %v212
    %v214 = vpop.f32.mrb[0].mxu0
    %215 = vdwg.mxu0
    %v216 = vadd.s32 %v63, 4294967287
    %vm217 = vcmp.eq.s32.totalorder %v46, %v216
    %vm218 = vcmp.eq.s32.totalorder %v47, %v216
    %vm219 = vcmp.eq.s32.totalorder %v48, %v216
    %vm220 = vcmp.eq.s32.totalorder %v49, %v216
    %vm221 = vcmp.eq.s32.totalorder %v50, %v216
    %vm222 = vcmp.eq.s32.totalorder %v51, %v216
    %vm223 = vcmp.eq.s32.totalorder %v52, %v216
    %vm224 = vcmp.eq.s32.totalorder %v53, %v216
    %vm225 = vcmp.eq.s32.totalorder %v54, %v216
    %vm226 = vcmp.eq.s32.totalorder %v55, %v216
    %vm227 = vcmp.eq.s32.totalorder %v56, %v216
    %vm228 = vcmp.eq.s32.totalorder %v57, %v216
    %vm229 = vcmp.eq.s32.totalorder %v58, %v216
    %vm230 = vcmp.eq.s32.totalorder %v59, %v216
    %vm231 = vcmp.eq.s32.totalorder %v60, %v216
    %vm232 = vcmp.eq.s32.totalorder %v61, %v216
    %vm233 = vmand %vm217, %vm98
    %vm234 = vmand %vm218, %vm99
    %vm235 = vmand %vm219, %vm100
    %vm236 = vmand %vm220, %vm101
    %vm237 = vmand %vm221, %vm102
    %vm238 = vmand %vm222, %vm103
    %vm239 = vmand %vm223, %vm104
    %vm240 = vmand %vm224, %vm105
    %vm241 = vmand %vm225, %vm106
    %vm242 = vmand %vm226, %vm107
    %vm243 = vmand %vm227, %vm108
    %vm244 = vmand %vm228, %vm109
    %vm245 = vmand %vm229, %vm110
    %vm246 = vmand %vm230, %vm111
    %vm247 = vmand %vm231, %vm112
    %vm248 = vmand %vm232, %vm113
    %v249 = vsel %vm233, 1.0, 0.0
    %v250 = vsel %vm234, 1.0, 0.0
    %v251 = vsel %vm235, 1.0, 0.0
    %v252 = vsel %vm236, 1.0, 0.0
    %v253 = vsel %vm237, 1.0, 0.0
    %v254 = vsel %vm238, 1.0, 0.0
    %v255 = vsel %vm239, 1.0, 0.0
    %v256 = vsel %vm240, 1.0, 0.0
    %v257 = vsel %vm241, 1.0, 0.0
    %v258 = vsel %vm242, 1.0, 0.0
    %v259 = vsel %vm243, 1.0, 0.0
    %v260 = vsel %vm244, 1.0, 0.0
    %v261 = vsel %vm245, 1.0, 0.0
    %v262 = vsel %vm246, 1.0, 0.0
    %v263 = vsel %vm247, 1.0, 0.0
    %v264 = vsel %vm248, 1.0, 0.0
    %265 = vmatprep.subr.mxu0 0.0
    %266 = vmatpush1.msra.mxu0 %v249
    %267 = vmatprep.subr.mxu0 0.0
    %268 = vmatpush1.msra.mxu0 %v250
    %269 = vmatprep.subr.mxu0 0.0
    %270 = vmatpush1.msra.mxu0 %v251
    %271 = vmatprep.subr.mxu0 0.0
    %272 = vmatpush1.msra.mxu0 %v252
    %273 = vmatprep.subr.mxu0 0.0
    %274 = vmatpush1.msra.mxu0 %v253
    %275 = vmatprep.subr.mxu0 0.0
    %276 = vmatpush1.msra.mxu0 %v254
    %277 = vmatprep.subr.mxu0 0.0
    %278 = vmatpush1.msra.mxu0 %v255
    %279 = vmatprep.subr.mxu0 0.0
    %280 = vmatpush1.msra.mxu0 %v256
    %281 = vmatprep.subr.mxu0 0.0
    %282 = vmatpush1.msra.mxu0 %v257
    %283 = vmatprep.subr.mxu0 0.0
    %284 = vmatpush1.msra.mxu0 %v258
    %285 = vmatprep.subr.mxu0 0.0
    %286 = vmatpush1.msra.mxu0 %v259
    %287 = vmatprep.subr.mxu0 0.0
    %288 = vmatpush1.msra.mxu0 %v260
    %289 = vmatprep.subr.mxu0 0.0
    %290 = vmatpush1.msra.mxu0 %v261
    %291 = vmatprep.subr.mxu0 0.0
    %292 = vmatpush1.msra.mxu0 %v262
    %293 = vmatprep.subr.mxu0 0.0
    %294 = vmatpush1.msra.mxu0 %v263
    %295 = vmatprep.subr.mxu0 0.0
    %296 = vmatpush1.msra.mxu0 %v264
    %297 = vmatprep.subr.mxu0 0.0
    %298 = vmatpush1.msra.mxu0 0.0
    %299 = vmatprep.subr.mxu0 0.0
    %300 = vmatpush1.msra.mxu0 0.0
    %301 = vmatprep.subr.mxu0 0.0
    %302 = vmatpush1.msra.mxu0 0.0
    %303 = vmatprep.subr.mxu0 0.0
    %304 = vmatpush1.msra.mxu0 0.0
    %305 = vmatprep.subr.mxu0 0.0
    %306 = vmatpush1.msra.mxu0 0.0
    %307 = vmatprep.subr.mxu0 0.0
    %308 = vmatpush1.msra.mxu0 0.0
    %309 = vmatprep.subr.mxu0 0.0
    %310 = vmatpush1.msra.mxu0 0.0
    %311 = vmatprep.subr.mxu0 0.0
    %312 = vmatpush1.msra.mxu0 0.0
    %313 = vmatprep.subr.mxu0 0.0
    %314 = vmatpush1.msra.mxu0 0.0
    %315 = vmatprep.subr.mxu0 0.0
    %316 = vmatpush1.msra.mxu0 0.0
    %317 = vmatprep.subr.mxu0 0.0
    %318 = vmatpush1.msra.mxu0 0.0
    %319 = vmatprep.subr.mxu0 0.0
    %320 = vmatpush1.msra.mxu0 0.0
    %321 = vmatprep.subr.mxu0 0.0
    %322 = vmatpush1.msra.mxu0 0.0
    %323 = vmatprep.subr.mxu0 0.0
    %324 = vmatpush1.msra.mxu0 0.0
    %325 = vmatprep.subr.mxu0 0.0
    %326 = vmatpush1.msra.mxu0 0.0
    %327 = vmatprep.subr.mxu0 0.0
    %328 = vmatpush1.msra.mxu0 0.0
    %329 = vmatprep.mubr.f32.mxu0 0.0
    %330 = vmatmul.mubr.f32.gmra.mrb[0].mxu0 %v44
    %v331 = vpop.f32.mrb[0].mxu0
    %v332 = vadd.f32 0.0, %v331
    %v333 = vpop.f32.mrb[0].mxu0
    %334 = vdwg.mxu0
    %v335 = vadd.s32 %v63, 9
    %vm336 = vcmp.eq.s32.totalorder %v46, %v335
    %vm337 = vcmp.eq.s32.totalorder %v47, %v335
    %vm338 = vcmp.eq.s32.totalorder %v48, %v335
    %vm339 = vcmp.eq.s32.totalorder %v49, %v335
    %vm340 = vcmp.eq.s32.totalorder %v50, %v335
    %vm341 = vcmp.eq.s32.totalorder %v51, %v335
    %vm342 = vcmp.eq.s32.totalorder %v52, %v335
    %vm343 = vcmp.eq.s32.totalorder %v53, %v335
    %vm344 = vcmp.eq.s32.totalorder %v54, %v335
    %vm345 = vcmp.eq.s32.totalorder %v55, %v335
    %vm346 = vcmp.eq.s32.totalorder %v56, %v335
    %vm347 = vcmp.eq.s32.totalorder %v57, %v335
    %vm348 = vcmp.eq.s32.totalorder %v58, %v335
    %vm349 = vcmp.eq.s32.totalorder %v59, %v335
    %vm350 = vcmp.eq.s32.totalorder %v60, %v335
    %vm351 = vcmp.eq.s32.totalorder %v61, %v335
    %vm352 = vmand %vm336, %vm98
    %vm353 = vmand %vm337, %vm99
    %vm354 = vmand %vm338, %vm100
    %vm355 = vmand %vm339, %vm101
    %vm356 = vmand %vm340, %vm102
    %vm357 = vmand %vm341, %vm103
    %vm358 = vmand %vm342, %vm104
    %vm359 = vmand %vm343, %vm105
    %vm360 = vmand %vm344, %vm106
    %vm361 = vmand %vm345, %vm107
    %vm362 = vmand %vm346, %vm108
    %vm363 = vmand %vm347, %vm109
    %vm364 = vmand %vm348, %vm110
    %vm365 = vmand %vm349, %vm111
    %vm366 = vmand %vm350, %vm112
    %vm367 = vmand %vm351, %vm113
    %v368 = vsel %vm352, 1.0, 0.0
    %v369 = vsel %vm353, 1.0, 0.0
    %v370 = vsel %vm354, 1.0, 0.0
    %v371 = vsel %vm355, 1.0, 0.0
    %v372 = vsel %vm356, 1.0, 0.0
    %v373 = vsel %vm357, 1.0, 0.0
    %v374 = vsel %vm358, 1.0, 0.0
    %v375 = vsel %vm359, 1.0, 0.0
    %v376 = vsel %vm360, 1.0, 0.0
    %v377 = vsel %vm361, 1.0, 0.0
    %v378 = vsel %vm362, 1.0, 0.0
    %v379 = vsel %vm363, 1.0, 0.0
    %v380 = vsel %vm364, 1.0, 0.0
    %v381 = vsel %vm365, 1.0, 0.0
    %v382 = vsel %vm366, 1.0, 0.0
    %v383 = vsel %vm367, 1.0, 0.0
    %384 = vmatprep.subr.mxu0 0.0
    %385 = vmatpush1.msra.mxu0 %v368
    %386 = vmatprep.subr.mxu0 0.0
    %387 = vmatpush1.msra.mxu0 %v369
    %388 = vmatprep.subr.mxu0 0.0
    %389 = vmatpush1.msra.mxu0 %v370
    %390 = vmatprep.subr.mxu0 0.0
    %391 = vmatpush1.msra.mxu0 %v371
    %392 = vmatprep.subr.mxu0 0.0
    %393 = vmatpush1.msra.mxu0 %v372
    %394 = vmatprep.subr.mxu0 0.0
    %395 = vmatpush1.msra.mxu0 %v373
    %396 = vmatprep.subr.mxu0 0.0
    %397 = vmatpush1.msra.mxu0 %v374
    %398 = vmatprep.subr.mxu0 0.0
    %399 = vmatpush1.msra.mxu0 %v375
    %400 = vmatprep.subr.mxu0 0.0
    %401 = vmatpush1.msra.mxu0 %v376
    %402 = vmatprep.subr.mxu0 0.0
    %403 = vmatpush1.msra.mxu0 %v377
    %404 = vmatprep.subr.mxu0 0.0
    %405 = vmatpush1.msra.mxu0 %v378
    %406 = vmatprep.subr.mxu0 0.0
    %407 = vmatpush1.msra.mxu0 %v379
    %408 = vmatprep.subr.mxu0 0.0
    %409 = vmatpush1.msra.mxu0 %v380
    %410 = vmatprep.subr.mxu0 0.0
    %411 = vmatpush1.msra.mxu0 %v381
    %412 = vmatprep.subr.mxu0 0.0
    %413 = vmatpush1.msra.mxu0 %v382
    %414 = vmatprep.subr.mxu0 0.0
    %415 = vmatpush1.msra.mxu0 %v383
    %416 = vmatprep.subr.mxu0 0.0
    %417 = vmatpush1.msra.mxu0 0.0
    %418 = vmatprep.subr.mxu0 0.0
    %419 = vmatpush1.msra.mxu0 0.0
    %420 = vmatprep.subr.mxu0 0.0
    %421 = vmatpush1.msra.mxu0 0.0
    %422 = vmatprep.subr.mxu0 0.0
    %423 = vmatpush1.msra.mxu0 0.0
    %424 = vmatprep.subr.mxu0 0.0
    %425 = vmatpush1.msra.mxu0 0.0
    %426 = vmatprep.subr.mxu0 0.0
    %427 = vmatpush1.msra.mxu0 0.0
    %428 = vmatprep.subr.mxu0 0.0
    %429 = vmatpush1.msra.mxu0 0.0
    %430 = vmatprep.subr.mxu0 0.0
    %431 = vmatpush1.msra.mxu0 0.0
    %432 = vmatprep.subr.mxu0 0.0
    %433 = vmatpush1.msra.mxu0 0.0
    %434 = vmatprep.subr.mxu0 0.0
    %435 = vmatpush1.msra.mxu0 0.0
    %436 = vmatprep.subr.mxu0 0.0
    %437 = vmatpush1.msra.mxu0 0.0
    %438 = vmatprep.subr.mxu0 0.0
    %439 = vmatpush1.msra.mxu0 0.0
    %440 = vmatprep.subr.mxu0 0.0
    %441 = vmatpush1.msra.mxu0 0.0
    %442 = vmatprep.subr.mxu0 0.0
    %443 = vmatpush1.msra.mxu0 0.0
    %444 = vmatprep.subr.mxu0 0.0
    %445 = vmatpush1.msra.mxu0 0.0
    %446 = vmatprep.subr.mxu0 0.0
    %447 = vmatpush1.msra.mxu0 0.0
    %448 = vmatprep.mubr.f32.mxu0 0.0
    %449 = vmatmul.mubr.f32.gmra.mrb[0].mxu0 %v44
    %v450 = vpop.f32.mrb[0].mxu0
    %v451 = vadd.f32 0.0, %v450
    %v452 = vpop.f32.mrb[0].mxu0
    %453 = vdwg.mxu0
    %v454 = vadd.s32 %v63, 18
    %vm455 = vcmp.eq.s32.totalorder %v46, %v454
    %vm456 = vcmp.eq.s32.totalorder %v47, %v454
    %vm457 = vcmp.eq.s32.totalorder %v48, %v454
    %vm458 = vcmp.eq.s32.totalorder %v49, %v454
    %vm459 = vcmp.eq.s32.totalorder %v50, %v454
    %vm460 = vcmp.eq.s32.totalorder %v51, %v454
    %vm461 = vcmp.eq.s32.totalorder %v52, %v454
    %vm462 = vcmp.eq.s32.totalorder %v53, %v454
    %vm463 = vcmp.eq.s32.totalorder %v54, %v454
    %vm464 = vcmp.eq.s32.totalorder %v55, %v454
    %vm465 = vcmp.eq.s32.totalorder %v56, %v454
    %vm466 = vcmp.eq.s32.totalorder %v57, %v454
    %vm467 = vcmp.eq.s32.totalorder %v58, %v454
    %vm468 = vcmp.eq.s32.totalorder %v59, %v454
    %vm469 = vcmp.eq.s32.totalorder %v60, %v454
    %vm470 = vcmp.eq.s32.totalorder %v61, %v454
    %vm471 = vmand %vm455, %vm98
    %vm472 = vmand %vm456, %vm99
    %vm473 = vmand %vm457, %vm100
    %vm474 = vmand %vm458, %vm101
    %vm475 = vmand %vm459, %vm102
    %vm476 = vmand %vm460, %vm103
    %vm477 = vmand %vm461, %vm104
    %vm478 = vmand %vm462, %vm105
    %vm479 = vmand %vm463, %vm106
    %vm480 = vmand %vm464, %vm107
    %vm481 = vmand %vm465, %vm108
    %vm482 = vmand %vm466, %vm109
    %vm483 = vmand %vm467, %vm110
    %vm484 = vmand %vm468, %vm111
    %vm485 = vmand %vm469, %vm112
    %vm486 = vmand %vm470, %vm113
    %v487 = vsel %vm471, 1.0, 0.0
    %v488 = vsel %vm472, 1.0, 0.0
    %v489 = vsel %vm473, 1.0, 0.0
    %v490 = vsel %vm474, 1.0, 0.0
    %v491 = vsel %vm475, 1.0, 0.0
    %v492 = vsel %vm476, 1.0, 0.0
    %v493 = vsel %vm477, 1.0, 0.0
    %v494 = vsel %vm478, 1.0, 0.0
    %v495 = vsel %vm479, 1.0, 0.0
    %v496 = vsel %vm480, 1.0, 0.0
    %v497 = vsel %vm481, 1.0, 0.0
    %v498 = vsel %vm482, 1.0, 0.0
    %v499 = vsel %vm483, 1.0, 0.0
    %v500 = vsel %vm484, 1.0, 0.0
    %v501 = vsel %vm485, 1.0, 0.0
    %v502 = vsel %vm486, 1.0, 0.0
    %503 = vmatprep.subr.mxu0 0.0
    %504 = vmatpush1.msra.mxu0 %v487
    %505 = vmatprep.subr.mxu0 0.0
    %506 = vmatpush1.msra.mxu0 %v488
    %507 = vmatprep.subr.mxu0 0.0
    %508 = vmatpush1.msra.mxu0 %v489
    %509 = vmatprep.subr.mxu0 0.0
    %510 = vmatpush1.msra.mxu0 %v490
    %511 = vmatprep.subr.mxu0 0.0
    %512 = vmatpush1.msra.mxu0 %v491
    %513 = vmatprep.subr.mxu0 0.0
    %514 = vmatpush1.msra.mxu0 %v492
    %515 = vmatprep.subr.mxu0 0.0
    %516 = vmatpush1.msra.mxu0 %v493
    %517 = vmatprep.subr.mxu0 0.0
    %518 = vmatpush1.msra.mxu0 %v494
    %519 = vmatprep.subr.mxu0 0.0
    %520 = vmatpush1.msra.mxu0 %v495
    %521 = vmatprep.subr.mxu0 0.0
    %522 = vmatpush1.msra.mxu0 %v496
    %523 = vmatprep.subr.mxu0 0.0
    %524 = vmatpush1.msra.mxu0 %v497
    %525 = vmatprep.subr.mxu0 0.0
    %526 = vmatpush1.msra.mxu0 %v498
    %527 = vmatprep.subr.mxu0 0.0
    %528 = vmatpush1.msra.mxu0 %v499
    %529 = vmatprep.subr.mxu0 0.0
    %530 = vmatpush1.msra.mxu0 %v500
    %531 = vmatprep.subr.mxu0 0.0
    %532 = vmatpush1.msra.mxu0 %v501
    %533 = vmatprep.subr.mxu0 0.0
    %534 = vmatpush1.msra.mxu0 %v502
    %535 = vmatprep.subr.mxu0 0.0
    %536 = vmatpush1.msra.mxu0 0.0
    %537 = vmatprep.subr.mxu0 0.0
    %538 = vmatpush1.msra.mxu0 0.0
    %539 = vmatprep.subr.mxu0 0.0
    %540 = vmatpush1.msra.mxu0 0.0
    %541 = vmatprep.subr.mxu0 0.0
    %542 = vmatpush1.msra.mxu0 0.0
    %543 = vmatprep.subr.mxu0 0.0
    %544 = vmatpush1.msra.mxu0 0.0
    %545 = vmatprep.subr.mxu0 0.0
    %546 = vmatpush1.msra.mxu0 0.0
    %547 = vmatprep.subr.mxu0 0.0
    %548 = vmatpush1.msra.mxu0 0.0
    %549 = vmatprep.subr.mxu0 0.0
    %550 = vmatpush1.msra.mxu0 0.0
    %551 = vmatprep.subr.mxu0 0.0
    %552 = vmatpush1.msra.mxu0 0.0
    %553 = vmatprep.subr.mxu0 0.0
    %554 = vmatpush1.msra.mxu0 0.0
    %555 = vmatprep.subr.mxu0 0.0
    %556 = vmatpush1.msra.mxu0 0.0
    %557 = vmatprep.subr.mxu0 0.0
    %558 = vmatpush1.msra.mxu0 0.0
    %559 = vmatprep.subr.mxu0 0.0
    %560 = vmatpush1.msra.mxu0 0.0
    %561 = vmatprep.subr.mxu0 0.0
    %562 = vmatpush1.msra.mxu0 0.0
    %563 = vmatprep.subr.mxu0 0.0
    %564 = vmatpush1.msra.mxu0 0.0
    %565 = vmatprep.subr.mxu0 0.0
    %566 = vmatpush1.msra.mxu0 0.0
    %567 = vmatprep.mubr.f32.mxu0 0.0
    %568 = vmatmul.mubr.f32.gmra.mrb[0].mxu0 %v44
    %v569 = vpop.f32.mrb[0].mxu0
    %v570 = vadd.f32 0.0, %v569
    %v571 = vpop.f32.mrb[0].mxu0
    %572 = vdwg.mxu0
    %v573 = vld [vmem:[#allocation2] sm:$0xff]
    %574 = vmatprep.subr.mxu0 0.0
    %575 = vmatpush1.msra.mxu0 %v213
    %576 = vmatprep.subr.mxu0 0.0
    %577 = vmatpush1.msra.mxu0 %v332
    %578 = vmatprep.subr.mxu0 0.0
    %579 = vmatpush1.msra.mxu0 %v44
    %580 = vmatprep.subr.mxu0 0.0
    %581 = vmatpush1.msra.mxu0 %v451
    %582 = vmatprep.subr.mxu0 0.0
    %583 = vmatpush1.msra.mxu0 %v570
    %584 = vmatprep.subr.mxu0 0.0
    %585 = vmatpush1.msra.mxu0 0.0
    %586 = vmatprep.subr.mxu0 0.0
    %587 = vmatpush1.msra.mxu0 0.0
    %588 = vmatprep.subr.mxu0 0.0
    %589 = vmatpush1.msra.mxu0 0.0
    %590 = vmatprep.subr.mxu0 0.0
    %591 = vmatpush1.msra.mxu0 0.0
    %592 = vmatprep.subr.mxu0 0.0
    %593 = vmatpush1.msra.mxu0 0.0
    %594 = vmatprep.subr.mxu0 0.0
    %595 = vmatpush1.msra.mxu0 0.0
    %596 = vmatprep.subr.mxu0 0.0
    %597 = vmatpush1.msra.mxu0 0.0
    %598 = vmatprep.subr.mxu0 0.0
    %599 = vmatpush1.msra.mxu0 0.0
    %600 = vmatprep.subr.mxu0 0.0
    %601 = vmatpush1.msra.mxu0 0.0
    %602 = vmatprep.subr.mxu0 0.0
    %603 = vmatpush1.msra.mxu0 0.0
    %604 = vmatprep.subr.mxu0 0.0
    %605 = vmatpush1.msra.mxu0 0.0
    %606 = vmatprep.subr.mxu0 0.0
    %607 = vmatpush1.msra.mxu0 0.0
    %608 = vmatprep.subr.mxu0 0.0
    %609 = vmatpush1.msra.mxu0 0.0
    %610 = vmatprep.subr.mxu0 0.0
    %611 = vmatpush1.msra.mxu0 0.0
    %612 = vmatprep.subr.mxu0 0.0
    %613 = vmatpush1.msra.mxu0 0.0
    %614 = vmatprep.subr.mxu0 0.0
    %615 = vmatpush1.msra.mxu0 0.0
    %616 = vmatprep.subr.mxu0 0.0
    %617 = vmatpush1.msra.mxu0 0.0
    %618 = vmatprep.subr.mxu0 0.0
    %619 = vmatpush1.msra.mxu0 0.0
    %620 = vmatprep.subr.mxu0 0.0
    %621 = vmatpush1.msra.mxu0 0.0
    %622 = vmatprep.subr.mxu0 0.0
    %623 = vmatpush1.msra.mxu0 0.0
    %624 = vmatprep.subr.mxu0 0.0
    %625 = vmatpush1.msra.mxu0 0.0
    %626 = vmatprep.subr.mxu0 0.0
    %627 = vmatpush1.msra.mxu0 0.0
    %628 = vmatprep.subr.mxu0 0.0
    %629 = vmatpush1.msra.mxu0 0.0
    %630 = vmatprep.subr.mxu0 0.0
    %631 = vmatpush1.msra.mxu0 0.0
    %632 = vmatprep.subr.mxu0 0.0
    %633 = vmatpush1.msra.mxu0 0.0
    %634 = vmatprep.subr.mxu0 0.0
    %635 = vmatpush1.msra.mxu0 0.0
    %636 = vmatprep.subr.mxu0 0.0
    %637 = vmatpush1.msra.mxu0 0.0
    %638 = vmatprep.mubr.f32.mxu0 0.0
    %639 = vmatmul.mubr.f32.gmra.mrb[0].mxu0 %v573
    %v640 = vpop.f32.mrb[0].mxu0
    %v641 = vadd.f32 0.0, %v640
    %v642 = vpop.f32.mrb[0].mxu0
    %643 = vdwg.mxu0
    %v644 = vld [vmem:[#allocation4] sm:$0xff]
    %vm645 = vcmask 1043456
    %v646 = vsel %vm645, %v641, 0.0
    %647 = vadd.xlane.f32.xlu0 %v646
    %v648 = vpop.xlane.xlu0 %647
    %v649 = vmul.f32 %v641, %v641
    %v650 = vsel %vm645, %v649, 0.0
    %651 = vadd.xlane.f32.xlu0 %v650
    %v652 = vpop.xlane.xlu0 %651
    %v653 = vmul.f32 %v648, 0.0078125
    %v654 = vmul.f32 %v652, 0.0078125
    %v655 = vmul.f32 %v653, %v653
    %v656 = vsub.f32 %v654, %v655
    %v657 = vmax.f32 %v656, 0.0
    %v658 = vadd.f32 %v657, 1e-05
    %v659 = vrsqrt.pop %v658
    %v660 = vmul.f32 %v659, %v644
    %v661 = vsub.f32 %v641, %v653
    %663 = vset.pattern.permute.xlu0 0
    %664 = vperm.xlu0 %663, %v660
    %v665 = vpop.permute.xlu0 %664
    %v667 = vmul.f32 %v661, %v665
    %669 = vset.pattern.permute.xlu0 1
    %670 = vperm.xlu0 %669, %v644
    %v671 = vpop.permute.xlu0 %670
    %v673 = vadd.f32 %v667, %v671
    %v674 = vmax.f32 %v673, 0.0
    %v675 = vsel %vm645, %v674, 0.0
    %676 = vmatprep.subr.mxu0 0.0
    %677 = vmatpush1.msra.mxu0 %v130
    %678 = vmatprep.subr.mxu0 0.0
    %679 = vmatpush1.msra.mxu0 %v131
    %680 = vmatprep.subr.mxu0 0.0
    %681 = vmatpush1.msra.mxu0 %v132
    %682 = vmatprep.subr.mxu0 0.0
    %683 = vmatpush1.msra.mxu0 %v133
    %684 = vmatprep.subr.mxu0 0.0
    %685 = vmatpush1.msra.mxu0 %v134
    %686 = vmatprep.subr.mxu0 0.0
    %687 = vmatpush1.msra.mxu0 %v135
    %688 = vmatprep.subr.mxu0 0.0
    %689 = vmatpush1.msra.mxu0 %v136
    %690 = vmatprep.subr.mxu0 0.0
    %691 = vmatpush1.msra.mxu0 %v137
    %692 = vmatprep.subr.mxu0 0.0
    %693 = vmatpush1.msra.mxu0 %v138
    %694 = vmatprep.subr.mxu0 0.0
    %695 = vmatpush1.msra.mxu0 %v139
    %696 = vmatprep.subr.mxu0 0.0
    %697 = vmatpush1.msra.mxu0 %v140
    %698 = vmatprep.subr.mxu0 0.0
    %699 = vmatpush1.msra.mxu0 %v141
    %700 = vmatprep.subr.mxu0 0.0
    %701 = vmatpush1.msra.mxu0 %v142
    %702 = vmatprep.subr.mxu0 0.0
    %703 = vmatpush1.msra.mxu0 %v143
    %704 = vmatprep.subr.mxu0 0.0
    %705 = vmatpush1.msra.mxu0 %v144
    %706 = vmatprep.subr.mxu0 0.0
    %707 = vmatpush1.msra.mxu0 %v145
    %708 = vmatprep.subr.mxu0 0.0
    %709 = vmatpush1.msra.mxu0 0.0
    %710 = vmatprep.subr.mxu0 0.0
    %711 = vmatpush1.msra.mxu0 0.0
    %712 = vmatprep.subr.mxu0 0.0
    %713 = vmatpush1.msra.mxu0 0.0
    %714 = vmatprep.subr.mxu0 0.0
    %715 = vmatpush1.msra.mxu0 0.0
    %716 = vmatprep.subr.mxu0 0.0
    %717 = vmatpush1.msra.mxu0 0.0
    %718 = vmatprep.subr.mxu0 0.0
    %719 = vmatpush1.msra.mxu0 0.0
    %720 = vmatprep.subr.mxu0 0.0
    %721 = vmatpush1.msra.mxu0 0.0
    %722 = vmatprep.subr.mxu0 0.0
    %723 = vmatpush1.msra.mxu0 0.0
    %724 = vmatprep.subr.mxu0 0.0
    %725 = vmatpush1.msra.mxu0 0.0
    %726 = vmatprep.subr.mxu0 0.0
    %727 = vmatpush1.msra.mxu0 0.0
    %728 = vmatprep.subr.mxu0 0.0
    %729 = vmatpush1.msra.mxu0 0.0
    %730 = vmatprep.subr.mxu0 0.0
    %731 = vmatpush1.msra.mxu0 0.0
    %732 = vmatprep.subr.mxu0 0.0
    %733 = vmatpush1.msra.mxu0 0.0
    %734 = vmatprep.subr.mxu0 0.0
    %735 = vmatpush1.msra.mxu0 0.0
    %736 = vmatprep.subr.mxu0 0.0
    %737 = vmatpush1.msra.mxu0 0.0
    %738 = vmatprep.subr.mxu0 0.0
    %739 = vmatpush1.msra.mxu0 0.0
    %740 = vmatprep.mubr.f32.mxu0 0.0
    %741 = vmatmul.mubr.f32.gmra.mrb[0].mxu0 %v675
    %v742 = vpop.f32.mrb[0].mxu0
    %v743 = vadd.f32 0.0, %v742
    %v744 = vpop.f32.mrb[0].mxu0
    %745 = vdwg.mxu0
    %746 = vmatprep.subr.mxu0 0.0
    %747 = vmatpush1.msra.mxu0 %v249
    %748 = vmatprep.subr.mxu0 0.0
    %749 = vmatpush1.msra.mxu0 %v250
    %750 = vmatprep.subr.mxu0 0.0
    %751 = vmatpush1.msra.mxu0 %v251
    %752 = vmatprep.subr.mxu0 0.0
    %753 = vmatpush1.msra.mxu0 %v252
    %754 = vmatprep.subr.mxu0 0.0
    %755 = vmatpush1.msra.mxu0 %v253
    %756 = vmatprep.subr.mxu0 0.0
    %757 = vmatpush1.msra.mxu0 %v254
    %758 = vmatprep.subr.mxu0 0.0
    %759 = vmatpush1.msra.mxu0 %v255
    %760 = vmatprep.subr.mxu0 0.0
    %761 = vmatpush1.msra.mxu0 %v256
    %762 = vmatprep.subr.mxu0 0.0
    %763 = vmatpush1.msra.mxu0 %v257
    %764 = vmatprep.subr.mxu0 0.0
    %765 = vmatpush1.msra.mxu0 %v258
    %766 = vmatprep.subr.mxu0 0.0
    %767 = vmatpush1.msra.mxu0 %v259
    %768 = vmatprep.subr.mxu0 0.0
    %769 = vmatpush1.msra.mxu0 %v260
    %770 = vmatprep.subr.mxu0 0.0
    %771 = vmatpush1.msra.mxu0 %v261
    %772 = vmatprep.subr.mxu0 0.0
    %773 = vmatpush1.msra.mxu0 %v262
    %774 = vmatprep.subr.mxu0 0.0
    %775 = vmatpush1.msra.mxu0 %v263
    %776 = vmatprep.subr.mxu0 0.0
    %777 = vmatpush1.msra.mxu0 %v264
    %778 = vmatprep.subr.mxu0 0.0
    %779 = vmatpush1.msra.mxu0 0.0
    %780 = vmatprep.subr.mxu0 0.0
    %781 = vmatpush1.msra.mxu0 0.0
    %782 = vmatprep.subr.mxu0 0.0
    %783 = vmatpush1.msra.mxu0 0.0
    %784 = vmatprep.subr.mxu0 0.0
    %785 = vmatpush1.msra.mxu0 0.0
    %786 = vmatprep.subr.mxu0 0.0
    %787 = vmatpush1.msra.mxu0 0.0
    %788 = vmatprep.subr.mxu0 0.0
    %789 = vmatpush1.msra.mxu0 0.0
    %790 = vmatprep.subr.mxu0 0.0
    %791 = vmatpush1.msra.mxu0 0.0
    %792 = vmatprep.subr.mxu0 0.0
    %793 = vmatpush1.msra.mxu0 0.0
    %794 = vmatprep.subr.mxu0 0.0
    %795 = vmatpush1.msra.mxu0 0.0
    %796 = vmatprep.subr.mxu0 0.0
    %797 = vmatpush1.msra.mxu0 0.0
    %798 = vmatprep.subr.mxu0 0.0
    %799 = vmatpush1.msra.mxu0 0.0
    %800 = vmatprep.subr.mxu0 0.0
    %801 = vmatpush1.msra.mxu0 0.0
    %802 = vmatprep.subr.mxu0 0.0
    %803 = vmatpush1.msra.mxu0 0.0
    %804 = vmatprep.subr.mxu0 0.0
    %805 = vmatpush1.msra.mxu0 0.0
    %806 = vmatprep.subr.mxu0 0.0
    %807 = vmatpush1.msra.mxu0 0.0
    %808 = vmatprep.subr.mxu0 0.0
    %809 = vmatpush1.msra.mxu0 0.0
    %810 = vmatprep.mubr.f32.mxu0 0.0
    %811 = vmatmul.mubr.f32.gmra.mrb[0].mxu0 %v675
    %v812 = vpop.f32.mrb[0].mxu0
    %v813 = vadd.f32 0.0, %v812
    %v814 = vpop.f32.mrb[0].mxu0
    %815 = vdwg.mxu0
    %816 = vmatprep.subr.mxu0 0.0
    %817 = vmatpush1.msra.mxu0 %v368
    %818 = vmatprep.subr.mxu0 0.0
    %819 = vmatpush1.msra.mxu0 %v369
    %820 = vmatprep.subr.mxu0 0.0
    %821 = vmatpush1.msra.mxu0 %v370
    %822 = vmatprep.subr.mxu0 0.0
    %823 = vmatpush1.msra.mxu0 %v371
    %824 = vmatprep.subr.mxu0 0.0
    %825 = vmatpush1.msra.mxu0 %v372
    %826 = vmatprep.subr.mxu0 0.0
    %827 = vmatpush1.msra.mxu0 %v373
    %828 = vmatprep.subr.mxu0 0.0
    %829 = vmatpush1.msra.mxu0 %v374
    %830 = vmatprep.subr.mxu0 0.0
    %831 = vmatpush1.msra.mxu0 %v375
    %832 = vmatprep.subr.mxu0 0.0
    %833 = vmatpush1.msra.mxu0 %v376
    %834 = vmatprep.subr.mxu0 0.0
    %835 = vmatpush1.msra.mxu0 %v377
    %836 = vmatprep.subr.mxu0 0.0
    %837 = vmatpush1.msra.mxu0 %v378
    %838 = vmatprep.subr.mxu0 0.0
    %839 = vmatpush1.msra.mxu0 %v379
    %840 = vmatprep.subr.mxu0 0.0
    %841 = vmatpush1.msra.mxu0 %v380
    %842 = vmatprep.subr.mxu0 0.0
    %843 = vmatpush1.msra.mxu0 %v381
    %844 = vmatprep.subr.mxu0 0.0
    %845 = vmatpush1.msra.mxu0 %v382
    %846 = vmatprep.subr.mxu0 0.0
    %847 = vmatpush1.msra.mxu0 %v383
    %848 = vmatprep.subr.mxu0 0.0
    %849 = vmatpush1.msra.mxu0 0.0
    %850 = vmatprep.subr.mxu0 0.0
    %851 = vmatpush1.msra.mxu0 0.0
    %852 = vmatprep.subr.mxu0 0.0
    %853 = vmatpush1.msra.mxu0 0.0
    %854 = vmatprep.subr.mxu0 0.0
    %855 = vmatpush1.msra.mxu0 0.0
    %856 = vmatprep.subr.mxu0 0.0
    %857 = vmatpush1.msra.mxu0 0.0
    %858 = vmatprep.subr.mxu0 0.0
    %859 = vmatpush1.msra.mxu0 0.0
    %860 = vmatprep.subr.mxu0 0.0
    %861 = vmatpush1.msra.mxu0 0.0
    %862 = vmatprep.subr.mxu0 0.0
    %863 = vmatpush1.msra.mxu0 0.0
    %864 = vmatprep.subr.mxu0 0.0
    %865 = vmatpush1.msra.mxu0 0.0
    %866 = vmatprep.subr.mxu0 0.0
    %867 = vmatpush1.msra.mxu0 0.0
    %868 = vmatprep.subr.mxu0 0.0
    %869 = vmatpush1.msra.mxu0 0.0
    %870 = vmatprep.subr.mxu0 0.0
    %871 = vmatpush1.msra.mxu0 0.0
    %872 = vmatprep.subr.mxu0 0.0
    %873 = vmatpush1.msra.mxu0 0.0
    %874 = vmatprep.subr.mxu0 0.0
    %875 = vmatpush1.msra.mxu0 0.0
    %876 = vmatprep.subr.mxu0 0.0
    %877 = vmatpush1.msra.mxu0 0.0
    %878 = vmatprep.subr.mxu0 0.0
    %879 = vmatpush1.msra.mxu0 0.0
    %880 = vmatprep.mubr.f32.mxu0 0.0
    %881 = vmatmul.mubr.f32.gmra.mrb[0].mxu0 %v675
    %v882 = vpop.f32.mrb[0].mxu0
    %v883 = vadd.f32 0.0, %v882
    %v884 = vpop.f32.mrb[0].mxu0
    %885 = vdwg.mxu0
    %886 = vmatprep.subr.mxu0 0.0
    %887 = vmatpush1.msra.mxu0 %v487
    %888 = vmatprep.subr.mxu0 0.0
    %889 = vmatpush1.msra.mxu0 %v488
    %890 = vmatprep.subr.mxu0 0.0
    %891 = vmatpush1.msra.mxu0 %v489
    %892 = vmatprep.subr.mxu0 0.0
    %893 = vmatpush1.msra.mxu0 %v490
    %894 = vmatprep.subr.mxu0 0.0
    %895 = vmatpush1.msra.mxu0 %v491
    %896 = vmatprep.subr.mxu0 0.0
    %897 = vmatpush1.msra.mxu0 %v492
    %898 = vmatprep.subr.mxu0 0.0
    %899 = vmatpush1.msra.mxu0 %v493
    %900 = vmatprep.subr.mxu0 0.0
    %901 = vmatpush1.msra.mxu0 %v494
    %902 = vmatprep.subr.mxu0 0.0
    %903 = vmatpush1.msra.mxu0 %v495
    %904 = vmatprep.subr.mxu0 0.0
    %905 = vmatpush1.msra.mxu0 %v496
    %906 = vmatprep.subr.mxu0 0.0
    %907 = vmatpush1.msra.mxu0 %v497
    %908 = vmatprep.subr.mxu0 0.0
    %909 = vmatpush1.msra.mxu0 %v498
    %910 = vmatprep.subr.mxu0 0.0
    %911 = vmatpush1.msra.mxu0 %v499
    %912 = vmatprep.subr.mxu0 0.0
    %913 = vmatpush1.msra.mxu0 %v500
    %914 = vmatprep.subr.mxu0 0.0
    %915 = vmatpush1.msra.mxu0 %v501
    %916 = vmatprep.subr.mxu0 0.0
    %917 = vmatpush1.msra.mxu0 %v502
    %918 = vmatprep.subr.mxu0 0.0
    %919 = vmatpush1.msra.mxu0 0.0
    %920 = vmatprep.subr.mxu0 0.0
    %921 = vmatpush1.msra.mxu0 0.0
    %922 = vmatprep.subr.mxu0 0.0
    %923 = vmatpush1.msra.mxu0 0.0
    %924 = vmatprep.subr.mxu0 0.0
    %925 = vmatpush1.msra.mxu0 0.0
    %926 = vmatprep.subr.mxu0 0.0
    %927 = vmatpush1.msra.mxu0 0.0
    %928 = vmatprep.subr.mxu0 0.0
    %929 = vmatpush1.msra.mxu0 0.0
    %930 = vmatprep.subr.mxu0 0.0
    %931 = vmatpush1.msra.mxu0 0.0
    %932 = vmatprep.subr.mxu0 0.0
    %933 = vmatpush1.msra.mxu0 0.0
    %934 = vmatprep.subr.mxu0 0.0
    %935 = vmatpush1.msra.mxu0 0.0
    %936 = vmatprep.subr.mxu0 0.0
    %937 = vmatpush1.msra.mxu0 0.0
    %938 = vmatprep.subr.mxu0 0.0
    %939 = vmatpush1.msra.mxu0 0.0
    %940 = vmatprep.subr.mxu0 0.0
    %941 = vmatpush1.msra.mxu0 0.0
    %942 = vmatprep.subr.mxu0 0.0
    %943 = vmatpush1.msra.mxu0 0.0
    %944 = vmatprep.subr.mxu0 0.0
    %945 = vmatpush1.msra.mxu0 0.0
    %946 = vmatprep.subr.mxu0 0.0
    %947 = vmatpush1.msra.mxu0 0.0
    %948 = vmatprep.subr.mxu0 0.0
    %949 = vmatpush1.msra.mxu0 0.0
    %950 = vmatprep.mubr.f32.mxu0 0.0
    %951 = vmatmul.mubr.f32.gmra.mrb[0].mxu0 %v675
    %v952 = vpop.f32.mrb[0].mxu0
    %v953 = vadd.f32 0.0, %v952
    %v954 = vpop.f32.mrb[0].mxu0
    %955 = vdwg.mxu0
    %v956 = vld [vmem:[#allocation2 + $0x8] sm:$0xff]
    %957 = vmatprep.subr.mxu0 0.0
    %958 = vmatpush1.msra.mxu0 %v743
    %959 = vmatprep.subr.mxu0 0.0
    %960 = vmatpush1.msra.mxu0 %v813
    %961 = vmatprep.subr.mxu0 0.0
    %962 = vmatpush1.msra.mxu0 %v675
    %963 = vmatprep.subr.mxu0 0.0
    %964 = vmatpush1.msra.mxu0 %v883
    %965 = vmatprep.subr.mxu0 0.0
    %966 = vmatpush1.msra.mxu0 %v953
    %967 = vmatprep.subr.mxu0 0.0
    %968 = vmatpush1.msra.mxu0 0.0
    %969 = vmatprep.subr.mxu0 0.0
    %970 = vmatpush1.msra.mxu0 0.0
    %971 = vmatprep.subr.mxu0 0.0
    %972 = vmatpush1.msra.mxu0 0.0
    %973 = vmatprep.subr.mxu0 0.0
    %974 = vmatpush1.msra.mxu0 0.0
    %975 = vmatprep.subr.mxu0 0.0
    %976 = vmatpush1.msra.mxu0 0.0
    %977 = vmatprep.subr.mxu0 0.0
    %978 = vmatpush1.msra.mxu0 0.0
    %979 = vmatprep.subr.mxu0 0.0
    %980 = vmatpush1.msra.mxu0 0.0
    %981 = vmatprep.subr.mxu0 0.0
    %982 = vmatpush1.msra.mxu0 0.0
    %983 = vmatprep.subr.mxu0 0.0
    %984 = vmatpush1.msra.mxu0 0.0
    %985 = vmatprep.subr.mxu0 0.0
    %986 = vmatpush1.msra.mxu0 0.0
    %987 = vmatprep.subr.mxu0 0.0
    %988 = vmatpush1.msra.mxu0 0.0
    %989 = vmatprep.subr.mxu0 0.0
    %990 = vmatpush1.msra.mxu0 0.0
    %991 = vmatprep.subr.mxu0 0.0
    %992 = vmatpush1.msra.mxu0 0.0
    %993 = vmatprep.subr.mxu0 0.0
    %994 = vmatpush1.msra.mxu0 0.0
    %995 = vmatprep.subr.mxu0 0.0
    %996 = vmatpush1.msra.mxu0 0.0
    %997 = vmatprep.subr.mxu0 0.0
    %998 = vmatpush1.msra.mxu0 0.0
    %999 = vmatprep.subr.mxu0 0.0
    %1000 = vmatpush1.msra.mxu0 0.0
    %1001 = vmatprep.subr.mxu0 0.0
    %1002 = vmatpush1.msra.mxu0 0.0
    %1003 = vmatprep.subr.mxu0 0.0
    %1004 = vmatpush1.msra.mxu0 0.0
    %1005 = vmatprep.subr.mxu0 0.0
    %1006 = vmatpush1.msra.mxu0 0.0
    %1007 = vmatprep.subr.mxu0 0.0
    %1008 = vmatpush1.msra.mxu0 0.0
    %1009 = vmatprep.subr.mxu0 0.0
    %1010 = vmatpush1.msra.mxu0 0.0
    %1011 = vmatprep.subr.mxu0 0.0
    %1012 = vmatpush1.msra.mxu0 0.0
    %1013 = vmatprep.subr.mxu0 0.0
    %1014 = vmatpush1.msra.mxu0 0.0
    %1015 = vmatprep.subr.mxu0 0.0
    %1016 = vmatpush1.msra.mxu0 0.0
    %1017 = vmatprep.subr.mxu0 0.0
    %1018 = vmatpush1.msra.mxu0 0.0
    %1019 = vmatprep.subr.mxu0 0.0
    %1020 = vmatpush1.msra.mxu0 0.0
    %1021 = vmatprep.mubr.f32.mxu0 0.0
    %1022 = vmatmul.mubr.f32.gmra.mrb[0].mxu0 %v956
    %v1023 = vpop.f32.mrb[0].mxu0
    %v1024 = vadd.f32 0.0, %v1023
    %v1025 = vpop.f32.mrb[0].mxu0
    %1026 = vdwg.mxu0
    %v1027 = vld [vmem:[#allocation4 + $0x8] sm:$0xff]
    %v1028 = vsel %vm645, %v1024, 0.0
    %1029 = vadd.xlane.f32.xlu0 %v1028
    %v1030 = vpop.xlane.xlu0 %1029
    %v1031 = vmul.f32 %v1024, %v1024
    %v1032 = vsel %vm645, %v1031, 0.0
    %1033 = vadd.xlane.f32.xlu0 %v1032
    %v1034 = vpop.xlane.xlu0 %1033
    %v1035 = vmul.f32 %v1030, 0.0078125
    %v1036 = vmul.f32 %v1034, 0.0078125
    %v1037 = vmul.f32 %v1035, %v1035
    %v1038 = vsub.f32 %v1036, %v1037
    %v1039 = vmax.f32 %v1038, 0.0
    %v1040 = vadd.f32 %v1039, 1e-05
    %v1041 = vrsqrt.pop %v1040
    %v1042 = vmul.f32 %v1041, %v1027
    %v1043 = vsub.f32 %v1024, %v1035
    %1045 = vset.pattern.permute.xlu0 0
    %1046 = vperm.xlu0 %1045, %v1042
    %v1047 = vpop.permute.xlu0 %1046
    %v1049 = vmul.f32 %v1043, %v1047
    %1051 = vset.pattern.permute.xlu0 1
    %1052 = vperm.xlu0 %1051, %v1027
    %v1053 = vpop.permute.xlu0 %1052
    %v1055 = vadd.f32 %v1049, %v1053
    %v1056 = vmax.f32 %v1055, 0.0
    %v1057 = vsel %vm645, %v1056, 0.0
    %1058 = vmatprep.subr.mxu0 0.0
    %1059 = vmatpush1.msra.mxu0 %v130
    %1060 = vmatprep.subr.mxu0 0.0
    %1061 = vmatpush1.msra.mxu0 %v131
    %1062 = vmatprep.subr.mxu0 0.0
    %1063 = vmatpush1.msra.mxu0 %v132
    %1064 = vmatprep.subr.mxu0 0.0
    %1065 = vmatpush1.msra.mxu0 %v133
    %1066 = vmatprep.subr.mxu0 0.0
    %1067 = vmatpush1.msra.mxu0 %v134
    %1068 = vmatprep.subr.mxu0 0.0
    %1069 = vmatpush1.msra.mxu0 %v135
    %1070 = vmatprep.subr.mxu0 0.0
    %1071 = vmatpush1.msra.mxu0 %v136
    %1072 = vmatprep.subr.mxu0 0.0
    %1073 = vmatpush1.msra.mxu0 %v137
    %1074 = vmatprep.subr.mxu0 0.0
    %1075 = vmatpush1.msra.mxu0 %v138
    %1076 = vmatprep.subr.mxu0 0.0
    %1077 = vmatpush1.msra.mxu0 %v139
    %1078 = vmatprep.subr.mxu0 0.0
    %1079 = vmatpush1.msra.mxu0 %v140
    %1080 = vmatprep.subr.mxu0 0.0
    %1081 = vmatpush1.msra.mxu0 %v141
    %1082 = vmatprep.subr.mxu0 0.0
    %1083 = vmatpush1.msra.mxu0 %v142
    %1084 = vmatprep.subr.mxu0 0.0
    %1085 = vmatpush1.msra.mxu0 %v143
    %1086 = vmatprep.subr.mxu0 0.0
    %1087 = vmatpush1.msra.mxu0 %v144
    %1088 = vmatprep.subr.mxu0 0.0
    %1089 = vmatpush1.msra.mxu0 %v145
    %1090 = vmatprep.subr.mxu0 0.0
    %1091 = vmatpush1.msra.mxu0 0.0
    %1092 = vmatprep.subr.mxu0 0.0
    %1093 = vmatpush1.msra.mxu0 0.0
    %1094 = vmatprep.subr.mxu0 0.0
    %1095 = vmatpush1.msra.mxu0 0.0
    %1096 = vmatprep.subr.mxu0 0.0
    %1097 = vmatpush1.msra.mxu0 0.0
    %1098 = vmatprep.subr.mxu0 0.0
    %1099 = vmatpush1.msra.mxu0 0.0
    %1100 = vmatprep.subr.mxu0 0.0
    %1101 = vmatpush1.msra.mxu0 0.0
    %1102 = vmatprep.subr.mxu0 0.0
    %1103 = vmatpush1.msra.mxu0 0.0
    %1104 = vmatprep.subr.mxu0 0.0
    %1105 = vmatpush1.msra.mxu0 0.0
    %1106 = vmatprep.subr.mxu0 0.0
    %1107 = vmatpush1.msra.mxu0 0.0
    %1108 = vmatprep.subr.mxu0 0.0
    %1109 = vmatpush1.msra.mxu0 0.0
    %1110 = vmatprep.subr.mxu0 0.0
    %1111 = vmatpush1.msra.mxu0 0.0
    %1112 = vmatprep.subr.mxu0 0.0
    %1113 = vmatpush1.msra.mxu0 0.0
    %1114 = vmatprep.subr.mxu0 0.0
    %1115 = vmatpush1.msra.mxu0 0.0
    %1116 = vmatprep.subr.mxu0 0.0
    %1117 = vmatpush1.msra.mxu0 0.0
    %1118 = vmatprep.subr.mxu0 0.0
    %1119 = vmatpush1.msra.mxu0 0.0
    %1120 = vmatprep.subr.mxu0 0.0
    %1121 = vmatpush1.msra.mxu0 0.0
    %1122 = vmatprep.mubr.f32.mxu0 0.0
    %1123 = vmatmul.mubr.f32.gmra.mrb[0].mxu0 %v1057
    %v1124 = vpop.f32.mrb[0].mxu0
    %v1125 = vadd.f32 0.0, %v1124
    %v1126 = vpop.f32.mrb[0].mxu0
    %1127 = vdwg.mxu0
    %1128 = vmatprep.subr.mxu0 0.0
    %1129 = vmatpush1.msra.mxu0 %v249
    %1130 = vmatprep.subr.mxu0 0.0
    %1131 = vmatpush1.msra.mxu0 %v250
    %1132 = vmatprep.subr.mxu0 0.0
    %1133 = vmatpush1.msra.mxu0 %v251
    %1134 = vmatprep.subr.mxu0 0.0
    %1135 = vmatpush1.msra.mxu0 %v252
    %1136 = vmatprep.subr.mxu0 0.0
    %1137 = vmatpush1.msra.mxu0 %v253
    %1138 = vmatprep.subr.mxu0 0.0
    %1139 = vmatpush1.msra.mxu0 %v254
    %1140 = vmatprep.subr.mxu0 0.0
    %1141 = vmatpush1.msra.mxu0 %v255
    %1142 = vmatprep.subr.mxu0 0.0
    %1143 = vmatpush1.msra.mxu0 %v256
    %1144 = vmatprep.subr.mxu0 0.0
    %1145 = vmatpush1.msra.mxu0 %v257
    %1146 = vmatprep.subr.mxu0 0.0
    %1147 = vmatpush1.msra.mxu0 %v258
    %1148 = vmatprep.subr.mxu0 0.0
    %1149 = vmatpush1.msra.mxu0 %v259
    %1150 = vmatprep.subr.mxu0 0.0
    %1151 = vmatpush1.msra.mxu0 %v260
    %1152 = vmatprep.subr.mxu0 0.0
    %1153 = vmatpush1.msra.mxu0 %v261
    %1154 = vmatprep.subr.mxu0 0.0
    %1155 = vmatpush1.msra.mxu0 %v262
    %1156 = vmatprep.subr.mxu0 0.0
    %1157 = vmatpush1.msra.mxu0 %v263
    %1158 = vmatprep.subr.mxu0 0.0
    %1159 = vmatpush1.msra.mxu0 %v264
    %1160 = vmatprep.subr.mxu0 0.0
    %1161 = vmatpush1.msra.mxu0 0.0
    %1162 = vmatprep.subr.mxu0 0.0
    %1163 = vmatpush1.msra.mxu0 0.0
    %1164 = vmatprep.subr.mxu0 0.0
    %1165 = vmatpush1.msra.mxu0 0.0
    %1166 = vmatprep.subr.mxu0 0.0
    %1167 = vmatpush1.msra.mxu0 0.0
    %1168 = vmatprep.subr.mxu0 0.0
    %1169 = vmatpush1.msra.mxu0 0.0
    %1170 = vmatprep.subr.mxu0 0.0
    %1171 = vmatpush1.msra.mxu0 0.0
    %1172 = vmatprep.subr.mxu0 0.0
    %1173 = vmatpush1.msra.mxu0 0.0
    %1174 = vmatprep.subr.mxu0 0.0
    %1175 = vmatpush1.msra.mxu0 0.0
    %1176 = vmatprep.subr.mxu0 0.0
    %1177 = vmatpush1.msra.mxu0 0.0
    %1178 = vmatprep.subr.mxu0 0.0
    %1179 = vmatpush1.msra.mxu0 0.0
    %1180 = vmatprep.subr.mxu0 0.0
    %1181 = vmatpush1.msra.mxu0 0.0
    %1182 = vmatprep.subr.mxu0 0.0
    %1183 = vmatpush1.msra.mxu0 0.0
    %1184 = vmatprep.subr.mxu0 0.0
    %1185 = vmatpush1.msra.mxu0 0.0
    %1186 = vmatprep.subr.mxu0 0.0
    %1187 = vmatpush1.msra.mxu0 0.0
    %1188 = vmatprep.subr.mxu0 0.0
    %1189 = vmatpush1.msra.mxu0 0.0
    %1190 = vmatprep.subr.mxu0 0.0
    %1191 = vmatpush1.msra.mxu0 0.0
    %1192 = vmatprep.mubr.f32.mxu0 0.0
    %1193 = vmatmul.mubr.f32.gmra.mrb[0].mxu0 %v1057
    %v1194 = vpop.f32.mrb[0].mxu0
    %v1195 = vadd.f32 0.0, %v1194
    %v1196 = vpop.f32.mrb[0].mxu0
    %1197 = vdwg.mxu0
    %1198 = vmatprep.subr.mxu0 0.0
    %1199 = vmatpush1.msra.mxu0 %v368
    %1200 = vmatprep.subr.mxu0 0.0
    %1201 = vmatpush1.msra.mxu0 %v369
    %1202 = vmatprep.subr.mxu0 0.0
    %1203 = vmatpush1.msra.mxu0 %v370
    %1204 = vmatprep.subr.mxu0 0.0
    %1205 = vmatpush1.msra.mxu0 %v371
    %1206 = vmatprep.subr.mxu0 0.0
    %1207 = vmatpush1.msra.mxu0 %v372
    %1208 = vmatprep.subr.mxu0 0.0
    %1209 = vmatpush1.msra.mxu0 %v373
    %1210 = vmatprep.subr.mxu0 0.0
    %1211 = vmatpush1.msra.mxu0 %v374
    %1212 = vmatprep.subr.mxu0 0.0
    %1213 = vmatpush1.msra.mxu0 %v375
    %1214 = vmatprep.subr.mxu0 0.0
    %1215 = vmatpush1.msra.mxu0 %v376
    %1216 = vmatprep.subr.mxu0 0.0
    %1217 = vmatpush1.msra.mxu0 %v377
    %1218 = vmatprep.subr.mxu0 0.0
    %1219 = vmatpush1.msra.mxu0 %v378
    %1220 = vmatprep.subr.mxu0 0.0
    %1221 = vmatpush1.msra.mxu0 %v379
    %1222 = vmatprep.subr.mxu0 0.0
    %1223 = vmatpush1.msra.mxu0 %v380
    %1224 = vmatprep.subr.mxu0 0.0
    %1225 = vmatpush1.msra.mxu0 %v381
    %1226 = vmatprep.subr.mxu0 0.0
    %1227 = vmatpush1.msra.mxu0 %v382
    %1228 = vmatprep.subr.mxu0 0.0
    %1229 = vmatpush1.msra.mxu0 %v383
    %1230 = vmatprep.subr.mxu0 0.0
    %1231 = vmatpush1.msra.mxu0 0.0
    %1232 = vmatprep.subr.mxu0 0.0
    %1233 = vmatpush1.msra.mxu0 0.0
    %1234 = vmatprep.subr.mxu0 0.0
    %1235 = vmatpush1.msra.mxu0 0.0
    %1236 = vmatprep.subr.mxu0 0.0
    %1237 = vmatpush1.msra.mxu0 0.0
    %1238 = vmatprep.subr.mxu0 0.0
    %1239 = vmatpush1.msra.mxu0 0.0
    %1240 = vmatprep.subr.mxu0 0.0
    %1241 = vmatpush1.msra.mxu0 0.0
    %1242 = vmatprep.subr.mxu0 0.0
    %1243 = vmatpush1.msra.mxu0 0.0
    %1244 = vmatprep.subr.mxu0 0.0
    %1245 = vmatpush1.msra.mxu0 0.0
    %1246 = vmatprep.subr.mxu0 0.0
    %1247 = vmatpush1.msra.mxu0 0.0
    %1248 = vmatprep.subr.mxu0 0.0
    %1249 = vmatpush1.msra.mxu0 0.0
    %1250 = vmatprep.subr.mxu0 0.0
    %1251 = vmatpush1.msra.mxu0 0.0
    %1252 = vmatprep.subr.mxu0 0.0
    %1253 = vmatpush1.msra.mxu0 0.0
    %1254 = vmatprep.subr.mxu0 0.0
    %1255 = vmatpush1.msra.mxu0 0.0
    %1256 = vmatprep.subr.mxu0 0.0
    %1257 = vmatpush1.msra.mxu0 0.0
    %1258 = vmatprep.subr.mxu0 0.0
    %1259 = vmatpush1.msra.mxu0 0.0
    %1260 = vmatprep.subr.mxu0 0.0
    %1261 = vmatpush1.msra.mxu0 0.0
    %1262 = vmatprep.mubr.f32.mxu0 0.0
    %1263 = vmatmul.mubr.f32.gmra.mrb[0].mxu0 %v1057
    %v1264 = vpop.f32.mrb[0].mxu0
    %v1265 = vadd.f32 0.0, %v1264
    %v1266 = vpop.f32.mrb[0].mxu0
    %1267 = vdwg.mxu0
    %1268 = vmatprep.subr.mxu0 0.0
    %1269 = vmatpush1.msra.mxu0 %v487
    %1270 = vmatprep.subr.mxu0 0.0
    %1271 = vmatpush1.msra.mxu0 %v488
    %1272 = vmatprep.subr.mxu0 0.0
    %1273 = vmatpush1.msra.mxu0 %v489
    %1274 = vmatprep.subr.mxu0 0.0
    %1275 = vmatpush1.msra.mxu0 %v490
    %1276 = vmatprep.subr.mxu0 0.0
    %1277 = vmatpush1.msra.mxu0 %v491
    %1278 = vmatprep.subr.mxu0 0.0
    %1279 = vmatpush1.msra.mxu0 %v492
    %1280 = vmatprep.subr.mxu0 0.0
    %1281 = vmatpush1.msra.mxu0 %v493
    %1282 = vmatprep.subr.mxu0 0.0
    %1283 = vmatpush1.msra.mxu0 %v494
    %1284 = vmatprep.subr.mxu0 0.0
    %1285 = vmatpush1.msra.mxu0 %v495
    %1286 = vmatprep.subr.mxu0 0.0
    %1287 = vmatpush1.msra.mxu0 %v496
    %1288 = vmatprep.subr.mxu0 0.0
    %1289 = vmatpush1.msra.mxu0 %v497
    %1290 = vmatprep.subr.mxu0 0.0
    %1291 = vmatpush1.msra.mxu0 %v498
    %1292 = vmatprep.subr.mxu0 0.0
    %1293 = vmatpush1.msra.mxu0 %v499
    %1294 = vmatprep.subr.mxu0 0.0
    %1295 = vmatpush1.msra.mxu0 %v500
    %1296 = vmatprep.subr.mxu0 0.0
    %1297 = vmatpush1.msra.mxu0 %v501
    %1298 = vmatprep.subr.mxu0 0.0
    %1299 = vmatpush1.msra.mxu0 %v502
    %1300 = vmatprep.subr.mxu0 0.0
    %1301 = vmatpush1.msra.mxu0 0.0
    %1302 = vmatprep.subr.mxu0 0.0
    %1303 = vmatpush1.msra.mxu0 0.0
    %1304 = vmatprep.subr.mxu0 0.0
    %1305 = vmatpush1.msra.mxu0 0.0
    %1306 = vmatprep.subr.mxu0 0.0
    %1307 = vmatpush1.msra.mxu0 0.0
    %1308 = vmatprep.subr.mxu0 0.0
    %1309 = vmatpush1.msra.mxu0 0.0
    %1310 = vmatprep.subr.mxu0 0.0
    %1311 = vmatpush1.msra.mxu0 0.0
    %1312 = vmatprep.subr.mxu0 0.0
    %1313 = vmatpush1.msra.mxu0 0.0
    %1314 = vmatprep.subr.mxu0 0.0
    %1315 = vmatpush1.msra.mxu0 0.0
    %1316 = vmatprep.subr.mxu0 0.0
    %1317 = vmatpush1.msra.mxu0 0.0
    %1318 = vmatprep.subr.mxu0 0.0
    %1319 = vmatpush1.msra.mxu0 0.0
    %1320 = vmatprep.subr.mxu0 0.0
    %1321 = vmatpush1.msra.mxu0 0.0
    %1322 = vmatprep.subr.mxu0 0.0
    %1323 = vmatpush1.msra.mxu0 0.0
    %1324 = vmatprep.subr.mxu0 0.0
    %1325 = vmatpush1.msra.mxu0 0.0
    %1326 = vmatprep.subr.mxu0 0.0
    %1327 = vmatpush1.msra.mxu0 0.0
    %1328 = vmatprep.subr.mxu0 0.0
    %1329 = vmatpush1.msra.mxu0 0.0
    %1330 = vmatprep.subr.mxu0 0.0
    %1331 = vmatpush1.msra.mxu0 0.0
    %1332 = vmatprep.mubr.f32.mxu0 0.0
    %1333 = vmatmul.mubr.f32.gmra.mrb[0].mxu0 %v1057
    %v1334 = vpop.f32.mrb[0].mxu0
    %v1335 = vadd.f32 0.0, %v1334
    %v1336 = vpop.f32.mrb[0].mxu0
    %1337 = vdwg.mxu0
    %v1338 = vld [vmem:[#allocation2 + $0x10] sm:$0xff]
    %1339 = vmatprep.subr.mxu0 0.0
    %1340 = vmatpush1.msra.mxu0 %v1125
    %1341 = vmatprep.subr.mxu0 0.0
    %1342 = vmatpush1.msra.mxu0 %v1195
    %1343 = vmatprep.subr.mxu0 0.0
    %1344 = vmatpush1.msra.mxu0 %v1057
    %1345 = vmatprep.subr.mxu0 0.0
    %1346 = vmatpush1.msra.mxu0 %v1265
    %1347 = vmatprep.subr.mxu0 0.0
    %1348 = vmatpush1.msra.mxu0 %v1335
    %1349 = vmatprep.subr.mxu0 0.0
    %1350 = vmatpush1.msra.mxu0 0.0
    %1351 = vmatprep.subr.mxu0 0.0
    %1352 = vmatpush1.msra.mxu0 0.0
    %1353 = vmatprep.subr.mxu0 0.0
    %1354 = vmatpush1.msra.mxu0 0.0
    %1355 = vmatprep.subr.mxu0 0.0
    %1356 = vmatpush1.msra.mxu0 0.0
    %1357 = vmatprep.subr.mxu0 0.0
    %1358 = vmatpush1.msra.mxu0 0.0
    %1359 = vmatprep.subr.mxu0 0.0
    %1360 = vmatpush1.msra.mxu0 0.0
    %1361 = vmatprep.subr.mxu0 0.0
    %1362 = vmatpush1.msra.mxu0 0.0
    %1363 = vmatprep.subr.mxu0 0.0
    %1364 = vmatpush1.msra.mxu0 0.0
    %1365 = vmatprep.subr.mxu0 0.0
    %1366 = vmatpush1.msra.mxu0 0.0
    %1367 = vmatprep.subr.mxu0 0.0
    %1368 = vmatpush1.msra.mxu0 0.0
    %1369 = vmatprep.subr.mxu0 0.0
    %1370 = vmatpush1.msra.mxu0 0.0
    %1371 = vmatprep.subr.mxu0 0.0
    %1372 = vmatpush1.msra.mxu0 0.0
    %1373 = vmatprep.subr.mxu0 0.0
    %1374 = vmatpush1.msra.mxu0 0.0
    %1375 = vmatprep.subr.mxu0 0.0
    %1376 = vmatpush1.msra.mxu0 0.0
    %1377 = vmatprep.subr.mxu0 0.0
    %1378 = vmatpush1.msra.mxu0 0.0
    %1379 = vmatprep.subr.mxu0 0.0
    %1380 = vmatpush1.msra.mxu0 0.0
    %1381 = vmatprep.subr.mxu0 0.0
    %1382 = vmatpush1.msra.mxu0 0.0
    %1383 = vmatprep.subr.mxu0 0.0
    %1384 = vmatpush1.msra.mxu0 0.0
    %1385 = vmatprep.subr.mxu0 0.0
    %1386 = vmatpush1.msra.mxu0 0.0
    %1387 = vmatprep.subr.mxu0 0.0
    %1388 = vmatpush1.msra.mxu0 0.0
    %1389 = vmatprep.subr.mxu0 0.0
    %1390 = vmatpush1.msra.mxu0 0.0
    %1391 = vmatprep.subr.mxu0 0.0
    %1392 = vmatpush1.msra.mxu0 0.0
    %1393 = vmatprep.subr.mxu0 0.0
    %1394 = vmatpush1.msra.mxu0 0.0
    %1395 = vmatprep.subr.mxu0 0.0
    %1396 = vmatpush1.msra.mxu0 0.0
    %1397 = vmatprep.subr.mxu0 0.0
    %1398 = vmatpush1.msra.mxu0 0.0
    %1399 = vmatprep.subr.mxu0 0.0
    %1400 = vmatpush1.msra.mxu0 0.0
    %1401 = vmatprep.subr.mxu0 0.0
    %1402 = vmatpush1.msra.mxu0 0.0
    %1403 = vmatprep.mubr.f32.mxu0 0.0
    %1404 = vmatmul.mubr.f32.gmra.mrb[0].mxu0 %v1338
    %v1405 = vpop.f32.mrb[0].mxu0
    %v1406 = vadd.f32 0.0, %v1405
    %v1407 = vpop.f32.mrb[0].mxu0
    %1408 = vdwg.mxu0
    %v1409 = vld [vmem:[#allocation4 + $0x10] sm:$0xff]
    %1410 = vadd.xlane.f32.xlu0 %v1406
    %v1411 = vpop.xlane.xlu0 %1410
    %v1412 = vmul.f32 %v1406, %v1406
    %1413 = vadd.xlane.f32.xlu0 %v1412
    %v1414 = vpop.xlane.xlu0 %1413
    %v1415 = vmul.f32 %v1411, 0.0078125
    %v1416 = vmul.f32 %v1414, 0.0078125
    %v1417 = vmul.f32 %v1415, %v1415
    %v1418 = vsub.f32 %v1416, %v1417
    %v1419 = vmax.f32 %v1418, 0.0
    %v1420 = vadd.f32 %v1419, 1e-05
    %v1421 = vrsqrt.pop %v1420
    %v1422 = vmul.f32 %v1421, %v1409
    %v1423 = vsub.f32 %v1406, %v1415
    %1425 = vset.pattern.permute.xlu0 0
    %1426 = vperm.xlu0 %1425, %v1422
    %v1427 = vpop.permute.xlu0 %1426
    %v1429 = vmul.f32 %v1423, %v1427
    %1431 = vset.pattern.permute.xlu0 1
    %1432 = vperm.xlu0 %1431, %v1409
    %v1433 = vpop.permute.xlu0 %1432
    %v1435 = vadd.f32 %v1429, %v1433
    %v1436 = vmax.f32 %v1435, 0.0
    %1437 = vmatprep.subr.mxu0 0.0
    %1438 = vmatpush1.msra.mxu0 %v130
    %1439 = vmatprep.subr.mxu0 0.0
    %1440 = vmatpush1.msra.mxu0 %v131
    %1441 = vmatprep.subr.mxu0 0.0
    %1442 = vmatpush1.msra.mxu0 %v132
    %1443 = vmatprep.subr.mxu0 0.0
    %1444 = vmatpush1.msra.mxu0 %v133
    %1445 = vmatprep.subr.mxu0 0.0
    %1446 = vmatpush1.msra.mxu0 %v134
    %1447 = vmatprep.subr.mxu0 0.0
    %1448 = vmatpush1.msra.mxu0 %v135
    %1449 = vmatprep.subr.mxu0 0.0
    %1450 = vmatpush1.msra.mxu0 %v136
    %1451 = vmatprep.subr.mxu0 0.0
    %1452 = vmatpush1.msra.mxu0 %v137
    %1453 = vmatprep.subr.mxu0 0.0
    %1454 = vmatpush1.msra.mxu0 %v138
    %1455 = vmatprep.subr.mxu0 0.0
    %1456 = vmatpush1.msra.mxu0 %v139
    %1457 = vmatprep.subr.mxu0 0.0
    %1458 = vmatpush1.msra.mxu0 %v140
    %1459 = vmatprep.subr.mxu0 0.0
    %1460 = vmatpush1.msra.mxu0 %v141
    %1461 = vmatprep.subr.mxu0 0.0
    %1462 = vmatpush1.msra.mxu0 %v142
    %1463 = vmatprep.subr.mxu0 0.0
    %1464 = vmatpush1.msra.mxu0 %v143
    %1465 = vmatprep.subr.mxu0 0.0
    %1466 = vmatpush1.msra.mxu0 %v144
    %1467 = vmatprep.subr.mxu0 0.0
    %1468 = vmatpush1.msra.mxu0 %v145
    %1469 = vmatprep.subr.mxu0 0.0
    %1470 = vmatpush1.msra.mxu0 0.0
    %1471 = vmatprep.subr.mxu0 0.0
    %1472 = vmatpush1.msra.mxu0 0.0
    %1473 = vmatprep.subr.mxu0 0.0
    %1474 = vmatpush1.msra.mxu0 0.0
    %1475 = vmatprep.subr.mxu0 0.0
    %1476 = vmatpush1.msra.mxu0 0.0
    %1477 = vmatprep.subr.mxu0 0.0
    %1478 = vmatpush1.msra.mxu0 0.0
    %1479 = vmatprep.subr.mxu0 0.0
    %1480 = vmatpush1.msra.mxu0 0.0
    %1481 = vmatprep.subr.mxu0 0.0
    %1482 = vmatpush1.msra.mxu0 0.0
    %1483 = vmatprep.subr.mxu0 0.0
    %1484 = vmatpush1.msra.mxu0 0.0
    %1485 = vmatprep.subr.mxu0 0.0
    %1486 = vmatpush1.msra.mxu0 0.0
    %1487 = vmatprep.subr.mxu0 0.0
    %1488 = vmatpush1.msra.mxu0 0.0
    %1489 = vmatprep.subr.mxu0 0.0
    %1490 = vmatpush1.msra.mxu0 0.0
    %1491 = vmatprep.subr.mxu0 0.0
    %1492 = vmatpush1.msra.mxu0 0.0
    %1493 = vmatprep.subr.mxu0 0.0
    %1494 = vmatpush1.msra.mxu0 0.0
    %1495 = vmatprep.subr.mxu0 0.0
    %1496 = vmatpush1.msra.mxu0 0.0
    %1497 = vmatprep.subr.mxu0 0.0
    %1498 = vmatpush1.msra.mxu0 0.0
    %1499 = vmatprep.subr.mxu0 0.0
    %1500 = vmatpush1.msra.mxu0 0.0
    %1501 = vmatprep.mubr.f32.mxu0 0.0
    %1502 = vmatmul.mubr.f32.gmra.mrb[0].mxu0 %v1436
    %v1503 = vpop.f32.mrb[0].mxu0
    %v1504 = vadd.f32 0.0, %v1503
    %v1505 = vpop.f32.mrb[0].mxu0
    %1506 = vdwg.mxu0
    %1507 = vmatprep.subr.mxu0 0.0
    %1508 = vmatpush1.msra.mxu0 %v249
    %1509 = vmatprep.subr.mxu0 0.0
    %1510 = vmatpush1.msra.mxu0 %v250
    %1511 = vmatprep.subr.mxu0 0.0
    %1512 = vmatpush1.msra.mxu0 %v251
    %1513 = vmatprep.subr.mxu0 0.0
    %1514 = vmatpush1.msra.mxu0 %v252
    %1515 = vmatprep.subr.mxu0 0.0
    %1516 = vmatpush1.msra.mxu0 %v253
    %1517 = vmatprep.subr.mxu0 0.0
    %1518 = vmatpush1.msra.mxu0 %v254
    %1519 = vmatprep.subr.mxu0 0.0
    %1520 = vmatpush1.msra.mxu0 %v255
    %1521 = vmatprep.subr.mxu0 0.0
    %1522 = vmatpush1.msra.mxu0 %v256
    %1523 = vmatprep.subr.mxu0 0.0
    %1524 = vmatpush1.msra.mxu0 %v257
    %1525 = vmatprep.subr.mxu0 0.0
    %1526 = vmatpush1.msra.mxu0 %v258
    %1527 = vmatprep.subr.mxu0 0.0
    %1528 = vmatpush1.msra.mxu0 %v259
    %1529 = vmatprep.subr.mxu0 0.0
    %1530 = vmatpush1.msra.mxu0 %v260
    %1531 = vmatprep.subr.mxu0 0.0
    %1532 = vmatpush1.msra.mxu0 %v261
    %1533 = vmatprep.subr.mxu0 0.0
    %1534 = vmatpush1.msra.mxu0 %v262
    %1535 = vmatprep.subr.mxu0 0.0
    %1536 = vmatpush1.msra.mxu0 %v263
    %1537 = vmatprep.subr.mxu0 0.0
    %1538 = vmatpush1.msra.mxu0 %v264
    %1539 = vmatprep.subr.mxu0 0.0
    %1540 = vmatpush1.msra.mxu0 0.0
    %1541 = vmatprep.subr.mxu0 0.0
    %1542 = vmatpush1.msra.mxu0 0.0
    %1543 = vmatprep.subr.mxu0 0.0
    %1544 = vmatpush1.msra.mxu0 0.0
    %1545 = vmatprep.subr.mxu0 0.0
    %1546 = vmatpush1.msra.mxu0 0.0
    %1547 = vmatprep.subr.mxu0 0.0
    %1548 = vmatpush1.msra.mxu0 0.0
    %1549 = vmatprep.subr.mxu0 0.0
    %1550 = vmatpush1.msra.mxu0 0.0
    %1551 = vmatprep.subr.mxu0 0.0
    %1552 = vmatpush1.msra.mxu0 0.0
    %1553 = vmatprep.subr.mxu0 0.0
    %1554 = vmatpush1.msra.mxu0 0.0
    %1555 = vmatprep.subr.mxu0 0.0
    %1556 = vmatpush1.msra.mxu0 0.0
    %1557 = vmatprep.subr.mxu0 0.0
    %1558 = vmatpush1.msra.mxu0 0.0
    %1559 = vmatprep.subr.mxu0 0.0
    %1560 = vmatpush1.msra.mxu0 0.0
    %1561 = vmatprep.subr.mxu0 0.0
    %1562 = vmatpush1.msra.mxu0 0.0
    %1563 = vmatprep.subr.mxu0 0.0
    %1564 = vmatpush1.msra.mxu0 0.0
    %1565 = vmatprep.subr.mxu0 0.0
    %1566 = vmatpush1.msra.mxu0 0.0
    %1567 = vmatprep.subr.mxu0 0.0
    %1568 = vmatpush1.msra.mxu0 0.0
    %1569 = vmatprep.subr.mxu0 0.0
    %1570 = vmatpush1.msra.mxu0 0.0
    %1571 = vmatprep.mubr.f32.mxu0 0.0
    %1572 = vmatmul.mubr.f32.gmra.mrb[0].mxu0 %v1436
    %v1573 = vpop.f32.mrb[0].mxu0
    %v1574 = vadd.f32 0.0, %v1573
    %v1575 = vpop.f32.mrb[0].mxu0
    %1576 = vdwg.mxu0
    %1577 = vmatprep.subr.mxu0 0.0
    %1578 = vmatpush1.msra.mxu0 %v368
    %1579 = vmatprep.subr.mxu0 0.0
    %1580 = vmatpush1.msra.mxu0 %v369
    %1581 = vmatprep.subr.mxu0 0.0
    %1582 = vmatpush1.msra.mxu0 %v370
    %1583 = vmatprep.subr.mxu0 0.0
    %1584 = vmatpush1.msra.mxu0 %v371
    %1585 = vmatprep.subr.mxu0 0.0
    %1586 = vmatpush1.msra.mxu0 %v372
    %1587 = vmatprep.subr.mxu0 0.0
    %1588 = vmatpush1.msra.mxu0 %v373
    %1589 = vmatprep.subr.mxu0 0.0
    %1590 = vmatpush1.msra.mxu0 %v374
    %1591 = vmatprep.subr.mxu0 0.0
    %1592 = vmatpush1.msra.mxu0 %v375
    %1593 = vmatprep.subr.mxu0 0.0
    %1594 = vmatpush1.msra.mxu0 %v376
    %1595 = vmatprep.subr.mxu0 0.0
    %1596 = vmatpush1.msra.mxu0 %v377
    %1597 = vmatprep.subr.mxu0 0.0
    %1598 = vmatpush1.msra.mxu0 %v378
    %1599 = vmatprep.subr.mxu0 0.0
    %1600 = vmatpush1.msra.mxu0 %v379
    %1601 = vmatprep.subr.mxu0 0.0
    %1602 = vmatpush1.msra.mxu0 %v380
    %1603 = vmatprep.subr.mxu0 0.0
    %1604 = vmatpush1.msra.mxu0 %v381
    %1605 = vmatprep.subr.mxu0 0.0
    %1606 = vmatpush1.msra.mxu0 %v382
    %1607 = vmatprep.subr.mxu0 0.0
    %1608 = vmatpush1.msra.mxu0 %v383
    %1609 = vmatprep.subr.mxu0 0.0
    %1610 = vmatpush1.msra.mxu0 0.0
    %1611 = vmatprep.subr.mxu0 0.0
    %1612 = vmatpush1.msra.mxu0 0.0
    %1613 = vmatprep.subr.mxu0 0.0
    %1614 = vmatpush1.msra.mxu0 0.0
    %1615 = vmatprep.subr.mxu0 0.0
    %1616 = vmatpush1.msra.mxu0 0.0
    %1617 = vmatprep.subr.mxu0 0.0
    %1618 = vmatpush1.msra.mxu0 0.0
    %1619 = vmatprep.subr.mxu0 0.0
    %1620 = vmatpush1.msra.mxu0 0.0
    %1621 = vmatprep.subr.mxu0 0.0
    %1622 = vmatpush1.msra.mxu0 0.0
    %1623 = vmatprep.subr.mxu0 0.0
    %1624 = vmatpush1.msra.mxu0 0.0
    %1625 = vmatprep.subr.mxu0 0.0
    %1626 = vmatpush1.msra.mxu0 0.0
    %1627 = vmatprep.subr.mxu0 0.0
    %1628 = vmatpush1.msra.mxu0 0.0
    %1629 = vmatprep.subr.mxu0 0.0
    %1630 = vmatpush1.msra.mxu0 0.0
    %1631 = vmatprep.subr.mxu0 0.0
    %1632 = vmatpush1.msra.mxu0 0.0
    %1633 = vmatprep.subr.mxu0 0.0
    %1634 = vmatpush1.msra.mxu0 0.0
    %1635 = vmatprep.subr.mxu0 0.0
    %1636 = vmatpush1.msra.mxu0 0.0
    %1637 = vmatprep.subr.mxu0 0.0
    %1638 = vmatpush1.msra.mxu0 0.0
    %1639 = vmatprep.subr.mxu0 0.0
    %1640 = vmatpush1.msra.mxu0 0.0
    %1641 = vmatprep.mubr.f32.mxu0 0.0
    %1642 = vmatmul.mubr.f32.gmra.mrb[0].mxu0 %v1436
    %v1643 = vpop.f32.mrb[0].mxu0
    %v1644 = vadd.f32 0.0, %v1643
    %v1645 = vpop.f32.mrb[0].mxu0
    %1646 = vdwg.mxu0
    %1647 = vmatprep.subr.mxu0 0.0
    %1648 = vmatpush1.msra.mxu0 %v487
    %1649 = vmatprep.subr.mxu0 0.0
    %1650 = vmatpush1.msra.mxu0 %v488
    %1651 = vmatprep.subr.mxu0 0.0
    %1652 = vmatpush1.msra.mxu0 %v489
    %1653 = vmatprep.subr.mxu0 0.0
    %1654 = vmatpush1.msra.mxu0 %v490
    %1655 = vmatprep.subr.mxu0 0.0
    %1656 = vmatpush1.msra.mxu0 %v491
    %1657 = vmatprep.subr.mxu0 0.0
    %1658 = vmatpush1.msra.mxu0 %v492
    %1659 = vmatprep.subr.mxu0 0.0
    %1660 = vmatpush1.msra.mxu0 %v493
    %1661 = vmatprep.subr.mxu0 0.0
    %1662 = vmatpush1.msra.mxu0 %v494
    %1663 = vmatprep.subr.mxu0 0.0
    %1664 = vmatpush1.msra.mxu0 %v495
    %1665 = vmatprep.subr.mxu0 0.0
    %1666 = vmatpush1.msra.mxu0 %v496
    %1667 = vmatprep.subr.mxu0 0.0
    %1668 = vmatpush1.msra.mxu0 %v497
    %1669 = vmatprep.subr.mxu0 0.0
    %1670 = vmatpush1.msra.mxu0 %v498
    %1671 = vmatprep.subr.mxu0 0.0
    %1672 = vmatpush1.msra.mxu0 %v499
    %1673 = vmatprep.subr.mxu0 0.0
    %1674 = vmatpush1.msra.mxu0 %v500
    %1675 = vmatprep.subr.mxu0 0.0
    %1676 = vmatpush1.msra.mxu0 %v501
    %1677 = vmatprep.subr.mxu0 0.0
    %1678 = vmatpush1.msra.mxu0 %v502
    %1679 = vmatprep.subr.mxu0 0.0
    %1680 = vmatpush1.msra.mxu0 0.0
    %1681 = vmatprep.subr.mxu0 0.0
    %1682 = vmatpush1.msra.mxu0 0.0
    %1683 = vmatprep.subr.mxu0 0.0
    %1684 = vmatpush1.msra.mxu0 0.0
    %1685 = vmatprep.subr.mxu0 0.0
    %1686 = vmatpush1.msra.mxu0 0.0
    %1687 = vmatprep.subr.mxu0 0.0
    %1688 = vmatpush1.msra.mxu0 0.0
    %1689 = vmatprep.subr.mxu0 0.0
    %1690 = vmatpush1.msra.mxu0 0.0
    %1691 = vmatprep.subr.mxu0 0.0
    %1692 = vmatpush1.msra.mxu0 0.0
    %1693 = vmatprep.subr.mxu0 0.0
    %1694 = vmatpush1.msra.mxu0 0.0
    %1695 = vmatprep.subr.mxu0 0.0
    %1696 = vmatpush1.msra.mxu0 0.0
    %1697 = vmatprep.subr.mxu0 0.0
    %1698 = vmatpush1.msra.mxu0 0.0
    %1699 = vmatprep.subr.mxu0 0.0
    %1700 = vmatpush1.msra.mxu0 0.0
    %1701 = vmatprep.subr.mxu0 0.0
    %1702 = vmatpush1.msra.mxu0 0.0
    %1703 = vmatprep.subr.mxu0 0.0
    %1704 = vmatpush1.msra.mxu0 0.0
    %1705 = vmatprep.subr.mxu0 0.0
    %1706 = vmatpush1.msra.mxu0 0.0
    %1707 = vmatprep.subr.mxu0 0.0
    %1708 = vmatpush1.msra.mxu0 0.0
    %1709 = vmatprep.subr.mxu0 0.0
    %1710 = vmatpush1.msra.mxu0 0.0
    %1711 = vmatprep.mubr.f32.mxu0 0.0
    %1712 = vmatmul.mubr.f32.gmra.mrb[0].mxu0 %v1436
    %v1713 = vpop.f32.mrb[0].mxu0
    %v1714 = vadd.f32 0.0, %v1713
    %v1715 = vpop.f32.mrb[0].mxu0
    %1716 = vdwg.mxu0
    %v1717 = vld [vmem:[#allocation2 + $0x18] sm:$0xff]
    %1718 = vmatprep.subr.mxu0 0.0
    %1719 = vmatpush1.msra.mxu0 %v1504
    %1720 = vmatprep.subr.mxu0 0.0
    %1721 = vmatpush1.msra.mxu0 %v1574
    %1722 = vmatprep.subr.mxu0 0.0
    %1723 = vmatpush1.msra.mxu0 %v1436
    %1724 = vmatprep.subr.mxu0 0.0
    %1725 = vmatpush1.msra.mxu0 %v1644
    %1726 = vmatprep.subr.mxu0 0.0
    %1727 = vmatpush1.msra.mxu0 %v1714
    %1728 = vmatprep.subr.mxu0 0.0
    %1729 = vmatpush1.msra.mxu0 0.0
    %1730 = vmatprep.subr.mxu0 0.0
    %1731 = vmatpush1.msra.mxu0 0.0
    %1732 = vmatprep.subr.mxu0 0.0
    %1733 = vmatpush1.msra.mxu0 0.0
    %1734 = vmatprep.subr.mxu0 0.0
    %1735 = vmatpush1.msra.mxu0 0.0
    %1736 = vmatprep.subr.mxu0 0.0
    %1737 = vmatpush1.msra.mxu0 0.0
    %1738 = vmatprep.subr.mxu0 0.0
    %1739 = vmatpush1.msra.mxu0 0.0
    %1740 = vmatprep.subr.mxu0 0.0
    %1741 = vmatpush1.msra.mxu0 0.0
    %1742 = vmatprep.subr.mxu0 0.0
    %1743 = vmatpush1.msra.mxu0 0.0
    %1744 = vmatprep.subr.mxu0 0.0
    %1745 = vmatpush1.msra.mxu0 0.0
    %1746 = vmatprep.subr.mxu0 0.0
    %1747 = vmatpush1.msra.mxu0 0.0
    %1748 = vmatprep.subr.mxu0 0.0
    %1749 = vmatpush1.msra.mxu0 0.0
    %1750 = vmatprep.subr.mxu0 0.0
    %1751 = vmatpush1.msra.mxu0 0.0
    %1752 = vmatprep.subr.mxu0 0.0
    %1753 = vmatpush1.msra.mxu0 0.0
    %1754 = vmatprep.subr.mxu0 0.0
    %1755 = vmatpush1.msra.mxu0 0.0
    %1756 = vmatprep.subr.mxu0 0.0
    %1757 = vmatpush1.msra.mxu0 0.0
    %1758 = vmatprep.subr.mxu0 0.0
    %1759 = vmatpush1.msra.mxu0 0.0
    %1760 = vmatprep.subr.mxu0 0.0
    %1761 = vmatpush1.msra.mxu0 0.0
    %1762 = vmatprep.subr.mxu0 0.0
    %1763 = vmatpush1.msra.mxu0 0.0
    %1764 = vmatprep.subr.mxu0 0.0
    %1765 = vmatpush1.msra.mxu0 0.0
    %1766 = vmatprep.subr.mxu0 0.0
    %1767 = vmatpush1.msra.mxu0 0.0
    %1768 = vmatprep.subr.mxu0 0.0
    %1769 = vmatpush1.msra.mxu0 0.0
    %1770 = vmatprep.subr.mxu0 0.0
    %1771 = vmatpush1.msra.mxu0 0.0
    %1772 = vmatprep.subr.mxu0 0.0
    %1773 = vmatpush1.msra.mxu0 0.0
    %1774 = vmatprep.subr.mxu0 0.0
    %1775 = vmatpush1.msra.mxu0 0.0
    %1776 = vmatprep.subr.mxu0 0.0
    %1777 = vmatpush1.msra.mxu0 0.0
    %1778 = vmatprep.subr.mxu0 0.0
    %1779 = vmatpush1.msra.mxu0 0.0
    %1780 = vmatprep.subr.mxu0 0.0
    %1781 = vmatpush1.msra.mxu0 0.0
    %1782 = vmatprep.mubr.f32.mxu0 0.0
    %1783 = vmatmul.mubr.f32.gmra.mrb[0].mxu0 %v1717
    %v1784 = vpop.f32.mrb[0].mxu0
    %v1785 = vadd.f32 0.0, %v1784
    %v1786 = vpop.f32.mrb[0].mxu0
    %1787 = vdwg.mxu0
    %v1788 = vld [vmem:[#allocation4 + $0x18] sm:$0xff]
    %1789 = vadd.xlane.f32.xlu0 %v1785
    %v1790 = vpop.xlane.xlu0 %1789
    %v1791 = vmul.f32 %v1785, %v1785
    %1792 = vadd.xlane.f32.xlu0 %v1791
    %v1793 = vpop.xlane.xlu0 %1792
    %v1794 = vmul.f32 %v1790, 0.0078125
    %v1795 = vmul.f32 %v1793, 0.0078125
    %v1796 = vmul.f32 %v1794, %v1794
    %v1797 = vsub.f32 %v1795, %v1796
    %v1798 = vmax.f32 %v1797, 0.0
    %v1799 = vadd.f32 %v1798, 1e-05
    %v1800 = vrsqrt.pop %v1799
    %v1801 = vmul.f32 %v1800, %v1788
    %v1802 = vsub.f32 %v1785, %v1794
    %1804 = vset.pattern.permute.xlu0 0
    %1805 = vperm.xlu0 %1804, %v1801
    %v1806 = vpop.permute.xlu0 %1805
    %v1808 = vmul.f32 %v1802, %v1806
    %1810 = vset.pattern.permute.xlu0 1
    %1811 = vperm.xlu0 %1810, %v1788
    %v1812 = vpop.permute.xlu0 %1811
    %v1814 = vadd.f32 %v1808, %v1812
    %v1815 = vmax.f32 %v1814, 0.0
    %v1816 = vshra.s32 %v63, 4
    %v1817 = vmul.u32 %v1816, 64
    %v1818 = vand.u32 %v63, 15
    %v1819 = vmul.u32 %v1818, 4
    %v1820 = vadd.s32 %v1817, %v1819
    %vm1821 = vcmp.eq.s32.totalorder %v46, %v1820
    %vm1822 = vcmp.eq.s32.totalorder %v47, %v1820
    %vm1823 = vcmp.eq.s32.totalorder %v48, %v1820
    %vm1824 = vcmp.eq.s32.totalorder %v49, %v1820
    %vm1825 = vcmp.eq.s32.totalorder %v50, %v1820
    %vm1826 = vcmp.eq.s32.totalorder %v51, %v1820
    %vm1827 = vcmp.eq.s32.totalorder %v52, %v1820
    %vm1828 = vcmp.eq.s32.totalorder %v53, %v1820
    %vm1829 = vcmp.eq.s32.totalorder %v54, %v1820
    %vm1830 = vcmp.eq.s32.totalorder %v55, %v1820
    %vm1831 = vcmp.eq.s32.totalorder %v56, %v1820
    %vm1832 = vcmp.eq.s32.totalorder %v57, %v1820
    %vm1833 = vcmp.eq.s32.totalorder %v58, %v1820
    %vm1834 = vcmp.eq.s32.totalorder %v59, %v1820
    %vm1835 = vcmp.eq.s32.totalorder %v60, %v1820
    %vm1836 = vcmp.eq.s32.totalorder %v61, %v1820
    %v1837 = vsel %vm1821, 1.0, 0.0
    %v1838 = vsel %vm1822, 1.0, 0.0
    %v1839 = vsel %vm1823, 1.0, 0.0
    %v1840 = vsel %vm1824, 1.0, 0.0
    %v1841 = vsel %vm1825, 1.0, 0.0
    %v1842 = vsel %vm1826, 1.0, 0.0
    %v1843 = vsel %vm1827, 1.0, 0.0
    %v1844 = vsel %vm1828, 1.0, 0.0
    %v1845 = vsel %vm1829, 1.0, 0.0
    %v1846 = vsel %vm1830, 1.0, 0.0
    %v1847 = vsel %vm1831, 1.0, 0.0
    %v1848 = vsel %vm1832, 1.0, 0.0
    %v1849 = vsel %vm1833, 1.0, 0.0
    %v1850 = vsel %vm1834, 1.0, 0.0
    %v1851 = vsel %vm1835, 1.0, 0.0
    %v1852 = vsel %vm1836, 1.0, 0.0
    %v1853 = vadd.s32 %v1820, 1
    %vm1854 = vcmp.eq.s32.totalorder %v46, %v1853
    %vm1855 = vcmp.eq.s32.totalorder %v47, %v1853
    %vm1856 = vcmp.eq.s32.totalorder %v48, %v1853
    %vm1857 = vcmp.eq.s32.totalorder %v49, %v1853
    %vm1858 = vcmp.eq.s32.totalorder %v50, %v1853
    %vm1859 = vcmp.eq.s32.totalorder %v51, %v1853
    %vm1860 = vcmp.eq.s32.totalorder %v52, %v1853
    %vm1861 = vcmp.eq.s32.totalorder %v53, %v1853
    %vm1862 = vcmp.eq.s32.totalorder %v54, %v1853
    %vm1863 = vcmp.eq.s32.totalorder %v55, %v1853
    %vm1864 = vcmp.eq.s32.totalorder %v56, %v1853
    %vm1865 = vcmp.eq.s32.totalorder %v57, %v1853
    %vm1866 = vcmp.eq.s32.totalorder %v58, %v1853
    %vm1867 = vcmp.eq.s32.totalorder %v59, %v1853
    %vm1868 = vcmp.eq.s32.totalorder %v60, %v1853
    %vm1869 = vcmp.eq.s32.totalorder %v61, %v1853
    %v1870 = vsel %vm1854, 1.0, 0.0
    %v1871 = vsel %vm1855, 1.0, 0.0
    %v1872 = vsel %vm1856, 1.0, 0.0
    %v1873 = vsel %vm1857, 1.0, 0.0
    %v1874 = vsel %vm1858, 1.0, 0.0
    %v1875 = vsel %vm1859, 1.0, 0.0
    %v1876 = vsel %vm1860, 1.0, 0.0
    %v1877 = vsel %vm1861, 1.0, 0.0
    %v1878 = vsel %vm1862, 1.0, 0.0
    %v1879 = vsel %vm1863, 1.0, 0.0
    %v1880 = vsel %vm1864, 1.0, 0.0
    %v1881 = vsel %vm1865, 1.0, 0.0
    %v1882 = vsel %vm1866, 1.0, 0.0
    %v1883 = vsel %vm1867, 1.0, 0.0
    %v1884 = vsel %vm1868, 1.0, 0.0
    %v1885 = vsel %vm1869, 1.0, 0.0
    %v1886 = vadd.s32 %v1820, 2
    %vm1887 = vcmp.eq.s32.totalorder %v46, %v1886
    %vm1888 = vcmp.eq.s32.totalorder %v47, %v1886
    %vm1889 = vcmp.eq.s32.totalorder %v48, %v1886
    %vm1890 = vcmp.eq.s32.totalorder %v49, %v1886
    %vm1891 = vcmp.eq.s32.totalorder %v50, %v1886
    %vm1892 = vcmp.eq.s32.totalorder %v51, %v1886
    %vm1893 = vcmp.eq.s32.totalorder %v52, %v1886
    %vm1894 = vcmp.eq.s32.totalorder %v53, %v1886
    %vm1895 = vcmp.eq.s32.totalorder %v54, %v1886
    %vm1896 = vcmp.eq.s32.totalorder %v55, %v1886
    %vm1897 = vcmp.eq.s32.totalorder %v56, %v1886
    %vm1898 = vcmp.eq.s32.totalorder %v57, %v1886
    %vm1899 = vcmp.eq.s32.totalorder %v58, %v1886
    %vm1900 = vcmp.eq.s32.totalorder %v59, %v1886
    %vm1901 = vcmp.eq.s32.totalorder %v60, %v1886
    %vm1902 = vcmp.eq.s32.totalorder %v61, %v1886
    %v1903 = vsel %vm1887, 1.0, 0.0
    %v1904 = vsel %vm1888, 1.0, 0.0
    %v1905 = vsel %vm1889, 1.0, 0.0
    %v1906 = vsel %vm1890, 1.0, 0.0
    %v1907 = vsel %vm1891, 1.0, 0.0
    %v1908 = vsel %vm1892, 1.0, 0.0
    %v1909 = vsel %vm1893, 1.0, 0.0
    %v1910 = vsel %vm1894, 1.0, 0.0
    %v1911 = vsel %vm1895, 1.0, 0.0
    %v1912 = vsel %vm1896, 1.0, 0.0
    %v1913 = vsel %vm1897, 1.0, 0.0
    %v1914 = vsel %vm1898, 1.0, 0.0
    %v1915 = vsel %vm1899, 1.0, 0.0
    %v1916 = vsel %vm1900, 1.0, 0.0
    %v1917 = vsel %vm1901, 1.0, 0.0
    %v1918 = vsel %vm1902, 1.0, 0.0
    %v1919 = vadd.s32 %v1820, 3
    %vm1920 = vcmp.eq.s32.totalorder %v46, %v1919
    %vm1921 = vcmp.eq.s32.totalorder %v47, %v1919
    %vm1922 = vcmp.eq.s32.totalorder %v48, %v1919
    %vm1923 = vcmp.eq.s32.totalorder %v49, %v1919
    %vm1924 = vcmp.eq.s32.totalorder %v50, %v1919
    %vm1925 = vcmp.eq.s32.totalorder %v51, %v1919
    %vm1926 = vcmp.eq.s32.totalorder %v52, %v1919
    %vm1927 = vcmp.eq.s32.totalorder %v53, %v1919
    %vm1928 = vcmp.eq.s32.totalorder %v54, %v1919
    %vm1929 = vcmp.eq.s32.totalorder %v55, %v1919
    %vm1930 = vcmp.eq.s32.totalorder %v56, %v1919
    %vm1931 = vcmp.eq.s32.totalorder %v57, %v1919
    %vm1932 = vcmp.eq.s32.totalorder %v58, %v1919
    %vm1933 = vcmp.eq.s32.totalorder %v59, %v1919
    %vm1934 = vcmp.eq.s32.totalorder %v60, %v1919
    %vm1935 = vcmp.eq.s32.totalorder %v61, %v1919
    %v1936 = vsel %vm1920, 1.0, 0.0
    %v1937 = vsel %vm1921, 1.0, 0.0
    %v1938 = vsel %vm1922, 1.0, 0.0
    %v1939 = vsel %vm1923, 1.0, 0.0
    %v1940 = vsel %vm1924, 1.0, 0.0
    %v1941 = vsel %vm1925, 1.0, 0.0
    %v1942 = vsel %vm1926, 1.0, 0.0
    %v1943 = vsel %vm1927, 1.0, 0.0
    %v1944 = vsel %vm1928, 1.0, 0.0
    %v1945 = vsel %vm1929, 1.0, 0.0
    %v1946 = vsel %vm1930, 1.0, 0.0
    %v1947 = vsel %vm1931, 1.0, 0.0
    %v1948 = vsel %vm1932, 1.0, 0.0
    %v1949 = vsel %vm1933, 1.0, 0.0
    %v1950 = vsel %vm1934, 1.0, 0.0
    %v1951 = vsel %vm1935, 1.0, 0.0
    %1952 = vmatprep.subr.mxu0 0.0
    %1953 = vmatpush1.msra.mxu0 %v1837
    %1954 = vmatprep.subr.mxu0 0.0
    %1955 = vmatpush1.msra.mxu0 %v1838
    %1956 = vmatprep.subr.mxu0 0.0
    %1957 = vmatpush1.msra.mxu0 %v1839
    %1958 = vmatprep.subr.mxu0 0.0
    %1959 = vmatpush1.msra.mxu0 %v1840
    %1960 = vmatprep.subr.mxu0 0.0
    %1961 = vmatpush1.msra.mxu0 %v1841
    %1962 = vmatprep.subr.mxu0 0.0
    %1963 = vmatpush1.msra.mxu0 %v1842
    %1964 = vmatprep.subr.mxu0 0.0
    %1965 = vmatpush1.msra.mxu0 %v1843
    %1966 = vmatprep.subr.mxu0 0.0
    %1967 = vmatpush1.msra.mxu0 %v1844
    %1968 = vmatprep.subr.mxu0 0.0
    %1969 = vmatpush1.msra.mxu0 %v1845
    %1970 = vmatprep.subr.mxu0 0.0
    %1971 = vmatpush1.msra.mxu0 %v1846
    %1972 = vmatprep.subr.mxu0 0.0
    %1973 = vmatpush1.msra.mxu0 %v1847
    %1974 = vmatprep.subr.mxu0 0.0
    %1975 = vmatpush1.msra.mxu0 %v1848
    %1976 = vmatprep.subr.mxu0 0.0
    %1977 = vmatpush1.msra.mxu0 %v1849
    %1978 = vmatprep.subr.mxu0 0.0
    %1979 = vmatpush1.msra.mxu0 %v1850
    %1980 = vmatprep.subr.mxu0 0.0
    %1981 = vmatpush1.msra.mxu0 %v1851
    %1982 = vmatprep.subr.mxu0 0.0
    %1983 = vmatpush1.msra.mxu0 %v1852
    %1984 = vmatprep.subr.mxu0 0.0
    %1985 = vmatpush1.msra.mxu0 0.0
    %1986 = vmatprep.subr.mxu0 0.0
    %1987 = vmatpush1.msra.mxu0 0.0
    %1988 = vmatprep.subr.mxu0 0.0
    %1989 = vmatpush1.msra.mxu0 0.0
    %1990 = vmatprep.subr.mxu0 0.0
    %1991 = vmatpush1.msra.mxu0 0.0
    %1992 = vmatprep.subr.mxu0 0.0
    %1993 = vmatpush1.msra.mxu0 0.0
    %1994 = vmatprep.subr.mxu0 0.0
    %1995 = vmatpush1.msra.mxu0 0.0
    %1996 = vmatprep.subr.mxu0 0.0
    %1997 = vmatpush1.msra.mxu0 0.0
    %1998 = vmatprep.subr.mxu0 0.0
    %1999 = vmatpush1.msra.mxu0 0.0
    %2000 = vmatprep.subr.mxu0 0.0
    %2001 = vmatpush1.msra.mxu0 0.0
    %2002 = vmatprep.subr.mxu0 0.0
    %2003 = vmatpush1.msra.mxu0 0.0
    %2004 = vmatprep.subr.mxu0 0.0
    %2005 = vmatpush1.msra.mxu0 0.0
    %2006 = vmatprep.subr.mxu0 0.0
    %2007 = vmatpush1.msra.mxu0 0.0
    %2008 = vmatprep.subr.mxu0 0.0
    %2009 = vmatpush1.msra.mxu0 0.0
    %2010 = vmatprep.subr.mxu0 0.0
    %2011 = vmatpush1.msra.mxu0 0.0
    %2012 = vmatprep.subr.mxu0 0.0
    %2013 = vmatpush1.msra.mxu0 0.0
    %2014 = vmatprep.subr.mxu0 0.0
    %2015 = vmatpush1.msra.mxu0 0.0
    %2016 = vmatprep.mubr.f32.mxu0 0.0
    %2017 = vmatmul.mubr.f32.gmra.mrb[0].mxu0 %v1815
    %v2018 = vpop.f32.mrb[0].mxu0
    %v2019 = vadd.f32 0.0, %v2018
    %v2020 = vpop.f32.mrb[0].mxu0
    %2021 = vdwg.mxu0
    %2022 = vmatprep.subr.mxu0 0.0
    %2023 = vmatpush1.msra.mxu0 %v1870
    %2024 = vmatprep.subr.mxu0 0.0
    %2025 = vmatpush1.msra.mxu0 %v1871
    %2026 = vmatprep.subr.mxu0 0.0
    %2027 = vmatpush1.msra.mxu0 %v1872
    %2028 = vmatprep.subr.mxu0 0.0
    %2029 = vmatpush1.msra.mxu0 %v1873
    %2030 = vmatprep.subr.mxu0 0.0
    %2031 = vmatpush1.msra.mxu0 %v1874
    %2032 = vmatprep.subr.mxu0 0.0
    %2033 = vmatpush1.msra.mxu0 %v1875
    %2034 = vmatprep.subr.mxu0 0.0
    %2035 = vmatpush1.msra.mxu0 %v1876
    %2036 = vmatprep.subr.mxu0 0.0
    %2037 = vmatpush1.msra.mxu0 %v1877
    %2038 = vmatprep.subr.mxu0 0.0
    %2039 = vmatpush1.msra.mxu0 %v1878
    %2040 = vmatprep.subr.mxu0 0.0
    %2041 = vmatpush1.msra.mxu0 %v1879
    %2042 = vmatprep.subr.mxu0 0.0
    %2043 = vmatpush1.msra.mxu0 %v1880
    %2044 = vmatprep.subr.mxu0 0.0
    %2045 = vmatpush1.msra.mxu0 %v1881
    %2046 = vmatprep.subr.mxu0 0.0
    %2047 = vmatpush1.msra.mxu0 %v1882
    %2048 = vmatprep.subr.mxu0 0.0
    %2049 = vmatpush1.msra.mxu0 %v1883
    %2050 = vmatprep.subr.mxu0 0.0
    %2051 = vmatpush1.msra.mxu0 %v1884
    %2052 = vmatprep.subr.mxu0 0.0
    %2053 = vmatpush1.msra.mxu0 %v1885
    %2054 = vmatprep.subr.mxu0 0.0
    %2055 = vmatpush1.msra.mxu0 0.0
    %2056 = vmatprep.subr.mxu0 0.0
    %2057 = vmatpush1.msra.mxu0 0.0
    %2058 = vmatprep.subr.mxu0 0.0
    %2059 = vmatpush1.msra.mxu0 0.0
    %2060 = vmatprep.subr.mxu0 0.0
    %2061 = vmatpush1.msra.mxu0 0.0
    %2062 = vmatprep.subr.mxu0 0.0
    %2063 = vmatpush1.msra.mxu0 0.0
    %2064 = vmatprep.subr.mxu0 0.0
    %2065 = vmatpush1.msra.mxu0 0.0
    %2066 = vmatprep.subr.mxu0 0.0
    %2067 = vmatpush1.msra.mxu0 0.0
    %2068 = vmatprep.subr.mxu0 0.0
    %2069 = vmatpush1.msra.mxu0 0.0
    %2070 = vmatprep.subr.mxu0 0.0
    %2071 = vmatpush1.msra.mxu0 0.0
    %2072 = vmatprep.subr.mxu0 0.0
    %2073 = vmatpush1.msra.mxu0 0.0
    %2074 = vmatprep.subr.mxu0 0.0
    %2075 = vmatpush1.msra.mxu0 0.0
    %2076 = vmatprep.subr.mxu0 0.0
    %2077 = vmatpush1.msra.mxu0 0.0
    %2078 = vmatprep.subr.mxu0 0.0
    %2079 = vmatpush1.msra.mxu0 0.0
    %2080 = vmatprep.subr.mxu0 0.0
    %2081 = vmatpush1.msra.mxu0 0.0
    %2082 = vmatprep.subr.mxu0 0.0
    %2083 = vmatpush1.msra.mxu0 0.0
    %2084 = vmatprep.subr.mxu0 0.0
    %2085 = vmatpush1.msra.mxu0 0.0
    %2086 = vmatprep.mubr.f32.mxu0 0.0
    %2087 = vmatmul.mubr.f32.gmra.mrb[0].mxu0 %v1815
    %v2088 = vpop.f32.mrb[0].mxu0
    %v2089 = vadd.f32 0.0, %v2088
    %v2090 = vpop.f32.mrb[0].mxu0
    %2091 = vdwg.mxu0
    %2092 = vmatprep.subr.mxu0 0.0
    %2093 = vmatpush1.msra.mxu0 %v1903
    %2094 = vmatprep.subr.mxu0 0.0
    %2095 = vmatpush1.msra.mxu0 %v1904
    %2096 = vmatprep.subr.mxu0 0.0
    %2097 = vmatpush1.msra.mxu0 %v1905
    %2098 = vmatprep.subr.mxu0 0.0
    %2099 = vmatpush1.msra.mxu0 %v1906
    %2100 = vmatprep.subr.mxu0 0.0
    %2101 = vmatpush1.msra.mxu0 %v1907
    %2102 = vmatprep.subr.mxu0 0.0
    %2103 = vmatpush1.msra.mxu0 %v1908
    %2104 = vmatprep.subr.mxu0 0.0
    %2105 = vmatpush1.msra.mxu0 %v1909
    %2106 = vmatprep.subr.mxu0 0.0
    %2107 = vmatpush1.msra.mxu0 %v1910
    %2108 = vmatprep.subr.mxu0 0.0
    %2109 = vmatpush1.msra.mxu0 %v1911
    %2110 = vmatprep.subr.mxu0 0.0
    %2111 = vmatpush1.msra.mxu0 %v1912
    %2112 = vmatprep.subr.mxu0 0.0
    %2113 = vmatpush1.msra.mxu0 %v1913
    %2114 = vmatprep.subr.mxu0 0.0
    %2115 = vmatpush1.msra.mxu0 %v1914
    %2116 = vmatprep.subr.mxu0 0.0
    %2117 = vmatpush1.msra.mxu0 %v1915
    %2118 = vmatprep.subr.mxu0 0.0
    %2119 = vmatpush1.msra.mxu0 %v1916
    %2120 = vmatprep.subr.mxu0 0.0
    %2121 = vmatpush1.msra.mxu0 %v1917
    %2122 = vmatprep.subr.mxu0 0.0
    %2123 = vmatpush1.msra.mxu0 %v1918
    %2124 = vmatprep.subr.mxu0 0.0
    %2125 = vmatpush1.msra.mxu0 0.0
    %2126 = vmatprep.subr.mxu0 0.0
    %2127 = vmatpush1.msra.mxu0 0.0
    %2128 = vmatprep.subr.mxu0 0.0
    %2129 = vmatpush1.msra.mxu0 0.0
    %2130 = vmatprep.subr.mxu0 0.0
    %2131 = vmatpush1.msra.mxu0 0.0
    %2132 = vmatprep.subr.mxu0 0.0
    %2133 = vmatpush1.msra.mxu0 0.0
    %2134 = vmatprep.subr.mxu0 0.0
    %2135 = vmatpush1.msra.mxu0 0.0
    %2136 = vmatprep.subr.mxu0 0.0
    %2137 = vmatpush1.msra.mxu0 0.0
    %2138 = vmatprep.subr.mxu0 0.0
    %2139 = vmatpush1.msra.mxu0 0.0
    %2140 = vmatprep.subr.mxu0 0.0
    %2141 = vmatpush1.msra.mxu0 0.0
    %2142 = vmatprep.subr.mxu0 0.0
    %2143 = vmatpush1.msra.mxu0 0.0
    %2144 = vmatprep.subr.mxu0 0.0
    %2145 = vmatpush1.msra.mxu0 0.0
    %2146 = vmatprep.subr.mxu0 0.0
    %2147 = vmatpush1.msra.mxu0 0.0
    %2148 = vmatprep.subr.mxu0 0.0
    %2149 = vmatpush1.msra.mxu0 0.0
    %2150 = vmatprep.subr.mxu0 0.0
    %2151 = vmatpush1.msra.mxu0 0.0
    %2152 = vmatprep.subr.mxu0 0.0
    %2153 = vmatpush1.msra.mxu0 0.0
    %2154 = vmatprep.subr.mxu0 0.0
    %2155 = vmatpush1.msra.mxu0 0.0
    %2156 = vmatprep.mubr.f32.mxu0 0.0
    %2157 = vmatmul.mubr.f32.gmra.mrb[0].mxu0 %v1815
    %v2158 = vpop.f32.mrb[0].mxu0
    %v2159 = vadd.f32 0.0, %v2158
    %v2160 = vpop.f32.mrb[0].mxu0
    %2161 = vdwg.mxu0
    %2162 = vmatprep.subr.mxu0 0.0
    %2163 = vmatpush1.msra.mxu0 %v1936
    %2164 = vmatprep.subr.mxu0 0.0
    %2165 = vmatpush1.msra.mxu0 %v1937
    %2166 = vmatprep.subr.mxu0 0.0
    %2167 = vmatpush1.msra.mxu0 %v1938
    %2168 = vmatprep.subr.mxu0 0.0
    %2169 = vmatpush1.msra.mxu0 %v1939
    %2170 = vmatprep.subr.mxu0 0.0
    %2171 = vmatpush1.msra.mxu0 %v1940
    %2172 = vmatprep.subr.mxu0 0.0
    %2173 = vmatpush1.msra.mxu0 %v1941
    %2174 = vmatprep.subr.mxu0 0.0
    %2175 = vmatpush1.msra.mxu0 %v1942
    %2176 = vmatprep.subr.mxu0 0.0
    %2177 = vmatpush1.msra.mxu0 %v1943
    %2178 = vmatprep.subr.mxu0 0.0
    %2179 = vmatpush1.msra.mxu0 %v1944
    %2180 = vmatprep.subr.mxu0 0.0
    %2181 = vmatpush1.msra.mxu0 %v1945
    %2182 = vmatprep.subr.mxu0 0.0
    %2183 = vmatpush1.msra.mxu0 %v1946
    %2184 = vmatprep.subr.mxu0 0.0
    %2185 = vmatpush1.msra.mxu0 %v1947
    %2186 = vmatprep.subr.mxu0 0.0
    %2187 = vmatpush1.msra.mxu0 %v1948
    %2188 = vmatprep.subr.mxu0 0.0
    %2189 = vmatpush1.msra.mxu0 %v1949
    %2190 = vmatprep.subr.mxu0 0.0
    %2191 = vmatpush1.msra.mxu0 %v1950
    %2192 = vmatprep.subr.mxu0 0.0
    %2193 = vmatpush1.msra.mxu0 %v1951
    %2194 = vmatprep.subr.mxu0 0.0
    %2195 = vmatpush1.msra.mxu0 0.0
    %2196 = vmatprep.subr.mxu0 0.0
    %2197 = vmatpush1.msra.mxu0 0.0
    %2198 = vmatprep.subr.mxu0 0.0
    %2199 = vmatpush1.msra.mxu0 0.0
    %2200 = vmatprep.subr.mxu0 0.0
    %2201 = vmatpush1.msra.mxu0 0.0
    %2202 = vmatprep.subr.mxu0 0.0
    %2203 = vmatpush1.msra.mxu0 0.0
    %2204 = vmatprep.subr.mxu0 0.0
    %2205 = vmatpush1.msra.mxu0 0.0
    %2206 = vmatprep.subr.mxu0 0.0
    %2207 = vmatpush1.msra.mxu0 0.0
    %2208 = vmatprep.subr.mxu0 0.0
    %2209 = vmatpush1.msra.mxu0 0.0
    %2210 = vmatprep.subr.mxu0 0.0
    %2211 = vmatpush1.msra.mxu0 0.0
    %2212 = vmatprep.subr.mxu0 0.0
    %2213 = vmatpush1.msra.mxu0 0.0
    %2214 = vmatprep.subr.mxu0 0.0
    %2215 = vmatpush1.msra.mxu0 0.0
    %2216 = vmatprep.subr.mxu0 0.0
    %2217 = vmatpush1.msra.mxu0 0.0
    %2218 = vmatprep.subr.mxu0 0.0
    %2219 = vmatpush1.msra.mxu0 0.0
    %2220 = vmatprep.subr.mxu0 0.0
    %2221 = vmatpush1.msra.mxu0 0.0
    %2222 = vmatprep.subr.mxu0 0.0
    %2223 = vmatpush1.msra.mxu0 0.0
    %2224 = vmatprep.subr.mxu0 0.0
    %2225 = vmatpush1.msra.mxu0 0.0
    %2226 = vmatprep.mubr.f32.mxu0 0.0
    %2227 = vmatmul.mubr.f32.gmra.mrb[0].mxu0 %v1815
    %v2228 = vpop.f32.mrb[0].mxu0
    %v2229 = vadd.f32 0.0, %v2228
    %v2230 = vpop.f32.mrb[0].mxu0
    %2231 = vdwg.mxu0
    %v2232 = vmax.f32 %v2019, %v2089
    %v2233 = vmax.f32 %v2232, %v2159
    %v2234 = vmax.f32 %v2233, %v2229
    %v2235 = vshra.s32 %v46, 4
    %v2236 = vshra.s32 %v47, 4
    %v2237 = vshra.s32 %v48, 4
    %v2238 = vshra.s32 %v49, 4
    %vm2239 = vcmp.eq.s32.totalorder %v2235, %v1816
    %vm2240 = vcmp.eq.s32.totalorder %v2236, %v1816
    %vm2241 = vcmp.eq.s32.totalorder %v2237, %v1816
    %vm2242 = vcmp.eq.s32.totalorder %v2238, %v1816
    %vm2243 = vmand %vm217, %vm2239
    %vm2244 = vmand %vm218, %vm2240
    %vm2245 = vmand %vm219, %vm2241
    %vm2246 = vmand %vm220, %vm2242
    %v2247 = vsel %vm2243, 1.0, 0.0
    %v2248 = vsel %vm2244, 1.0, 0.0
    %v2249 = vsel %vm2245, 1.0, 0.0
    %v2250 = vsel %vm2246, 1.0, 0.0
    %vm2251 = vcmask 261120
    %v2253 = vsel %vm2251, %v2234, 0
    %2255 = vmatprep.subr.mxu0 0.0
    %2256 = vmatpush1.msra.mxu0 %v2247
    %2257 = vmatprep.subr.mxu0 0.0
    %2258 = vmatpush1.msra.mxu0 %v2248
    %2259 = vmatprep.subr.mxu0 0.0
    %2260 = vmatpush1.msra.mxu0 %v2249
    %2261 = vmatprep.subr.mxu0 0.0
    %2262 = vmatpush1.msra.mxu0 %v2250
    %2263 = vmatprep.subr.mxu0 0.0
    %2264 = vmatpush1.msra.mxu0 0.0
    %2265 = vmatprep.subr.mxu0 0.0
    %2266 = vmatpush1.msra.mxu0 0.0
    %2267 = vmatprep.subr.mxu0 0.0
    %2268 = vmatpush1.msra.mxu0 0.0
    %2269 = vmatprep.subr.mxu0 0.0
    %2270 = vmatpush1.msra.mxu0 0.0
    %2271 = vmatprep.subr.mxu0 0.0
    %2272 = vmatpush1.msra.mxu0 0.0
    %2273 = vmatprep.subr.mxu0 0.0
    %2274 = vmatpush1.msra.mxu0 0.0
    %2275 = vmatprep.subr.mxu0 0.0
    %2276 = vmatpush1.msra.mxu0 0.0
    %2277 = vmatprep.subr.mxu0 0.0
    %2278 = vmatpush1.msra.mxu0 0.0
    %2279 = vmatprep.subr.mxu0 0.0
    %2280 = vmatpush1.msra.mxu0 0.0
    %2281 = vmatprep.subr.mxu0 0.0
    %2282 = vmatpush1.msra.mxu0 0.0
    %2283 = vmatprep.subr.mxu0 0.0
    %2284 = vmatpush1.msra.mxu0 0.0
    %2285 = vmatprep.subr.mxu0 0.0
    %2286 = vmatpush1.msra.mxu0 0.0
    %2287 = vmatprep.subr.mxu0 0.0
    %2288 = vmatpush1.msra.mxu0 0.0
    %2289 = vmatprep.subr.mxu0 0.0
    %2290 = vmatpush1.msra.mxu0 0.0
    %2291 = vmatprep.subr.mxu0 0.0
    %2292 = vmatpush1.msra.mxu0 0.0
    %2293 = vmatprep.subr.mxu0 0.0
    %2294 = vmatpush1.msra.mxu0 0.0
    %2295 = vmatprep.subr.mxu0 0.0
    %2296 = vmatpush1.msra.mxu0 0.0
    %2297 = vmatprep.subr.mxu0 0.0
    %2298 = vmatpush1.msra.mxu0 0.0
    %2299 = vmatprep.subr.mxu0 0.0
    %2300 = vmatpush1.msra.mxu0 0.0
    %2301 = vmatprep.subr.mxu0 0.0
    %2302 = vmatpush1.msra.mxu0 0.0
    %2303 = vmatprep.subr.mxu0 0.0
    %2304 = vmatpush1.msra.mxu0 0.0
    %2305 = vmatprep.subr.mxu0 0.0
    %2306 = vmatpush1.msra.mxu0 0.0
    %2307 = vmatprep.subr.mxu0 0.0
    %2308 = vmatpush1.msra.mxu0 0.0
    %2309 = vmatprep.subr.mxu0 0.0
    %2310 = vmatpush1.msra.mxu0 0.0
    %2311 = vmatprep.subr.mxu0 0.0
    %2312 = vmatpush1.msra.mxu0 0.0
    %2313 = vmatprep.subr.mxu0 0.0
    %2314 = vmatpush1.msra.mxu0 0.0
    %2315 = vmatprep.subr.mxu0 0.0
    %2316 = vmatpush1.msra.mxu0 0.0
    %2317 = vmatprep.subr.mxu0 0.0
    %2318 = vmatpush1.msra.mxu0 0.0
    %2319 = vmatprep.mubr.f32.mxu0 0.0
    %2320 = vmatmul.mubr.f32.gmra.mrb[0].mxu0 %v2253
    %v2321 = vpop.f32.mrb[0].mxu0
    %v2322 = vadd.f32 0.0, %v2321
    %v2323 = vpop.f32.mrb[0].mxu0
    %2324 = vdwg.mxu0
    %vm2325 = vmand %vm336, %vm2239
    %vm2326 = vmand %vm337, %vm2240
    %vm2327 = vmand %vm338, %vm2241
    %vm2328 = vmand %vm339, %vm2242
    %v2329 = vsel %vm2325, 1.0, 0.0
    %v2330 = vsel %vm2326, 1.0, 0.0
    %v2331 = vsel %vm2327, 1.0, 0.0
    %v2332 = vsel %vm2328, 1.0, 0.0
    %2333 = vmatprep.subr.mxu0 0.0
    %2334 = vmatpush1.msra.mxu0 %v2329
    %2335 = vmatprep.subr.mxu0 0.0
    %2336 = vmatpush1.msra.mxu0 %v2330
    %2337 = vmatprep.subr.mxu0 0.0
    %2338 = vmatpush1.msra.mxu0 %v2331
    %2339 = vmatprep.subr.mxu0 0.0
    %2340 = vmatpush1.msra.mxu0 %v2332
    %2341 = vmatprep.subr.mxu0 0.0
    %2342 = vmatpush1.msra.mxu0 0.0
    %2343 = vmatprep.subr.mxu0 0.0
    %2344 = vmatpush1.msra.mxu0 0.0
    %2345 = vmatprep.subr.mxu0 0.0
    %2346 = vmatpush1.msra.mxu0 0.0
    %2347 = vmatprep.subr.mxu0 0.0
    %2348 = vmatpush1.msra.mxu0 0.0
    %2349 = vmatprep.subr.mxu0 0.0
    %2350 = vmatpush1.msra.mxu0 0.0
    %2351 = vmatprep.subr.mxu0 0.0
    %2352 = vmatpush1.msra.mxu0 0.0
    %2353 = vmatprep.subr.mxu0 0.0
    %2354 = vmatpush1.msra.mxu0 0.0
    %2355 = vmatprep.subr.mxu0 0.0
    %2356 = vmatpush1.msra.mxu0 0.0
    %2357 = vmatprep.subr.mxu0 0.0
    %2358 = vmatpush1.msra.mxu0 0.0
    %2359 = vmatprep.subr.mxu0 0.0
    %2360 = vmatpush1.msra.mxu0 0.0
    %2361 = vmatprep.subr.mxu0 0.0
    %2362 = vmatpush1.msra.mxu0 0.0
    %2363 = vmatprep.subr.mxu0 0.0
    %2364 = vmatpush1.msra.mxu0 0.0
    %2365 = vmatprep.subr.mxu0 0.0
    %2366 = vmatpush1.msra.mxu0 0.0
    %2367 = vmatprep.subr.mxu0 0.0
    %2368 = vmatpush1.msra.mxu0 0.0
    %2369 = vmatprep.subr.mxu0 0.0
    %2370 = vmatpush1.msra.mxu0 0.0
    %2371 = vmatprep.subr.mxu0 0.0
    %2372 = vmatpush1.msra.mxu0 0.0
    %2373 = vmatprep.subr.mxu0 0.0
    %2374 = vmatpush1.msra.mxu0 0.0
    %2375 = vmatprep.subr.mxu0 0.0
    %2376 = vmatpush1.msra.mxu0 0.0
    %2377 = vmatprep.subr.mxu0 0.0
    %2378 = vmatpush1.msra.mxu0 0.0
    %2379 = vmatprep.subr.mxu0 0.0
    %2380 = vmatpush1.msra.mxu0 0.0
    %2381 = vmatprep.subr.mxu0 0.0
    %2382 = vmatpush1.msra.mxu0 0.0
    %2383 = vmatprep.subr.mxu0 0.0
    %2384 = vmatpush1.msra.mxu0 0.0
    %2385 = vmatprep.subr.mxu0 0.0
    %2386 = vmatpush1.msra.mxu0 0.0
    %2387 = vmatprep.subr.mxu0 0.0
    %2388 = vmatpush1.msra.mxu0 0.0
    %2389 = vmatprep.subr.mxu0 0.0
    %2390 = vmatpush1.msra.mxu0 0.0
    %2391 = vmatprep.subr.mxu0 0.0
    %2392 = vmatpush1.msra.mxu0 0.0
    %2393 = vmatprep.subr.mxu0 0.0
    %2394 = vmatpush1.msra.mxu0 0.0
    %2395 = vmatprep.subr.mxu0 0.0
    %2396 = vmatpush1.msra.mxu0 0.0
    %2397 = vmatprep.mubr.f32.mxu0 0.0
    %2398 = vmatmul.mubr.f32.gmra.mrb[0].mxu0 %v2253
    %v2399 = vpop.f32.mrb[0].mxu0
    %v2400 = vadd.f32 0.0, %v2399
    %v2401 = vpop.f32.mrb[0].mxu0
    %2402 = vdwg.mxu0
    %v2403 = vld [vmem:[#allocation2 + $0x20] sm:$0xff]
    %v2404 = vld [vmem:[#allocation2 + $0x28] sm:$0xff]
    %2405 = vmatprep.subr.mxu0 0.0
    %2406 = vmatpush1.msra.mxu0 0.0
    %2407 = vmatprep.subr.mxu0 0.0
    %2408 = vmatpush1.msra.mxu0 %v2322
    %2409 = vmatprep.subr.mxu0 0.0
    %2410 = vmatpush1.msra.mxu0 %v2234
    %2411 = vmatprep.subr.mxu0 0.0
    %2412 = vmatpush1.msra.mxu0 %v2400
    %2413 = vmatprep.subr.mxu0 0.0
    %2414 = vmatpush1.msra.mxu0 0.0
    %2415 = vmatprep.subr.mxu0 0.0
    %2416 = vmatpush1.msra.mxu0 0.0
    %2417 = vmatprep.subr.mxu0 0.0
    %2418 = vmatpush1.msra.mxu0 0.0
    %2419 = vmatprep.subr.mxu0 0.0
    %2420 = vmatpush1.msra.mxu0 0.0
    %2421 = vmatprep.subr.mxu0 0.0
    %2422 = vmatpush1.msra.mxu0 0.0
    %2423 = vmatprep.subr.mxu0 0.0
    %2424 = vmatpush1.msra.mxu0 0.0
    %2425 = vmatprep.subr.mxu0 0.0
    %2426 = vmatpush1.msra.mxu0 0.0
    %2427 = vmatprep.subr.mxu0 0.0
    %2428 = vmatpush1.msra.mxu0 0.0
    %2429 = vmatprep.subr.mxu0 0.0
    %2430 = vmatpush1.msra.mxu0 0.0
    %2431 = vmatprep.subr.mxu0 0.0
    %2432 = vmatpush1.msra.mxu0 0.0
    %2433 = vmatprep.subr.mxu0 0.0
    %2434 = vmatpush1.msra.mxu0 0.0
    %2435 = vmatprep.subr.mxu0 0.0
    %2436 = vmatpush1.msra.mxu0 0.0
    %2437 = vmatprep.subr.mxu0 0.0
    %2438 = vmatpush1.msra.mxu0 0.0
    %2439 = vmatprep.subr.mxu0 0.0
    %2440 = vmatpush1.msra.mxu0 0.0
    %2441 = vmatprep.subr.mxu0 0.0
    %2442 = vmatpush1.msra.mxu0 0.0
    %2443 = vmatprep.subr.mxu0 0.0
    %2444 = vmatpush1.msra.mxu0 0.0
    %2445 = vmatprep.subr.mxu0 0.0
    %2446 = vmatpush1.msra.mxu0 0.0
    %2447 = vmatprep.subr.mxu0 0.0
    %2448 = vmatpush1.msra.mxu0 0.0
    %2449 = vmatprep.subr.mxu0 0.0
    %2450 = vmatpush1.msra.mxu0 0.0
    %2451 = vmatprep.subr.mxu0 0.0
    %2452 = vmatpush1.msra.mxu0 0.0
    %2453 = vmatprep.subr.mxu0 0.0
    %2454 = vmatpush1.msra.mxu0 0.0
    %2455 = vmatprep.subr.mxu0 0.0
    %2456 = vmatpush1.msra.mxu0 0.0
    %2457 = vmatprep.subr.mxu0 0.0
    %2458 = vmatpush1.msra.mxu0 0.0
    %2459 = vmatprep.subr.mxu0 0.0
    %2460 = vmatpush1.msra.mxu0 0.0
    %2461 = vmatprep.subr.mxu0 0.0
    %2462 = vmatpush1.msra.mxu0 0.0
    %2463 = vmatprep.subr.mxu0 0.0
    %2464 = vmatpush1.msra.mxu0 0.0
    %2465 = vmatprep.subr.mxu0 0.0
    %2466 = vmatpush1.msra.mxu0 0.0
    %2467 = vmatprep.subr.mxu0 0.0
    %2468 = vmatpush1.msra.mxu0 0.0
    %2469 = vmatprep.mubr.f32.mxu0 0.0
    %2470 = vmatmul.mubr.f32.gmra.mrb[0].mxu0 %v2403
    %v2471 = vpop.f32.mrb[0].mxu0
    %v2472 = vadd.f32 0.0, %v2471
    %v2473 = vpop.f32.mrb[0].mxu0
    %2474 = vmatprep.mubr.f32.mxu0 0.0
    %2475 = vmatmul.mubr.f32.gmra.mrb[0].mxu0 %v2404
    %v2476 = vpop.f32.mrb[0].mxu0
    %v2477 = vadd.f32 0.0, %v2476
    %v2478 = vpop.f32.mrb[0].mxu0
    %2479 = vdwg.mxu0
    %v2480 = vld [vmem:[#allocation4 + $0x20] sm:$0xff]
    %v2481 = vld [vmem:[#allocation4 + $0x28] sm:$0xff]
    %v2482 = vsel %vm2251, %v2472, 0.0
    %2483 = vadd.xlane.f32.xlu0 %v2482
    %v2484 = vpop.xlane.xlu0 %2483
    %v2485 = vsel %vm2251, %v2477, 0.0
    %2486 = vadd.xlane.f32.xlu0 %v2485
    %v2487 = vpop.xlane.xlu0 %2486
    %v2488 = vmul.f32 %v2472, %v2472
    %v2489 = vmul.f32 %v2477, %v2477
    %v2490 = vsel %vm2251, %v2488, 0.0
    %2491 = vadd.xlane.f32.xlu0 %v2490
    %v2492 = vpop.xlane.xlu0 %2491
    %v2493 = vsel %vm2251, %v2489, 0.0
    %2494 = vadd.xlane.f32.xlu0 %v2493
    %v2495 = vpop.xlane.xlu0 %2494
    %v2496 = vmul.f32 %v2484, 0.03125
    %v2497 = vmul.f32 %v2487, 0.03125
    %v2498 = vmul.f32 %v2492, 0.03125
    %v2499 = vmul.f32 %v2495, 0.03125
    %v2500 = vmul.f32 %v2496, %v2496
    %v2501 = vmul.f32 %v2497, %v2497
    %v2502 = vsub.f32 %v2498, %v2500
    %v2503 = vsub.f32 %v2499, %v2501
    %v2504 = vmax.f32 %v2502, 0.0
    %v2505 = vmax.f32 %v2503, 0.0
    %v2506 = vadd.f32 %v2504, 1e-05
    %v2507 = vadd.f32 %v2505, 1e-05
    %v2508 = vrsqrt.pop %v2506
    %v2509 = vrsqrt.pop %v2507
    %v2510 = vmul.f32 %v2508, %v2480
    %v2511 = vmul.f32 %v2509, %v2481
    %v2512 = vsub.f32 %v2472, %v2496
    %v2513 = vsub.f32 %v2477, %v2497
    %2515 = vset.pattern.permute.xlu0 0
    %2516 = vperm.xlu0 %2515, %v2510
    %v2517 = vpop.permute.xlu0 %2516
    %2520 = vset.pattern.permute.xlu0 0
    %2521 = vperm.xlu0 %2520, %v2511
    %v2522 = vpop.permute.xlu0 %2521
    %v2524 = vmul.f32 %v2512, %v2517
    %v2525 = vmul.f32 %v2513, %v2522
    %2527 = vset.pattern.permute.xlu0 1
    %2528 = vperm.xlu0 %2527, %v2480
    %v2529 = vpop.permute.xlu0 %2528
    %2532 = vset.pattern.permute.xlu0 1
    %2533 = vperm.xlu0 %2532, %v2481
    %v2534 = vpop.permute.xlu0 %2533
    %v2536 = vadd.f32 %v2524, %v2529
    %v2537 = vadd.f32 %v2525, %v2534
    %v2538 = vmax.f32 %v2536, 0.0
    %v2539 = vmax.f32 %v2537, 0.0
    %v2541 = vsel %vm2251, %v2538, 0
    %v2544 = vsel %vm2251, %v2539, 0
    %2546 = vmatprep.subr.mxu0 0.0
    %2547 = vmatpush1.msra.mxu0 %v2247
    %2548 = vmatprep.subr.mxu0 0.0
    %2549 = vmatpush1.msra.mxu0 %v2248
    %2550 = vmatprep.subr.mxu0 0.0
    %2551 = vmatpush1.msra.mxu0 %v2249
    %2552 = vmatprep.subr.mxu0 0.0
    %2553 = vmatpush1.msra.mxu0 %v2250
    %2554 = vmatprep.subr.mxu0 0.0
    %2555 = vmatpush1.msra.mxu0 0.0
    %2556 = vmatprep.subr.mxu0 0.0
    %2557 = vmatpush1.msra.mxu0 0.0
    %2558 = vmatprep.subr.mxu0 0.0
    %2559 = vmatpush1.msra.mxu0 0.0
    %2560 = vmatprep.subr.mxu0 0.0
    %2561 = vmatpush1.msra.mxu0 0.0
    %2562 = vmatprep.subr.mxu0 0.0
    %2563 = vmatpush1.msra.mxu0 0.0
    %2564 = vmatprep.subr.mxu0 0.0
    %2565 = vmatpush1.msra.mxu0 0.0
    %2566 = vmatprep.subr.mxu0 0.0
    %2567 = vmatpush1.msra.mxu0 0.0
    %2568 = vmatprep.subr.mxu0 0.0
    %2569 = vmatpush1.msra.mxu0 0.0
    %2570 = vmatprep.subr.mxu0 0.0
    %2571 = vmatpush1.msra.mxu0 0.0
    %2572 = vmatprep.subr.mxu0 0.0
    %2573 = vmatpush1.msra.mxu0 0.0
    %2574 = vmatprep.subr.mxu0 0.0
    %2575 = vmatpush1.msra.mxu0 0.0
    %2576 = vmatprep.subr.mxu0 0.0
    %2577 = vmatpush1.msra.mxu0 0.0
    %2578 = vmatprep.subr.mxu0 0.0
    %2579 = vmatpush1.msra.mxu0 0.0
    %2580 = vmatprep.subr.mxu0 0.0
    %2581 = vmatpush1.msra.mxu0 0.0
    %2582 = vmatprep.subr.mxu0 0.0
    %2583 = vmatpush1.msra.mxu0 0.0
    %2584 = vmatprep.subr.mxu0 0.0
    %2585 = vmatpush1.msra.mxu0 0.0
    %2586 = vmatprep.subr.mxu0 0.0
    %2587 = vmatpush1.msra.mxu0 0.0
    %2588 = vmatprep.subr.mxu0 0.0
    %2589 = vmatpush1.msra.mxu0 0.0
    %2590 = vmatprep.subr.mxu0 0.0
    %2591 = vmatpush1.msra.mxu0 0.0
    %2592 = vmatprep.subr.mxu0 0.0
    %2593 = vmatpush1.msra.mxu0 0.0
    %2594 = vmatprep.subr.mxu0 0.0
    %2595 = vmatpush1.msra.mxu0 0.0
    %2596 = vmatprep.subr.mxu0 0.0
    %2597 = vmatpush1.msra.mxu0 0.0
    %2598 = vmatprep.subr.mxu0 0.0
    %2599 = vmatpush1.msra.mxu0 0.0
    %2600 = vmatprep.subr.mxu0 0.0
    %2601 = vmatpush1.msra.mxu0 0.0
    %2602 = vmatprep.subr.mxu0 0.0
    %2603 = vmatpush1.msra.mxu0 0.0
    %2604 = vmatprep.subr.mxu0 0.0
    %2605 = vmatpush1.msra.mxu0 0.0
    %2606 = vmatprep.subr.mxu0 0.0
    %2607 = vmatpush1.msra.mxu0 0.0
    %2608 = vmatprep.subr.mxu0 0.0
    %2609 = vmatpush1.msra.mxu0 0.0
    %2610 = vmatprep.mubr.f32.mxu0 0.0
    %2611 = vmatmul.mubr.f32.gmra.mrb[0].mxu0 %v2541
    %v2612 = vpop.f32.mrb[0].mxu0
    %v2613 = vadd.f32 0.0, %v2612
    %v2614 = vpop.f32.mrb[0].mxu0
    %2615 = vmatprep.mubr.f32.mxu0 0.0
    %2616 = vmatmul.mubr.f32.gmra.mrb[0].mxu0 %v2544
    %v2617 = vpop.f32.mrb[0].mxu0
    %v2618 = vadd.f32 0.0, %v2617
    %v2619 = vpop.f32.mrb[0].mxu0
    %2620 = vdwg.mxu0
    %2621 = vmatprep.subr.mxu0 0.0
    %2622 = vmatpush1.msra.mxu0 %v2329
    %2623 = vmatprep.subr.mxu0 0.0
    %2624 = vmatpush1.msra.mxu0 %v2330
    %2625 = vmatprep.subr.mxu0 0.0
    %2626 = vmatpush1.msra.mxu0 %v2331
    %2627 = vmatprep.subr.mxu0 0.0
    %2628 = vmatpush1.msra.mxu0 %v2332
    %2629 = vmatprep.subr.mxu0 0.0
    %2630 = vmatpush1.msra.mxu0 0.0
    %2631 = vmatprep.subr.mxu0 0.0
    %2632 = vmatpush1.msra.mxu0 0.0
    %2633 = vmatprep.subr.mxu0 0.0
    %2634 = vmatpush1.msra.mxu0 0.0
    %2635 = vmatprep.subr.mxu0 0.0
    %2636 = vmatpush1.msra.mxu0 0.0
    %2637 = vmatprep.subr.mxu0 0.0
    %2638 = vmatpush1.msra.mxu0 0.0
    %2639 = vmatprep.subr.mxu0 0.0
    %2640 = vmatpush1.msra.mxu0 0.0
    %2641 = vmatprep.subr.mxu0 0.0
    %2642 = vmatpush1.msra.mxu0 0.0
    %2643 = vmatprep.subr.mxu0 0.0
    %2644 = vmatpush1.msra.mxu0 0.0
    %2645 = vmatprep.subr.mxu0 0.0
    %2646 = vmatpush1.msra.mxu0 0.0
    %2647 = vmatprep.subr.mxu0 0.0
    %2648 = vmatpush1.msra.mxu0 0.0
    %2649 = vmatprep.subr.mxu0 0.0
    %2650 = vmatpush1.msra.mxu0 0.0
    %2651 = vmatprep.subr.mxu0 0.0
    %2652 = vmatpush1.msra.mxu0 0.0
    %2653 = vmatprep.subr.mxu0 0.0
    %2654 = vmatpush1.msra.mxu0 0.0
    %2655 = vmatprep.subr.mxu0 0.0
    %2656 = vmatpush1.msra.mxu0 0.0
    %2657 = vmatprep.subr.mxu0 0.0
    %2658 = vmatpush1.msra.mxu0 0.0
    %2659 = vmatprep.subr.mxu0 0.0
    %2660 = vmatpush1.msra.mxu0 0.0
    %2661 = vmatprep.subr.mxu0 0.0
    %2662 = vmatpush1.msra.mxu0 0.0
    %2663 = vmatprep.subr.mxu0 0.0
    %2664 = vmatpush1.msra.mxu0 0.0
    %2665 = vmatprep.subr.mxu0 0.0
    %2666 = vmatpush1.msra.mxu0 0.0
    %2667 = vmatprep.subr.mxu0 0.0
    %2668 = vmatpush1.msra.mxu0 0.0
    %2669 = vmatprep.subr.mxu0 0.0
    %2670 = vmatpush1.msra.mxu0 0.0
    %2671 = vmatprep.subr.mxu0 0.0
    %2672 = vmatpush1.msra.mxu0 0.0
    %2673 = vmatprep.subr.mxu0 0.0
    %2674 = vmatpush1.msra.mxu0 0.0
    %2675 = vmatprep.subr.mxu0 0.0
    %2676 = vmatpush1.msra.mxu0 0.0
    %2677 = vmatprep.subr.mxu0 0.0
    %2678 = vmatpush1.msra.mxu0 0.0
    %2679 = vmatprep.subr.mxu0 0.0
    %2680 = vmatpush1.msra.mxu0 0.0
    %2681 = vmatprep.subr.mxu0 0.0
    %2682 = vmatpush1.msra.mxu0 0.0
    %2683 = vmatprep.subr.mxu0 0.0
    %2684 = vmatpush1.msra.mxu0 0.0
    %2685 = vmatprep.mubr.f32.mxu0 0.0
    %2686 = vmatmul.mubr.f32.gmra.mrb[0].mxu0 %v2541
    %v2687 = vpop.f32.mrb[0].mxu0
    %v2688 = vadd.f32 0.0, %v2687
    %v2689 = vpop.f32.mrb[0].mxu0
    %2690 = vmatprep.mubr.f32.mxu0 0.0
    %2691 = vmatmul.mubr.f32.gmra.mrb[0].mxu0 %v2544
    %v2692 = vpop.f32.mrb[0].mxu0
    %v2693 = vadd.f32 0.0, %v2692
    %v2694 = vpop.f32.mrb[0].mxu0
    %2695 = vdwg.mxu0
    %v2696 = vld [vmem:[#allocation2 + $0x30] sm:$0xff]
    %v2697 = vld [vmem:[#allocation2 + $0x38] sm:$0xff]
    %2698 = vmatprep.subr.mxu0 0.0
    %2699 = vmatpush1.msra.mxu0 0.0
    %2700 = vmatprep.subr.mxu0 0.0
    %2701 = vmatpush1.msra.mxu0 0.0
    %2702 = vmatprep.subr.mxu0 0.0
    %2703 = vmatpush1.msra.mxu0 %v2613
    %2704 = vmatprep.subr.mxu0 0.0
    %2705 = vmatpush1.msra.mxu0 %v2618
    %2706 = vmatprep.subr.mxu0 0.0
    %2707 = vmatpush1.msra.mxu0 %v2538
    %2708 = vmatprep.subr.mxu0 0.0
    %2709 = vmatpush1.msra.mxu0 %v2539
    %2710 = vmatprep.subr.mxu0 0.0
    %2711 = vmatpush1.msra.mxu0 %v2688
    %2712 = vmatprep.subr.mxu0 0.0
    %2713 = vmatpush1.msra.mxu0 %v2693
    %2714 = vmatprep.subr.mxu0 0.0
    %2715 = vmatpush1.msra.mxu0 0.0
    %2716 = vmatprep.subr.mxu0 0.0
    %2717 = vmatpush1.msra.mxu0 0.0
    %2718 = vmatprep.subr.mxu0 0.0
    %2719 = vmatpush1.msra.mxu0 0.0
    %2720 = vmatprep.subr.mxu0 0.0
    %2721 = vmatpush1.msra.mxu0 0.0
    %2722 = vmatprep.subr.mxu0 0.0
    %2723 = vmatpush1.msra.mxu0 0.0
    %2724 = vmatprep.subr.mxu0 0.0
    %2725 = vmatpush1.msra.mxu0 0.0
    %2726 = vmatprep.subr.mxu0 0.0
    %2727 = vmatpush1.msra.mxu0 0.0
    %2728 = vmatprep.subr.mxu0 0.0
    %2729 = vmatpush1.msra.mxu0 0.0
    %2730 = vmatprep.subr.mxu0 0.0
    %2731 = vmatpush1.msra.mxu0 0.0
    %2732 = vmatprep.subr.mxu0 0.0
    %2733 = vmatpush1.msra.mxu0 0.0
    %2734 = vmatprep.subr.mxu0 0.0
    %2735 = vmatpush1.msra.mxu0 0.0
    %2736 = vmatprep.subr.mxu0 0.0
    %2737 = vmatpush1.msra.mxu0 0.0
    %2738 = vmatprep.subr.mxu0 0.0
    %2739 = vmatpush1.msra.mxu0 0.0
    %2740 = vmatprep.subr.mxu0 0.0
    %2741 = vmatpush1.msra.mxu0 0.0
    %2742 = vmatprep.subr.mxu0 0.0
    %2743 = vmatpush1.msra.mxu0 0.0
    %2744 = vmatprep.subr.mxu0 0.0
    %2745 = vmatpush1.msra.mxu0 0.0
    %2746 = vmatprep.subr.mxu0 0.0
    %2747 = vmatpush1.msra.mxu0 0.0
    %2748 = vmatprep.subr.mxu0 0.0
    %2749 = vmatpush1.msra.mxu0 0.0
    %2750 = vmatprep.subr.mxu0 0.0
    %2751 = vmatpush1.msra.mxu0 0.0
    %2752 = vmatprep.subr.mxu0 0.0
    %2753 = vmatpush1.msra.mxu0 0.0
    %2754 = vmatprep.subr.mxu0 0.0
    %2755 = vmatpush1.msra.mxu0 0.0
    %2756 = vmatprep.subr.mxu0 0.0
    %2757 = vmatpush1.msra.mxu0 0.0
    %2758 = vmatprep.subr.mxu0 0.0
    %2759 = vmatpush1.msra.mxu0 0.0
    %2760 = vmatprep.subr.mxu0 0.0
    %2761 = vmatpush1.msra.mxu0 0.0
    %2762 = vmatprep.mubr.f32.mxu0 0.0
    %2763 = vmatmul.mubr.f32.gmra.mrb[0].mxu0 %v2696
    %v2764 = vpop.f32.mrb[0].mxu0
    %v2765 = vadd.f32 0.0, %v2764
    %v2766 = vpop.f32.mrb[0].mxu0
    %2767 = vmatprep.mubr.f32.mxu0 0.0
    %2768 = vmatmul.mubr.f32.gmra.mrb[0].mxu0 %v2697
    %v2769 = vpop.f32.mrb[0].mxu0
    %v2770 = vadd.f32 0.0, %v2769
    %v2771 = vpop.f32.mrb[0].mxu0
    %2772 = vdwg.mxu0
    %v2773 = vld [vmem:[#allocation4 + $0x30] sm:$0xff]
    %v2774 = vld [vmem:[#allocation4 + $0x38] sm:$0xff]
    %v2775 = vsel %vm2251, %v2765, 0.0
    %2776 = vadd.xlane.f32.xlu0 %v2775
    %v2777 = vpop.xlane.xlu0 %2776
    %v2778 = vsel %vm2251, %v2770, 0.0
    %2779 = vadd.xlane.f32.xlu0 %v2778
    %v2780 = vpop.xlane.xlu0 %2779
    %v2781 = vmul.f32 %v2765, %v2765
    %v2782 = vmul.f32 %v2770, %v2770
    %v2783 = vsel %vm2251, %v2781, 0.0
    %2784 = vadd.xlane.f32.xlu0 %v2783
    %v2785 = vpop.xlane.xlu0 %2784
    %v2786 = vsel %vm2251, %v2782, 0.0
    %2787 = vadd.xlane.f32.xlu0 %v2786
    %v2788 = vpop.xlane.xlu0 %2787
    %v2789 = vmul.f32 %v2777, 0.03125
    %v2790 = vmul.f32 %v2780, 0.03125
    %v2791 = vmul.f32 %v2785, 0.03125
    %v2792 = vmul.f32 %v2788, 0.03125
    %v2793 = vmul.f32 %v2789, %v2789
    %v2794 = vmul.f32 %v2790, %v2790
    %v2795 = vsub.f32 %v2791, %v2793
    %v2796 = vsub.f32 %v2792, %v2794
    %v2797 = vmax.f32 %v2795, 0.0
    %v2798 = vmax.f32 %v2796, 0.0
    %v2799 = vadd.f32 %v2797, 1e-05
    %v2800 = vadd.f32 %v2798, 1e-05
    %v2801 = vrsqrt.pop %v2799
    %v2802 = vrsqrt.pop %v2800
    %v2803 = vmul.f32 %v2801, %v2773
    %v2804 = vmul.f32 %v2802, %v2774
    %v2805 = vsub.f32 %v2765, %v2789
    %v2806 = vsub.f32 %v2770, %v2790
    %2808 = vset.pattern.permute.xlu0 0
    %2809 = vperm.xlu0 %2808, %v2803
    %v2810 = vpop.permute.xlu0 %2809
    %2813 = vset.pattern.permute.xlu0 0
    %2814 = vperm.xlu0 %2813, %v2804
    %v2815 = vpop.permute.xlu0 %2814
    %v2817 = vmul.f32 %v2805, %v2810
    %v2818 = vmul.f32 %v2806, %v2815
    %2820 = vset.pattern.permute.xlu0 1
    %2821 = vperm.xlu0 %2820, %v2773
    %v2822 = vpop.permute.xlu0 %2821
    %2825 = vset.pattern.permute.xlu0 1
    %2826 = vperm.xlu0 %2825, %v2774
    %v2827 = vpop.permute.xlu0 %2826
    %v2829 = vadd.f32 %v2817, %v2822
    %v2830 = vadd.f32 %v2818, %v2827
    %v2831 = vmax.f32 %v2829, 0.0
    %v2832 = vmax.f32 %v2830, 0.0
    %v2833 = vshra.s32 %v63, 3
    %v2834 = vmul.u32 %v2833, 16
    %v2835 = vand.u32 %v63, 7
    %v2836 = vmul.u32 %v2835, 2
    %v2837 = vadd.s32 %v2834, %v2836
    %vm2838 = vcmp.eq.s32.totalorder %v46, %v2837
    %vm2839 = vcmp.eq.s32.totalorder %v47, %v2837
    %vm2840 = vcmp.eq.s32.totalorder %v48, %v2837
    %vm2841 = vcmp.eq.s32.totalorder %v49, %v2837
    %v2842 = vsel %vm2838, 1.0, 0.0
    %v2843 = vsel %vm2839, 1.0, 0.0
    %v2844 = vsel %vm2840, 1.0, 0.0
    %v2845 = vsel %vm2841, 1.0, 0.0
    %v2846 = vadd.s32 %v2837, 1
    %vm2847 = vcmp.eq.s32.totalorder %v46, %v2846
    %vm2848 = vcmp.eq.s32.totalorder %v47, %v2846
    %vm2849 = vcmp.eq.s32.totalorder %v48, %v2846
    %vm2850 = vcmp.eq.s32.totalorder %v49, %v2846
    %v2851 = vsel %vm2847, 1.0, 0.0
    %v2852 = vsel %vm2848, 1.0, 0.0
    %v2853 = vsel %vm2849, 1.0, 0.0
    %v2854 = vsel %vm2850, 1.0, 0.0
    %v2856 = vsel %vm2251, %v2831, 0
    %v2859 = vsel %vm2251, %v2832, 0
    %2861 = vmatprep.subr.mxu0 0.0
    %2862 = vmatpush1.msra.mxu0 %v2842
    %2863 = vmatprep.subr.mxu0 0.0
    %2864 = vmatpush1.msra.mxu0 %v2843
    %2865 = vmatprep.subr.mxu0 0.0
    %2866 = vmatpush1.msra.mxu0 %v2844
    %2867 = vmatprep.subr.mxu0 0.0
    %2868 = vmatpush1.msra.mxu0 %v2845
    %2869 = vmatprep.subr.mxu0 0.0
    %2870 = vmatpush1.msra.mxu0 0.0
    %2871 = vmatprep.subr.mxu0 0.0
    %2872 = vmatpush1.msra.mxu0 0.0
    %2873 = vmatprep.subr.mxu0 0.0
    %2874 = vmatpush1.msra.mxu0 0.0
    %2875 = vmatprep.subr.mxu0 0.0
    %2876 = vmatpush1.msra.mxu0 0.0
    %2877 = vmatprep.subr.mxu0 0.0
    %2878 = vmatpush1.msra.mxu0 0.0
    %2879 = vmatprep.subr.mxu0 0.0
    %2880 = vmatpush1.msra.mxu0 0.0
    %2881 = vmatprep.subr.mxu0 0.0
    %2882 = vmatpush1.msra.mxu0 0.0
    %2883 = vmatprep.subr.mxu0 0.0
    %2884 = vmatpush1.msra.mxu0 0.0
    %2885 = vmatprep.subr.mxu0 0.0
    %2886 = vmatpush1.msra.mxu0 0.0
    %2887 = vmatprep.subr.mxu0 0.0
    %2888 = vmatpush1.msra.mxu0 0.0
    %2889 = vmatprep.subr.mxu0 0.0
    %2890 = vmatpush1.msra.mxu0 0.0
    %2891 = vmatprep.subr.mxu0 0.0
    %2892 = vmatpush1.msra.mxu0 0.0
    %2893 = vmatprep.subr.mxu0 0.0
    %2894 = vmatpush1.msra.mxu0 0.0
    %2895 = vmatprep.subr.mxu0 0.0
    %2896 = vmatpush1.msra.mxu0 0.0
    %2897 = vmatprep.subr.mxu0 0.0
    %2898 = vmatpush1.msra.mxu0 0.0
    %2899 = vmatprep.subr.mxu0 0.0
    %2900 = vmatpush1.msra.mxu0 0.0
    %2901 = vmatprep.subr.mxu0 0.0
    %2902 = vmatpush1.msra.mxu0 0.0
    %2903 = vmatprep.subr.mxu0 0.0
    %2904 = vmatpush1.msra.mxu0 0.0
    %2905 = vmatprep.subr.mxu0 0.0
    %2906 = vmatpush1.msra.mxu0 0.0
    %2907 = vmatprep.subr.mxu0 0.0
    %2908 = vmatpush1.msra.mxu0 0.0
    %2909 = vmatprep.subr.mxu0 0.0
    %2910 = vmatpush1.msra.mxu0 0.0
    %2911 = vmatprep.subr.mxu0 0.0
    %2912 = vmatpush1.msra.mxu0 0.0
    %2913 = vmatprep.subr.mxu0 0.0
    %2914 = vmatpush1.msra.mxu0 0.0
    %2915 = vmatprep.subr.mxu0 0.0
    %2916 = vmatpush1.msra.mxu0 0.0
    %2917 = vmatprep.subr.mxu0 0.0
    %2918 = vmatpush1.msra.mxu0 0.0
    %2919 = vmatprep.subr.mxu0 0.0
    %2920 = vmatpush1.msra.mxu0 0.0
    %2921 = vmatprep.subr.mxu0 0.0
    %2922 = vmatpush1.msra.mxu0 0.0
    %2923 = vmatprep.subr.mxu0 0.0
    %2924 = vmatpush1.msra.mxu0 0.0
    %2925 = vmatprep.mubr.f32.mxu0 0.0
    %2926 = vmatmul.mubr.f32.gmra.mrb[0].mxu0 %v2856
    %v2927 = vpop.f32.mrb[0].mxu0
    %v2928 = vadd.f32 0.0, %v2927
    %v2929 = vpop.f32.mrb[0].mxu0
    %2930 = vmatprep.mubr.f32.mxu0 0.0
    %2931 = vmatmul.mubr.f32.gmra.mrb[0].mxu0 %v2859
    %v2932 = vpop.f32.mrb[0].mxu0
    %v2933 = vadd.f32 0.0, %v2932
    %v2934 = vpop.f32.mrb[0].mxu0
    %2935 = vdwg.mxu0
    %2936 = vmatprep.subr.mxu0 0.0
    %2937 = vmatpush1.msra.mxu0 %v2851
    %2938 = vmatprep.subr.mxu0 0.0
    %2939 = vmatpush1.msra.mxu0 %v2852
    %2940 = vmatprep.subr.mxu0 0.0
    %2941 = vmatpush1.msra.mxu0 %v2853
    %2942 = vmatprep.subr.mxu0 0.0
    %2943 = vmatpush1.msra.mxu0 %v2854
    %2944 = vmatprep.subr.mxu0 0.0
    %2945 = vmatpush1.msra.mxu0 0.0
    %2946 = vmatprep.subr.mxu0 0.0
    %2947 = vmatpush1.msra.mxu0 0.0
    %2948 = vmatprep.subr.mxu0 0.0
    %2949 = vmatpush1.msra.mxu0 0.0
    %2950 = vmatprep.subr.mxu0 0.0
    %2951 = vmatpush1.msra.mxu0 0.0
    %2952 = vmatprep.subr.mxu0 0.0
    %2953 = vmatpush1.msra.mxu0 0.0
    %2954 = vmatprep.subr.mxu0 0.0
    %2955 = vmatpush1.msra.mxu0 0.0
    %2956 = vmatprep.subr.mxu0 0.0
    %2957 = vmatpush1.msra.mxu0 0.0
    %2958 = vmatprep.subr.mxu0 0.0
    %2959 = vmatpush1.msra.mxu0 0.0
    %2960 = vmatprep.subr.mxu0 0.0
    %2961 = vmatpush1.msra.mxu0 0.0
    %2962 = vmatprep.subr.mxu0 0.0
    %2963 = vmatpush1.msra.mxu0 0.0
    %2964 = vmatprep.subr.mxu0 0.0
    %2965 = vmatpush1.msra.mxu0 0.0
    %2966 = vmatprep.subr.mxu0 0.0
    %2967 = vmatpush1.msra.mxu0 0.0
    %2968 = vmatprep.subr.mxu0 0.0
    %2969 = vmatpush1.msra.mxu0 0.0
    %2970 = vmatprep.subr.mxu0 0.0
    %2971 = vmatpush1.msra.mxu0 0.0
    %2972 = vmatprep.subr.mxu0 0.0
    %2973 = vmatpush1.msra.mxu0 0.0
    %2974 = vmatprep.subr.mxu0 0.0
    %2975 = vmatpush1.msra.mxu0 0.0
    %2976 = vmatprep.subr.mxu0 0.0
    %2977 = vmatpush1.msra.mxu0 0.0
    %2978 = vmatprep.subr.mxu0 0.0
    %2979 = vmatpush1.msra.mxu0 0.0
    %2980 = vmatprep.subr.mxu0 0.0
    %2981 = vmatpush1.msra.mxu0 0.0
    %2982 = vmatprep.subr.mxu0 0.0
    %2983 = vmatpush1.msra.mxu0 0.0
    %2984 = vmatprep.subr.mxu0 0.0
    %2985 = vmatpush1.msra.mxu0 0.0
    %2986 = vmatprep.subr.mxu0 0.0
    %2987 = vmatpush1.msra.mxu0 0.0
    %2988 = vmatprep.subr.mxu0 0.0
    %2989 = vmatpush1.msra.mxu0 0.0
    %2990 = vmatprep.subr.mxu0 0.0
    %2991 = vmatpush1.msra.mxu0 0.0
    %2992 = vmatprep.subr.mxu0 0.0
    %2993 = vmatpush1.msra.mxu0 0.0
    %2994 = vmatprep.subr.mxu0 0.0
    %2995 = vmatpush1.msra.mxu0 0.0
    %2996 = vmatprep.subr.mxu0 0.0
    %2997 = vmatpush1.msra.mxu0 0.0
    %2998 = vmatprep.subr.mxu0 0.0
    %2999 = vmatpush1.msra.mxu0 0.0
    %3000 = vmatprep.mubr.f32.mxu0 0.0
    %3001 = vmatmul.mubr.f32.gmra.mrb[0].mxu0 %v2856
    %v3002 = vpop.f32.mrb[0].mxu0
    %v3003 = vadd.f32 0.0, %v3002
    %v3004 = vpop.f32.mrb[0].mxu0
    %3005 = vmatprep.mubr.f32.mxu0 0.0
    %3006 = vmatmul.mubr.f32.gmra.mrb[0].mxu0 %v2859
    %v3007 = vpop.f32.mrb[0].mxu0
    %v3008 = vadd.f32 0.0, %v3007
    %v3009 = vpop.f32.mrb[0].mxu0
    %3010 = vdwg.mxu0
    %v3011 = vmax.f32 %v2928, %v3003
    %v3012 = vmax.f32 %v2933, %v3008
    %v3013 = vld [vmem:[#allocation2 + $0x40] sm:$0xff]
    %v3014 = vld [vmem:[#allocation2 + $0x48] sm:$0xff]
    %3015 = vmatprep.subr.mxu0 0.0
    %3016 = vmatpush1.msra.mxu0 0.0
    %3017 = vmatprep.subr.mxu0 0.0
    %3018 = vmatpush1.msra.mxu0 0.0
    %3019 = vmatprep.subr.mxu0 0.0
    %3020 = vmatpush1.msra.mxu0 0.0
    %3021 = vmatprep.subr.mxu0 0.0
    %3022 = vmatpush1.msra.mxu0 0.0
    %3023 = vmatprep.subr.mxu0 0.0
    %3024 = vmatpush1.msra.mxu0 %v3011
    %3025 = vmatprep.subr.mxu0 0.0
    %3026 = vmatpush1.msra.mxu0 %v3012
    %3027 = vmatprep.subr.mxu0 0.0
    %3028 = vmatpush1.msra.mxu0 0.0
    %3029 = vmatprep.subr.mxu0 0.0
    %3030 = vmatpush1.msra.mxu0 0.0
    %3031 = vmatprep.subr.mxu0 0.0
    %3032 = vmatpush1.msra.mxu0 0.0
    %3033 = vmatprep.subr.mxu0 0.0
    %3034 = vmatpush1.msra.mxu0 0.0
    %3035 = vmatprep.subr.mxu0 0.0
    %3036 = vmatpush1.msra.mxu0 0.0
    %3037 = vmatprep.subr.mxu0 0.0
    %3038 = vmatpush1.msra.mxu0 0.0
    %3039 = vmatprep.subr.mxu0 0.0
    %3040 = vmatpush1.msra.mxu0 0.0
    %3041 = vmatprep.subr.mxu0 0.0
    %3042 = vmatpush1.msra.mxu0 0.0
    %3043 = vmatprep.subr.mxu0 0.0
    %3044 = vmatpush1.msra.mxu0 0.0
    %3045 = vmatprep.subr.mxu0 0.0
    %3046 = vmatpush1.msra.mxu0 0.0
    %3047 = vmatprep.subr.mxu0 0.0
    %3048 = vmatpush1.msra.mxu0 0.0
    %3049 = vmatprep.subr.mxu0 0.0
    %3050 = vmatpush1.msra.mxu0 0.0
    %3051 = vmatprep.subr.mxu0 0.0
    %3052 = vmatpush1.msra.mxu0 0.0
    %3053 = vmatprep.subr.mxu0 0.0
    %3054 = vmatpush1.msra.mxu0 0.0
    %3055 = vmatprep.subr.mxu0 0.0
    %3056 = vmatpush1.msra.mxu0 0.0
    %3057 = vmatprep.subr.mxu0 0.0
    %3058 = vmatpush1.msra.mxu0 0.0
    %3059 = vmatprep.subr.mxu0 0.0
    %3060 = vmatpush1.msra.mxu0 0.0
    %3061 = vmatprep.subr.mxu0 0.0
    %3062 = vmatpush1.msra.mxu0 0.0
    %3063 = vmatprep.subr.mxu0 0.0
    %3064 = vmatpush1.msra.mxu0 0.0
    %3065 = vmatprep.subr.mxu0 0.0
    %3066 = vmatpush1.msra.mxu0 0.0
    %3067 = vmatprep.subr.mxu0 0.0
    %3068 = vmatpush1.msra.mxu0 0.0
    %3069 = vmatprep.subr.mxu0 0.0
    %3070 = vmatpush1.msra.mxu0 0.0
    %3071 = vmatprep.subr.mxu0 0.0
    %3072 = vmatpush1.msra.mxu0 0.0
    %3073 = vmatprep.subr.mxu0 0.0
    %3074 = vmatpush1.msra.mxu0 0.0
    %3075 = vmatprep.subr.mxu0 0.0
    %3076 = vmatpush1.msra.mxu0 0.0
    %3077 = vmatprep.subr.mxu0 0.0
    %3078 = vmatpush1.msra.mxu0 0.0
    %3079 = vmatprep.mubr.f32.mxu0 0.0
    %3080 = vmatmul.mubr.f32.gmra.mrb[0].mxu0 %v3013
    %v3081 = vpop.f32.mrb[0].mxu0
    %v3082 = vadd.f32 0.0, %v3081
    %v3083 = vpop.f32.mrb[0].mxu0
    %3084 = vmatprep.mubr.f32.mxu0 0.0
    %3085 = vmatmul.mubr.f32.gmra.mrb[0].mxu0 %v3014
    %v3086 = vpop.f32.mrb[0].mxu0
    %v3087 = vadd.f32 0.0, %v3086
    %v3088 = vpop.f32.mrb[0].mxu0
    %3089 = vdwg.mxu0
    %v3090 = vld [vmem:[#allocation4 + $0x40] sm:$0xff]
    %v3091 = vld [vmem:[#allocation4 + $0x48] sm:$0xff]
    %vm3092 = vcmask 130048
    %v3093 = vsel %vm3092, %v3082, 0.0
    %3094 = vadd.xlane.f32.xlu0 %v3093
    %v3095 = vpop.xlane.xlu0 %3094
    %v3096 = vsel %vm3092, %v3087, 0.0
    %3097 = vadd.xlane.f32.xlu0 %v3096
    %v3098 = vpop.xlane.xlu0 %3097
    %v3099 = vmul.f32 %v3082, %v3082
    %v3100 = vmul.f32 %v3087, %v3087
    %v3101 = vsel %vm3092, %v3099, 0.0
    %3102 = vadd.xlane.f32.xlu0 %v3101
    %v3103 = vpop.xlane.xlu0 %3102
    %v3104 = vsel %vm3092, %v3100, 0.0
    %3105 = vadd.xlane.f32.xlu0 %v3104
    %v3106 = vpop.xlane.xlu0 %3105
    %v3107 = vmul.f32 %v3095, 0.0625
    %v3108 = vmul.f32 %v3098, 0.0625
    %v3109 = vmul.f32 %v3103, 0.0625
    %v3110 = vmul.f32 %v3106, 0.0625
    %v3111 = vmul.f32 %v3107, %v3107
    %v3112 = vmul.f32 %v3108, %v3108
    %v3113 = vsub.f32 %v3109, %v3111
    %v3114 = vsub.f32 %v3110, %v3112
    %v3115 = vmax.f32 %v3113, 0.0
    %v3116 = vmax.f32 %v3114, 0.0
    %v3117 = vadd.f32 %v3115, 1e-05
    %v3118 = vadd.f32 %v3116, 1e-05
    %v3119 = vrsqrt.pop %v3117
    %v3120 = vrsqrt.pop %v3118
    %v3121 = vmul.f32 %v3119, %v3090
    %v3122 = vmul.f32 %v3120, %v3091
    %v3123 = vsub.f32 %v3082, %v3107
    %v3124 = vsub.f32 %v3087, %v3108
    %3126 = vset.pattern.permute.xlu0 0
    %3127 = vperm.xlu0 %3126, %v3121
    %v3128 = vpop.permute.xlu0 %3127
    %3131 = vset.pattern.permute.xlu0 0
    %3132 = vperm.xlu0 %3131, %v3122
    %v3133 = vpop.permute.xlu0 %3132
    %v3135 = vmul.f32 %v3123, %v3128
    %v3136 = vmul.f32 %v3124, %v3133
    %3138 = vset.pattern.permute.xlu0 1
    %3139 = vperm.xlu0 %3138, %v3090
    %v3140 = vpop.permute.xlu0 %3139
    %3143 = vset.pattern.permute.xlu0 1
    %3144 = vperm.xlu0 %3143, %v3091
    %v3145 = vpop.permute.xlu0 %3144
    %v3147 = vadd.f32 %v3135, %v3140
    %v3148 = vadd.f32 %v3136, %v3145
    %v3149 = vmax.f32 %v3147, 0.0
    %v3150 = vmax.f32 %v3148, 0.0
    %v3151 = vld [vmem:[#allocation2 + $0x50] sm:$0xff]
    %v3152 = vld [vmem:[#allocation2 + $0x58] sm:$0xff]
    %3153 = vmatprep.subr.mxu0 0.0
    %3154 = vmatpush1.msra.mxu0 0.0
    %3155 = vmatprep.subr.mxu0 0.0
    %3156 = vmatpush1.msra.mxu0 0.0
    %3157 = vmatprep.subr.mxu0 0.0
    %3158 = vmatpush1.msra.mxu0 0.0
    %3159 = vmatprep.subr.mxu0 0.0
    %3160 = vmatpush1.msra.mxu0 0.0
    %3161 = vmatprep.subr.mxu0 0.0
    %3162 = vmatpush1.msra.mxu0 %v3149
    %3163 = vmatprep.subr.mxu0 0.0
    %3164 = vmatpush1.msra.mxu0 %v3150
    %3165 = vmatprep.subr.mxu0 0.0
    %3166 = vmatpush1.msra.mxu0 0.0
    %3167 = vmatprep.subr.mxu0 0.0
    %3168 = vmatpush1.msra.mxu0 0.0
    %3169 = vmatprep.subr.mxu0 0.0
    %3170 = vmatpush1.msra.mxu0 0.0
    %3171 = vmatprep.subr.mxu0 0.0
    %3172 = vmatpush1.msra.mxu0 0.0
    %3173 = vmatprep.subr.mxu0 0.0
    %3174 = vmatpush1.msra.mxu0 0.0
    %3175 = vmatprep.subr.mxu0 0.0
    %3176 = vmatpush1.msra.mxu0 0.0
    %3177 = vmatprep.subr.mxu0 0.0
    %3178 = vmatpush1.msra.mxu0 0.0
    %3179 = vmatprep.subr.mxu0 0.0
    %3180 = vmatpush1.msra.mxu0 0.0
    %3181 = vmatprep.subr.mxu0 0.0
    %3182 = vmatpush1.msra.mxu0 0.0
    %3183 = vmatprep.subr.mxu0 0.0
    %3184 = vmatpush1.msra.mxu0 0.0
    %3185 = vmatprep.subr.mxu0 0.0
    %3186 = vmatpush1.msra.mxu0 0.0
    %3187 = vmatprep.subr.mxu0 0.0
    %3188 = vmatpush1.msra.mxu0 0.0
    %3189 = vmatprep.subr.mxu0 0.0
    %3190 = vmatpush1.msra.mxu0 0.0
    %3191 = vmatprep.subr.mxu0 0.0
    %3192 = vmatpush1.msra.mxu0 0.0
    %3193 = vmatprep.subr.mxu0 0.0
    %3194 = vmatpush1.msra.mxu0 0.0
    %3195 = vmatprep.subr.mxu0 0.0
    %3196 = vmatpush1.msra.mxu0 0.0
    %3197 = vmatprep.subr.mxu0 0.0
    %3198 = vmatpush1.msra.mxu0 0.0
    %3199 = vmatprep.subr.mxu0 0.0
    %3200 = vmatpush1.msra.mxu0 0.0
    %3201 = vmatprep.subr.mxu0 0.0
    %3202 = vmatpush1.msra.mxu0 0.0
    %3203 = vmatprep.subr.mxu0 0.0
    %3204 = vmatpush1.msra.mxu0 0.0
    %3205 = vmatprep.subr.mxu0 0.0
    %3206 = vmatpush1.msra.mxu0 0.0
    %3207 = vmatprep.subr.mxu0 0.0
    %3208 = vmatpush1.msra.mxu0 0.0
    %3209 = vmatprep.subr.mxu0 0.0
    %3210 = vmatpush1.msra.mxu0 0.0
    %3211 = vmatprep.subr.mxu0 0.0
    %3212 = vmatpush1.msra.mxu0 0.0
    %3213 = vmatprep.subr.mxu0 0.0
    %3214 = vmatpush1.msra.mxu0 0.0
    %3215 = vmatprep.subr.mxu0 0.0
    %3216 = vmatpush1.msra.mxu0 0.0
    %3217 = vmatprep.mubr.f32.mxu0 0.0
    %3218 = vmatmul.mubr.f32.gmra.mrb[0].mxu0 %v3151
    %v3219 = vpop.f32.mrb[0].mxu0
    %v3220 = vadd.f32 0.0, %v3219
    %v3221 = vpop.f32.mrb[0].mxu0
    %3222 = vmatprep.mubr.f32.mxu0 0.0
    %3223 = vmatmul.mubr.f32.gmra.mrb[0].mxu0 %v3152
    %v3224 = vpop.f32.mrb[0].mxu0
    %v3225 = vadd.f32 0.0, %v3224
    %v3226 = vpop.f32.mrb[0].mxu0
    %3227 = vdwg.mxu0
    %v3228 = vld [vmem:[#allocation4 + $0x50] sm:$0xff]
    %v3229 = vld [vmem:[#allocation4 + $0x58] sm:$0xff]
    %v3230 = vsel %vm3092, %v3220, 0.0
    %3231 = vadd.xlane.f32.xlu0 %v3230
    %v3232 = vpop.xlane.xlu0 %3231
    %v3233 = vsel %vm3092, %v3225, 0.0
    %3234 = vadd.xlane.f32.xlu0 %v3233
    %v3235 = vpop.xlane.xlu0 %3234
    %v3236 = vmul.f32 %v3220, %v3220
    %v3237 = vmul.f32 %v3225, %v3225
    %v3238 = vsel %vm3092, %v3236, 0.0
    %3239 = vadd.xlane.f32.xlu0 %v3238
    %v3240 = vpop.xlane.xlu0 %3239
    %v3241 = vsel %vm3092, %v3237, 0.0
    %3242 = vadd.xlane.f32.xlu0 %v3241
    %v3243 = vpop.xlane.xlu0 %3242
    %v3244 = vmul.f32 %v3232, 0.0625
    %v3245 = vmul.f32 %v3235, 0.0625
    %v3246 = vmul.f32 %v3240, 0.0625
    %v3247 = vmul.f32 %v3243, 0.0625
    %v3248 = vmul.f32 %v3244, %v3244
    %v3249 = vmul.f32 %v3245, %v3245
    %v3250 = vsub.f32 %v3246, %v3248
    %v3251 = vsub.f32 %v3247, %v3249
    %v3252 = vmax.f32 %v3250, 0.0
    %v3253 = vmax.f32 %v3251, 0.0
    %v3254 = vadd.f32 %v3252, 1e-05
    %v3255 = vadd.f32 %v3253, 1e-05
    %v3256 = vrsqrt.pop %v3254
    %v3257 = vrsqrt.pop %v3255
    %v3258 = vmul.f32 %v3256, %v3228
    %v3259 = vmul.f32 %v3257, %v3229
    %v3260 = vsub.f32 %v3220, %v3244
    %v3261 = vsub.f32 %v3225, %v3245
    %3263 = vset.pattern.permute.xlu0 0
    %3264 = vperm.xlu0 %3263, %v3258
    %v3265 = vpop.permute.xlu0 %3264
    %3268 = vset.pattern.permute.xlu0 0
    %3269 = vperm.xlu0 %3268, %v3259
    %v3270 = vpop.permute.xlu0 %3269
    %v3272 = vmul.f32 %v3260, %v3265
    %v3273 = vmul.f32 %v3261, %v3270
    %3275 = vset.pattern.permute.xlu0 1
    %3276 = vperm.xlu0 %3275, %v3228
    %v3277 = vpop.permute.xlu0 %3276
    %3280 = vset.pattern.permute.xlu0 1
    %3281 = vperm.xlu0 %3280, %v3229
    %v3282 = vpop.permute.xlu0 %3281
    %v3284 = vadd.f32 %v3272, %v3277
    %v3285 = vadd.f32 %v3273, %v3282
    %v3286 = vmax.f32 %v3284, 0.0
    %v3287 = vmax.f32 %v3285, 0.0
    %v3288 = vmul.u32 %v97, 8
    %v3289 = vand.u32 %v63, 63
    %v3290 = vmul.u32 %v3289, 8
    %v3291 = vshra.s32 %v3290, 6
    %v3292 = vadd.s32 %v3288, %v3291
    %vm3293 = vcmp.eq.s32.totalorder %v46, %v3292
    %vm3294 = vcmp.eq.s32.totalorder %v47, %v3292
    %v3295 = vsel %vm3293, 1.0, 0.0
    %v3296 = vsel %vm3294, 1.0, 0.0
    %v3298 = vsel %vm3092, %v3286, 0
    %v3301 = vsel %vm3092, %v3287, 0
    %3303 = vmatprep.subr.mxu0 0.0
    %3304 = vmatpush1.msra.mxu0 %v3295
    %3305 = vmatprep.subr.mxu0 0.0
    %3306 = vmatpush1.msra.mxu0 %v3296
    %3307 = vmatprep.subr.mxu0 0.0
    %3308 = vmatpush1.msra.mxu0 0.0
    %3309 = vmatprep.subr.mxu0 0.0
    %3310 = vmatpush1.msra.mxu0 0.0
    %3311 = vmatprep.subr.mxu0 0.0
    %3312 = vmatpush1.msra.mxu0 0.0
    %3313 = vmatprep.subr.mxu0 0.0
    %3314 = vmatpush1.msra.mxu0 0.0
    %3315 = vmatprep.subr.mxu0 0.0
    %3316 = vmatpush1.msra.mxu0 0.0
    %3317 = vmatprep.subr.mxu0 0.0
    %3318 = vmatpush1.msra.mxu0 0.0
    %3319 = vmatprep.subr.mxu0 0.0
    %3320 = vmatpush1.msra.mxu0 0.0
    %3321 = vmatprep.subr.mxu0 0.0
    %3322 = vmatpush1.msra.mxu0 0.0
    %3323 = vmatprep.subr.mxu0 0.0
    %3324 = vmatpush1.msra.mxu0 0.0
    %3325 = vmatprep.subr.mxu0 0.0
    %3326 = vmatpush1.msra.mxu0 0.0
    %3327 = vmatprep.subr.mxu0 0.0
    %3328 = vmatpush1.msra.mxu0 0.0
    %3329 = vmatprep.subr.mxu0 0.0
    %3330 = vmatpush1.msra.mxu0 0.0
    %3331 = vmatprep.subr.mxu0 0.0
    %3332 = vmatpush1.msra.mxu0 0.0
    %3333 = vmatprep.subr.mxu0 0.0
    %3334 = vmatpush1.msra.mxu0 0.0
    %3335 = vmatprep.subr.mxu0 0.0
    %3336 = vmatpush1.msra.mxu0 0.0
    %3337 = vmatprep.subr.mxu0 0.0
    %3338 = vmatpush1.msra.mxu0 0.0
    %3339 = vmatprep.subr.mxu0 0.0
    %3340 = vmatpush1.msra.mxu0 0.0
    %3341 = vmatprep.subr.mxu0 0.0
    %3342 = vmatpush1.msra.mxu0 0.0
    %3343 = vmatprep.subr.mxu0 0.0
    %3344 = vmatpush1.msra.mxu0 0.0
    %3345 = vmatprep.subr.mxu0 0.0
    %3346 = vmatpush1.msra.mxu0 0.0
    %3347 = vmatprep.subr.mxu0 0.0
    %3348 = vmatpush1.msra.mxu0 0.0
    %3349 = vmatprep.subr.mxu0 0.0
    %3350 = vmatpush1.msra.mxu0 0.0
    %3351 = vmatprep.subr.mxu0 0.0
    %3352 = vmatpush1.msra.mxu0 0.0
    %3353 = vmatprep.subr.mxu0 0.0
    %3354 = vmatpush1.msra.mxu0 0.0
    %3355 = vmatprep.subr.mxu0 0.0
    %3356 = vmatpush1.msra.mxu0 0.0
    %3357 = vmatprep.subr.mxu0 0.0
    %3358 = vmatpush1.msra.mxu0 0.0
    %3359 = vmatprep.subr.mxu0 0.0
    %3360 = vmatpush1.msra.mxu0 0.0
    %3361 = vmatprep.subr.mxu0 0.0
    %3362 = vmatpush1.msra.mxu0 0.0
    %3363 = vmatprep.subr.mxu0 0.0
    %3364 = vmatpush1.msra.mxu0 0.0
    %3365 = vmatprep.subr.mxu0 0.0
    %3366 = vmatpush1.msra.mxu0 0.0
    %3367 = vmatprep.mubr.f32.mxu0 0.0
    %3368 = vmatmul.mubr.f32.gmra.mrb[0].mxu0 %v3298
    %v3369 = vpop.f32.mrb[0].mxu0
    %v3370 = vadd.f32 0.0, %v3369
    %v3371 = vpop.f32.mrb[0].mxu0
    %3372 = vmatprep.mubr.f32.mxu0 0.0
    %3373 = vmatmul.mubr.f32.gmra.mrb[0].mxu0 %v3301
    %v3374 = vpop.f32.mrb[0].mxu0
    %v3375 = vadd.f32 0.0, %v3374
    %v3376 = vpop.f32.mrb[0].mxu0
    %3377 = vdwg.mxu0
    %v3378 = vadd.s32 %v63, 1
    %vm3379 = vcmp.eq.s32.totalorder %v46, %v3378
    %vm3380 = vcmp.eq.s32.totalorder %v47, %v3378
    %vm3381 = vcmp.eq.s32.totalorder %v48, %v3378
    %vm3382 = vcmp.eq.s32.totalorder %v49, %v3378
    %vm3383 = vcmp.eq.s32.totalorder %v50, %v3378
    %vm3384 = vcmp.eq.s32.totalorder %v51, %v3378
    %vm3385 = vcmp.eq.s32.totalorder %v52, %v3378
    %vm3386 = vcmp.eq.s32.totalorder %v53, %v3378
    %vm3387 = vcmp.eq.s32.totalorder %v54, %v3378
    %vm3388 = vcmp.eq.s32.totalorder %v55, %v3378
    %vm3389 = vcmp.eq.s32.totalorder %v56, %v3378
    %vm3390 = vcmp.eq.s32.totalorder %v57, %v3378
    %vm3391 = vcmp.eq.s32.totalorder %v58, %v3378
    %vm3392 = vcmp.eq.s32.totalorder %v59, %v3378
    %vm3393 = vcmp.eq.s32.totalorder %v60, %v3378
    %vm3394 = vcmp.eq.s32.totalorder %v61, %v3378
    %vm3395 = vmand %vm3379, %vm98
    %vm3396 = vmand %vm3380, %vm99
    %vm3397 = vmand %vm3381, %vm100
    %vm3398 = vmand %vm3382, %vm101
    %vm3399 = vmand %vm3383, %vm102
    %vm3400 = vmand %vm3384, %vm103
    %vm3401 = vmand %vm3385, %vm104
    %vm3402 = vmand %vm3386, %vm105
    %vm3403 = vmand %vm3387, %vm106
    %vm3404 = vmand %vm3388, %vm107
    %vm3405 = vmand %vm3389, %vm108
    %vm3406 = vmand %vm3390, %vm109
    %vm3407 = vmand %vm3391, %vm110
    %vm3408 = vmand %vm3392, %vm111
    %vm3409 = vmand %vm3393, %vm112
    %vm3410 = vmand %vm3394, %vm113
    %v3411 = vsel %vm3395, 1.0, 0.0
    %v3412 = vsel %vm3396, 1.0, 0.0
    %v3413 = vsel %vm3397, 1.0, 0.0
    %v3414 = vsel %vm3398, 1.0, 0.0
    %v3415 = vsel %vm3399, 1.0, 0.0
    %v3416 = vsel %vm3400, 1.0, 0.0
    %v3417 = vsel %vm3401, 1.0, 0.0
    %v3418 = vsel %vm3402, 1.0, 0.0
    %v3419 = vsel %vm3403, 1.0, 0.0
    %v3420 = vsel %vm3404, 1.0, 0.0
    %v3421 = vsel %vm3405, 1.0, 0.0
    %v3422 = vsel %vm3406, 1.0, 0.0
    %v3423 = vsel %vm3407, 1.0, 0.0
    %v3424 = vsel %vm3408, 1.0, 0.0
    %v3425 = vsel %vm3409, 1.0, 0.0
    %v3426 = vsel %vm3410, 1.0, 0.0
    %3427 = vmatprep.subr.mxu0 0.0
    %3428 = vmatpush1.msra.mxu0 %v3411
    %3429 = vmatprep.subr.mxu0 0.0
    %3430 = vmatpush1.msra.mxu0 %v3412
    %3431 = vmatprep.subr.mxu0 0.0
    %3432 = vmatpush1.msra.mxu0 %v3413
    %3433 = vmatprep.subr.mxu0 0.0
    %3434 = vmatpush1.msra.mxu0 %v3414
    %3435 = vmatprep.subr.mxu0 0.0
    %3436 = vmatpush1.msra.mxu0 %v3415
    %3437 = vmatprep.subr.mxu0 0.0
    %3438 = vmatpush1.msra.mxu0 %v3416
    %3439 = vmatprep.subr.mxu0 0.0
    %3440 = vmatpush1.msra.mxu0 %v3417
    %3441 = vmatprep.subr.mxu0 0.0
    %3442 = vmatpush1.msra.mxu0 %v3418
    %3443 = vmatprep.subr.mxu0 0.0
    %3444 = vmatpush1.msra.mxu0 %v3419
    %3445 = vmatprep.subr.mxu0 0.0
    %3446 = vmatpush1.msra.mxu0 %v3420
    %3447 = vmatprep.subr.mxu0 0.0
    %3448 = vmatpush1.msra.mxu0 %v3421
    %3449 = vmatprep.subr.mxu0 0.0
    %3450 = vmatpush1.msra.mxu0 %v3422
    %3451 = vmatprep.subr.mxu0 0.0
    %3452 = vmatpush1.msra.mxu0 %v3423
    %3453 = vmatprep.subr.mxu0 0.0
    %3454 = vmatpush1.msra.mxu0 %v3424
    %3455 = vmatprep.subr.mxu0 0.0
    %3456 = vmatpush1.msra.mxu0 %v3425
    %3457 = vmatprep.subr.mxu0 0.0
    %3458 = vmatpush1.msra.mxu0 %v3426
    %3459 = vmatprep.subr.mxu0 0.0
    %3460 = vmatpush1.msra.mxu0 0.0
    %3461 = vmatprep.subr.mxu0 0.0
    %3462 = vmatpush1.msra.mxu0 0.0
    %3463 = vmatprep.subr.mxu0 0.0
    %3464 = vmatpush1.msra.mxu0 0.0
    %3465 = vmatprep.subr.mxu0 0.0
    %3466 = vmatpush1.msra.mxu0 0.0
    %3467 = vmatprep.subr.mxu0 0.0
    %3468 = vmatpush1.msra.mxu0 0.0
    %3469 = vmatprep.subr.mxu0 0.0
    %3470 = vmatpush1.msra.mxu0 0.0
    %3471 = vmatprep.subr.mxu0 0.0
    %3472 = vmatpush1.msra.mxu0 0.0
    %3473 = vmatprep.subr.mxu0 0.0
    %3474 = vmatpush1.msra.mxu0 0.0
    %3475 = vmatprep.subr.mxu0 0.0
    %3476 = vmatpush1.msra.mxu0 0.0
    %3477 = vmatprep.subr.mxu0 0.0
    %3478 = vmatpush1.msra.mxu0 0.0
    %3479 = vmatprep.subr.mxu0 0.0
    %3480 = vmatpush1.msra.mxu0 0.0
    %3481 = vmatprep.subr.mxu0 0.0
    %3482 = vmatpush1.msra.mxu0 0.0
    %3483 = vmatprep.subr.mxu0 0.0
    %3484 = vmatpush1.msra.mxu0 0.0
    %3485 = vmatprep.subr.mxu0 0.0
    %3486 = vmatpush1.msra.mxu0 0.0
    %3487 = vmatprep.subr.mxu0 0.0
    %3488 = vmatpush1.msra.mxu0 0.0
    %3489 = vmatprep.subr.mxu0 0.0
    %3490 = vmatpush1.msra.mxu0 0.0
    %3491 = vmatprep.mubr.f32.mxu0 0.0
    %3492 = vmatmul.mubr.f32.gmra.mrb[0].mxu0 %v3370
    %v3493 = vpop.f32.mrb[0].mxu0
    %v3494 = vadd.f32 0.0, %v3493
    %v3495 = vpop.f32.mrb[0].mxu0
    %3496 = vmatprep.mubr.f32.mxu0 0.0
    %3497 = vmatmul.mubr.f32.gmra.mrb[0].mxu0 %v3375
    %v3498 = vpop.f32.mrb[0].mxu0
    %v3499 = vadd.f32 0.0, %v3498
    %v3500 = vpop.f32.mrb[0].mxu0
    %3501 = vdwg.mxu0
    %v3502 = vld [vmem:[#allocation2 + $0x60] sm:$0xff]
    %3503 = vmatprep.subr.mxu0 0.0
    %3504 = vmatpush1.msra.mxu0 %v3370
    %3505 = vmatprep.subr.mxu0 0.0
    %3506 = vmatpush1.msra.mxu0 %v3375
    %3507 = vmatprep.subr.mxu0 0.0
    %3508 = vmatpush1.msra.mxu0 %v3494
    %3509 = vmatprep.subr.mxu0 0.0
    %3510 = vmatpush1.msra.mxu0 %v3499
    %3511 = vmatprep.subr.mxu0 0.0
    %3512 = vmatpush1.msra.mxu0 0.0
    %3513 = vmatprep.subr.mxu0 0.0
    %3514 = vmatpush1.msra.mxu0 0.0
    %3515 = vmatprep.subr.mxu0 0.0
    %3516 = vmatpush1.msra.mxu0 0.0
    %3517 = vmatprep.subr.mxu0 0.0
    %3518 = vmatpush1.msra.mxu0 0.0
    %3519 = vmatprep.subr.mxu0 0.0
    %3520 = vmatpush1.msra.mxu0 0.0
    %3521 = vmatprep.subr.mxu0 0.0
    %3522 = vmatpush1.msra.mxu0 0.0
    %3523 = vmatprep.subr.mxu0 0.0
    %3524 = vmatpush1.msra.mxu0 0.0
    %3525 = vmatprep.subr.mxu0 0.0
    %3526 = vmatpush1.msra.mxu0 0.0
    %3527 = vmatprep.subr.mxu0 0.0
    %3528 = vmatpush1.msra.mxu0 0.0
    %3529 = vmatprep.subr.mxu0 0.0
    %3530 = vmatpush1.msra.mxu0 0.0
    %3531 = vmatprep.subr.mxu0 0.0
    %3532 = vmatpush1.msra.mxu0 0.0
    %3533 = vmatprep.subr.mxu0 0.0
    %3534 = vmatpush1.msra.mxu0 0.0
    %3535 = vmatprep.subr.mxu0 0.0
    %3536 = vmatpush1.msra.mxu0 0.0
    %3537 = vmatprep.subr.mxu0 0.0
    %3538 = vmatpush1.msra.mxu0 0.0
    %3539 = vmatprep.subr.mxu0 0.0
    %3540 = vmatpush1.msra.mxu0 0.0
    %3541 = vmatprep.subr.mxu0 0.0
    %3542 = vmatpush1.msra.mxu0 0.0
    %3543 = vmatprep.subr.mxu0 0.0
    %3544 = vmatpush1.msra.mxu0 0.0
    %3545 = vmatprep.subr.mxu0 0.0
    %3546 = vmatpush1.msra.mxu0 0.0
    %3547 = vmatprep.subr.mxu0 0.0
    %3548 = vmatpush1.msra.mxu0 0.0
    %3549 = vmatprep.subr.mxu0 0.0
    %3550 = vmatpush1.msra.mxu0 0.0
    %3551 = vmatprep.subr.mxu0 0.0
    %3552 = vmatpush1.msra.mxu0 0.0
    %3553 = vmatprep.subr.mxu0 0.0
    %3554 = vmatpush1.msra.mxu0 0.0
    %3555 = vmatprep.subr.mxu0 0.0
    %3556 = vmatpush1.msra.mxu0 0.0
    %3557 = vmatprep.subr.mxu0 0.0
    %3558 = vmatpush1.msra.mxu0 0.0
    %3559 = vmatprep.subr.mxu0 0.0
    %3560 = vmatpush1.msra.mxu0 0.0
    %3561 = vmatprep.subr.mxu0 0.0
    %3562 = vmatpush1.msra.mxu0 0.0
    %3563 = vmatprep.subr.mxu0 0.0
    %3564 = vmatpush1.msra.mxu0 0.0
    %3565 = vmatprep.subr.mxu0 0.0
    %3566 = vmatpush1.msra.mxu0 0.0
    %3567 = vmatprep.mubr.f32.mxu0 0.0
    %3568 = vmatmul.mubr.f32.gmra.mrb[0].mxu0 %v3502
    %v3569 = vpop.f32.mrb[0].mxu0
    %v3570 = vadd.f32 0.0, %v3569
    %v3571 = vpop.f32.mrb[0].mxu0
    %3572 = vdwg.mxu0
    %v3573 = vld [vmem:[#allocation4 + $0x60] sm:$0xff]
    %3574 = vadd.xlane.f32.xlu0 %v3570
    %v3575 = vpop.xlane.xlu0 %3574
    %v3576 = vmul.f32 %v3570, %v3570
    %3577 = vadd.xlane.f32.xlu0 %v3576
    %v3578 = vpop.xlane.xlu0 %3577
    %v3579 = vmul.f32 %v3575, 0.0078125
    %v3580 = vmul.f32 %v3578, 0.0078125
    %v3581 = vmul.f32 %v3579, %v3579
    %v3582 = vsub.f32 %v3580, %v3581
    %v3583 = vmax.f32 %v3582, 0.0
    %v3584 = vadd.f32 %v3583, 1e-05
    %v3585 = vrsqrt.pop %v3584
    %v3586 = vmul.f32 %v3585, %v3573
    %v3587 = vsub.f32 %v3570, %v3579
    %3589 = vset.pattern.permute.xlu0 0
    %3590 = vperm.xlu0 %3589, %v3586
    %v3591 = vpop.permute.xlu0 %3590
    %v3593 = vmul.f32 %v3587, %v3591
    %3595 = vset.pattern.permute.xlu0 1
    %3596 = vperm.xlu0 %3595, %v3573
    %v3597 = vpop.permute.xlu0 %3596
    %v3599 = vadd.f32 %v3593, %v3597
    %v3600 = vmax.f32 %v3599, 0.0
    %v3601 = vadd.s32 %v63, 4294967294
    %vm3602 = vcmp.eq.s32.totalorder %v46, %v3601
    %vm3603 = vcmp.eq.s32.totalorder %v47, %v3601
    %vm3604 = vcmp.eq.s32.totalorder %v48, %v3601
    %vm3605 = vcmp.eq.s32.totalorder %v49, %v3601
    %vm3606 = vcmp.eq.s32.totalorder %v50, %v3601
    %vm3607 = vcmp.eq.s32.totalorder %v51, %v3601
    %vm3608 = vcmp.eq.s32.totalorder %v52, %v3601
    %vm3609 = vcmp.eq.s32.totalorder %v53, %v3601
    %vm3610 = vcmp.eq.s32.totalorder %v54, %v3601
    %vm3611 = vcmp.eq.s32.totalorder %v55, %v3601
    %vm3612 = vcmp.eq.s32.totalorder %v56, %v3601
    %vm3613 = vcmp.eq.s32.totalorder %v57, %v3601
    %vm3614 = vcmp.eq.s32.totalorder %v58, %v3601
    %vm3615 = vcmp.eq.s32.totalorder %v59, %v3601
    %vm3616 = vcmp.eq.s32.totalorder %v60, %v3601
    %vm3617 = vcmp.eq.s32.totalorder %v61, %v3601
    %vm3618 = vmand %vm3602, %vm98
    %vm3619 = vmand %vm3603, %vm99
    %vm3620 = vmand %vm3604, %vm100
    %vm3621 = vmand %vm3605, %vm101
    %vm3622 = vmand %vm3606, %vm102
    %vm3623 = vmand %vm3607, %vm103
    %vm3624 = vmand %vm3608, %vm104
    %vm3625 = vmand %vm3609, %vm105
    %vm3626 = vmand %vm3610, %vm106
    %vm3627 = vmand %vm3611, %vm107
    %vm3628 = vmand %vm3612, %vm108
    %vm3629 = vmand %vm3613, %vm109
    %vm3630 = vmand %vm3614, %vm110
    %vm3631 = vmand %vm3615, %vm111
    %vm3632 = vmand %vm3616, %vm112
    %vm3633 = vmand %vm3617, %vm113
    %v3634 = vsel %vm3618, 1.0, 0.0
    %v3635 = vsel %vm3619, 1.0, 0.0
    %v3636 = vsel %vm3620, 1.0, 0.0
    %v3637 = vsel %vm3621, 1.0, 0.0
    %v3638 = vsel %vm3622, 1.0, 0.0
    %v3639 = vsel %vm3623, 1.0, 0.0
    %v3640 = vsel %vm3624, 1.0, 0.0
    %v3641 = vsel %vm3625, 1.0, 0.0
    %v3642 = vsel %vm3626, 1.0, 0.0
    %v3643 = vsel %vm3627, 1.0, 0.0
    %v3644 = vsel %vm3628, 1.0, 0.0
    %v3645 = vsel %vm3629, 1.0, 0.0
    %v3646 = vsel %vm3630, 1.0, 0.0
    %v3647 = vsel %vm3631, 1.0, 0.0
    %v3648 = vsel %vm3632, 1.0, 0.0
    %v3649 = vsel %vm3633, 1.0, 0.0
    %3650 = vmatprep.subr.mxu0 0.0
    %3651 = vmatpush1.msra.mxu0 %v3634
    %3652 = vmatprep.subr.mxu0 0.0
    %3653 = vmatpush1.msra.mxu0 %v3635
    %3654 = vmatprep.subr.mxu0 0.0
    %3655 = vmatpush1.msra.mxu0 %v3636
    %3656 = vmatprep.subr.mxu0 0.0
    %3657 = vmatpush1.msra.mxu0 %v3637
    %3658 = vmatprep.subr.mxu0 0.0
    %3659 = vmatpush1.msra.mxu0 %v3638
    %3660 = vmatprep.subr.mxu0 0.0
    %3661 = vmatpush1.msra.mxu0 %v3639
    %3662 = vmatprep.subr.mxu0 0.0
    %3663 = vmatpush1.msra.mxu0 %v3640
    %3664 = vmatprep.subr.mxu0 0.0
    %3665 = vmatpush1.msra.mxu0 %v3641
    %3666 = vmatprep.subr.mxu0 0.0
    %3667 = vmatpush1.msra.mxu0 %v3642
    %3668 = vmatprep.subr.mxu0 0.0
    %3669 = vmatpush1.msra.mxu0 %v3643
    %3670 = vmatprep.subr.mxu0 0.0
    %3671 = vmatpush1.msra.mxu0 %v3644
    %3672 = vmatprep.subr.mxu0 0.0
    %3673 = vmatpush1.msra.mxu0 %v3645
    %3674 = vmatprep.subr.mxu0 0.0
    %3675 = vmatpush1.msra.mxu0 %v3646
    %3676 = vmatprep.subr.mxu0 0.0
    %3677 = vmatpush1.msra.mxu0 %v3647
    %3678 = vmatprep.subr.mxu0 0.0
    %3679 = vmatpush1.msra.mxu0 %v3648
    %3680 = vmatprep.subr.mxu0 0.0
    %3681 = vmatpush1.msra.mxu0 %v3649
    %3682 = vmatprep.subr.mxu0 0.0
    %3683 = vmatpush1.msra.mxu0 0.0
    %3684 = vmatprep.subr.mxu0 0.0
    %3685 = vmatpush1.msra.mxu0 0.0
    %3686 = vmatprep.subr.mxu0 0.0
    %3687 = vmatpush1.msra.mxu0 0.0
    %3688 = vmatprep.subr.mxu0 0.0
    %3689 = vmatpush1.msra.mxu0 0.0
    %3690 = vmatprep.subr.mxu0 0.0
    %3691 = vmatpush1.msra.mxu0 0.0
    %3692 = vmatprep.subr.mxu0 0.0
    %3693 = vmatpush1.msra.mxu0 0.0
    %3694 = vmatprep.subr.mxu0 0.0
    %3695 = vmatpush1.msra.mxu0 0.0
    %3696 = vmatprep.subr.mxu0 0.0
    %3697 = vmatpush1.msra.mxu0 0.0
    %3698 = vmatprep.subr.mxu0 0.0
    %3699 = vmatpush1.msra.mxu0 0.0
    %3700 = vmatprep.subr.mxu0 0.0
    %3701 = vmatpush1.msra.mxu0 0.0
    %3702 = vmatprep.subr.mxu0 0.0
    %3703 = vmatpush1.msra.mxu0 0.0
    %3704 = vmatprep.subr.mxu0 0.0
    %3705 = vmatpush1.msra.mxu0 0.0
    %3706 = vmatprep.subr.mxu0 0.0
    %3707 = vmatpush1.msra.mxu0 0.0
    %3708 = vmatprep.subr.mxu0 0.0
    %3709 = vmatpush1.msra.mxu0 0.0
    %3710 = vmatprep.subr.mxu0 0.0
    %3711 = vmatpush1.msra.mxu0 0.0
    %3712 = vmatprep.subr.mxu0 0.0
    %3713 = vmatpush1.msra.mxu0 0.0
    %3714 = vmatprep.mubr.f32.mxu0 0.0
    %3715 = vmatmul.mubr.f32.gmra.mrb[0].mxu0 %v3600
    %v3716 = vpop.f32.mrb[0].mxu0
    %v3717 = vadd.f32 0.0, %v3716
    %v3718 = vpop.f32.mrb[0].mxu0
    %3719 = vmatprep.mubr.f32.mxu0 0.0
    %3720 = vmatmul.mubr.f32.gmra.mrb[0].mxu0 %v1815
    %v3721 = vpop.f32.mrb[0].mxu0
    %v3722 = vadd.f32 0.0, %v3721
    %v3723 = vpop.f32.mrb[0].mxu0
    %3724 = vdwg.mxu0
    %v3725 = vadd.s32 %v63, 4294967295
    %vm3726 = vcmp.eq.s32.totalorder %v46, %v3725
    %vm3727 = vcmp.eq.s32.totalorder %v47, %v3725
    %vm3728 = vcmp.eq.s32.totalorder %v48, %v3725
    %vm3729 = vcmp.eq.s32.totalorder %v49, %v3725
    %vm3730 = vcmp.eq.s32.totalorder %v50, %v3725
    %vm3731 = vcmp.eq.s32.totalorder %v51, %v3725
    %vm3732 = vcmp.eq.s32.totalorder %v52, %v3725
    %vm3733 = vcmp.eq.s32.totalorder %v53, %v3725
    %vm3734 = vcmp.eq.s32.totalorder %v54, %v3725
    %vm3735 = vcmp.eq.s32.totalorder %v55, %v3725
    %vm3736 = vcmp.eq.s32.totalorder %v56, %v3725
    %vm3737 = vcmp.eq.s32.totalorder %v57, %v3725
    %vm3738 = vcmp.eq.s32.totalorder %v58, %v3725
    %vm3739 = vcmp.eq.s32.totalorder %v59, %v3725
    %vm3740 = vcmp.eq.s32.totalorder %v60, %v3725
    %vm3741 = vcmp.eq.s32.totalorder %v61, %v3725
    %vm3742 = vmand %vm3726, %vm98
    %vm3743 = vmand %vm3727, %vm99
    %vm3744 = vmand %vm3728, %vm100
    %vm3745 = vmand %vm3729, %vm101
    %vm3746 = vmand %vm3730, %vm102
    %vm3747 = vmand %vm3731, %vm103
    %vm3748 = vmand %vm3732, %vm104
    %vm3749 = vmand %vm3733, %vm105
    %vm3750 = vmand %vm3734, %vm106
    %vm3751 = vmand %vm3735, %vm107
    %vm3752 = vmand %vm3736, %vm108
    %vm3753 = vmand %vm3737, %vm109
    %vm3754 = vmand %vm3738, %vm110
    %vm3755 = vmand %vm3739, %vm111
    %vm3756 = vmand %vm3740, %vm112
    %vm3757 = vmand %vm3741, %vm113
    %v3758 = vsel %vm3742, 1.0, 0.0
    %v3759 = vsel %vm3743, 1.0, 0.0
    %v3760 = vsel %vm3744, 1.0, 0.0
    %v3761 = vsel %vm3745, 1.0, 0.0
    %v3762 = vsel %vm3746, 1.0, 0.0
    %v3763 = vsel %vm3747, 1.0, 0.0
    %v3764 = vsel %vm3748, 1.0, 0.0
    %v3765 = vsel %vm3749, 1.0, 0.0
    %v3766 = vsel %vm3750, 1.0, 0.0
    %v3767 = vsel %vm3751, 1.0, 0.0
    %v3768 = vsel %vm3752, 1.0, 0.0
    %v3769 = vsel %vm3753, 1.0, 0.0
    %v3770 = vsel %vm3754, 1.0, 0.0
    %v3771 = vsel %vm3755, 1.0, 0.0
    %v3772 = vsel %vm3756, 1.0, 0.0
    %v3773 = vsel %vm3757, 1.0, 0.0
    %3774 = vmatprep.subr.mxu0 0.0
    %3775 = vmatpush1.msra.mxu0 %v3758
    %3776 = vmatprep.subr.mxu0 0.0
    %3777 = vmatpush1.msra.mxu0 %v3759
    %3778 = vmatprep.subr.mxu0 0.0
    %3779 = vmatpush1.msra.mxu0 %v3760
    %3780 = vmatprep.subr.mxu0 0.0
    %3781 = vmatpush1.msra.mxu0 %v3761
    %3782 = vmatprep.subr.mxu0 0.0
    %3783 = vmatpush1.msra.mxu0 %v3762
    %3784 = vmatprep.subr.mxu0 0.0
    %3785 = vmatpush1.msra.mxu0 %v3763
    %3786 = vmatprep.subr.mxu0 0.0
    %3787 = vmatpush1.msra.mxu0 %v3764
    %3788 = vmatprep.subr.mxu0 0.0
    %3789 = vmatpush1.msra.mxu0 %v3765
    %3790 = vmatprep.subr.mxu0 0.0
    %3791 = vmatpush1.msra.mxu0 %v3766
    %3792 = vmatprep.subr.mxu0 0.0
    %3793 = vmatpush1.msra.mxu0 %v3767
    %3794 = vmatprep.subr.mxu0 0.0
    %3795 = vmatpush1.msra.mxu0 %v3768
    %3796 = vmatprep.subr.mxu0 0.0
    %3797 = vmatpush1.msra.mxu0 %v3769
    %3798 = vmatprep.subr.mxu0 0.0
    %3799 = vmatpush1.msra.mxu0 %v3770
    %3800 = vmatprep.subr.mxu0 0.0
    %3801 = vmatpush1.msra.mxu0 %v3771
    %3802 = vmatprep.subr.mxu0 0.0
    %3803 = vmatpush1.msra.mxu0 %v3772
    %3804 = vmatprep.subr.mxu0 0.0
    %3805 = vmatpush1.msra.mxu0 %v3773
    %3806 = vmatprep.subr.mxu0 0.0
    %3807 = vmatpush1.msra.mxu0 0.0
    %3808 = vmatprep.subr.mxu0 0.0
    %3809 = vmatpush1.msra.mxu0 0.0
    %3810 = vmatprep.subr.mxu0 0.0
    %3811 = vmatpush1.msra.mxu0 0.0
    %3812 = vmatprep.subr.mxu0 0.0
    %3813 = vmatpush1.msra.mxu0 0.0
    %3814 = vmatprep.subr.mxu0 0.0
    %3815 = vmatpush1.msra.mxu0 0.0
    %3816 = vmatprep.subr.mxu0 0.0
    %3817 = vmatpush1.msra.mxu0 0.0
    %3818 = vmatprep.subr.mxu0 0.0
    %3819 = vmatpush1.msra.mxu0 0.0
    %3820 = vmatprep.subr.mxu0 0.0
    %3821 = vmatpush1.msra.mxu0 0.0
    %3822 = vmatprep.subr.mxu0 0.0
    %3823 = vmatpush1.msra.mxu0 0.0
    %3824 = vmatprep.subr.mxu0 0.0
    %3825 = vmatpush1.msra.mxu0 0.0
    %3826 = vmatprep.subr.mxu0 0.0
    %3827 = vmatpush1.msra.mxu0 0.0
    %3828 = vmatprep.subr.mxu0 0.0
    %3829 = vmatpush1.msra.mxu0 0.0
    %3830 = vmatprep.subr.mxu0 0.0
    %3831 = vmatpush1.msra.mxu0 0.0
    %3832 = vmatprep.subr.mxu0 0.0
    %3833 = vmatpush1.msra.mxu0 0.0
    %3834 = vmatprep.subr.mxu0 0.0
    %3835 = vmatpush1.msra.mxu0 0.0
    %3836 = vmatprep.subr.mxu0 0.0
    %3837 = vmatpush1.msra.mxu0 0.0
    %3838 = vmatprep.mubr.f32.mxu0 0.0
    %3839 = vmatmul.mubr.f32.gmra.mrb[0].mxu0 %v3600
    %v3840 = vpop.f32.mrb[0].mxu0
    %v3841 = vadd.f32 0.0, %v3840
    %v3842 = vpop.f32.mrb[0].mxu0
    %3843 = vmatprep.mubr.f32.mxu0 0.0
    %3844 = vmatmul.mubr.f32.gmra.mrb[0].mxu0 %v1815
    %v3845 = vpop.f32.mrb[0].mxu0
    %v3846 = vadd.f32 0.0, %v3845
    %v3847 = vpop.f32.mrb[0].mxu0
    %3848 = vdwg.mxu0
    %3849 = vmatprep.subr.mxu0 0.0
    %3850 = vmatpush1.msra.mxu0 %v3411
    %3851 = vmatprep.subr.mxu0 0.0
    %3852 = vmatpush1.msra.mxu0 %v3412
    %3853 = vmatprep.subr.mxu0 0.0
    %3854 = vmatpush1.msra.mxu0 %v3413
    %3855 = vmatprep.subr.mxu0 0.0
    %3856 = vmatpush1.msra.mxu0 %v3414
    %3857 = vmatprep.subr.mxu0 0.0
    %3858 = vmatpush1.msra.mxu0 %v3415
    %3859 = vmatprep.subr.mxu0 0.0
    %3860 = vmatpush1.msra.mxu0 %v3416
    %3861 = vmatprep.subr.mxu0 0.0
    %3862 = vmatpush1.msra.mxu0 %v3417
    %3863 = vmatprep.subr.mxu0 0.0
    %3864 = vmatpush1.msra.mxu0 %v3418
    %3865 = vmatprep.subr.mxu0 0.0
    %3866 = vmatpush1.msra.mxu0 %v3419
    %3867 = vmatprep.subr.mxu0 0.0
    %3868 = vmatpush1.msra.mxu0 %v3420
    %3869 = vmatprep.subr.mxu0 0.0
    %3870 = vmatpush1.msra.mxu0 %v3421
    %3871 = vmatprep.subr.mxu0 0.0
    %3872 = vmatpush1.msra.mxu0 %v3422
    %3873 = vmatprep.subr.mxu0 0.0
    %3874 = vmatpush1.msra.mxu0 %v3423
    %3875 = vmatprep.subr.mxu0 0.0
    %3876 = vmatpush1.msra.mxu0 %v3424
    %3877 = vmatprep.subr.mxu0 0.0
    %3878 = vmatpush1.msra.mxu0 %v3425
    %3879 = vmatprep.subr.mxu0 0.0
    %3880 = vmatpush1.msra.mxu0 %v3426
    %3881 = vmatprep.subr.mxu0 0.0
    %3882 = vmatpush1.msra.mxu0 0.0
    %3883 = vmatprep.subr.mxu0 0.0
    %3884 = vmatpush1.msra.mxu0 0.0
    %3885 = vmatprep.subr.mxu0 0.0
    %3886 = vmatpush1.msra.mxu0 0.0
    %3887 = vmatprep.subr.mxu0 0.0
    %3888 = vmatpush1.msra.mxu0 0.0
    %3889 = vmatprep.subr.mxu0 0.0
    %3890 = vmatpush1.msra.mxu0 0.0
    %3891 = vmatprep.subr.mxu0 0.0
    %3892 = vmatpush1.msra.mxu0 0.0
    %3893 = vmatprep.subr.mxu0 0.0
    %3894 = vmatpush1.msra.mxu0 0.0
    %3895 = vmatprep.subr.mxu0 0.0
    %3896 = vmatpush1.msra.mxu0 0.0
    %3897 = vmatprep.subr.mxu0 0.0
    %3898 = vmatpush1.msra.mxu0 0.0
    %3899 = vmatprep.subr.mxu0 0.0
    %3900 = vmatpush1.msra.mxu0 0.0
    %3901 = vmatprep.subr.mxu0 0.0
    %3902 = vmatpush1.msra.mxu0 0.0
    %3903 = vmatprep.subr.mxu0 0.0
    %3904 = vmatpush1.msra.mxu0 0.0
    %3905 = vmatprep.subr.mxu0 0.0
    %3906 = vmatpush1.msra.mxu0 0.0
    %3907 = vmatprep.subr.mxu0 0.0
    %3908 = vmatpush1.msra.mxu0 0.0
    %3909 = vmatprep.subr.mxu0 0.0
    %3910 = vmatpush1.msra.mxu0 0.0
    %3911 = vmatprep.subr.mxu0 0.0
    %3912 = vmatpush1.msra.mxu0 0.0
    %3913 = vmatprep.mubr.f32.mxu0 0.0
    %3914 = vmatmul.mubr.f32.gmra.mrb[0].mxu0 %v3600
    %v3915 = vpop.f32.mrb[0].mxu0
    %v3916 = vadd.f32 0.0, %v3915
    %v3917 = vpop.f32.mrb[0].mxu0
    %3918 = vmatprep.mubr.f32.mxu0 0.0
    %3919 = vmatmul.mubr.f32.gmra.mrb[0].mxu0 %v1815
    %v3920 = vpop.f32.mrb[0].mxu0
    %v3921 = vadd.f32 0.0, %v3920
    %v3922 = vpop.f32.mrb[0].mxu0
    %3923 = vdwg.mxu0
    %v3924 = vadd.s32 %v63, 2
    %vm3925 = vcmp.eq.s32.totalorder %v46, %v3924
    %vm3926 = vcmp.eq.s32.totalorder %v47, %v3924
    %vm3927 = vcmp.eq.s32.totalorder %v48, %v3924
    %vm3928 = vcmp.eq.s32.totalorder %v49, %v3924
    %vm3929 = vcmp.eq.s32.totalorder %v50, %v3924
    %vm3930 = vcmp.eq.s32.totalorder %v51, %v3924
    %vm3931 = vcmp.eq.s32.totalorder %v52, %v3924
    %vm3932 = vcmp.eq.s32.totalorder %v53, %v3924
    %vm3933 = vcmp.eq.s32.totalorder %v54, %v3924
    %vm3934 = vcmp.eq.s32.totalorder %v55, %v3924
    %vm3935 = vcmp.eq.s32.totalorder %v56, %v3924
    %vm3936 = vcmp.eq.s32.totalorder %v57, %v3924
    %vm3937 = vcmp.eq.s32.totalorder %v58, %v3924
    %vm3938 = vcmp.eq.s32.totalorder %v59, %v3924
    %vm3939 = vcmp.eq.s32.totalorder %v60, %v3924
    %vm3940 = vcmp.eq.s32.totalorder %v61, %v3924
    %vm3941 = vmand %vm3925, %vm98
    %vm3942 = vmand %vm3926, %vm99
    %vm3943 = vmand %vm3927, %vm100
    %vm3944 = vmand %vm3928, %vm101
    %vm3945 = vmand %vm3929, %vm102
    %vm3946 = vmand %vm3930, %vm103
    %vm3947 = vmand %vm3931, %vm104
    %vm3948 = vmand %vm3932, %vm105
    %vm3949 = vmand %vm3933, %vm106
    %vm3950 = vmand %vm3934, %vm107
    %vm3951 = vmand %vm3935, %vm108
    %vm3952 = vmand %vm3936, %vm109
    %vm3953 = vmand %vm3937, %vm110
    %vm3954 = vmand %vm3938, %vm111
    %vm3955 = vmand %vm3939, %vm112
    %vm3956 = vmand %vm3940, %vm113
    %v3957 = vsel %vm3941, 1.0, 0.0
    %v3958 = vsel %vm3942, 1.0, 0.0
    %v3959 = vsel %vm3943, 1.0, 0.0
    %v3960 = vsel %vm3944, 1.0, 0.0
    %v3961 = vsel %vm3945, 1.0, 0.0
    %v3962 = vsel %vm3946, 1.0, 0.0
    %v3963 = vsel %vm3947, 1.0, 0.0
    %v3964 = vsel %vm3948, 1.0, 0.0
    %v3965 = vsel %vm3949, 1.0, 0.0
    %v3966 = vsel %vm3950, 1.0, 0.0
    %v3967 = vsel %vm3951, 1.0, 0.0
    %v3968 = vsel %vm3952, 1.0, 0.0
    %v3969 = vsel %vm3953, 1.0, 0.0
    %v3970 = vsel %vm3954, 1.0, 0.0
    %v3971 = vsel %vm3955, 1.0, 0.0
    %v3972 = vsel %vm3956, 1.0, 0.0
    %3973 = vmatprep.subr.mxu0 0.0
    %3974 = vmatpush1.msra.mxu0 %v3957
    %3975 = vmatprep.subr.mxu0 0.0
    %3976 = vmatpush1.msra.mxu0 %v3958
    %3977 = vmatprep.subr.mxu0 0.0
    %3978 = vmatpush1.msra.mxu0 %v3959
    %3979 = vmatprep.subr.mxu0 0.0
    %3980 = vmatpush1.msra.mxu0 %v3960
    %3981 = vmatprep.subr.mxu0 0.0
    %3982 = vmatpush1.msra.mxu0 %v3961
    %3983 = vmatprep.subr.mxu0 0.0
    %3984 = vmatpush1.msra.mxu0 %v3962
    %3985 = vmatprep.subr.mxu0 0.0
    %3986 = vmatpush1.msra.mxu0 %v3963
    %3987 = vmatprep.subr.mxu0 0.0
    %3988 = vmatpush1.msra.mxu0 %v3964
    %3989 = vmatprep.subr.mxu0 0.0
    %3990 = vmatpush1.msra.mxu0 %v3965
    %3991 = vmatprep.subr.mxu0 0.0
    %3992 = vmatpush1.msra.mxu0 %v3966
    %3993 = vmatprep.subr.mxu0 0.0
    %3994 = vmatpush1.msra.mxu0 %v3967
    %3995 = vmatprep.subr.mxu0 0.0
    %3996 = vmatpush1.msra.mxu0 %v3968
    %3997 = vmatprep.subr.mxu0 0.0
    %3998 = vmatpush1.msra.mxu0 %v3969
    %3999 = vmatprep.subr.mxu0 0.0
    %4000 = vmatpush1.msra.mxu0 %v3970
    %4001 = vmatprep.subr.mxu0 0.0
    %4002 = vmatpush1.msra.mxu0 %v3971
    %4003 = vmatprep.subr.mxu0 0.0
    %4004 = vmatpush1.msra.mxu0 %v3972
    %4005 = vmatprep.subr.mxu0 0.0
    %4006 = vmatpush1.msra.mxu0 0.0
    %4007 = vmatprep.subr.mxu0 0.0
    %4008 = vmatpush1.msra.mxu0 0.0
    %4009 = vmatprep.subr.mxu0 0.0
    %4010 = vmatpush1.msra.mxu0 0.0
    %4011 = vmatprep.subr.mxu0 0.0
    %4012 = vmatpush1.msra.mxu0 0.0
    %4013 = vmatprep.subr.mxu0 0.0
    %4014 = vmatpush1.msra.mxu0 0.0
    %4015 = vmatprep.subr.mxu0 0.0
    %4016 = vmatpush1.msra.mxu0 0.0
    %4017 = vmatprep.subr.mxu0 0.0
    %4018 = vmatpush1.msra.mxu0 0.0
    %4019 = vmatprep.subr.mxu0 0.0
    %4020 = vmatpush1.msra.mxu0 0.0
    %4021 = vmatprep.subr.mxu0 0.0
    %4022 = vmatpush1.msra.mxu0 0.0
    %4023 = vmatprep.subr.mxu0 0.0
    %4024 = vmatpush1.msra.mxu0 0.0
    %4025 = vmatprep.subr.mxu0 0.0
    %4026 = vmatpush1.msra.mxu0 0.0
    %4027 = vmatprep.subr.mxu0 0.0
    %4028 = vmatpush1.msra.mxu0 0.0
    %4029 = vmatprep.subr.mxu0 0.0
    %4030 = vmatpush1.msra.mxu0 0.0
    %4031 = vmatprep.subr.mxu0 0.0
    %4032 = vmatpush1.msra.mxu0 0.0
    %4033 = vmatprep.subr.mxu0 0.0
    %4034 = vmatpush1.msra.mxu0 0.0
    %4035 = vmatprep.subr.mxu0 0.0
    %4036 = vmatpush1.msra.mxu0 0.0
    %4037 = vmatprep.mubr.f32.mxu0 0.0
    %4038 = vmatmul.mubr.f32.gmra.mrb[0].mxu0 %v3600
    %v4039 = vpop.f32.mrb[0].mxu0
    %v4040 = vadd.f32 0.0, %v4039
    %v4041 = vpop.f32.mrb[0].mxu0
    %4042 = vmatprep.mubr.f32.mxu0 0.0
    %4043 = vmatmul.mubr.f32.gmra.mrb[0].mxu0 %v1815
    %v4044 = vpop.f32.mrb[0].mxu0
    %v4045 = vadd.f32 0.0, %v4044
    %v4046 = vpop.f32.mrb[0].mxu0
    %4047 = vdwg.mxu0
    %v4048 = vld [vmem:[#allocation2 + $0x68] sm:$0xff]
    %4049 = vmatprep.subr.mxu0 0.0
    %4050 = vmatpush1.msra.mxu0 %v3717
    %4051 = vmatprep.subr.mxu0 0.0
    %4052 = vmatpush1.msra.mxu0 %v3722
    %4053 = vmatprep.subr.mxu0 0.0
    %4054 = vmatpush1.msra.mxu0 %v3841
    %4055 = vmatprep.subr.mxu0 0.0
    %4056 = vmatpush1.msra.mxu0 %v3846
    %4057 = vmatprep.subr.mxu0 0.0
    %4058 = vmatpush1.msra.mxu0 %v3600
    %4059 = vmatprep.subr.mxu0 0.0
    %4060 = vmatpush1.msra.mxu0 %v1815
    %4061 = vmatprep.subr.mxu0 0.0
    %4062 = vmatpush1.msra.mxu0 %v3916
    %4063 = vmatprep.subr.mxu0 0.0
    %4064 = vmatpush1.msra.mxu0 %v3921
    %4065 = vmatprep.subr.mxu0 0.0
    %4066 = vmatpush1.msra.mxu0 %v4040
    %4067 = vmatprep.subr.mxu0 0.0
    %4068 = vmatpush1.msra.mxu0 %v4045
    %4069 = vmatprep.subr.mxu0 0.0
    %4070 = vmatpush1.msra.mxu0 0.0
    %4071 = vmatprep.subr.mxu0 0.0
    %4072 = vmatpush1.msra.mxu0 0.0
    %4073 = vmatprep.subr.mxu0 0.0
    %4074 = vmatpush1.msra.mxu0 0.0
    %4075 = vmatprep.subr.mxu0 0.0
    %4076 = vmatpush1.msra.mxu0 0.0
    %4077 = vmatprep.subr.mxu0 0.0
    %4078 = vmatpush1.msra.mxu0 0.0
    %4079 = vmatprep.subr.mxu0 0.0
    %4080 = vmatpush1.msra.mxu0 0.0
    %4081 = vmatprep.subr.mxu0 0.0
    %4082 = vmatpush1.msra.mxu0 0.0
    %4083 = vmatprep.subr.mxu0 0.0
    %4084 = vmatpush1.msra.mxu0 0.0
    %4085 = vmatprep.subr.mxu0 0.0
    %4086 = vmatpush1.msra.mxu0 0.0
    %4087 = vmatprep.subr.mxu0 0.0
    %4088 = vmatpush1.msra.mxu0 0.0
    %4089 = vmatprep.subr.mxu0 0.0
    %4090 = vmatpush1.msra.mxu0 0.0
    %4091 = vmatprep.subr.mxu0 0.0
    %4092 = vmatpush1.msra.mxu0 0.0
    %4093 = vmatprep.subr.mxu0 0.0
    %4094 = vmatpush1.msra.mxu0 0.0
    %4095 = vmatprep.subr.mxu0 0.0
    %4096 = vmatpush1.msra.mxu0 0.0
    %4097 = vmatprep.subr.mxu0 0.0
    %4098 = vmatpush1.msra.mxu0 0.0
    %4099 = vmatprep.subr.mxu0 0.0
    %4100 = vmatpush1.msra.mxu0 0.0
    %4101 = vmatprep.subr.mxu0 0.0
    %4102 = vmatpush1.msra.mxu0 0.0
    %4103 = vmatprep.subr.mxu0 0.0
    %4104 = vmatpush1.msra.mxu0 0.0
    %4105 = vmatprep.subr.mxu0 0.0
    %4106 = vmatpush1.msra.mxu0 0.0
    %4107 = vmatprep.subr.mxu0 0.0
    %4108 = vmatpush1.msra.mxu0 0.0
    %4109 = vmatprep.subr.mxu0 0.0
    %4110 = vmatpush1.msra.mxu0 0.0
    %4111 = vmatprep.subr.mxu0 0.0
    %4112 = vmatpush1.msra.mxu0 0.0
    %4113 = vmatprep.mubr.f32.mxu0 0.0
    %4114 = vmatmul.mubr.f32.gmra.mrb[0].mxu0 %v4048
    %v4115 = vpop.f32.mrb[0].mxu0
    %v4116 = vadd.f32 0.0, %v4115
    %v4117 = vpop.f32.mrb[0].mxu0
    %4118 = vdwg.mxu0
    %v4119 = vld [vmem:[#allocation4 + $0x68] sm:$0xff]
    %4120 = vadd.xlane.f32.xlu0 %v4116
    %v4121 = vpop.xlane.xlu0 %4120
    %v4122 = vmul.f32 %v4116, %v4116
    %4123 = vadd.xlane.f32.xlu0 %v4122
    %v4124 = vpop.xlane.xlu0 %4123
    %v4125 = vmul.f32 %v4121, 0.0078125
    %v4126 = vmul.f32 %v4124, 0.0078125
    %v4127 = vmul.f32 %v4125, %v4125
    %v4128 = vsub.f32 %v4126, %v4127
    %v4129 = vmax.f32 %v4128, 0.0
    %v4130 = vadd.f32 %v4129, 1e-05
    %v4131 = vrsqrt.pop %v4130
    %v4132 = vmul.f32 %v4131, %v4119
    %v4133 = vsub.f32 %v4116, %v4125
    %4135 = vset.pattern.permute.xlu0 0
    %4136 = vperm.xlu0 %4135, %v4132
    %v4137 = vpop.permute.xlu0 %4136
    %v4139 = vmul.f32 %v4133, %v4137
    %4141 = vset.pattern.permute.xlu0 1
    %4142 = vperm.xlu0 %4141, %v4119
    %v4143 = vpop.permute.xlu0 %4142
    %v4145 = vadd.f32 %v4139, %v4143
    %v4146 = vmax.f32 %v4145, 0.0
    %4147 = vmatprep.subr.mxu0 0.0
    %4148 = vmatpush1.msra.mxu0 %v3634
    %4149 = vmatprep.subr.mxu0 0.0
    %4150 = vmatpush1.msra.mxu0 %v3635
    %4151 = vmatprep.subr.mxu0 0.0
    %4152 = vmatpush1.msra.mxu0 %v3636
    %4153 = vmatprep.subr.mxu0 0.0
    %4154 = vmatpush1.msra.mxu0 %v3637
    %4155 = vmatprep.subr.mxu0 0.0
    %4156 = vmatpush1.msra.mxu0 %v3638
    %4157 = vmatprep.subr.mxu0 0.0
    %4158 = vmatpush1.msra.mxu0 %v3639
    %4159 = vmatprep.subr.mxu0 0.0
    %4160 = vmatpush1.msra.mxu0 %v3640
    %4161 = vmatprep.subr.mxu0 0.0
    %4162 = vmatpush1.msra.mxu0 %v3641
    %4163 = vmatprep.subr.mxu0 0.0
    %4164 = vmatpush1.msra.mxu0 %v3642
    %4165 = vmatprep.subr.mxu0 0.0
    %4166 = vmatpush1.msra.mxu0 %v3643
    %4167 = vmatprep.subr.mxu0 0.0
    %4168 = vmatpush1.msra.mxu0 %v3644
    %4169 = vmatprep.subr.mxu0 0.0
    %4170 = vmatpush1.msra.mxu0 %v3645
    %4171 = vmatprep.subr.mxu0 0.0
    %4172 = vmatpush1.msra.mxu0 %v3646
    %4173 = vmatprep.subr.mxu0 0.0
    %4174 = vmatpush1.msra.mxu0 %v3647
    %4175 = vmatprep.subr.mxu0 0.0
    %4176 = vmatpush1.msra.mxu0 %v3648
    %4177 = vmatprep.subr.mxu0 0.0
    %4178 = vmatpush1.msra.mxu0 %v3649
    %4179 = vmatprep.subr.mxu0 0.0
    %4180 = vmatpush1.msra.mxu0 0.0
    %4181 = vmatprep.subr.mxu0 0.0
    %4182 = vmatpush1.msra.mxu0 0.0
    %4183 = vmatprep.subr.mxu0 0.0
    %4184 = vmatpush1.msra.mxu0 0.0
    %4185 = vmatprep.subr.mxu0 0.0
    %4186 = vmatpush1.msra.mxu0 0.0
    %4187 = vmatprep.subr.mxu0 0.0
    %4188 = vmatpush1.msra.mxu0 0.0
    %4189 = vmatprep.subr.mxu0 0.0
    %4190 = vmatpush1.msra.mxu0 0.0
    %4191 = vmatprep.subr.mxu0 0.0
    %4192 = vmatpush1.msra.mxu0 0.0
    %4193 = vmatprep.subr.mxu0 0.0
    %4194 = vmatpush1.msra.mxu0 0.0
    %4195 = vmatprep.subr.mxu0 0.0
    %4196 = vmatpush1.msra.mxu0 0.0
    %4197 = vmatprep.subr.mxu0 0.0
    %4198 = vmatpush1.msra.mxu0 0.0
    %4199 = vmatprep.subr.mxu0 0.0
    %4200 = vmatpush1.msra.mxu0 0.0
    %4201 = vmatprep.subr.mxu0 0.0
    %4202 = vmatpush1.msra.mxu0 0.0
    %4203 = vmatprep.subr.mxu0 0.0
    %4204 = vmatpush1.msra.mxu0 0.0
    %4205 = vmatprep.subr.mxu0 0.0
    %4206 = vmatpush1.msra.mxu0 0.0
    %4207 = vmatprep.subr.mxu0 0.0
    %4208 = vmatpush1.msra.mxu0 0.0
    %4209 = vmatprep.subr.mxu0 0.0
    %4210 = vmatpush1.msra.mxu0 0.0
    %4211 = vmatprep.mubr.f32.mxu0 0.0
    %4212 = vmatmul.mubr.f32.gmra.mrb[0].mxu0 %v4146
    %v4213 = vpop.f32.mrb[0].mxu0
    %v4214 = vadd.f32 0.0, %v4213
    %v4215 = vpop.f32.mrb[0].mxu0
    %4216 = vdwg.mxu0
    %4217 = vmatprep.subr.mxu0 0.0
    %4218 = vmatpush1.msra.mxu0 %v3758
    %4219 = vmatprep.subr.mxu0 0.0
    %4220 = vmatpush1.msra.mxu0 %v3759
    %4221 = vmatprep.subr.mxu0 0.0
    %4222 = vmatpush1.msra.mxu0 %v3760
    %4223 = vmatprep.subr.mxu0 0.0
    %4224 = vmatpush1.msra.mxu0 %v3761
    %4225 = vmatprep.subr.mxu0 0.0
    %4226 = vmatpush1.msra.mxu0 %v3762
    %4227 = vmatprep.subr.mxu0 0.0
    %4228 = vmatpush1.msra.mxu0 %v3763
    %4229 = vmatprep.subr.mxu0 0.0
    %4230 = vmatpush1.msra.mxu0 %v3764
    %4231 = vmatprep.subr.mxu0 0.0
    %4232 = vmatpush1.msra.mxu0 %v3765
    %4233 = vmatprep.subr.mxu0 0.0
    %4234 = vmatpush1.msra.mxu0 %v3766
    %4235 = vmatprep.subr.mxu0 0.0
    %4236 = vmatpush1.msra.mxu0 %v3767
    %4237 = vmatprep.subr.mxu0 0.0
    %4238 = vmatpush1.msra.mxu0 %v3768
    %4239 = vmatprep.subr.mxu0 0.0
    %4240 = vmatpush1.msra.mxu0 %v3769
    %4241 = vmatprep.subr.mxu0 0.0
    %4242 = vmatpush1.msra.mxu0 %v3770
    %4243 = vmatprep.subr.mxu0 0.0
    %4244 = vmatpush1.msra.mxu0 %v3771
    %4245 = vmatprep.subr.mxu0 0.0
    %4246 = vmatpush1.msra.mxu0 %v3772
    %4247 = vmatprep.subr.mxu0 0.0
    %4248 = vmatpush1.msra.mxu0 %v3773
    %4249 = vmatprep.subr.mxu0 0.0
    %4250 = vmatpush1.msra.mxu0 0.0
    %4251 = vmatprep.subr.mxu0 0.0
    %4252 = vmatpush1.msra.mxu0 0.0
    %4253 = vmatprep.subr.mxu0 0.0
    %4254 = vmatpush1.msra.mxu0 0.0
    %4255 = vmatprep.subr.mxu0 0.0
    %4256 = vmatpush1.msra.mxu0 0.0
    %4257 = vmatprep.subr.mxu0 0.0
    %4258 = vmatpush1.msra.mxu0 0.0
    %4259 = vmatprep.subr.mxu0 0.0
    %4260 = vmatpush1.msra.mxu0 0.0
    %4261 = vmatprep.subr.mxu0 0.0
    %4262 = vmatpush1.msra.mxu0 0.0
    %4263 = vmatprep.subr.mxu0 0.0
    %4264 = vmatpush1.msra.mxu0 0.0
    %4265 = vmatprep.subr.mxu0 0.0
    %4266 = vmatpush1.msra.mxu0 0.0
    %4267 = vmatprep.subr.mxu0 0.0
    %4268 = vmatpush1.msra.mxu0 0.0
    %4269 = vmatprep.subr.mxu0 0.0
    %4270 = vmatpush1.msra.mxu0 0.0
    %4271 = vmatprep.subr.mxu0 0.0
    %4272 = vmatpush1.msra.mxu0 0.0
    %4273 = vmatprep.subr.mxu0 0.0
    %4274 = vmatpush1.msra.mxu0 0.0
    %4275 = vmatprep.subr.mxu0 0.0
    %4276 = vmatpush1.msra.mxu0 0.0
    %4277 = vmatprep.subr.mxu0 0.0
    %4278 = vmatpush1.msra.mxu0 0.0
    %4279 = vmatprep.subr.mxu0 0.0
    %4280 = vmatpush1.msra.mxu0 0.0
    %4281 = vmatprep.mubr.f32.mxu0 0.0
    %4282 = vmatmul.mubr.f32.gmra.mrb[0].mxu0 %v4146
    %v4283 = vpop.f32.mrb[0].mxu0
    %v4284 = vadd.f32 0.0, %v4283
    %v4285 = vpop.f32.mrb[0].mxu0
    %4286 = vdwg.mxu0
    %4287 = vmatprep.subr.mxu0 0.0
    %4288 = vmatpush1.msra.mxu0 %v3411
    %4289 = vmatprep.subr.mxu0 0.0
    %4290 = vmatpush1.msra.mxu0 %v3412
    %4291 = vmatprep.subr.mxu0 0.0
    %4292 = vmatpush1.msra.mxu0 %v3413
    %4293 = vmatprep.subr.mxu0 0.0
    %4294 = vmatpush1.msra.mxu0 %v3414
    %4295 = vmatprep.subr.mxu0 0.0
    %4296 = vmatpush1.msra.mxu0 %v3415
    %4297 = vmatprep.subr.mxu0 0.0
    %4298 = vmatpush1.msra.mxu0 %v3416
    %4299 = vmatprep.subr.mxu0 0.0
    %4300 = vmatpush1.msra.mxu0 %v3417
    %4301 = vmatprep.subr.mxu0 0.0
    %4302 = vmatpush1.msra.mxu0 %v3418
    %4303 = vmatprep.subr.mxu0 0.0
    %4304 = vmatpush1.msra.mxu0 %v3419
    %4305 = vmatprep.subr.mxu0 0.0
    %4306 = vmatpush1.msra.mxu0 %v3420
    %4307 = vmatprep.subr.mxu0 0.0
    %4308 = vmatpush1.msra.mxu0 %v3421
    %4309 = vmatprep.subr.mxu0 0.0
    %4310 = vmatpush1.msra.mxu0 %v3422
    %4311 = vmatprep.subr.mxu0 0.0
    %4312 = vmatpush1.msra.mxu0 %v3423
    %4313 = vmatprep.subr.mxu0 0.0
    %4314 = vmatpush1.msra.mxu0 %v3424
    %4315 = vmatprep.subr.mxu0 0.0
    %4316 = vmatpush1.msra.mxu0 %v3425
    %4317 = vmatprep.subr.mxu0 0.0
    %4318 = vmatpush1.msra.mxu0 %v3426
    %4319 = vmatprep.subr.mxu0 0.0
    %4320 = vmatpush1.msra.mxu0 0.0
    %4321 = vmatprep.subr.mxu0 0.0
    %4322 = vmatpush1.msra.mxu0 0.0
    %4323 = vmatprep.subr.mxu0 0.0
    %4324 = vmatpush1.msra.mxu0 0.0
    %4325 = vmatprep.subr.mxu0 0.0
    %4326 = vmatpush1.msra.mxu0 0.0
    %4327 = vmatprep.subr.mxu0 0.0
    %4328 = vmatpush1.msra.mxu0 0.0
    %4329 = vmatprep.subr.mxu0 0.0
    %4330 = vmatpush1.msra.mxu0 0.0
    %4331 = vmatprep.subr.mxu0 0.0
    %4332 = vmatpush1.msra.mxu0 0.0
    %4333 = vmatprep.subr.mxu0 0.0
    %4334 = vmatpush1.msra.mxu0 0.0
    %4335 = vmatprep.subr.mxu0 0.0
    %4336 = vmatpush1.msra.mxu0 0.0
    %4337 = vmatprep.subr.mxu0 0.0
    %4338 = vmatpush1.msra.mxu0 0.0
    %4339 = vmatprep.subr.mxu0 0.0
    %4340 = vmatpush1.msra.mxu0 0.0
    %4341 = vmatprep.subr.mxu0 0.0
    %4342 = vmatpush1.msra.mxu0 0.0
    %4343 = vmatprep.subr.mxu0 0.0
    %4344 = vmatpush1.msra.mxu0 0.0
    %4345 = vmatprep.subr.mxu0 0.0
    %4346 = vmatpush1.msra.mxu0 0.0
    %4347 = vmatprep.subr.mxu0 0.0
    %4348 = vmatpush1.msra.mxu0 0.0
    %4349 = vmatprep.subr.mxu0 0.0
    %4350 = vmatpush1.msra.mxu0 0.0
    %4351 = vmatprep.mubr.f32.mxu0 0.0
    %4352 = vmatmul.mubr.f32.gmra.mrb[0].mxu0 %v4146
    %v4353 = vpop.f32.mrb[0].mxu0
    %v4354 = vadd.f32 0.0, %v4353
    %v4355 = vpop.f32.mrb[0].mxu0
    %4356 = vdwg.mxu0
    %4357 = vmatprep.subr.mxu0 0.0
    %4358 = vmatpush1.msra.mxu0 %v3957
    %4359 = vmatprep.subr.mxu0 0.0
    %4360 = vmatpush1.msra.mxu0 %v3958
    %4361 = vmatprep.subr.mxu0 0.0
    %4362 = vmatpush1.msra.mxu0 %v3959
    %4363 = vmatprep.subr.mxu0 0.0
    %4364 = vmatpush1.msra.mxu0 %v3960
    %4365 = vmatprep.subr.mxu0 0.0
    %4366 = vmatpush1.msra.mxu0 %v3961
    %4367 = vmatprep.subr.mxu0 0.0
    %4368 = vmatpush1.msra.mxu0 %v3962
    %4369 = vmatprep.subr.mxu0 0.0
    %4370 = vmatpush1.msra.mxu0 %v3963
    %4371 = vmatprep.subr.mxu0 0.0
    %4372 = vmatpush1.msra.mxu0 %v3964
    %4373 = vmatprep.subr.mxu0 0.0
    %4374 = vmatpush1.msra.mxu0 %v3965
    %4375 = vmatprep.subr.mxu0 0.0
    %4376 = vmatpush1.msra.mxu0 %v3966
    %4377 = vmatprep.subr.mxu0 0.0
    %4378 = vmatpush1.msra.mxu0 %v3967
    %4379 = vmatprep.subr.mxu0 0.0
    %4380 = vmatpush1.msra.mxu0 %v3968
    %4381 = vmatprep.subr.mxu0 0.0
    %4382 = vmatpush1.msra.mxu0 %v3969
    %4383 = vmatprep.subr.mxu0 0.0
    %4384 = vmatpush1.msra.mxu0 %v3970
    %4385 = vmatprep.subr.mxu0 0.0
    %4386 = vmatpush1.msra.mxu0 %v3971
    %4387 = vmatprep.subr.mxu0 0.0
    %4388 = vmatpush1.msra.mxu0 %v3972
    %4389 = vmatprep.subr.mxu0 0.0
    %4390 = vmatpush1.msra.mxu0 0.0
    %4391 = vmatprep.subr.mxu0 0.0
    %4392 = vmatpush1.msra.mxu0 0.0
    %4393 = vmatprep.subr.mxu0 0.0
    %4394 = vmatpush1.msra.mxu0 0.0
    %4395 = vmatprep.subr.mxu0 0.0
    %4396 = vmatpush1.msra.mxu0 0.0
    %4397 = vmatprep.subr.mxu0 0.0
    %4398 = vmatpush1.msra.mxu0 0.0
    %4399 = vmatprep.subr.mxu0 0.0
    %4400 = vmatpush1.msra.mxu0 0.0
    %4401 = vmatprep.subr.mxu0 0.0
    %4402 = vmatpush1.msra.mxu0 0.0
    %4403 = vmatprep.subr.mxu0 0.0
    %4404 = vmatpush1.msra.mxu0 0.0
    %4405 = vmatprep.subr.mxu0 0.0
    %4406 = vmatpush1.msra.mxu0 0.0
    %4407 = vmatprep.subr.mxu0 0.0
    %4408 = vmatpush1.msra.mxu0 0.0
    %4409 = vmatprep.subr.mxu0 0.0
    %4410 = vmatpush1.msra.mxu0 0.0
    %4411 = vmatprep.subr.mxu0 0.0
    %4412 = vmatpush1.msra.mxu0 0.0
    %4413 = vmatprep.subr.mxu0 0.0
    %4414 = vmatpush1.msra.mxu0 0.0
    %4415 = vmatprep.subr.mxu0 0.0
    %4416 = vmatpush1.msra.mxu0 0.0
    %4417 = vmatprep.subr.mxu0 0.0
    %4418 = vmatpush1.msra.mxu0 0.0
    %4419 = vmatprep.subr.mxu0 0.0
    %4420 = vmatpush1.msra.mxu0 0.0
    %4421 = vmatprep.mubr.f32.mxu0 0.0
    %4422 = vmatmul.mubr.f32.gmra.mrb[0].mxu0 %v4146
    %v4423 = vpop.f32.mrb[0].mxu0
    %v4424 = vadd.f32 0.0, %v4423
    %v4425 = vpop.f32.mrb[0].mxu0
    %4426 = vdwg.mxu0
    %v4427 = vld [vmem:[#allocation2 + $0x70] sm:$0xff]
    %4428 = vmatprep.subr.mxu0 0.0
    %4429 = vmatpush1.msra.mxu0 %v4214
    %4430 = vmatprep.subr.mxu0 0.0
    %4431 = vmatpush1.msra.mxu0 %v4284
    %4432 = vmatprep.subr.mxu0 0.0
    %4433 = vmatpush1.msra.mxu0 %v4146
    %4434 = vmatprep.subr.mxu0 0.0
    %4435 = vmatpush1.msra.mxu0 %v4354
    %4436 = vmatprep.subr.mxu0 0.0
    %4437 = vmatpush1.msra.mxu0 %v4424
    %4438 = vmatprep.subr.mxu0 0.0
    %4439 = vmatpush1.msra.mxu0 0.0
    %4440 = vmatprep.subr.mxu0 0.0
    %4441 = vmatpush1.msra.mxu0 0.0
    %4442 = vmatprep.subr.mxu0 0.0
    %4443 = vmatpush1.msra.mxu0 0.0
    %4444 = vmatprep.subr.mxu0 0.0
    %4445 = vmatpush1.msra.mxu0 0.0
    %4446 = vmatprep.subr.mxu0 0.0
    %4447 = vmatpush1.msra.mxu0 0.0
    %4448 = vmatprep.subr.mxu0 0.0
    %4449 = vmatpush1.msra.mxu0 0.0
    %4450 = vmatprep.subr.mxu0 0.0
    %4451 = vmatpush1.msra.mxu0 0.0
    %4452 = vmatprep.subr.mxu0 0.0
    %4453 = vmatpush1.msra.mxu0 0.0
    %4454 = vmatprep.subr.mxu0 0.0
    %4455 = vmatpush1.msra.mxu0 0.0
    %4456 = vmatprep.subr.mxu0 0.0
    %4457 = vmatpush1.msra.mxu0 0.0
    %4458 = vmatprep.subr.mxu0 0.0
    %4459 = vmatpush1.msra.mxu0 0.0
    %4460 = vmatprep.subr.mxu0 0.0
    %4461 = vmatpush1.msra.mxu0 0.0
    %4462 = vmatprep.subr.mxu0 0.0
    %4463 = vmatpush1.msra.mxu0 0.0
    %4464 = vmatprep.subr.mxu0 0.0
    %4465 = vmatpush1.msra.mxu0 0.0
    %4466 = vmatprep.subr.mxu0 0.0
    %4467 = vmatpush1.msra.mxu0 0.0
    %4468 = vmatprep.subr.mxu0 0.0
    %4469 = vmatpush1.msra.mxu0 0.0
    %4470 = vmatprep.subr.mxu0 0.0
    %4471 = vmatpush1.msra.mxu0 0.0
    %4472 = vmatprep.subr.mxu0 0.0
    %4473 = vmatpush1.msra.mxu0 0.0
    %4474 = vmatprep.subr.mxu0 0.0
    %4475 = vmatpush1.msra.mxu0 0.0
    %4476 = vmatprep.subr.mxu0 0.0
    %4477 = vmatpush1.msra.mxu0 0.0
    %4478 = vmatprep.subr.mxu0 0.0
    %4479 = vmatpush1.msra.mxu0 0.0
    %4480 = vmatprep.subr.mxu0 0.0
    %4481 = vmatpush1.msra.mxu0 0.0
    %4482 = vmatprep.subr.mxu0 0.0
    %4483 = vmatpush1.msra.mxu0 0.0
    %4484 = vmatprep.subr.mxu0 0.0
    %4485 = vmatpush1.msra.mxu0 0.0
    %4486 = vmatprep.subr.mxu0 0.0
    %4487 = vmatpush1.msra.mxu0 0.0
    %4488 = vmatprep.subr.mxu0 0.0
    %4489 = vmatpush1.msra.mxu0 0.0
    %4490 = vmatprep.subr.mxu0 0.0
    %4491 = vmatpush1.msra.mxu0 0.0
    %4492 = vmatprep.mubr.f32.mxu0 0.0
    %4493 = vmatmul.mubr.f32.gmra.mrb[0].mxu0 %v4427
    %v4494 = vpop.f32.mrb[0].mxu0
    %v4495 = vadd.f32 0.0, %v4494
    %v4496 = vpop.f32.mrb[0].mxu0
    %4497 = vdwg.mxu0
    %v4498 = vld [vmem:[#allocation4 + $0x70] sm:$0xff]
    %4499 = vadd.xlane.f32.xlu0 %v4495
    %v4500 = vpop.xlane.xlu0 %4499
    %v4501 = vmul.f32 %v4495, %v4495
    %4502 = vadd.xlane.f32.xlu0 %v4501
    %v4503 = vpop.xlane.xlu0 %4502
    %v4504 = vmul.f32 %v4500, 0.0078125
    %v4505 = vmul.f32 %v4503, 0.0078125
    %v4506 = vmul.f32 %v4504, %v4504
    %v4507 = vsub.f32 %v4505, %v4506
    %v4508 = vmax.f32 %v4507, 0.0
    %v4509 = vadd.f32 %v4508, 1e-05
    %v4510 = vrsqrt.pop %v4509
    %v4511 = vmul.f32 %v4510, %v4498
    %v4512 = vsub.f32 %v4495, %v4504
    %4514 = vset.pattern.permute.xlu0 0
    %4515 = vperm.xlu0 %4514, %v4511
    %v4516 = vpop.permute.xlu0 %4515
    %v4518 = vmul.f32 %v4512, %v4516
    %4520 = vset.pattern.permute.xlu0 1
    %4521 = vperm.xlu0 %4520, %v4498
    %v4522 = vpop.permute.xlu0 %4521
    %v4524 = vadd.f32 %v4518, %v4522
    %v4525 = vmax.f32 %v4524, 0.0
    %4526 = vmatprep.subr.mxu0 0.0
    %4527 = vmatpush1.msra.mxu0 %v3758
    %4528 = vmatprep.subr.mxu0 0.0
    %4529 = vmatpush1.msra.mxu0 %v3759
    %4530 = vmatprep.subr.mxu0 0.0
    %4531 = vmatpush1.msra.mxu0 %v3760
    %4532 = vmatprep.subr.mxu0 0.0
    %4533 = vmatpush1.msra.mxu0 %v3761
    %4534 = vmatprep.subr.mxu0 0.0
    %4535 = vmatpush1.msra.mxu0 %v3762
    %4536 = vmatprep.subr.mxu0 0.0
    %4537 = vmatpush1.msra.mxu0 %v3763
    %4538 = vmatprep.subr.mxu0 0.0
    %4539 = vmatpush1.msra.mxu0 %v3764
    %4540 = vmatprep.subr.mxu0 0.0
    %4541 = vmatpush1.msra.mxu0 %v3765
    %4542 = vmatprep.subr.mxu0 0.0
    %4543 = vmatpush1.msra.mxu0 %v3766
    %4544 = vmatprep.subr.mxu0 0.0
    %4545 = vmatpush1.msra.mxu0 %v3767
    %4546 = vmatprep.subr.mxu0 0.0
    %4547 = vmatpush1.msra.mxu0 %v3768
    %4548 = vmatprep.subr.mxu0 0.0
    %4549 = vmatpush1.msra.mxu0 %v3769
    %4550 = vmatprep.subr.mxu0 0.0
    %4551 = vmatpush1.msra.mxu0 %v3770
    %4552 = vmatprep.subr.mxu0 0.0
    %4553 = vmatpush1.msra.mxu0 %v3771
    %4554 = vmatprep.subr.mxu0 0.0
    %4555 = vmatpush1.msra.mxu0 %v3772
    %4556 = vmatprep.subr.mxu0 0.0
    %4557 = vmatpush1.msra.mxu0 %v3773
    %4558 = vmatprep.subr.mxu0 0.0
    %4559 = vmatpush1.msra.mxu0 0.0
    %4560 = vmatprep.subr.mxu0 0.0
    %4561 = vmatpush1.msra.mxu0 0.0
    %4562 = vmatprep.subr.mxu0 0.0
    %4563 = vmatpush1.msra.mxu0 0.0
    %4564 = vmatprep.subr.mxu0 0.0
    %4565 = vmatpush1.msra.mxu0 0.0
    %4566 = vmatprep.subr.mxu0 0.0
    %4567 = vmatpush1.msra.mxu0 0.0
    %4568 = vmatprep.subr.mxu0 0.0
    %4569 = vmatpush1.msra.mxu0 0.0
    %4570 = vmatprep.subr.mxu0 0.0
    %4571 = vmatpush1.msra.mxu0 0.0
    %4572 = vmatprep.subr.mxu0 0.0
    %4573 = vmatpush1.msra.mxu0 0.0
    %4574 = vmatprep.subr.mxu0 0.0
    %4575 = vmatpush1.msra.mxu0 0.0
    %4576 = vmatprep.subr.mxu0 0.0
    %4577 = vmatpush1.msra.mxu0 0.0
    %4578 = vmatprep.subr.mxu0 0.0
    %4579 = vmatpush1.msra.mxu0 0.0
    %4580 = vmatprep.subr.mxu0 0.0
    %4581 = vmatpush1.msra.mxu0 0.0
    %4582 = vmatprep.subr.mxu0 0.0
    %4583 = vmatpush1.msra.mxu0 0.0
    %4584 = vmatprep.subr.mxu0 0.0
    %4585 = vmatpush1.msra.mxu0 0.0
    %4586 = vmatprep.subr.mxu0 0.0
    %4587 = vmatpush1.msra.mxu0 0.0
    %4588 = vmatprep.subr.mxu0 0.0
    %4589 = vmatpush1.msra.mxu0 0.0
    %4590 = vmatprep.mubr.f32.mxu0 0.0
    %4591 = vmatmul.mubr.f32.gmra.mrb[0].mxu0 %v4525
    %v4592 = vpop.f32.mrb[0].mxu0
    %v4593 = vadd.f32 0.0, %v4592
    %v4594 = vpop.f32.mrb[0].mxu0
    %4595 = vdwg.mxu0
    %4596 = vmatprep.subr.mxu0 0.0
    %4597 = vmatpush1.msra.mxu0 %v3411
    %4598 = vmatprep.subr.mxu0 0.0
    %4599 = vmatpush1.msra.mxu0 %v3412
    %4600 = vmatprep.subr.mxu0 0.0
    %4601 = vmatpush1.msra.mxu0 %v3413
    %4602 = vmatprep.subr.mxu0 0.0
    %4603 = vmatpush1.msra.mxu0 %v3414
    %4604 = vmatprep.subr.mxu0 0.0
    %4605 = vmatpush1.msra.mxu0 %v3415
    %4606 = vmatprep.subr.mxu0 0.0
    %4607 = vmatpush1.msra.mxu0 %v3416
    %4608 = vmatprep.subr.mxu0 0.0
    %4609 = vmatpush1.msra.mxu0 %v3417
    %4610 = vmatprep.subr.mxu0 0.0
    %4611 = vmatpush1.msra.mxu0 %v3418
    %4612 = vmatprep.subr.mxu0 0.0
    %4613 = vmatpush1.msra.mxu0 %v3419
    %4614 = vmatprep.subr.mxu0 0.0
    %4615 = vmatpush1.msra.mxu0 %v3420
    %4616 = vmatprep.subr.mxu0 0.0
    %4617 = vmatpush1.msra.mxu0 %v3421
    %4618 = vmatprep.subr.mxu0 0.0
    %4619 = vmatpush1.msra.mxu0 %v3422
    %4620 = vmatprep.subr.mxu0 0.0
    %4621 = vmatpush1.msra.mxu0 %v3423
    %4622 = vmatprep.subr.mxu0 0.0
    %4623 = vmatpush1.msra.mxu0 %v3424
    %4624 = vmatprep.subr.mxu0 0.0
    %4625 = vmatpush1.msra.mxu0 %v3425
    %4626 = vmatprep.subr.mxu0 0.0
    %4627 = vmatpush1.msra.mxu0 %v3426
    %4628 = vmatprep.subr.mxu0 0.0
    %4629 = vmatpush1.msra.mxu0 0.0
    %4630 = vmatprep.subr.mxu0 0.0
    %4631 = vmatpush1.msra.mxu0 0.0
    %4632 = vmatprep.subr.mxu0 0.0
    %4633 = vmatpush1.msra.mxu0 0.0
    %4634 = vmatprep.subr.mxu0 0.0
    %4635 = vmatpush1.msra.mxu0 0.0
    %4636 = vmatprep.subr.mxu0 0.0
    %4637 = vmatpush1.msra.mxu0 0.0
    %4638 = vmatprep.subr.mxu0 0.0
    %4639 = vmatpush1.msra.mxu0 0.0
    %4640 = vmatprep.subr.mxu0 0.0
    %4641 = vmatpush1.msra.mxu0 0.0
    %4642 = vmatprep.subr.mxu0 0.0
    %4643 = vmatpush1.msra.mxu0 0.0
    %4644 = vmatprep.subr.mxu0 0.0
    %4645 = vmatpush1.msra.mxu0 0.0
    %4646 = vmatprep.subr.mxu0 0.0
    %4647 = vmatpush1.msra.mxu0 0.0
    %4648 = vmatprep.subr.mxu0 0.0
    %4649 = vmatpush1.msra.mxu0 0.0
    %4650 = vmatprep.subr.mxu0 0.0
    %4651 = vmatpush1.msra.mxu0 0.0
    %4652 = vmatprep.subr.mxu0 0.0
    %4653 = vmatpush1.msra.mxu0 0.0
    %4654 = vmatprep.subr.mxu0 0.0
    %4655 = vmatpush1.msra.mxu0 0.0
    %4656 = vmatprep.subr.mxu0 0.0
    %4657 = vmatpush1.msra.mxu0 0.0
    %4658 = vmatprep.subr.mxu0 0.0
    %4659 = vmatpush1.msra.mxu0 0.0
    %4660 = vmatprep.mubr.f32.mxu0 0.0
    %4661 = vmatmul.mubr.f32.gmra.mrb[0].mxu0 %v4525
    %v4662 = vpop.f32.mrb[0].mxu0
    %v4663 = vadd.f32 0.0, %v4662
    %v4664 = vpop.f32.mrb[0].mxu0
    %4665 = vdwg.mxu0
    %4666 = vmatprep.subr.mxu0 0.0
    %4667 = vmatpush1.msra.mxu0 %v3957
    %4668 = vmatprep.subr.mxu0 0.0
    %4669 = vmatpush1.msra.mxu0 %v3958
    %4670 = vmatprep.subr.mxu0 0.0
    %4671 = vmatpush1.msra.mxu0 %v3959
    %4672 = vmatprep.subr.mxu0 0.0
    %4673 = vmatpush1.msra.mxu0 %v3960
    %4674 = vmatprep.subr.mxu0 0.0
    %4675 = vmatpush1.msra.mxu0 %v3961
    %4676 = vmatprep.subr.mxu0 0.0
    %4677 = vmatpush1.msra.mxu0 %v3962
    %4678 = vmatprep.subr.mxu0 0.0
    %4679 = vmatpush1.msra.mxu0 %v3963
    %4680 = vmatprep.subr.mxu0 0.0
    %4681 = vmatpush1.msra.mxu0 %v3964
    %4682 = vmatprep.subr.mxu0 0.0
    %4683 = vmatpush1.msra.mxu0 %v3965
    %4684 = vmatprep.subr.mxu0 0.0
    %4685 = vmatpush1.msra.mxu0 %v3966
    %4686 = vmatprep.subr.mxu0 0.0
    %4687 = vmatpush1.msra.mxu0 %v3967
    %4688 = vmatprep.subr.mxu0 0.0
    %4689 = vmatpush1.msra.mxu0 %v3968
    %4690 = vmatprep.subr.mxu0 0.0
    %4691 = vmatpush1.msra.mxu0 %v3969
    %4692 = vmatprep.subr.mxu0 0.0
    %4693 = vmatpush1.msra.mxu0 %v3970
    %4694 = vmatprep.subr.mxu0 0.0
    %4695 = vmatpush1.msra.mxu0 %v3971
    %4696 = vmatprep.subr.mxu0 0.0
    %4697 = vmatpush1.msra.mxu0 %v3972
    %4698 = vmatprep.subr.mxu0 0.0
    %4699 = vmatpush1.msra.mxu0 0.0
    %4700 = vmatprep.subr.mxu0 0.0
    %4701 = vmatpush1.msra.mxu0 0.0
    %4702 = vmatprep.subr.mxu0 0.0
    %4703 = vmatpush1.msra.mxu0 0.0
    %4704 = vmatprep.subr.mxu0 0.0
    %4705 = vmatpush1.msra.mxu0 0.0
    %4706 = vmatprep.subr.mxu0 0.0
    %4707 = vmatpush1.msra.mxu0 0.0
    %4708 = vmatprep.subr.mxu0 0.0
    %4709 = vmatpush1.msra.mxu0 0.0
    %4710 = vmatprep.subr.mxu0 0.0
    %4711 = vmatpush1.msra.mxu0 0.0
    %4712 = vmatprep.subr.mxu0 0.0
    %4713 = vmatpush1.msra.mxu0 0.0
    %4714 = vmatprep.subr.mxu0 0.0
    %4715 = vmatpush1.msra.mxu0 0.0
    %4716 = vmatprep.subr.mxu0 0.0
    %4717 = vmatpush1.msra.mxu0 0.0
    %4718 = vmatprep.subr.mxu0 0.0
    %4719 = vmatpush1.msra.mxu0 0.0
    %4720 = vmatprep.subr.mxu0 0.0
    %4721 = vmatpush1.msra.mxu0 0.0
    %4722 = vmatprep.subr.mxu0 0.0
    %4723 = vmatpush1.msra.mxu0 0.0
    %4724 = vmatprep.subr.mxu0 0.0
    %4725 = vmatpush1.msra.mxu0 0.0
    %4726 = vmatprep.subr.mxu0 0.0
    %4727 = vmatpush1.msra.mxu0 0.0
    %4728 = vmatprep.subr.mxu0 0.0
    %4729 = vmatpush1.msra.mxu0 0.0
    %4730 = vmatprep.mubr.f32.mxu0 0.0
    %4731 = vmatmul.mubr.f32.gmra.mrb[0].mxu0 %v4525
    %v4732 = vpop.f32.mrb[0].mxu0
    %v4733 = vadd.f32 0.0, %v4732
    %v4734 = vpop.f32.mrb[0].mxu0
    %4735 = vdwg.mxu0
    %v4736 = vld [vmem:[#allocation2 + $0x78] sm:$0xff]
    %4737 = vmatprep.subr.mxu0 0.0
    %4738 = vmatpush1.msra.mxu0 %v4593
    %4739 = vmatprep.subr.mxu0 0.0
    %4740 = vmatpush1.msra.mxu0 %v4525
    %4741 = vmatprep.subr.mxu0 0.0
    %4742 = vmatpush1.msra.mxu0 %v4663
    %4743 = vmatprep.subr.mxu0 0.0
    %4744 = vmatpush1.msra.mxu0 %v4733
    %4745 = vmatprep.subr.mxu0 0.0
    %4746 = vmatpush1.msra.mxu0 0.0
    %4747 = vmatprep.subr.mxu0 0.0
    %4748 = vmatpush1.msra.mxu0 0.0
    %4749 = vmatprep.subr.mxu0 0.0
    %4750 = vmatpush1.msra.mxu0 0.0
    %4751 = vmatprep.subr.mxu0 0.0
    %4752 = vmatpush1.msra.mxu0 0.0
    %4753 = vmatprep.subr.mxu0 0.0
    %4754 = vmatpush1.msra.mxu0 0.0
    %4755 = vmatprep.subr.mxu0 0.0
    %4756 = vmatpush1.msra.mxu0 0.0
    %4757 = vmatprep.subr.mxu0 0.0
    %4758 = vmatpush1.msra.mxu0 0.0
    %4759 = vmatprep.subr.mxu0 0.0
    %4760 = vmatpush1.msra.mxu0 0.0
    %4761 = vmatprep.subr.mxu0 0.0
    %4762 = vmatpush1.msra.mxu0 0.0
    %4763 = vmatprep.subr.mxu0 0.0
    %4764 = vmatpush1.msra.mxu0 0.0
    %4765 = vmatprep.subr.mxu0 0.0
    %4766 = vmatpush1.msra.mxu0 0.0
    %4767 = vmatprep.subr.mxu0 0.0
    %4768 = vmatpush1.msra.mxu0 0.0
    %4769 = vmatprep.subr.mxu0 0.0
    %4770 = vmatpush1.msra.mxu0 0.0
    %4771 = vmatprep.subr.mxu0 0.0
    %4772 = vmatpush1.msra.mxu0 0.0
    %4773 = vmatprep.subr.mxu0 0.0
    %4774 = vmatpush1.msra.mxu0 0.0
    %4775 = vmatprep.subr.mxu0 0.0
    %4776 = vmatpush1.msra.mxu0 0.0
    %4777 = vmatprep.subr.mxu0 0.0
    %4778 = vmatpush1.msra.mxu0 0.0
    %4779 = vmatprep.subr.mxu0 0.0
    %4780 = vmatpush1.msra.mxu0 0.0
    %4781 = vmatprep.subr.mxu0 0.0
    %4782 = vmatpush1.msra.mxu0 0.0
    %4783 = vmatprep.subr.mxu0 0.0
    %4784 = vmatpush1.msra.mxu0 0.0
    %4785 = vmatprep.subr.mxu0 0.0
    %4786 = vmatpush1.msra.mxu0 0.0
    %4787 = vmatprep.subr.mxu0 0.0
    %4788 = vmatpush1.msra.mxu0 0.0
    %4789 = vmatprep.subr.mxu0 0.0
    %4790 = vmatpush1.msra.mxu0 0.0
    %4791 = vmatprep.subr.mxu0 0.0
    %4792 = vmatpush1.msra.mxu0 0.0
    %4793 = vmatprep.subr.mxu0 0.0
    %4794 = vmatpush1.msra.mxu0 0.0
    %4795 = vmatprep.subr.mxu0 0.0
    %4796 = vmatpush1.msra.mxu0 0.0
    %4797 = vmatprep.subr.mxu0 0.0
    %4798 = vmatpush1.msra.mxu0 0.0
    %4799 = vmatprep.subr.mxu0 0.0
    %4800 = vmatpush1.msra.mxu0 0.0
    %4801 = vmatprep.mubr.f32.mxu0 0.0
    %4802 = vmatmul.mubr.f32.gmra.mrb[0].mxu0 %v4736
    %v4803 = vpop.f32.mrb[0].mxu0
    %v4804 = vadd.f32 0.0, %v4803
    %v4805 = vpop.f32.mrb[0].mxu0
    %4806 = vdwg.mxu0
    %v4807 = vld [vmem:[#allocation4 + $0x78] sm:$0xff]
    %v4808 = vsel %vm645, %v4804, 0.0
    %4809 = vadd.xlane.f32.xlu0 %v4808
    %v4810 = vpop.xlane.xlu0 %4809
    %v4811 = vmul.f32 %v4804, %v4804
    %v4812 = vsel %vm645, %v4811, 0.0
    %4813 = vadd.xlane.f32.xlu0 %v4812
    %v4814 = vpop.xlane.xlu0 %4813
    %v4815 = vmul.f32 %v4810, 0.0078125
    %v4816 = vmul.f32 %v4814, 0.0078125
    %v4817 = vmul.f32 %v4815, %v4815
    %v4818 = vsub.f32 %v4816, %v4817
    %v4819 = vmax.f32 %v4818, 0.0
    %v4820 = vadd.f32 %v4819, 1e-05
    %v4821 = vrsqrt.pop %v4820
    %v4822 = vmul.f32 %v4821, %v4807
    %v4823 = vsub.f32 %v4804, %v4815
    %4825 = vset.pattern.permute.xlu0 0
    %4826 = vperm.xlu0 %4825, %v4822
    %v4827 = vpop.permute.xlu0 %4826
    %v4829 = vmul.f32 %v4823, %v4827
    %4831 = vset.pattern.permute.xlu0 1
    %4832 = vperm.xlu0 %4831, %v4807
    %v4833 = vpop.permute.xlu0 %4832
    %v4835 = vadd.f32 %v4829, %v4833
    %v4836 = vmax.f32 %v4835, 0.0
    %v4838 = vrot.slane %v1056, 4
    %v4840 = vsel %vm645, %v4836, %v4838
    %4841 = vmatprep.subr.mxu0 0.0
    %4842 = vmatpush1.msra.mxu0 %v3634
    %4843 = vmatprep.subr.mxu0 0.0
    %4844 = vmatpush1.msra.mxu0 %v3635
    %4845 = vmatprep.subr.mxu0 0.0
    %4846 = vmatpush1.msra.mxu0 %v3636
    %4847 = vmatprep.subr.mxu0 0.0
    %4848 = vmatpush1.msra.mxu0 %v3637
    %4849 = vmatprep.subr.mxu0 0.0
    %4850 = vmatpush1.msra.mxu0 %v3638
    %4851 = vmatprep.subr.mxu0 0.0
    %4852 = vmatpush1.msra.mxu0 %v3639
    %4853 = vmatprep.subr.mxu0 0.0
    %4854 = vmatpush1.msra.mxu0 %v3640
    %4855 = vmatprep.subr.mxu0 0.0
    %4856 = vmatpush1.msra.mxu0 %v3641
    %4857 = vmatprep.subr.mxu0 0.0
    %4858 = vmatpush1.msra.mxu0 %v3642
    %4859 = vmatprep.subr.mxu0 0.0
    %4860 = vmatpush1.msra.mxu0 %v3643
    %4861 = vmatprep.subr.mxu0 0.0
    %4862 = vmatpush1.msra.mxu0 %v3644
    %4863 = vmatprep.subr.mxu0 0.0
    %4864 = vmatpush1.msra.mxu0 %v3645
    %4865 = vmatprep.subr.mxu0 0.0
    %4866 = vmatpush1.msra.mxu0 %v3646
    %4867 = vmatprep.subr.mxu0 0.0
    %4868 = vmatpush1.msra.mxu0 %v3647
    %4869 = vmatprep.subr.mxu0 0.0
    %4870 = vmatpush1.msra.mxu0 %v3648
    %4871 = vmatprep.subr.mxu0 0.0
    %4872 = vmatpush1.msra.mxu0 %v3649
    %4873 = vmatprep.subr.mxu0 0.0
    %4874 = vmatpush1.msra.mxu0 0.0
    %4875 = vmatprep.subr.mxu0 0.0
    %4876 = vmatpush1.msra.mxu0 0.0
    %4877 = vmatprep.subr.mxu0 0.0
    %4878 = vmatpush1.msra.mxu0 0.0
    %4879 = vmatprep.subr.mxu0 0.0
    %4880 = vmatpush1.msra.mxu0 0.0
    %4881 = vmatprep.subr.mxu0 0.0
    %4882 = vmatpush1.msra.mxu0 0.0
    %4883 = vmatprep.subr.mxu0 0.0
    %4884 = vmatpush1.msra.mxu0 0.0
    %4885 = vmatprep.subr.mxu0 0.0
    %4886 = vmatpush1.msra.mxu0 0.0
    %4887 = vmatprep.subr.mxu0 0.0
    %4888 = vmatpush1.msra.mxu0 0.0
    %4889 = vmatprep.subr.mxu0 0.0
    %4890 = vmatpush1.msra.mxu0 0.0
    %4891 = vmatprep.subr.mxu0 0.0
    %4892 = vmatpush1.msra.mxu0 0.0
    %4893 = vmatprep.subr.mxu0 0.0
    %4894 = vmatpush1.msra.mxu0 0.0
    %4895 = vmatprep.subr.mxu0 0.0
    %4896 = vmatpush1.msra.mxu0 0.0
    %4897 = vmatprep.subr.mxu0 0.0
    %4898 = vmatpush1.msra.mxu0 0.0
    %4899 = vmatprep.subr.mxu0 0.0
    %4900 = vmatpush1.msra.mxu0 0.0
    %4901 = vmatprep.subr.mxu0 0.0
    %4902 = vmatpush1.msra.mxu0 0.0
    %4903 = vmatprep.subr.mxu0 0.0
    %4904 = vmatpush1.msra.mxu0 0.0
    %4905 = vmatprep.mubr.f32.mxu0 0.0
    %4906 = vmatmul.mubr.f32.gmra.mrb[0].mxu0 %v4840
    %v4907 = vpop.f32.mrb[0].mxu0
    %v4908 = vadd.f32 0.0, %v4907
    %v4909 = vpop.f32.mrb[0].mxu0
    %4910 = vdwg.mxu0
    %4911 = vmatprep.subr.mxu0 0.0
    %4912 = vmatpush1.msra.mxu0 %v3758
    %4913 = vmatprep.subr.mxu0 0.0
    %4914 = vmatpush1.msra.mxu0 %v3759
    %4915 = vmatprep.subr.mxu0 0.0
    %4916 = vmatpush1.msra.mxu0 %v3760
    %4917 = vmatprep.subr.mxu0 0.0
    %4918 = vmatpush1.msra.mxu0 %v3761
    %4919 = vmatprep.subr.mxu0 0.0
    %4920 = vmatpush1.msra.mxu0 %v3762
    %4921 = vmatprep.subr.mxu0 0.0
    %4922 = vmatpush1.msra.mxu0 %v3763
    %4923 = vmatprep.subr.mxu0 0.0
    %4924 = vmatpush1.msra.mxu0 %v3764
    %4925 = vmatprep.subr.mxu0 0.0
    %4926 = vmatpush1.msra.mxu0 %v3765
    %4927 = vmatprep.subr.mxu0 0.0
    %4928 = vmatpush1.msra.mxu0 %v3766
    %4929 = vmatprep.subr.mxu0 0.0
    %4930 = vmatpush1.msra.mxu0 %v3767
    %4931 = vmatprep.subr.mxu0 0.0
    %4932 = vmatpush1.msra.mxu0 %v3768
    %4933 = vmatprep.subr.mxu0 0.0
    %4934 = vmatpush1.msra.mxu0 %v3769
    %4935 = vmatprep.subr.mxu0 0.0
    %4936 = vmatpush1.msra.mxu0 %v3770
    %4937 = vmatprep.subr.mxu0 0.0
    %4938 = vmatpush1.msra.mxu0 %v3771
    %4939 = vmatprep.subr.mxu0 0.0
    %4940 = vmatpush1.msra.mxu0 %v3772
    %4941 = vmatprep.subr.mxu0 0.0
    %4942 = vmatpush1.msra.mxu0 %v3773
    %4943 = vmatprep.subr.mxu0 0.0
    %4944 = vmatpush1.msra.mxu0 0.0
    %4945 = vmatprep.subr.mxu0 0.0
    %4946 = vmatpush1.msra.mxu0 0.0
    %4947 = vmatprep.subr.mxu0 0.0
    %4948 = vmatpush1.msra.mxu0 0.0
    %4949 = vmatprep.subr.mxu0 0.0
    %4950 = vmatpush1.msra.mxu0 0.0
    %4951 = vmatprep.subr.mxu0 0.0
    %4952 = vmatpush1.msra.mxu0 0.0
    %4953 = vmatprep.subr.mxu0 0.0
    %4954 = vmatpush1.msra.mxu0 0.0
    %4955 = vmatprep.subr.mxu0 0.0
    %4956 = vmatpush1.msra.mxu0 0.0
    %4957 = vmatprep.subr.mxu0 0.0
    %4958 = vmatpush1.msra.mxu0 0.0
    %4959 = vmatprep.subr.mxu0 0.0
    %4960 = vmatpush1.msra.mxu0 0.0
    %4961 = vmatprep.subr.mxu0 0.0
    %4962 = vmatpush1.msra.mxu0 0.0
    %4963 = vmatprep.subr.mxu0 0.0
    %4964 = vmatpush1.msra.mxu0 0.0
    %4965 = vmatprep.subr.mxu0 0.0
    %4966 = vmatpush1.msra.mxu0 0.0
    %4967 = vmatprep.subr.mxu0 0.0
    %4968 = vmatpush1.msra.mxu0 0.0
    %4969 = vmatprep.subr.mxu0 0.0
    %4970 = vmatpush1.msra.mxu0 0.0
    %4971 = vmatprep.subr.mxu0 0.0
    %4972 = vmatpush1.msra.mxu0 0.0
    %4973 = vmatprep.subr.mxu0 0.0
    %4974 = vmatpush1.msra.mxu0 0.0
    %4975 = vmatprep.mubr.f32.mxu0 0.0
    %4976 = vmatmul.mubr.f32.gmra.mrb[0].mxu0 %v4840
    %v4977 = vpop.f32.mrb[0].mxu0
    %v4978 = vadd.f32 0.0, %v4977
    %v4979 = vpop.f32.mrb[0].mxu0
    %4980 = vdwg.mxu0
    %4981 = vmatprep.subr.mxu0 0.0
    %4982 = vmatpush1.msra.mxu0 %v3411
    %4983 = vmatprep.subr.mxu0 0.0
    %4984 = vmatpush1.msra.mxu0 %v3412
    %4985 = vmatprep.subr.mxu0 0.0
    %4986 = vmatpush1.msra.mxu0 %v3413
    %4987 = vmatprep.subr.mxu0 0.0
    %4988 = vmatpush1.msra.mxu0 %v3414
    %4989 = vmatprep.subr.mxu0 0.0
    %4990 = vmatpush1.msra.mxu0 %v3415
    %4991 = vmatprep.subr.mxu0 0.0
    %4992 = vmatpush1.msra.mxu0 %v3416
    %4993 = vmatprep.subr.mxu0 0.0
    %4994 = vmatpush1.msra.mxu0 %v3417
    %4995 = vmatprep.subr.mxu0 0.0
    %4996 = vmatpush1.msra.mxu0 %v3418
    %4997 = vmatprep.subr.mxu0 0.0
    %4998 = vmatpush1.msra.mxu0 %v3419
    %4999 = vmatprep.subr.mxu0 0.0
    %5000 = vmatpush1.msra.mxu0 %v3420
    %5001 = vmatprep.subr.mxu0 0.0
    %5002 = vmatpush1.msra.mxu0 %v3421
    %5003 = vmatprep.subr.mxu0 0.0
    %5004 = vmatpush1.msra.mxu0 %v3422
    %5005 = vmatprep.subr.mxu0 0.0
    %5006 = vmatpush1.msra.mxu0 %v3423
    %5007 = vmatprep.subr.mxu0 0.0
    %5008 = vmatpush1.msra.mxu0 %v3424
    %5009 = vmatprep.subr.mxu0 0.0
    %5010 = vmatpush1.msra.mxu0 %v3425
    %5011 = vmatprep.subr.mxu0 0.0
    %5012 = vmatpush1.msra.mxu0 %v3426
    %5013 = vmatprep.subr.mxu0 0.0
    %5014 = vmatpush1.msra.mxu0 0.0
    %5015 = vmatprep.subr.mxu0 0.0
    %5016 = vmatpush1.msra.mxu0 0.0
    %5017 = vmatprep.subr.mxu0 0.0
    %5018 = vmatpush1.msra.mxu0 0.0
    %5019 = vmatprep.subr.mxu0 0.0
    %5020 = vmatpush1.msra.mxu0 0.0
    %5021 = vmatprep.subr.mxu0 0.0
    %5022 = vmatpush1.msra.mxu0 0.0
    %5023 = vmatprep.subr.mxu0 0.0
    %5024 = vmatpush1.msra.mxu0 0.0
    %5025 = vmatprep.subr.mxu0 0.0
    %5026 = vmatpush1.msra.mxu0 0.0
    %5027 = vmatprep.subr.mxu0 0.0
    %5028 = vmatpush1.msra.mxu0 0.0
    %5029 = vmatprep.subr.mxu0 0.0
    %5030 = vmatpush1.msra.mxu0 0.0
    %5031 = vmatprep.subr.mxu0 0.0
    %5032 = vmatpush1.msra.mxu0 0.0
    %5033 = vmatprep.subr.mxu0 0.0
    %5034 = vmatpush1.msra.mxu0 0.0
    %5035 = vmatprep.subr.mxu0 0.0
    %5036 = vmatpush1.msra.mxu0 0.0
    %5037 = vmatprep.subr.mxu0 0.0
    %5038 = vmatpush1.msra.mxu0 0.0
    %5039 = vmatprep.subr.mxu0 0.0
    %5040 = vmatpush1.msra.mxu0 0.0
    %5041 = vmatprep.subr.mxu0 0.0
    %5042 = vmatpush1.msra.mxu0 0.0
    %5043 = vmatprep.subr.mxu0 0.0
    %5044 = vmatpush1.msra.mxu0 0.0
    %5045 = vmatprep.mubr.f32.mxu0 0.0
    %5046 = vmatmul.mubr.f32.gmra.mrb[0].mxu0 %v4840
    %v5047 = vpop.f32.mrb[0].mxu0
    %v5048 = vadd.f32 0.0, %v5047
    %v5049 = vpop.f32.mrb[0].mxu0
    %5050 = vdwg.mxu0
    %5051 = vmatprep.subr.mxu0 0.0
    %5052 = vmatpush1.msra.mxu0 %v3957
    %5053 = vmatprep.subr.mxu0 0.0
    %5054 = vmatpush1.msra.mxu0 %v3958
    %5055 = vmatprep.subr.mxu0 0.0
    %5056 = vmatpush1.msra.mxu0 %v3959
    %5057 = vmatprep.subr.mxu0 0.0
    %5058 = vmatpush1.msra.mxu0 %v3960
    %5059 = vmatprep.subr.mxu0 0.0
    %5060 = vmatpush1.msra.mxu0 %v3961
    %5061 = vmatprep.subr.mxu0 0.0
    %5062 = vmatpush1.msra.mxu0 %v3962
    %5063 = vmatprep.subr.mxu0 0.0
    %5064 = vmatpush1.msra.mxu0 %v3963
    %5065 = vmatprep.subr.mxu0 0.0
    %5066 = vmatpush1.msra.mxu0 %v3964
    %5067 = vmatprep.subr.mxu0 0.0
    %5068 = vmatpush1.msra.mxu0 %v3965
    %5069 = vmatprep.subr.mxu0 0.0
    %5070 = vmatpush1.msra.mxu0 %v3966
    %5071 = vmatprep.subr.mxu0 0.0
    %5072 = vmatpush1.msra.mxu0 %v3967
    %5073 = vmatprep.subr.mxu0 0.0
    %5074 = vmatpush1.msra.mxu0 %v3968
    %5075 = vmatprep.subr.mxu0 0.0
    %5076 = vmatpush1.msra.mxu0 %v3969
    %5077 = vmatprep.subr.mxu0 0.0
    %5078 = vmatpush1.msra.mxu0 %v3970
    %5079 = vmatprep.subr.mxu0 0.0
    %5080 = vmatpush1.msra.mxu0 %v3971
    %5081 = vmatprep.subr.mxu0 0.0
    %5082 = vmatpush1.msra.mxu0 %v3972
    %5083 = vmatprep.subr.mxu0 0.0
    %5084 = vmatpush1.msra.mxu0 0.0
    %5085 = vmatprep.subr.mxu0 0.0
    %5086 = vmatpush1.msra.mxu0 0.0
    %5087 = vmatprep.subr.mxu0 0.0
    %5088 = vmatpush1.msra.mxu0 0.0
    %5089 = vmatprep.subr.mxu0 0.0
    %5090 = vmatpush1.msra.mxu0 0.0
    %5091 = vmatprep.subr.mxu0 0.0
    %5092 = vmatpush1.msra.mxu0 0.0
    %5093 = vmatprep.subr.mxu0 0.0
    %5094 = vmatpush1.msra.mxu0 0.0
    %5095 = vmatprep.subr.mxu0 0.0
    %5096 = vmatpush1.msra.mxu0 0.0
    %5097 = vmatprep.subr.mxu0 0.0
    %5098 = vmatpush1.msra.mxu0 0.0
    %5099 = vmatprep.subr.mxu0 0.0
    %5100 = vmatpush1.msra.mxu0 0.0
    %5101 = vmatprep.subr.mxu0 0.0
    %5102 = vmatpush1.msra.mxu0 0.0
    %5103 = vmatprep.subr.mxu0 0.0
    %5104 = vmatpush1.msra.mxu0 0.0
    %5105 = vmatprep.subr.mxu0 0.0
    %5106 = vmatpush1.msra.mxu0 0.0
    %5107 = vmatprep.subr.mxu0 0.0
    %5108 = vmatpush1.msra.mxu0 0.0
    %5109 = vmatprep.subr.mxu0 0.0
    %5110 = vmatpush1.msra.mxu0 0.0
    %5111 = vmatprep.subr.mxu0 0.0
    %5112 = vmatpush1.msra.mxu0 0.0
    %5113 = vmatprep.subr.mxu0 0.0
    %5114 = vmatpush1.msra.mxu0 0.0
    %5115 = vmatprep.mubr.f32.mxu0 0.0
    %5116 = vmatmul.mubr.f32.gmra.mrb[0].mxu0 %v4840
    %v5117 = vpop.f32.mrb[0].mxu0
    %v5118 = vadd.f32 0.0, %v5117
    %v5119 = vpop.f32.mrb[0].mxu0
    %5120 = vdwg.mxu0
    %v5121 = vld [vmem:[#allocation2 + $0x80] sm:$0xff]
    %5122 = vmatprep.subr.mxu0 0.0
    %5123 = vmatpush1.msra.mxu0 %v4908
    %5124 = vmatprep.subr.mxu0 0.0
    %5125 = vmatpush1.msra.mxu0 %v4978
    %5126 = vmatprep.subr.mxu0 0.0
    %5127 = vmatpush1.msra.mxu0 %v4840
    %5128 = vmatprep.subr.mxu0 0.0
    %5129 = vmatpush1.msra.mxu0 %v5048
    %5130 = vmatprep.subr.mxu0 0.0
    %5131 = vmatpush1.msra.mxu0 %v5118
    %5132 = vmatprep.subr.mxu0 0.0
    %5133 = vmatpush1.msra.mxu0 0.0
    %5134 = vmatprep.subr.mxu0 0.0
    %5135 = vmatpush1.msra.mxu0 0.0
    %5136 = vmatprep.subr.mxu0 0.0
    %5137 = vmatpush1.msra.mxu0 0.0
    %5138 = vmatprep.subr.mxu0 0.0
    %5139 = vmatpush1.msra.mxu0 0.0
    %5140 = vmatprep.subr.mxu0 0.0
    %5141 = vmatpush1.msra.mxu0 0.0
    %5142 = vmatprep.subr.mxu0 0.0
    %5143 = vmatpush1.msra.mxu0 0.0
    %5144 = vmatprep.subr.mxu0 0.0
    %5145 = vmatpush1.msra.mxu0 0.0
    %5146 = vmatprep.subr.mxu0 0.0
    %5147 = vmatpush1.msra.mxu0 0.0
    %5148 = vmatprep.subr.mxu0 0.0
    %5149 = vmatpush1.msra.mxu0 0.0
    %5150 = vmatprep.subr.mxu0 0.0
    %5151 = vmatpush1.msra.mxu0 0.0
    %5152 = vmatprep.subr.mxu0 0.0
    %5153 = vmatpush1.msra.mxu0 0.0
    %5154 = vmatprep.subr.mxu0 0.0
    %5155 = vmatpush1.msra.mxu0 0.0
    %5156 = vmatprep.subr.mxu0 0.0
    %5157 = vmatpush1.msra.mxu0 0.0
    %5158 = vmatprep.subr.mxu0 0.0
    %5159 = vmatpush1.msra.mxu0 0.0
    %5160 = vmatprep.subr.mxu0 0.0
    %5161 = vmatpush1.msra.mxu0 0.0
    %5162 = vmatprep.subr.mxu0 0.0
    %5163 = vmatpush1.msra.mxu0 0.0
    %5164 = vmatprep.subr.mxu0 0.0
    %5165 = vmatpush1.msra.mxu0 0.0
    %5166 = vmatprep.subr.mxu0 0.0
    %5167 = vmatpush1.msra.mxu0 0.0
    %5168 = vmatprep.subr.mxu0 0.0
    %5169 = vmatpush1.msra.mxu0 0.0
    %5170 = vmatprep.subr.mxu0 0.0
    %5171 = vmatpush1.msra.mxu0 0.0
    %5172 = vmatprep.subr.mxu0 0.0
    %5173 = vmatpush1.msra.mxu0 0.0
    %5174 = vmatprep.subr.mxu0 0.0
    %5175 = vmatpush1.msra.mxu0 0.0
    %5176 = vmatprep.subr.mxu0 0.0
    %5177 = vmatpush1.msra.mxu0 0.0
    %5178 = vmatprep.subr.mxu0 0.0
    %5179 = vmatpush1.msra.mxu0 0.0
    %5180 = vmatprep.subr.mxu0 0.0
    %5181 = vmatpush1.msra.mxu0 0.0
    %5182 = vmatprep.subr.mxu0 0.0
    %5183 = vmatpush1.msra.mxu0 0.0
    %5184 = vmatprep.subr.mxu0 0.0
    %5185 = vmatpush1.msra.mxu0 0.0
    %5186 = vmatprep.mubr.f32.mxu0 0.0
    %5187 = vmatmul.mubr.f32.gmra.mrb[0].mxu0 %v5121
    %v5188 = vpop.f32.mrb[0].mxu0
    %v5189 = vadd.f32 0.0, %v5188
    %v5190 = vpop.f32.mrb[0].mxu0
    %5191 = vdwg.mxu0
    %v5192 = vld [vmem:[#allocation4 + $0x80] sm:$0xff]
    %v5193 = vsel %vm645, %v5189, 0.0
    %5194 = vadd.xlane.f32.xlu0 %v5193
    %v5195 = vpop.xlane.xlu0 %5194
    %v5196 = vmul.f32 %v5189, %v5189
    %v5197 = vsel %vm645, %v5196, 0.0
    %5198 = vadd.xlane.f32.xlu0 %v5197
    %v5199 = vpop.xlane.xlu0 %5198
    %v5200 = vmul.f32 %v5195, 0.0078125
    %v5201 = vmul.f32 %v5199, 0.0078125
    %v5202 = vmul.f32 %v5200, %v5200
    %v5203 = vsub.f32 %v5201, %v5202
    %v5204 = vmax.f32 %v5203, 0.0
    %v5205 = vadd.f32 %v5204, 1e-05
    %v5206 = vrsqrt.pop %v5205
    %v5207 = vmul.f32 %v5206, %v5192
    %v5208 = vsub.f32 %v5189, %v5200
    %5210 = vset.pattern.permute.xlu0 0
    %5211 = vperm.xlu0 %5210, %v5207
    %v5212 = vpop.permute.xlu0 %5211
    %v5214 = vmul.f32 %v5208, %v5212
    %5216 = vset.pattern.permute.xlu0 1
    %5217 = vperm.xlu0 %5216, %v5192
    %v5218 = vpop.permute.xlu0 %5217
    %v5220 = vadd.f32 %v5214, %v5218
    %v5221 = vmax.f32 %v5220, 0.0
    %v5222 = vsel %vm645, %v5221, 0.0
    %5223 = vmatprep.subr.mxu0 0.0
    %5224 = vmatpush1.msra.mxu0 %v3634
    %5225 = vmatprep.subr.mxu0 0.0
    %5226 = vmatpush1.msra.mxu0 %v3635
    %5227 = vmatprep.subr.mxu0 0.0
    %5228 = vmatpush1.msra.mxu0 %v3636
    %5229 = vmatprep.subr.mxu0 0.0
    %5230 = vmatpush1.msra.mxu0 %v3637
    %5231 = vmatprep.subr.mxu0 0.0
    %5232 = vmatpush1.msra.mxu0 %v3638
    %5233 = vmatprep.subr.mxu0 0.0
    %5234 = vmatpush1.msra.mxu0 %v3639
    %5235 = vmatprep.subr.mxu0 0.0
    %5236 = vmatpush1.msra.mxu0 %v3640
    %5237 = vmatprep.subr.mxu0 0.0
    %5238 = vmatpush1.msra.mxu0 %v3641
    %5239 = vmatprep.subr.mxu0 0.0
    %5240 = vmatpush1.msra.mxu0 %v3642
    %5241 = vmatprep.subr.mxu0 0.0
    %5242 = vmatpush1.msra.mxu0 %v3643
    %5243 = vmatprep.subr.mxu0 0.0
    %5244 = vmatpush1.msra.mxu0 %v3644
    %5245 = vmatprep.subr.mxu0 0.0
    %5246 = vmatpush1.msra.mxu0 %v3645
    %5247 = vmatprep.subr.mxu0 0.0
    %5248 = vmatpush1.msra.mxu0 %v3646
    %5249 = vmatprep.subr.mxu0 0.0
    %5250 = vmatpush1.msra.mxu0 %v3647
    %5251 = vmatprep.subr.mxu0 0.0
    %5252 = vmatpush1.msra.mxu0 %v3648
    %5253 = vmatprep.subr.mxu0 0.0
    %5254 = vmatpush1.msra.mxu0 %v3649
    %5255 = vmatprep.subr.mxu0 0.0
    %5256 = vmatpush1.msra.mxu0 0.0
    %5257 = vmatprep.subr.mxu0 0.0
    %5258 = vmatpush1.msra.mxu0 0.0
    %5259 = vmatprep.subr.mxu0 0.0
    %5260 = vmatpush1.msra.mxu0 0.0
    %5261 = vmatprep.subr.mxu0 0.0
    %5262 = vmatpush1.msra.mxu0 0.0
    %5263 = vmatprep.subr.mxu0 0.0
    %5264 = vmatpush1.msra.mxu0 0.0
    %5265 = vmatprep.subr.mxu0 0.0
    %5266 = vmatpush1.msra.mxu0 0.0
    %5267 = vmatprep.subr.mxu0 0.0
    %5268 = vmatpush1.msra.mxu0 0.0
    %5269 = vmatprep.subr.mxu0 0.0
    %5270 = vmatpush1.msra.mxu0 0.0
    %5271 = vmatprep.subr.mxu0 0.0
    %5272 = vmatpush1.msra.mxu0 0.0
    %5273 = vmatprep.subr.mxu0 0.0
    %5274 = vmatpush1.msra.mxu0 0.0
    %5275 = vmatprep.subr.mxu0 0.0
    %5276 = vmatpush1.msra.mxu0 0.0
    %5277 = vmatprep.subr.mxu0 0.0
    %5278 = vmatpush1.msra.mxu0 0.0
    %5279 = vmatprep.subr.mxu0 0.0
    %5280 = vmatpush1.msra.mxu0 0.0
    %5281 = vmatprep.subr.mxu0 0.0
    %5282 = vmatpush1.msra.mxu0 0.0
    %5283 = vmatprep.subr.mxu0 0.0
    %5284 = vmatpush1.msra.mxu0 0.0
    %5285 = vmatprep.subr.mxu0 0.0
    %5286 = vmatpush1.msra.mxu0 0.0
    %5287 = vmatprep.mubr.f32.mxu0 0.0
    %5288 = vmatmul.mubr.f32.gmra.mrb[0].mxu0 %v5222
    %v5289 = vpop.f32.mrb[0].mxu0
    %v5290 = vadd.f32 0.0, %v5289
    %v5291 = vpop.f32.mrb[0].mxu0
    %5292 = vdwg.mxu0
    %5293 = vmatprep.subr.mxu0 0.0
    %5294 = vmatpush1.msra.mxu0 %v3758
    %5295 = vmatprep.subr.mxu0 0.0
    %5296 = vmatpush1.msra.mxu0 %v3759
    %5297 = vmatprep.subr.mxu0 0.0
    %5298 = vmatpush1.msra.mxu0 %v3760
    %5299 = vmatprep.subr.mxu0 0.0
    %5300 = vmatpush1.msra.mxu0 %v3761
    %5301 = vmatprep.subr.mxu0 0.0
    %5302 = vmatpush1.msra.mxu0 %v3762
    %5303 = vmatprep.subr.mxu0 0.0
    %5304 = vmatpush1.msra.mxu0 %v3763
    %5305 = vmatprep.subr.mxu0 0.0
    %5306 = vmatpush1.msra.mxu0 %v3764
    %5307 = vmatprep.subr.mxu0 0.0
    %5308 = vmatpush1.msra.mxu0 %v3765
    %5309 = vmatprep.subr.mxu0 0.0
    %5310 = vmatpush1.msra.mxu0 %v3766
    %5311 = vmatprep.subr.mxu0 0.0
    %5312 = vmatpush1.msra.mxu0 %v3767
    %5313 = vmatprep.subr.mxu0 0.0
    %5314 = vmatpush1.msra.mxu0 %v3768
    %5315 = vmatprep.subr.mxu0 0.0
    %5316 = vmatpush1.msra.mxu0 %v3769
    %5317 = vmatprep.subr.mxu0 0.0
    %5318 = vmatpush1.msra.mxu0 %v3770
    %5319 = vmatprep.subr.mxu0 0.0
    %5320 = vmatpush1.msra.mxu0 %v3771
    %5321 = vmatprep.subr.mxu0 0.0
    %5322 = vmatpush1.msra.mxu0 %v3772
    %5323 = vmatprep.subr.mxu0 0.0
    %5324 = vmatpush1.msra.mxu0 %v3773
    %5325 = vmatprep.subr.mxu0 0.0
    %5326 = vmatpush1.msra.mxu0 0.0
    %5327 = vmatprep.subr.mxu0 0.0
    %5328 = vmatpush1.msra.mxu0 0.0
    %5329 = vmatprep.subr.mxu0 0.0
    %5330 = vmatpush1.msra.mxu0 0.0
    %5331 = vmatprep.subr.mxu0 0.0
    %5332 = vmatpush1.msra.mxu0 0.0
    %5333 = vmatprep.subr.mxu0 0.0
    %5334 = vmatpush1.msra.mxu0 0.0
    %5335 = vmatprep.subr.mxu0 0.0
    %5336 = vmatpush1.msra.mxu0 0.0
    %5337 = vmatprep.subr.mxu0 0.0
    %5338 = vmatpush1.msra.mxu0 0.0
    %5339 = vmatprep.subr.mxu0 0.0
    %5340 = vmatpush1.msra.mxu0 0.0
    %5341 = vmatprep.subr.mxu0 0.0
    %5342 = vmatpush1.msra.mxu0 0.0
    %5343 = vmatprep.subr.mxu0 0.0
    %5344 = vmatpush1.msra.mxu0 0.0
    %5345 = vmatprep.subr.mxu0 0.0
    %5346 = vmatpush1.msra.mxu0 0.0
    %5347 = vmatprep.subr.mxu0 0.0
    %5348 = vmatpush1.msra.mxu0 0.0
    %5349 = vmatprep.subr.mxu0 0.0
    %5350 = vmatpush1.msra.mxu0 0.0
    %5351 = vmatprep.subr.mxu0 0.0
    %5352 = vmatpush1.msra.mxu0 0.0
    %5353 = vmatprep.subr.mxu0 0.0
    %5354 = vmatpush1.msra.mxu0 0.0
    %5355 = vmatprep.subr.mxu0 0.0
    %5356 = vmatpush1.msra.mxu0 0.0
    %5357 = vmatprep.mubr.f32.mxu0 0.0
    %5358 = vmatmul.mubr.f32.gmra.mrb[0].mxu0 %v5222
    %v5359 = vpop.f32.mrb[0].mxu0
    %v5360 = vadd.f32 0.0, %v5359
    %v5361 = vpop.f32.mrb[0].mxu0
    %5362 = vdwg.mxu0
    %5363 = vmatprep.subr.mxu0 0.0
    %5364 = vmatpush1.msra.mxu0 %v3411
    %5365 = vmatprep.subr.mxu0 0.0
    %5366 = vmatpush1.msra.mxu0 %v3412
    %5367 = vmatprep.subr.mxu0 0.0
    %5368 = vmatpush1.msra.mxu0 %v3413
    %5369 = vmatprep.subr.mxu0 0.0
    %5370 = vmatpush1.msra.mxu0 %v3414
    %5371 = vmatprep.subr.mxu0 0.0
    %5372 = vmatpush1.msra.mxu0 %v3415
    %5373 = vmatprep.subr.mxu0 0.0
    %5374 = vmatpush1.msra.mxu0 %v3416
    %5375 = vmatprep.subr.mxu0 0.0
    %5376 = vmatpush1.msra.mxu0 %v3417
    %5377 = vmatprep.subr.mxu0 0.0
    %5378 = vmatpush1.msra.mxu0 %v3418
    %5379 = vmatprep.subr.mxu0 0.0
    %5380 = vmatpush1.msra.mxu0 %v3419
    %5381 = vmatprep.subr.mxu0 0.0
    %5382 = vmatpush1.msra.mxu0 %v3420
    %5383 = vmatprep.subr.mxu0 0.0
    %5384 = vmatpush1.msra.mxu0 %v3421
    %5385 = vmatprep.subr.mxu0 0.0
    %5386 = vmatpush1.msra.mxu0 %v3422
    %5387 = vmatprep.subr.mxu0 0.0
    %5388 = vmatpush1.msra.mxu0 %v3423
    %5389 = vmatprep.subr.mxu0 0.0
    %5390 = vmatpush1.msra.mxu0 %v3424
    %5391 = vmatprep.subr.mxu0 0.0
    %5392 = vmatpush1.msra.mxu0 %v3425
    %5393 = vmatprep.subr.mxu0 0.0
    %5394 = vmatpush1.msra.mxu0 %v3426
    %5395 = vmatprep.subr.mxu0 0.0
    %5396 = vmatpush1.msra.mxu0 0.0
    %5397 = vmatprep.subr.mxu0 0.0
    %5398 = vmatpush1.msra.mxu0 0.0
    %5399 = vmatprep.subr.mxu0 0.0
    %5400 = vmatpush1.msra.mxu0 0.0
    %5401 = vmatprep.subr.mxu0 0.0
    %5402 = vmatpush1.msra.mxu0 0.0
    %5403 = vmatprep.subr.mxu0 0.0
    %5404 = vmatpush1.msra.mxu0 0.0
    %5405 = vmatprep.subr.mxu0 0.0
    %5406 = vmatpush1.msra.mxu0 0.0
    %5407 = vmatprep.subr.mxu0 0.0
    %5408 = vmatpush1.msra.mxu0 0.0
    %5409 = vmatprep.subr.mxu0 0.0
    %5410 = vmatpush1.msra.mxu0 0.0
    %5411 = vmatprep.subr.mxu0 0.0
    %5412 = vmatpush1.msra.mxu0 0.0
    %5413 = vmatprep.subr.mxu0 0.0
    %5414 = vmatpush1.msra.mxu0 0.0
    %5415 = vmatprep.subr.mxu0 0.0
    %5416 = vmatpush1.msra.mxu0 0.0
    %5417 = vmatprep.subr.mxu0 0.0
    %5418 = vmatpush1.msra.mxu0 0.0
    %5419 = vmatprep.subr.mxu0 0.0
    %5420 = vmatpush1.msra.mxu0 0.0
    %5421 = vmatprep.subr.mxu0 0.0
    %5422 = vmatpush1.msra.mxu0 0.0
    %5423 = vmatprep.subr.mxu0 0.0
    %5424 = vmatpush1.msra.mxu0 0.0
    %5425 = vmatprep.subr.mxu0 0.0
    %5426 = vmatpush1.msra.mxu0 0.0
    %5427 = vmatprep.mubr.f32.mxu0 0.0
    %5428 = vmatmul.mubr.f32.gmra.mrb[0].mxu0 %v5222
    %v5429 = vpop.f32.mrb[0].mxu0
    %v5430 = vadd.f32 0.0, %v5429
    %v5431 = vpop.f32.mrb[0].mxu0
    %5432 = vdwg.mxu0
    %5433 = vmatprep.subr.mxu0 0.0
    %5434 = vmatpush1.msra.mxu0 %v3957
    %5435 = vmatprep.subr.mxu0 0.0
    %5436 = vmatpush1.msra.mxu0 %v3958
    %5437 = vmatprep.subr.mxu0 0.0
    %5438 = vmatpush1.msra.mxu0 %v3959
    %5439 = vmatprep.subr.mxu0 0.0
    %5440 = vmatpush1.msra.mxu0 %v3960
    %5441 = vmatprep.subr.mxu0 0.0
    %5442 = vmatpush1.msra.mxu0 %v3961
    %5443 = vmatprep.subr.mxu0 0.0
    %5444 = vmatpush1.msra.mxu0 %v3962
    %5445 = vmatprep.subr.mxu0 0.0
    %5446 = vmatpush1.msra.mxu0 %v3963
    %5447 = vmatprep.subr.mxu0 0.0
    %5448 = vmatpush1.msra.mxu0 %v3964
    %5449 = vmatprep.subr.mxu0 0.0
    %5450 = vmatpush1.msra.mxu0 %v3965
    %5451 = vmatprep.subr.mxu0 0.0
    %5452 = vmatpush1.msra.mxu0 %v3966
    %5453 = vmatprep.subr.mxu0 0.0
    %5454 = vmatpush1.msra.mxu0 %v3967
    %5455 = vmatprep.subr.mxu0 0.0
    %5456 = vmatpush1.msra.mxu0 %v3968
    %5457 = vmatprep.subr.mxu0 0.0
    %5458 = vmatpush1.msra.mxu0 %v3969
    %5459 = vmatprep.subr.mxu0 0.0
    %5460 = vmatpush1.msra.mxu0 %v3970
    %5461 = vmatprep.subr.mxu0 0.0
    %5462 = vmatpush1.msra.mxu0 %v3971
    %5463 = vmatprep.subr.mxu0 0.0
    %5464 = vmatpush1.msra.mxu0 %v3972
    %5465 = vmatprep.subr.mxu0 0.0
    %5466 = vmatpush1.msra.mxu0 0.0
    %5467 = vmatprep.subr.mxu0 0.0
    %5468 = vmatpush1.msra.mxu0 0.0
    %5469 = vmatprep.subr.mxu0 0.0
    %5470 = vmatpush1.msra.mxu0 0.0
    %5471 = vmatprep.subr.mxu0 0.0
    %5472 = vmatpush1.msra.mxu0 0.0
    %5473 = vmatprep.subr.mxu0 0.0
    %5474 = vmatpush1.msra.mxu0 0.0
    %5475 = vmatprep.subr.mxu0 0.0
    %5476 = vmatpush1.msra.mxu0 0.0
    %5477 = vmatprep.subr.mxu0 0.0
    %5478 = vmatpush1.msra.mxu0 0.0
    %5479 = vmatprep.subr.mxu0 0.0
    %5480 = vmatpush1.msra.mxu0 0.0
    %5481 = vmatprep.subr.mxu0 0.0
    %5482 = vmatpush1.msra.mxu0 0.0
    %5483 = vmatprep.subr.mxu0 0.0
    %5484 = vmatpush1.msra.mxu0 0.0
    %5485 = vmatprep.subr.mxu0 0.0
    %5486 = vmatpush1.msra.mxu0 0.0
    %5487 = vmatprep.subr.mxu0 0.0
    %5488 = vmatpush1.msra.mxu0 0.0
    %5489 = vmatprep.subr.mxu0 0.0
    %5490 = vmatpush1.msra.mxu0 0.0
    %5491 = vmatprep.subr.mxu0 0.0
    %5492 = vmatpush1.msra.mxu0 0.0
    %5493 = vmatprep.subr.mxu0 0.0
    %5494 = vmatpush1.msra.mxu0 0.0
    %5495 = vmatprep.subr.mxu0 0.0
    %5496 = vmatpush1.msra.mxu0 0.0
    %5497 = vmatprep.mubr.f32.mxu0 0.0
    %5498 = vmatmul.mubr.f32.gmra.mrb[0].mxu0 %v5222
    %v5499 = vpop.f32.mrb[0].mxu0
    %v5500 = vadd.f32 0.0, %v5499
    %v5501 = vpop.f32.mrb[0].mxu0
    %5502 = vdwg.mxu0
    %v5503 = vld [vmem:[#allocation2 + $0x88] sm:$0xff]
    %5504 = vmatprep.subr.mxu0 0.0
    %5505 = vmatpush1.msra.mxu0 %v5290
    %5506 = vmatprep.subr.mxu0 0.0
    %5507 = vmatpush1.msra.mxu0 %v5360
    %5508 = vmatprep.subr.mxu0 0.0
    %5509 = vmatpush1.msra.mxu0 %v5222
    %5510 = vmatprep.subr.mxu0 0.0
    %5511 = vmatpush1.msra.mxu0 %v5430
    %5512 = vmatprep.subr.mxu0 0.0
    %5513 = vmatpush1.msra.mxu0 %v5500
    %5514 = vmatprep.subr.mxu0 0.0
    %5515 = vmatpush1.msra.mxu0 0.0
    %5516 = vmatprep.subr.mxu0 0.0
    %5517 = vmatpush1.msra.mxu0 0.0
    %5518 = vmatprep.subr.mxu0 0.0
    %5519 = vmatpush1.msra.mxu0 0.0
    %5520 = vmatprep.subr.mxu0 0.0
    %5521 = vmatpush1.msra.mxu0 0.0
    %5522 = vmatprep.subr.mxu0 0.0
    %5523 = vmatpush1.msra.mxu0 0.0
    %5524 = vmatprep.subr.mxu0 0.0
    %5525 = vmatpush1.msra.mxu0 0.0
    %5526 = vmatprep.subr.mxu0 0.0
    %5527 = vmatpush1.msra.mxu0 0.0
    %5528 = vmatprep.subr.mxu0 0.0
    %5529 = vmatpush1.msra.mxu0 0.0
    %5530 = vmatprep.subr.mxu0 0.0
    %5531 = vmatpush1.msra.mxu0 0.0
    %5532 = vmatprep.subr.mxu0 0.0
    %5533 = vmatpush1.msra.mxu0 0.0
    %5534 = vmatprep.subr.mxu0 0.0
    %5535 = vmatpush1.msra.mxu0 0.0
    %5536 = vmatprep.subr.mxu0 0.0
    %5537 = vmatpush1.msra.mxu0 0.0
    %5538 = vmatprep.subr.mxu0 0.0
    %5539 = vmatpush1.msra.mxu0 0.0
    %5540 = vmatprep.subr.mxu0 0.0
    %5541 = vmatpush1.msra.mxu0 0.0
    %5542 = vmatprep.subr.mxu0 0.0
    %5543 = vmatpush1.msra.mxu0 0.0
    %5544 = vmatprep.subr.mxu0 0.0
    %5545 = vmatpush1.msra.mxu0 0.0
    %5546 = vmatprep.subr.mxu0 0.0
    %5547 = vmatpush1.msra.mxu0 0.0
    %5548 = vmatprep.subr.mxu0 0.0
    %5549 = vmatpush1.msra.mxu0 0.0
    %5550 = vmatprep.subr.mxu0 0.0
    %5551 = vmatpush1.msra.mxu0 0.0
    %5552 = vmatprep.subr.mxu0 0.0
    %5553 = vmatpush1.msra.mxu0 0.0
    %5554 = vmatprep.subr.mxu0 0.0
    %5555 = vmatpush1.msra.mxu0 0.0
    %5556 = vmatprep.subr.mxu0 0.0
    %5557 = vmatpush1.msra.mxu0 0.0
    %5558 = vmatprep.subr.mxu0 0.0
    %5559 = vmatpush1.msra.mxu0 0.0
    %5560 = vmatprep.subr.mxu0 0.0
    %5561 = vmatpush1.msra.mxu0 0.0
    %5562 = vmatprep.subr.mxu0 0.0
    %5563 = vmatpush1.msra.mxu0 0.0
    %5564 = vmatprep.subr.mxu0 0.0
    %5565 = vmatpush1.msra.mxu0 0.0
    %5566 = vmatprep.subr.mxu0 0.0
    %5567 = vmatpush1.msra.mxu0 0.0
    %5568 = vmatprep.mubr.f32.mxu0 0.0
    %5569 = vmatmul.mubr.f32.gmra.mrb[0].mxu0 %v5503
    %v5570 = vpop.f32.mrb[0].mxu0
    %v5571 = vadd.f32 0.0, %v5570
    %v5572 = vpop.f32.mrb[0].mxu0
    %5573 = vdwg.mxu0
    %v5574 = vld [vmem:[#allocation4 + $0x88] sm:$0xff]
    %v5575 = vsel %vm645, %v5571, 0.0
    %5576 = vadd.xlane.f32.xlu0 %v5575
    %v5577 = vpop.xlane.xlu0 %5576
    %v5578 = vmul.f32 %v5571, %v5571
    %v5579 = vsel %vm645, %v5578, 0.0
    %5580 = vadd.xlane.f32.xlu0 %v5579
    %v5581 = vpop.xlane.xlu0 %5580
    %v5582 = vmul.f32 %v5577, 0.0078125
    %v5583 = vmul.f32 %v5581, 0.0078125
    %v5584 = vmul.f32 %v5582, %v5582
    %v5585 = vsub.f32 %v5583, %v5584
    %v5586 = vmax.f32 %v5585, 0.0
    %v5587 = vadd.f32 %v5586, 1e-05
    %v5588 = vrsqrt.pop %v5587
    %v5589 = vmul.f32 %v5588, %v5574
    %v5590 = vsub.f32 %v5571, %v5582
    %5592 = vset.pattern.permute.xlu0 0
    %5593 = vperm.xlu0 %5592, %v5589
    %v5594 = vpop.permute.xlu0 %5593
    %v5596 = vmul.f32 %v5590, %v5594
    %5598 = vset.pattern.permute.xlu0 1
    %5599 = vperm.xlu0 %5598, %v5574
    %v5600 = vpop.permute.xlu0 %5599
    %v5602 = vadd.f32 %v5596, %v5600
    %v5603 = vmax.f32 %v5602, 0.0
    %v5604 = vsel %vm645, %v5603, 0.0
    %v5605 = vld [vmem:[#allocation2 + $0x90] sm:$0xff]
    %5606 = vmatprep.subr.mxu0 0.0
    %5607 = vmatpush1.msra.mxu0 %v5604
    %5608 = vmatprep.subr.mxu0 0.0
    %5609 = vmatpush1.msra.mxu0 0.0
    %5610 = vmatprep.subr.mxu0 0.0
    %5611 = vmatpush1.msra.mxu0 0.0
    %5612 = vmatprep.subr.mxu0 0.0
    %5613 = vmatpush1.msra.mxu0 0.0
    %5614 = vmatprep.subr.mxu0 0.0
    %5615 = vmatpush1.msra.mxu0 0.0
    %5616 = vmatprep.subr.mxu0 0.0
    %5617 = vmatpush1.msra.mxu0 0.0
    %5618 = vmatprep.subr.mxu0 0.0
    %5619 = vmatpush1.msra.mxu0 0.0
    %5620 = vmatprep.subr.mxu0 0.0
    %5621 = vmatpush1.msra.mxu0 0.0
    %5622 = vmatprep.subr.mxu0 0.0
    %5623 = vmatpush1.msra.mxu0 0.0
    %5624 = vmatprep.subr.mxu0 0.0
    %5625 = vmatpush1.msra.mxu0 0.0
    %5626 = vmatprep.subr.mxu0 0.0
    %5627 = vmatpush1.msra.mxu0 0.0
    %5628 = vmatprep.subr.mxu0 0.0
    %5629 = vmatpush1.msra.mxu0 0.0
    %5630 = vmatprep.subr.mxu0 0.0
    %5631 = vmatpush1.msra.mxu0 0.0
    %5632 = vmatprep.subr.mxu0 0.0
    %5633 = vmatpush1.msra.mxu0 0.0
    %5634 = vmatprep.subr.mxu0 0.0
    %5635 = vmatpush1.msra.mxu0 0.0
    %5636 = vmatprep.subr.mxu0 0.0
    %5637 = vmatpush1.msra.mxu0 0.0
    %5638 = vmatprep.subr.mxu0 0.0
    %5639 = vmatpush1.msra.mxu0 0.0
    %5640 = vmatprep.subr.mxu0 0.0
    %5641 = vmatpush1.msra.mxu0 0.0
    %5642 = vmatprep.subr.mxu0 0.0
    %5643 = vmatpush1.msra.mxu0 0.0
    %5644 = vmatprep.subr.mxu0 0.0
    %5645 = vmatpush1.msra.mxu0 0.0
    %5646 = vmatprep.subr.mxu0 0.0
    %5647 = vmatpush1.msra.mxu0 0.0
    %5648 = vmatprep.subr.mxu0 0.0
    %5649 = vmatpush1.msra.mxu0 0.0
    %5650 = vmatprep.subr.mxu0 0.0
    %5651 = vmatpush1.msra.mxu0 0.0
    %5652 = vmatprep.subr.mxu0 0.0
    %5653 = vmatpush1.msra.mxu0 0.0
    %5654 = vmatprep.subr.mxu0 0.0
    %5655 = vmatpush1.msra.mxu0 0.0
    %5656 = vmatprep.subr.mxu0 0.0
    %5657 = vmatpush1.msra.mxu0 0.0
    %5658 = vmatprep.subr.mxu0 0.0
    %5659 = vmatpush1.msra.mxu0 0.0
    %5660 = vmatprep.subr.mxu0 0.0
    %5661 = vmatpush1.msra.mxu0 0.0
    %5662 = vmatprep.subr.mxu0 0.0
    %5663 = vmatpush1.msra.mxu0 0.0
    %5664 = vmatprep.subr.mxu0 0.0
    %5665 = vmatpush1.msra.mxu0 0.0
    %5666 = vmatprep.subr.mxu0 0.0
    %5667 = vmatpush1.msra.mxu0 0.0
    %5668 = vmatprep.subr.mxu0 0.0
    %5669 = vmatpush1.msra.mxu0 0.0
    %5670 = vmatprep.mubr.f32.mxu0 0.0
    %5671 = vmatmul.mubr.f32.gmra.mrb[0].mxu0 %v5605
    %v5672 = vpop.f32.mrb[0].mxu0
    %v5673 = vadd.f32 0.0, %v5672
    %v5674 = vpop.f32.mrb[0].mxu0
    %5675 = vdwg.mxu0
    %v5676 = vld [vmem:[#allocation4 + $0x90] sm:$0xff]
    %5678 = vset.pattern.permute.xlu0 0
    %5679 = vperm.xlu0 %5678, %v5676
    %v5680 = vpop.permute.xlu0 %5679
    %v5682 = vadd.f32 %v5673, %v5680
    %5683 = vst [vmem:[%s3] sm:$0x7] %v5682
    // Predicated region
    $region22: #{forward.1} parent=1 // pred_check
      _
    $region23: #{forward.1} parent=1 // pred_check_branch
      %5685 = sbr.rel (0) target = $region25
    $region24: #{forward.1} parent=1 // pred_region
      _
    $region25: #{forward.1} parent=1 // pred_fallthru
      _
    // Predicated region
    $region26: #{forward.1} parent=1 // pred_check
      _
    $region27: #{forward.1} parent=1 // pred_check_branch
      %5687 = sbr.rel (0) target = $region29
    $region28: #{forward.1} parent=1 // pred_region
      _
    $region29: #{forward.1} parent=1 // pred_fallthru
      _
    %5688 = vsyncpa [#allocation3], 1
    %5689 = vsyncpa [#allocation5], 1

</llo_original>
